<compile_context>
chip_gen: v5e
topology: v5e:2x2
jax: 0.10.0
libtpu: 0.0.40
codegen_flags: <defaults>
</compile_context>

<pallas_src>
import functools

import jax
import jax.numpy as jnp
from jax.experimental import pallas as pl
from jax.experimental.pallas import tpu as pltpu

INPUT_DIM = 1328
H1, H2, H3 = 1024, 512, 256
OUT_DIM = 128
BN_EPS = 1e-5


def _round_up(n, m):
    return ((n + m - 1) // m) * m


def _default_batch_tile():
    """128 on v5e (4x128 MXU saturates at M=128), 256 on v6e/v7x (2x256 MXU)."""
    try:
        kind = jax.devices()[0].device_kind.lower()
        if "v5 lite" in kind or "v5e" in kind or "v5lite" in kind:
            return 128
    except Exception:
        pass
    return 256


def _mlp_kernel(x_ref,
                w1_ref, b1_ref,
                w2_ref, b2_ref,
                w3_ref, b3_ref,
                w4_ref, b4_ref,
                o_ref,
                *, norm_flag: bool):
    # BN(eval) is already folded into the weights/biases on the host, so the body
    # is a pure Linear/ReLU chain.  MXU inputs are bf16; accumulation / bias-add /
    # ReLU stay in f32 (v5e has no bf16 VPU).
    x = x_ref[...].astype(jnp.bfloat16)

    h = jnp.dot(x, w1_ref[...], preferred_element_type=jnp.float32) + b1_ref[...]
    h = jnp.maximum(h, 0.0).astype(jnp.bfloat16)

    h = jnp.dot(h, w2_ref[...], preferred_element_type=jnp.float32) + b2_ref[...]
    h = jnp.maximum(h, 0.0).astype(jnp.bfloat16)

    h = jnp.dot(h, w3_ref[...], preferred_element_type=jnp.float32) + b3_ref[...]
    h = h.astype(jnp.bfloat16)          # no ReLU after the third Linear

    y = jnp.dot(h, w4_ref[...], preferred_element_type=jnp.float32) + b4_ref[...]

    if norm_flag:  # F.normalize(embedding, p=2, dim=1)
        inv = jax.lax.rsqrt(jnp.maximum(jnp.sum(y * y, axis=-1, keepdims=True), 1e-24))
        y = y * inv

    o_ref[...] = y.astype(o_ref.dtype)


def shared_encoder_forward(x, params, *, norm_flag=False, tm=None):
    """x: (B, INPUT_DIM) float32.  params: folded kernel params (see fold_params).

    Returns (B, OUT_DIM) float32.
    """
    B, D = x.shape
    assert D == INPUT_DIM, (D, INPUT_DIM)

    if tm is None:
        tm = _default_batch_tile()
    # Clamp the batch tile to the (sublane-rounded) batch so tiny batches don't
    # waste a full 256-row tile, then pad B up to a whole number of tiles.
    tm_eff = max(8, min(tm, _round_up(B, 8)))
    Bp = _round_up(B, tm_eff)
    if Bp != B:
        x = jnp.pad(x, ((0, Bp - B), (0, 0)))

    # x streams per grid step; weights/biases have constant block indices so Pallas
    # keeps them VMEM-resident (no re-DMA across grid steps).  Double-buffered bf16
    # weights are ~8 MiB -> fits every generation's VMEM.
    in_specs = [pl.BlockSpec((tm_eff, D), lambda i: (i, 0))]
    for p in params:
        in_specs.append(pl.BlockSpec(p.shape, lambda i: (0, 0)))
    out_spec = pl.BlockSpec((tm_eff, OUT_DIM), lambda i: (i, 0))

    kernel = functools.partial(_mlp_kernel, norm_flag=norm_flag)

    out = pl.pallas_call(
        kernel,
        out_shape=jax.ShapeDtypeStruct((Bp, OUT_DIM), jnp.float32),
        grid_spec=pltpu.PrefetchScalarGridSpec(
            num_scalar_prefetch=0,
            grid=(Bp // tm_eff,),
            in_specs=in_specs,
            out_specs=out_spec,
        ),
        compiler_params=pltpu.CompilerParams(
            dimension_semantics=("parallel",),
            # ~16 MiB actually used at tm=256; 48 MiB is valid on v7x (64 MiB VMEM)
            # and leaves the compiler spill headroom on all generations.
            vmem_limit_bytes=48 * 1024 * 1024,
        ),
    )(x, *params)

    return out[:B] if Bp != B else out


# ------------------------------------------------------------------------------
# Parameter construction (synthetic, PyTorch-equivalent shapes) + host-side folding
# ------------------------------------------------------------------------------

def make_raw_params(key):
    """Synthetic parameters matching the PyTorch module (weights stored (in, out))."""
    dims = [(INPUT_DIM, H1), (H1, H2), (H2, H3), (H3, OUT_DIM)]
    keys = iter(jax.random.split(key, 20))
    raw = []
    for li, (din, dout) in enumerate(dims):
        bound = 1.0 / (din ** 0.5)
        w = jax.random.uniform(next(keys), (din, dout), jnp.float32, -bound, bound)
        b = jax.random.uniform(next(keys), (1, dout), jnp.float32, -bound, bound)
        raw += [w, b]
        if li < 3:  # the first three Linears are followed by BatchNorm1d
            g = 1.0 + 0.1 * jax.random.normal(next(keys), (1, dout), jnp.float32)
            be = 0.1 * jax.random.normal(next(keys), (1, dout), jnp.float32)
            m = 0.05 * jax.random.normal(next(keys), (1, dout), jnp.float32)
            v = jnp.abs(1.0 + 0.1 * jax.random.normal(next(keys), (1, dout), jnp.float32))
            raw += [g, be, m, v]
    return tuple(raw)


def fold_params(raw):
    """Fold eval-mode BatchNorms into the adjacent Linears; cast weights to bf16.

    BN(h) = h*s + t with s = gamma/sqrt(var+eps), t = beta - mean*s.
      * BN1, BN2 (after a ReLU) are folded forward into the *next* Linear:
            W' = diag(s) @ W,  b' = b + t @ W
      * BN3 (no ReLU between Linear3 and BN3) is folded backward into Linear3:
            W3'' = diag(s2) @ W3 @ diag(s3),  b3'' = (t2 @ W3 + b3)*s3 + t3
    Folding is done in float32; only the matmul weights are cast to bf16.
    """
    (w1, b1, g1, be1, m1, v1,
     w2, b2, g2, be2, m2, v2,
     w3, b3, g3, be3, m3, v3,
     w4, b4) = raw

    def bn_scale_shift(g, be, m, v):
        s = g / jnp.sqrt(v + BN_EPS)
        return s, be - m * s

    s1, t1 = bn_scale_shift(g1, be1, m1, v1)
    s2, t2 = bn_scale_shift(g2, be2, m2, v2)
    s3, t3 = bn_scale_shift(g3, be3, m3, v3)

    w2f = s1.reshape(-1, 1) * w2
    b2f = b2 + t1 @ w2
    w3f = s2.reshape(-1, 1) * w3 * s3
    b3f = (t2 @ w3 + b3) * s3 + t3

    bf = lambda w: w.astype(jnp.bfloat16)
    f32 = lambda b: b.astype(jnp.float32)
    return (bf(w1), f32(b1),
            bf(w2f), f32(b2f),
            bf(w3f), f32(b3f),
            bf(w4), f32(b4))


def reference_forward(x, raw, norm_flag=False):
    """Pure-JAX f32 reference with eval-mode BatchNorm computed explicitly."""
    (w1, b1, g1, be1, m1, v1,
     w2, b2, g2, be2, m2, v2,
     w3, b3, g3, be3, m3, v3,
     w4, b4) = raw

    def bn(h, g, be, m, v):
        return (h - m) / jnp.sqrt(v + BN_EPS) * g + be

    h = bn(jnp.maximum(x @ w1 + b1, 0.0), g1, be1, m1, v1)
    h = bn(jnp.maximum(h @ w2 + b2, 0.0), g2, be2, m2, v2)
    h = bn(h @ w3 + b3, g3, be3, m3, v3)
    y = h @ w4 + b4
    if norm_flag:
        y = y / jnp.sqrt(jnp.maximum(jnp.sum(y * y, axis=-1, keepdims=True), 1e-24))
    return y


if __name__ == "__main__":
    key = jax.random.PRNGKey(0)
    kx, kp = jax.random.split(key)

    B = 20  # small, non-multiple-of-8 batch -> exercises the padded-tile path
    x = jax.random.normal(kx, (B, INPUT_DIM), jnp.float32)

    raw = make_raw_params(kp)
    params = fold_params(raw)

    out = shared_encoder_forward(x, params, norm_flag=False)
    out = jax.block_until_ready(out)

    ref = reference_forward(x, raw, norm_flag=False)
    assert out.shape == (B, OUT_DIM), out.shape
    err = float(jnp.max(jnp.abs(out - ref)))
    assert err < 2e-2, err  # bf16 MXU inputs, f32 accumulation vs. pure-f32 reference

    print("KERNEL_OK")
</pallas_src>

<mosaic_0001>
module attributes {stable_mosaic.version = 11 : i64} {
  func.func @_mlp_kernel(%arg0: i32, %arg1: memref<24x1328xf32, #tpu.memory_space<vmem>>, %arg2: memref<1328x1024xbf16, #tpu.memory_space<vmem>>, %arg3: memref<1x1024xf32, #tpu.memory_space<vmem>>, %arg4: memref<1024x512xbf16, #tpu.memory_space<vmem>>, %arg5: memref<1x512xf32, #tpu.memory_space<vmem>>, %arg6: memref<512x256xbf16, #tpu.memory_space<vmem>>, %arg7: memref<1x256xf32, #tpu.memory_space<vmem>>, %arg8: memref<256x128xbf16, #tpu.memory_space<vmem>>, %arg9: memref<1x128xf32, #tpu.memory_space<vmem>>, %arg10: memref<24x128xf32, #tpu.memory_space<vmem>>) attributes {dimension_semantics = [#tpu.dimension_semantics<parallel>], iteration_bounds = array<i64: 1>, scalar_prefetch = 0 : i64, scratch_operands = 0 : i64, tpu.core_type = #tpu.core_type<tc>, window_params = [{transform_indices = @transform_0, window_bounds = array<i64: 24, 1328>}, {pipeline_mode = #tpu.pipeline_mode<synchronous>, transform_indices = @transform_1, window_bounds = array<i64: 1328, 1024>}, {pipeline_mode = #tpu.pipeline_mode<synchronous>, transform_indices = @transform_2, window_bounds = array<i64: 1, 1024>}, {pipeline_mode = #tpu.pipeline_mode<synchronous>, transform_indices = @transform_3, window_bounds = array<i64: 1024, 512>}, {pipeline_mode = #tpu.pipeline_mode<synchronous>, transform_indices = @transform_4, window_bounds = array<i64: 1, 512>}, {pipeline_mode = #tpu.pipeline_mode<synchronous>, transform_indices = @transform_5, window_bounds = array<i64: 512, 256>}, {pipeline_mode = #tpu.pipeline_mode<synchronous>, transform_indices = @transform_6, window_bounds = array<i64: 1, 256>}, {pipeline_mode = #tpu.pipeline_mode<synchronous>, transform_indices = @transform_7, window_bounds = array<i64: 256, 128>}, {pipeline_mode = #tpu.pipeline_mode<synchronous>, transform_indices = @transform_8, window_bounds = array<i64: 1, 128>}, {transform_indices = @transform_9, window_bounds = array<i64: 24, 128>}]} {
    %c0 = arith.constant 0 : index
    %c0_0 = arith.constant 0 : index
    %0 = vector.load %arg1[%c0, %c0_0] : memref<24x1328xf32, #tpu.memory_space<vmem>>, vector<24x1328xf32>
    %1 = arith.truncf %0 : vector<24x1328xf32> to vector<24x1328xbf16>
    %c0_1 = arith.constant 0 : index
    %c0_2 = arith.constant 0 : index
    %2 = vector.load %arg2[%c0_1, %c0_2] : memref<1328x1024xbf16, #tpu.memory_space<vmem>>, vector<1328x1024xbf16>
    %cst = arith.constant dense<0.000000e+00> : vector<24x1024xf32>
    %3 = tpu.matmul %1, %2, %cst {dimension_numbers = #tpu.dot_dimension_numbers<[1], [0], [0], [1], [0, 0, 1, 1], [], []>} : vector<24x1328xbf16>, vector<1328x1024xbf16>, vector<24x1024xf32> -> vector<24x1024xf32>
    %c0_3 = arith.constant 0 : index
    %c0_4 = arith.constant 0 : index
    %4 = vector.load %arg3[%c0_3, %c0_4] : memref<1x1024xf32, #tpu.memory_space<vmem>>, vector<1x1024xf32>
    %5 = vector.broadcast %4 : vector<1x1024xf32> to vector<24x1024xf32>
    %6 = arith.addf %3, %5 : vector<24x1024xf32>
    %cst_5 = arith.constant 0.000000e+00 : f32
    %7 = vector.broadcast %cst_5 : f32 to vector<24x1024xf32>
    %8 = arith.maximumf %6, %7 : vector<24x1024xf32>
    %9 = arith.truncf %8 : vector<24x1024xf32> to vector<24x1024xbf16>
    %c0_6 = arith.constant 0 : index
    %c0_7 = arith.constant 0 : index
    %10 = vector.load %arg4[%c0_6, %c0_7] : memref<1024x512xbf16, #tpu.memory_space<vmem>>, vector<1024x512xbf16>
    %cst_8 = arith.constant dense<0.000000e+00> : vector<24x512xf32>
    %11 = tpu.matmul %9, %10, %cst_8 {dimension_numbers = #tpu.dot_dimension_numbers<[1], [0], [0], [1], [0, 0, 1, 1], [], []>} : vector<24x1024xbf16>, vector<1024x512xbf16>, vector<24x512xf32> -> vector<24x512xf32>
    %c0_9 = arith.constant 0 : index
    %c0_10 = arith.constant 0 : index
    %12 = vector.load %arg5[%c0_9, %c0_10] : memref<1x512xf32, #tpu.memory_space<vmem>>, vector<1x512xf32>
    %13 = vector.broadcast %12 : vector<1x512xf32> to vector<24x512xf32>
    %14 = arith.addf %11, %13 : vector<24x512xf32>
    %cst_11 = arith.constant 0.000000e+00 : f32
    %15 = vector.broadcast %cst_11 : f32 to vector<24x512xf32>
    %16 = arith.maximumf %14, %15 : vector<24x512xf32>
    %17 = arith.truncf %16 : vector<24x512xf32> to vector<24x512xbf16>
    %c0_12 = arith.constant 0 : index
    %c0_13 = arith.constant 0 : index
    %18 = vector.load %arg6[%c0_12, %c0_13] : memref<512x256xbf16, #tpu.memory_space<vmem>>, vector<512x256xbf16>
    %cst_14 = arith.constant dense<0.000000e+00> : vector<24x256xf32>
    %19 = tpu.matmul %17, %18, %cst_14 {dimension_numbers = #tpu.dot_dimension_numbers<[1], [0], [0], [1], [0, 0, 1, 1], [], []>} : vector<24x512xbf16>, vector<512x256xbf16>, vector<24x256xf32> -> vector<24x256xf32>
    %c0_15 = arith.constant 0 : index
    %c0_16 = arith.constant 0 : index
    %20 = vector.load %arg7[%c0_15, %c0_16] : memref<1x256xf32, #tpu.memory_space<vmem>>, vector<1x256xf32>
    %21 = vector.broadcast %20 : vector<1x256xf32> to vector<24x256xf32>
    %22 = arith.addf %19, %21 : vector<24x256xf32>
    %23 = arith.truncf %22 : vector<24x256xf32> to vector<24x256xbf16>
    %c0_17 = arith.constant 0 : index
    %c0_18 = arith.constant 0 : index
    %24 = vector.load %arg8[%c0_17, %c0_18] : memref<256x128xbf16, #tpu.memory_space<vmem>>, vector<256x128xbf16>
    %cst_19 = arith.constant dense<0.000000e+00> : vector<24x128xf32>
    %25 = tpu.matmul %23, %24, %cst_19 {dimension_numbers = #tpu.dot_dimension_numbers<[1], [0], [0], [1], [0, 0, 1, 1], [], []>} : vector<24x256xbf16>, vector<256x128xbf16>, vector<24x128xf32> -> vector<24x128xf32>
    %c0_20 = arith.constant 0 : index
    %c0_21 = arith.constant 0 : index
    %26 = vector.load %arg9[%c0_20, %c0_21] : memref<1x128xf32, #tpu.memory_space<vmem>>, vector<1x128xf32>
    %27 = vector.broadcast %26 : vector<1x128xf32> to vector<24x128xf32>
    %28 = arith.addf %25, %27 : vector<24x128xf32>
    %c0_22 = arith.constant 0 : index
    %c0_23 = arith.constant 0 : index
    %29 = vector.load %arg10[%c0_22, %c0_23] : memref<24x128xf32, #tpu.memory_space<vmem>>, vector<24x128xf32>
    tpu.vector_store %arg10[%c0_22, %c0_23], %28 {strides = array<i32>} : memref<24x128xf32, #tpu.memory_space<vmem>>, vector<24x128xf32>,
    return
  }
  func.func @transform_0(%arg0: i32) -> (i32, i32) {
    %c0_i32 = arith.constant 0 : i32
    %c0_i32_0 = arith.constant 0 : i32
    return %arg0, %c0_i32 : i32, i32
  }
  func.func @transform_1(%arg0: i32) -> (i32, i32) {
    %c0_i32 = arith.constant 0 : i32
    %c0_i32_0 = arith.constant 0 : i32
    %c0_i32_1 = arith.constant 0 : i32
    return %c0_i32, %c0_i32_0 : i32, i32
  }
  func.func @transform_2(%arg0: i32) -> (i32, i32) {
    %c0_i32 = arith.constant 0 : i32
    %c0_i32_0 = arith.constant 0 : i32
    %c0_i32_1 = arith.constant 0 : i32
    return %c0_i32, %c0_i32_0 : i32, i32
  }
  func.func @transform_3(%arg0: i32) -> (i32, i32) {
    %c0_i32 = arith.constant 0 : i32
    %c0_i32_0 = arith.constant 0 : i32
    %c0_i32_1 = arith.constant 0 : i32
    return %c0_i32, %c0_i32_0 : i32, i32
  }
  func.func @transform_4(%arg0: i32) -> (i32, i32) {
    %c0_i32 = arith.constant 0 : i32
    %c0_i32_0 = arith.constant 0 : i32
    %c0_i32_1 = arith.constant 0 : i32
    return %c0_i32, %c0_i32_0 : i32, i32
  }
  func.func @transform_5(%arg0: i32) -> (i32, i32) {
    %c0_i32 = arith.constant 0 : i32
    %c0_i32_0 = arith.constant 0 : i32
    %c0_i32_1 = arith.constant 0 : i32
    return %c0_i32, %c0_i32_0 : i32, i32
  }
  func.func @transform_6(%arg0: i32) -> (i32, i32) {
    %c0_i32 = arith.constant 0 : i32
    %c0_i32_0 = arith.constant 0 : i32
    %c0_i32_1 = arith.constant 0 : i32
    return %c0_i32, %c0_i32_0 : i32, i32
  }
  func.func @transform_7(%arg0: i32) -> (i32, i32) {
    %c0_i32 = arith.constant 0 : i32
    %c0_i32_0 = arith.constant 0 : i32
    %c0_i32_1 = arith.constant 0 : i32
    return %c0_i32, %c0_i32_0 : i32, i32
  }
  func.func @transform_8(%arg0: i32) -> (i32, i32) {
    %c0_i32 = arith.constant 0 : i32
    %c0_i32_0 = arith.constant 0 : i32
    %c0_i32_1 = arith.constant 0 : i32
    return %c0_i32, %c0_i32_0 : i32, i32
  }
  func.func @transform_9(%arg0: i32) -> (i32, i32) {
    %c0_i32 = arith.constant 0 : i32
    %c0_i32_0 = arith.constant 0 : i32
    return %arg0, %c0_i32 : i32, i32
  }
}

</mosaic_0001>

<llo_original>
// kernel: tpu_custom_call.1
$region0: #{tpu_custom_call.1}
  #allocation0 [shape = 'u32[]', space=smem, size = 0x4, offset = 0x4, fixed_abs, tag = 'smem constant byte address 0x4 - core index']
  #allocation1 [shape = 'u32[72,128]{1,0:T(1,128)}', space=vmem, size = 0x9000, scoped, tag = 'internal scratch']
  %s0 = inlined_call_operand.hbm [shape: f32[24,1328], index: 0, kind: input, shape index: {}]
  %s1 = inlined_call_operand.hbm [shape: bf16[1328,1024], index: 1, kind: input, shape index: {}]
  %s2 = inlined_call_operand.hbm [shape: f32[1,1024], index: 2, kind: input, shape index: {}]
  %s3 = inlined_call_operand.hbm [shape: bf16[1024,512], index: 3, kind: input, shape index: {}]
  %s4 = inlined_call_operand.hbm [shape: f32[1,512], index: 4, kind: input, shape index: {}]
  %s5 = inlined_call_operand.hbm [shape: bf16[512,256], index: 5, kind: input, shape index: {}]
  %s6 = inlined_call_operand.hbm [shape: f32[1,256], index: 6, kind: input, shape index: {}]
  %s7 = inlined_call_operand.hbm [shape: bf16[256,128], index: 7, kind: input, shape index: {}]
  %s8 = inlined_call_operand.hbm [shape: f32[1,128], index: 8, kind: input, shape index: {}]
  %s9 = inlined_call_operand.hbm [shape: f32[24,128], index: 9, kind: output, shape index: {}]
  %s10 = sld [smem:[#allocation0]]
  $region82: #{tpu_custom_call.1} parent=0
    _
  %s12 = ssub.s32 1, %s10
  %s13 = scalar_select 0, %s12, %s10
  $region1: #{tpu_custom_call.1} parent=0
    #allocation2 [shape = 'u8[135168]{0}', space=vmem, size = 0x21000, scoped, tag = 'input window, operand 0, single buffered']
    #allocation3 [shape = 's32[1]{0}', space=sflag, size = 0x4, scoped, tag = 'scoped memory for tpu_custom_call.1']
    #allocation4 [shape = 's32[1]{0}', space=sflag, size = 0x4, scoped, tag = 'scoped memory for tpu_custom_call.1']
    #allocation5 [shape = 'u8[2719744]{0}', space=vmem, size = 0x298000, scoped, tag = 'input window, operand 1, single buffered']
    #allocation6 [shape = 's32[1]{0}', space=sflag, size = 0x4, scoped, tag = 'scoped memory for tpu_custom_call.1']
    #allocation7 [shape = 'u8[4096]{0}', space=vmem, size = 0x1000, scoped, tag = 'input window, operand 2, single buffered']
    #allocation8 [shape = 'u8[1048576]{0}', space=vmem, size = 0x100000, scoped, tag = 'input window, operand 3, single buffered']
    #allocation9 [shape = 's32[1]{0}', space=sflag, size = 0x4, scoped, tag = 'scoped memory for tpu_custom_call.1']
    #allocation10 [shape = 'u8[2048]{0}', space=vmem, size = 0x800, scoped, tag = 'input window, operand 4, single buffered']
    #allocation11 [shape = 'u8[262144]{0}', space=vmem, size = 0x40000, scoped, tag = 'input window, operand 5, single buffered']
    #allocation12 [shape = 's32[1]{0}', space=sflag, size = 0x4, scoped, tag = 'scoped memory for tpu_custom_call.1']
    #allocation13 [shape = 'u8[1024]{0}', space=vmem, size = 0x400, scoped, tag = 'input window, operand 6, single buffered']
    #allocation14 [shape = 'u8[65536]{0}', space=vmem, size = 0x10000, scoped, tag = 'input window, operand 7, single buffered']
    #allocation15 [shape = 's32[1]{0}', space=sflag, size = 0x4, scoped, tag = 'scoped memory for tpu_custom_call.1']
    #allocation16 [shape = 'u8[512]{0}', space=vmem, size = 0x400, scoped, tag = 'input window, operand 8, single buffered']
    #allocation17 [shape = 'u8[12288]{0}', space=vmem, size = 0x3000, scoped, tag = 'output window, operand 0, single buffered']
    %14 = vsyncpa [#allocation3], 0
    %15 = vsyncpa [#allocation6], 0
    %16 = vsyncpa [#allocation9], 0
    %17 = vsyncpa [#allocation12], 0
    %18 = vsyncpa [#allocation15], 0
    %19 = vsyncpa [#allocation4], 0
    // Predicated region
    $region2: #{tpu_custom_call.1} parent=1 // pred_check
      _
    $region3: #{tpu_custom_call.1} parent=1 // pred_check_branch
      %21 = sbr.rel (0) target = $region5
    $region4: #{tpu_custom_call.1} parent=1 // pred_region
      %23 = vsyncadd [#allocation3], 0
      %s24 = sshll.u32 %s0, 4
      %s25 = int_to_ptr.hbm [resolvable:$true] %s24
      %s26 = sshll.u32 [#allocation2], 4
      %s27 = int_to_ptr.vmem [resolvable:$true] %s26
      %32 = dma.hbm_to_vmem [thread:$0]  %s25, 4224, %s27, [#allocation3], 1408, 1408, 88
    $region5: #{tpu_custom_call.1} parent=1 // pred_fallthru
      _
    // Predicated region
    $region6: #{tpu_custom_call.1} parent=1 // pred_check
      _
    $region7: #{tpu_custom_call.1} parent=1 // pred_check_branch
      %34 = sbr.rel (0) target = $region9
    $region8: #{tpu_custom_call.1} parent=1 // pred_region
      %36 = vsyncadd [#allocation6], 0
      %s37 = sshll.u32 %s1, 4
      %s38 = int_to_ptr.hbm [resolvable:$true] %s37
      %s39 = sshll.u32 [#allocation5], 4
      %s40 = int_to_ptr.vmem [resolvable:$true] %s39
      %45 = dma.hbm_to_vmem [thread:$0]  %s38, 84992, %s40, [#allocation6], 512, 512, 32
    $region9: #{tpu_custom_call.1} parent=1 // pred_fallthru
      _
    // Predicated region
    $region10: #{tpu_custom_call.1} parent=1 // pred_check
      _
    $region11: #{tpu_custom_call.1} parent=1 // pred_check_branch
      %47 = sbr.rel (0) target = $region13
    $region12: #{tpu_custom_call.1} parent=1 // pred_region
      %49 = vsyncadd [#allocation6], 0
      %s51 = sshll.u32 %s2, 4
      %s52 = int_to_ptr.hbm [resolvable:$true] %s51
      %s53 = sshll.u32 [#allocation7], 4
      %s54 = int_to_ptr.vmem [resolvable:$true] %s53
      %56 = dma.hbm_to_vmem [thread:$0]  %s52, 128, %s54, [#allocation6]
    $region13: #{tpu_custom_call.1} parent=1 // pred_fallthru
      _
    // Predicated region
    $region14: #{tpu_custom_call.1} parent=1 // pred_check
      _
    $region15: #{tpu_custom_call.1} parent=1 // pred_check_branch
      %58 = sbr.rel (0) target = $region17
    $region16: #{tpu_custom_call.1} parent=1 // pred_region
      %60 = vsyncadd [#allocation9], 0
      %s61 = sshll.u32 %s3, 4
      %s62 = int_to_ptr.hbm [resolvable:$true] %s61
      %s63 = sshll.u32 [#allocation8], 4
      %s64 = int_to_ptr.vmem [resolvable:$true] %s63
      %69 = dma.hbm_to_vmem [thread:$0]  %s62, 32768, %s64, [#allocation9], 256, 256, 16
    $region17: #{tpu_custom_call.1} parent=1 // pred_fallthru
      _
    // Predicated region
    $region18: #{tpu_custom_call.1} parent=1 // pred_check
      _
    $region19: #{tpu_custom_call.1} parent=1 // pred_check_branch
      %71 = sbr.rel (0) target = $region21
    $region20: #{tpu_custom_call.1} parent=1 // pred_region
      %73 = vsyncadd [#allocation9], 0
      %s75 = sshll.u32 %s4, 4
      %s76 = int_to_ptr.hbm [resolvable:$true] %s75
      %s77 = sshll.u32 [#allocation10], 4
      %s78 = int_to_ptr.vmem [resolvable:$true] %s77
      %80 = dma.hbm_to_vmem [thread:$0]  %s76, 64, %s78, [#allocation9]
    $region21: #{tpu_custom_call.1} parent=1 // pred_fallthru
      _
    // Predicated region
    $region22: #{tpu_custom_call.1} parent=1 // pred_check
      _
    $region23: #{tpu_custom_call.1} parent=1 // pred_check_branch
      %82 = sbr.rel (0) target = $region25
    $region24: #{tpu_custom_call.1} parent=1 // pred_region
      %84 = vsyncadd [#allocation12], 0
      %s85 = sshll.u32 %s5, 4
      %s86 = int_to_ptr.hbm [resolvable:$true] %s85
      %s87 = sshll.u32 [#allocation11], 4
      %s88 = int_to_ptr.vmem [resolvable:$true] %s87
      %93 = dma.hbm_to_vmem [thread:$0]  %s86, 8192, %s88, [#allocation12], 128, 128, 8
    $region25: #{tpu_custom_call.1} parent=1 // pred_fallthru
      _
    // Predicated region
    $region26: #{tpu_custom_call.1} parent=1 // pred_check
      _
    $region27: #{tpu_custom_call.1} parent=1 // pred_check_branch
      %95 = sbr.rel (0) target = $region29
    $region28: #{tpu_custom_call.1} parent=1 // pred_region
      %97 = vsyncadd [#allocation12], 0
      %s99 = sshll.u32 %s6, 4
      %s100 = int_to_ptr.hbm [resolvable:$true] %s99
      %s101 = sshll.u32 [#allocation13], 4
      %s102 = int_to_ptr.vmem [resolvable:$true] %s101
      %104 = dma.hbm_to_vmem [thread:$0]  %s100, 32, %s102, [#allocation12]
    $region29: #{tpu_custom_call.1} parent=1 // pred_fallthru
      _
    // Predicated region
    $region30: #{tpu_custom_call.1} parent=1 // pred_check
      _
    $region31: #{tpu_custom_call.1} parent=1 // pred_check_branch
      %106 = sbr.rel (0) target = $region33
    $region32: #{tpu_custom_call.1} parent=1 // pred_region
      %108 = vsyncadd [#allocation15], 0
      %s109 = sshll.u32 %s7, 4
      %s110 = int_to_ptr.hbm [resolvable:$true] %s109
      %s111 = sshll.u32 [#allocation14], 4
      %s112 = int_to_ptr.vmem [resolvable:$true] %s111
      %117 = dma.hbm_to_vmem [thread:$0]  %s110, 2048, %s112, [#allocation15], 64, 64, 4
    $region33: #{tpu_custom_call.1} parent=1 // pred_fallthru
      _
    // Predicated region
    $region34: #{tpu_custom_call.1} parent=1 // pred_check
      _
    $region35: #{tpu_custom_call.1} parent=1 // pred_check_branch
      %119 = sbr.rel (0) target = $region37
    $region36: #{tpu_custom_call.1} parent=1 // pred_region
      %121 = vsyncadd [#allocation15], 0
      %s123 = sshll.u32 %s8, 4
      %s124 = int_to_ptr.hbm [resolvable:$true] %s123
      %s125 = sshll.u32 [#allocation16], 4
      %s126 = int_to_ptr.vmem [resolvable:$true] %s125
      %128 = dma.hbm_to_vmem [thread:$0]  %s124, 16, %s126, [#allocation15]
    $region37: #{tpu_custom_call.1} parent=1 // pred_fallthru
      _
    // Predicated region
    $region38: #{tpu_custom_call.1} parent=1 // pred_check
      _
    $region39: #{tpu_custom_call.1} parent=1 // pred_check_branch
      %130 = sbr.rel (0) target = $region41
    $region40: #{tpu_custom_call.1} parent=1 // pred_region
      %132 = dma.done [#allocation3], 4224
    $region41: #{tpu_custom_call.1} parent=1 // pred_fallthru
      _
    // Predicated region
    $region42: #{tpu_custom_call.1} parent=1 // pred_check
      _
    $region43: #{tpu_custom_call.1} parent=1 // pred_check_branch
      %134 = sbr.rel (0) target = $region45
    $region44: #{tpu_custom_call.1} parent=1 // pred_region
      %136 = dma.done [#allocation6], 84992
    $region45: #{tpu_custom_call.1} parent=1 // pred_fallthru
      _
    // Predicated region
    $region46: #{tpu_custom_call.1} parent=1 // pred_check
      _
    $region47: #{tpu_custom_call.1} parent=1 // pred_check_branch
      %138 = sbr.rel (0) target = $region49
    $region48: #{tpu_custom_call.1} parent=1 // pred_region
      %140 = dma.done [#allocation6], 128
    $region49: #{tpu_custom_call.1} parent=1 // pred_fallthru
      _
    // Predicated region
    $region50: #{tpu_custom_call.1} parent=1 // pred_check
      _
    $region51: #{tpu_custom_call.1} parent=1 // pred_check_branch
      %142 = sbr.rel (0) target = $region53
    $region52: #{tpu_custom_call.1} parent=1 // pred_region
      %144 = dma.done [#allocation9], 32768
    $region53: #{tpu_custom_call.1} parent=1 // pred_fallthru
      _
    // Predicated region
    $region54: #{tpu_custom_call.1} parent=1 // pred_check
      _
    $region55: #{tpu_custom_call.1} parent=1 // pred_check_branch
      %146 = sbr.rel (0) target = $region57
    $region56: #{tpu_custom_call.1} parent=1 // pred_region
      %148 = dma.done [#allocation9], 64
    $region57: #{tpu_custom_call.1} parent=1 // pred_fallthru
      _
    // Predicated region
    $region58: #{tpu_custom_call.1} parent=1 // pred_check
      _
    $region59: #{tpu_custom_call.1} parent=1 // pred_check_branch
      %150 = sbr.rel (0) target = $region61
    $region60: #{tpu_custom_call.1} parent=1 // pred_region
      %152 = dma.done [#allocation12], 8192
    $region61: #{tpu_custom_call.1} parent=1 // pred_fallthru
      _
    // Predicated region
    $region62: #{tpu_custom_call.1} parent=1 // pred_check
      _
    $region63: #{tpu_custom_call.1} parent=1 // pred_check_branch
      %154 = sbr.rel (0) target = $region65
    $region64: #{tpu_custom_call.1} parent=1 // pred_region
      %156 = dma.done [#allocation12], 32
    $region65: #{tpu_custom_call.1} parent=1 // pred_fallthru
      _
    // Predicated region
    $region66: #{tpu_custom_call.1} parent=1 // pred_check
      _
    $region67: #{tpu_custom_call.1} parent=1 // pred_check_branch
      %158 = sbr.rel (0) target = $region69
    $region68: #{tpu_custom_call.1} parent=1 // pred_region
      %160 = dma.done [#allocation15], 2048
    $region69: #{tpu_custom_call.1} parent=1 // pred_fallthru
      _
    // Predicated region
    $region70: #{tpu_custom_call.1} parent=1 // pred_check
      _
    $region71: #{tpu_custom_call.1} parent=1 // pred_check_branch
      %162 = sbr.rel (0) target = $region73
    $region72: #{tpu_custom_call.1} parent=1 // pred_region
      %164 = dma.done [#allocation15], 16
    $region73: #{tpu_custom_call.1} parent=1 // pred_fallthru
      _
    %v166 = vld [vmem:[#allocation2] sm:$0xff]
    %v167 = vld [vmem:[#allocation2 + $0x8] sm:$0xff]
    %v168 = vld [vmem:[#allocation2 + $0x10] sm:$0xff]
    %v169 = vld [vmem:[#allocation2 + $0x18] sm:$0xff]
    %v170 = vld [vmem:[#allocation2 + $0x20] sm:$0xff]
    %v171 = vld [vmem:[#allocation2 + $0x28] sm:$0xff]
    %v172 = vld [vmem:[#allocation2 + $0x30] sm:$0xff]
    %v173 = vld [vmem:[#allocation2 + $0x38] sm:$0xff]
    %v174 = vld [vmem:[#allocation2 + $0x40] sm:$0xff]
    %v175 = vld [vmem:[#allocation2 + $0x48] sm:$0xff]
    %v176 = vld [vmem:[#allocation2 + $0x50] sm:$0xff]
    %v177 = vld [vmem:[#allocation2 + $0x58] sm:$0xff]
    %v178 = vld [vmem:[#allocation2 + $0x60] sm:$0xff]
    %v179 = vld [vmem:[#allocation2 + $0x68] sm:$0xff]
    %v180 = vld [vmem:[#allocation2 + $0x70] sm:$0xff]
    %v181 = vld [vmem:[#allocation2 + $0x78] sm:$0xff]
    %v182 = vld [vmem:[#allocation2 + $0x80] sm:$0xff]
    %v183 = vld [vmem:[#allocation2 + $0x88] sm:$0xff]
    %v184 = vld [vmem:[#allocation2 + $0x90] sm:$0xff]
    %v185 = vld [vmem:[#allocation2 + $0x98] sm:$0xff]
    %v186 = vld [vmem:[#allocation2 + $0xa0] sm:$0xff]
    %v187 = vld [vmem:[#allocation2 + $0xa8] sm:$0xff]
    %v188 = vld [vmem:[#allocation2 + $0xb0] sm:$0xff]
    %v189 = vld [vmem:[#allocation2 + $0xb8] sm:$0xff]
    %v190 = vld [vmem:[#allocation2 + $0xc0] sm:$0xff]
    %v191 = vld [vmem:[#allocation2 + $0xc8] sm:$0xff]
    %v192 = vld [vmem:[#allocation2 + $0xd0] sm:$0xff]
    %v193 = vld [vmem:[#allocation2 + $0xd8] sm:$0xff]
    %v194 = vld [vmem:[#allocation2 + $0xe0] sm:$0xff]
    %v195 = vld [vmem:[#allocation2 + $0xe8] sm:$0xff]
    %v196 = vld [vmem:[#allocation2 + $0xf0] sm:$0xff]
    %v197 = vld [vmem:[#allocation2 + $0xf8] sm:$0xff]
    %v198 = vld [vmem:[#allocation2 + $0x100] sm:$0xff]
    %v199 = vpack.c.bf16 %v177, %v166
    %v200 = vpack.c.bf16 %v178, %v167
    %v201 = vpack.c.bf16 %v179, %v168
    %v202 = vpack.c.bf16 %v180, %v169
    %v203 = vpack.c.bf16 %v181, %v170
    %v204 = vpack.c.bf16 %v182, %v171
    %v205 = vpack.c.bf16 %v183, %v172
    %v206 = vpack.c.bf16 %v184, %v173
    %v207 = vpack.c.bf16 %v185, %v174
    %v208 = vpack.c.bf16 %v186, %v175
    %v209 = vpack.c.bf16 %v187, %v176
    %v210 = vpack.c.bf16 %v188, %v188
    %v211 = vpack.c.bf16 %v189, %v189
    %v212 = vpack.c.bf16 %v190, %v190
    %v213 = vpack.c.bf16 %v191, %v191
    %v214 = vpack.c.bf16 %v192, %v192
    %v215 = vpack.c.bf16 %v193, %v193
    %v216 = vpack.c.bf16 %v194, %v194
    %v217 = vpack.c.bf16 %v195, %v195
    %v218 = vpack.c.bf16 %v196, %v196
    %v219 = vpack.c.bf16 %v197, %v197
    %v220 = vpack.c.bf16 %v198, %v198
    %v221 = vld [vmem:[#allocation5] sm:$0xff]
    %v222 = vld [vmem:[#allocation5 + $0x8] sm:$0xff]
    %v223 = vld [vmem:[#allocation5 + $0x10] sm:$0xff]
    %v224 = vld [vmem:[#allocation5 + $0x18] sm:$0xff]
    %v225 = vld [vmem:[#allocation5 + $0x20] sm:$0xff]
    %v226 = vld [vmem:[#allocation5 + $0x28] sm:$0xff]
    %v227 = vld [vmem:[#allocation5 + $0x30] sm:$0xff]
    %v228 = vld [vmem:[#allocation5 + $0x38] sm:$0xff]
    %v229 = vld [vmem:[#allocation5 + $0x40] sm:$0xff]
    %v230 = vld [vmem:[#allocation5 + $0x48] sm:$0xff]
    %v231 = vld [vmem:[#allocation5 + $0x50] sm:$0xff]
    %v232 = vld [vmem:[#allocation5 + $0x58] sm:$0xff]
    %v233 = vld [vmem:[#allocation5 + $0x60] sm:$0xff]
    %v234 = vld [vmem:[#allocation5 + $0x68] sm:$0xff]
    %v235 = vld [vmem:[#allocation5 + $0x70] sm:$0xff]
    %v236 = vld [vmem:[#allocation5 + $0x78] sm:$0xff]
    %v237 = vld [vmem:[#allocation5 + $0x80] sm:$0xff]
    %v238 = vld [vmem:[#allocation5 + $0x88] sm:$0xff]
    %v239 = vld [vmem:[#allocation5 + $0x90] sm:$0xff]
    %v240 = vld [vmem:[#allocation5 + $0x98] sm:$0xff]
    %v241 = vld [vmem:[#allocation5 + $0xa0] sm:$0xff]
    %v242 = vld [vmem:[#allocation5 + $0xa8] sm:$0xff]
    %v243 = vld [vmem:[#allocation5 + $0xb0] sm:$0xff]
    %v244 = vld [vmem:[#allocation5 + $0xb8] sm:$0xff]
    %v245 = vld [vmem:[#allocation5 + $0xc0] sm:$0xff]
    %v246 = vld [vmem:[#allocation5 + $0xc8] sm:$0xff]
    %v247 = vld [vmem:[#allocation5 + $0xd0] sm:$0xff]
    %v248 = vld [vmem:[#allocation5 + $0xd8] sm:$0xff]
    %v249 = vld [vmem:[#allocation5 + $0xe0] sm:$0xff]
    %v250 = vld [vmem:[#allocation5 + $0xe8] sm:$0xff]
    %v251 = vld [vmem:[#allocation5 + $0xf0] sm:$0xff]
    %v252 = vld [vmem:[#allocation5 + $0xf8] sm:$0xff]
    %v253 = vld [vmem:[#allocation5 + $0x100] sm:$0xff]
    %v254 = vld [vmem:[#allocation5 + $0x108] sm:$0xff]
    %v255 = vld [vmem:[#allocation5 + $0x110] sm:$0xff]
    %v256 = vld [vmem:[#allocation5 + $0x118] sm:$0xff]
    %v257 = vld [vmem:[#allocation5 + $0x120] sm:$0xff]
    %v258 = vld [vmem:[#allocation5 + $0x128] sm:$0xff]
    %v259 = vld [vmem:[#allocation5 + $0x130] sm:$0xff]
    %v260 = vld [vmem:[#allocation5 + $0x138] sm:$0xff]
    %v261 = vld [vmem:[#allocation5 + $0x140] sm:$0xff]
    %v262 = vld [vmem:[#allocation5 + $0x148] sm:$0xff]
    %v263 = vld [vmem:[#allocation5 + $0x150] sm:$0xff]
    %v264 = vld [vmem:[#allocation5 + $0x158] sm:$0xff]
    %v265 = vld [vmem:[#allocation5 + $0x160] sm:$0xff]
    %v266 = vld [vmem:[#allocation5 + $0x168] sm:$0xff]
    %v267 = vld [vmem:[#allocation5 + $0x170] sm:$0xff]
    %v268 = vld [vmem:[#allocation5 + $0x178] sm:$0xff]
    %v269 = vld [vmem:[#allocation5 + $0x180] sm:$0xff]
    %v270 = vld [vmem:[#allocation5 + $0x188] sm:$0xff]
    %v271 = vld [vmem:[#allocation5 + $0x190] sm:$0xff]
    %v272 = vld [vmem:[#allocation5 + $0x198] sm:$0xff]
    %v273 = vld [vmem:[#allocation5 + $0x1a0] sm:$0xff]
    %v274 = vld [vmem:[#allocation5 + $0x1a8] sm:$0xff]
    %v275 = vld [vmem:[#allocation5 + $0x1b0] sm:$0xff]
    %v276 = vld [vmem:[#allocation5 + $0x1b8] sm:$0xff]
    %v277 = vld [vmem:[#allocation5 + $0x1c0] sm:$0xff]
    %v278 = vld [vmem:[#allocation5 + $0x1c8] sm:$0xff]
    %v279 = vld [vmem:[#allocation5 + $0x1d0] sm:$0xff]
    %v280 = vld [vmem:[#allocation5 + $0x1d8] sm:$0xff]
    %v281 = vld [vmem:[#allocation5 + $0x1e0] sm:$0xff]
    %v282 = vld [vmem:[#allocation5 + $0x1e8] sm:$0xff]
    %v283 = vld [vmem:[#allocation5 + $0x1f0] sm:$0xff]
    %v284 = vld [vmem:[#allocation5 + $0x1f8] sm:$0xff]
    %v285 = vld [vmem:[#allocation5 + $0x200] sm:$0xff]
    %v286 = vld [vmem:[#allocation5 + $0x208] sm:$0xff]
    %v287 = vld [vmem:[#allocation5 + $0x210] sm:$0xff]
    %v288 = vld [vmem:[#allocation5 + $0x218] sm:$0xff]
    %v289 = vld [vmem:[#allocation5 + $0x220] sm:$0xff]
    %v290 = vld [vmem:[#allocation5 + $0x228] sm:$0xff]
    %v291 = vld [vmem:[#allocation5 + $0x230] sm:$0xff]
    %v292 = vld [vmem:[#allocation5 + $0x238] sm:$0xff]
    %v293 = vld [vmem:[#allocation5 + $0x240] sm:$0xff]
    %v294 = vld [vmem:[#allocation5 + $0x248] sm:$0xff]
    %v295 = vld [vmem:[#allocation5 + $0x250] sm:$0xff]
    %v296 = vld [vmem:[#allocation5 + $0x258] sm:$0xff]
    %v297 = vld [vmem:[#allocation5 + $0x260] sm:$0xff]
    %v298 = vld [vmem:[#allocation5 + $0x268] sm:$0xff]
    %v299 = vld [vmem:[#allocation5 + $0x270] sm:$0xff]
    %v300 = vld [vmem:[#allocation5 + $0x278] sm:$0xff]
    %v301 = vld [vmem:[#allocation5 + $0x280] sm:$0xff]
    %v302 = vld [vmem:[#allocation5 + $0x288] sm:$0xff]
    %v303 = vld [vmem:[#allocation5 + $0x290] sm:$0xff]
    %v304 = vld [vmem:[#allocation5 + $0x298] sm:$0xff]
    %v305 = vld [vmem:[#allocation5 + $0x2a0] sm:$0xff]
    %v306 = vld [vmem:[#allocation5 + $0x2a8] sm:$0xff]
    %v307 = vld [vmem:[#allocation5 + $0x2b0] sm:$0xff]
    %v308 = vld [vmem:[#allocation5 + $0x2b8] sm:$0xff]
    %v309 = vld [vmem:[#allocation5 + $0x2c0] sm:$0xff]
    %v310 = vld [vmem:[#allocation5 + $0x2c8] sm:$0xff]
    %v311 = vld [vmem:[#allocation5 + $0x2d0] sm:$0xff]
    %v312 = vld [vmem:[#allocation5 + $0x2d8] sm:$0xff]
    %v313 = vld [vmem:[#allocation5 + $0x2e0] sm:$0xff]
    %v314 = vld [vmem:[#allocation5 + $0x2e8] sm:$0xff]
    %v315 = vld [vmem:[#allocation5 + $0x2f0] sm:$0xff]
    %v316 = vld [vmem:[#allocation5 + $0x2f8] sm:$0xff]
    %v317 = vld [vmem:[#allocation5 + $0x300] sm:$0xff]
    %v318 = vld [vmem:[#allocation5 + $0x308] sm:$0xff]
    %v319 = vld [vmem:[#allocation5 + $0x310] sm:$0xff]
    %v320 = vld [vmem:[#allocation5 + $0x318] sm:$0xff]
    %v321 = vld [vmem:[#allocation5 + $0x320] sm:$0xff]
    %v322 = vld [vmem:[#allocation5 + $0x328] sm:$0xff]
    %v323 = vld [vmem:[#allocation5 + $0x330] sm:$0xff]
    %v324 = vld [vmem:[#allocation5 + $0x338] sm:$0xff]
    %v325 = vld [vmem:[#allocation5 + $0x340] sm:$0xff]
    %v326 = vld [vmem:[#allocation5 + $0x348] sm:$0xff]
    %v327 = vld [vmem:[#allocation5 + $0x350] sm:$0xff]
    %v328 = vld [vmem:[#allocation5 + $0x358] sm:$0xff]
    %v329 = vld [vmem:[#allocation5 + $0x360] sm:$0xff]
    %v330 = vld [vmem:[#allocation5 + $0x368] sm:$0xff]
    %v331 = vld [vmem:[#allocation5 + $0x370] sm:$0xff]
    %v332 = vld [vmem:[#allocation5 + $0x378] sm:$0xff]
    %v333 = vld [vmem:[#allocation5 + $0x380] sm:$0xff]
    %v334 = vld [vmem:[#allocation5 + $0x388] sm:$0xff]
    %v335 = vld [vmem:[#allocation5 + $0x390] sm:$0xff]
    %v336 = vld [vmem:[#allocation5 + $0x398] sm:$0xff]
    %v337 = vld [vmem:[#allocation5 + $0x3a0] sm:$0xff]
    %v338 = vld [vmem:[#allocation5 + $0x3a8] sm:$0xff]
    %v339 = vld [vmem:[#allocation5 + $0x3b0] sm:$0xff]
    %v340 = vld [vmem:[#allocation5 + $0x3b8] sm:$0xff]
    %v341 = vld [vmem:[#allocation5 + $0x3c0] sm:$0xff]
    %v342 = vld [vmem:[#allocation5 + $0x3c8] sm:$0xff]
    %v343 = vld [vmem:[#allocation5 + $0x3d0] sm:$0xff]
    %v344 = vld [vmem:[#allocation5 + $0x3d8] sm:$0xff]
    %v345 = vld [vmem:[#allocation5 + $0x3e0] sm:$0xff]
    %v346 = vld [vmem:[#allocation5 + $0x3e8] sm:$0xff]
    %v347 = vld [vmem:[#allocation5 + $0x3f0] sm:$0xff]
    %v348 = vld [vmem:[#allocation5 + $0x3f8] sm:$0xff]
    %v349 = vld [vmem:[#allocation5 + $0x400] sm:$0xff]
    %v350 = vld [vmem:[#allocation5 + $0x408] sm:$0xff]
    %v351 = vld [vmem:[#allocation5 + $0x410] sm:$0xff]
    %v352 = vld [vmem:[#allocation5 + $0x418] sm:$0xff]
    %v353 = vld [vmem:[#allocation5 + $0x420] sm:$0xff]
    %v354 = vld [vmem:[#allocation5 + $0x428] sm:$0xff]
    %v355 = vld [vmem:[#allocation5 + $0x430] sm:$0xff]
    %v356 = vld [vmem:[#allocation5 + $0x438] sm:$0xff]
    %v357 = vld [vmem:[#allocation5 + $0x440] sm:$0xff]
    %v358 = vld [vmem:[#allocation5 + $0x448] sm:$0xff]
    %v359 = vld [vmem:[#allocation5 + $0x450] sm:$0xff]
    %v360 = vld [vmem:[#allocation5 + $0x458] sm:$0xff]
    %v361 = vld [vmem:[#allocation5 + $0x460] sm:$0xff]
    %v362 = vld [vmem:[#allocation5 + $0x468] sm:$0xff]
    %v363 = vld [vmem:[#allocation5 + $0x470] sm:$0xff]
    %v364 = vld [vmem:[#allocation5 + $0x478] sm:$0xff]
    %v365 = vld [vmem:[#allocation5 + $0x480] sm:$0xff]
    %v366 = vld [vmem:[#allocation5 + $0x488] sm:$0xff]
    %v367 = vld [vmem:[#allocation5 + $0x490] sm:$0xff]
    %v368 = vld [vmem:[#allocation5 + $0x498] sm:$0xff]
    %v369 = vld [vmem:[#allocation5 + $0x4a0] sm:$0xff]
    %v370 = vld [vmem:[#allocation5 + $0x4a8] sm:$0xff]
    %v371 = vld [vmem:[#allocation5 + $0x4b0] sm:$0xff]
    %v372 = vld [vmem:[#allocation5 + $0x4b8] sm:$0xff]
    %v373 = vld [vmem:[#allocation5 + $0x4c0] sm:$0xff]
    %v374 = vld [vmem:[#allocation5 + $0x4c8] sm:$0xff]
    %v375 = vld [vmem:[#allocation5 + $0x4d0] sm:$0xff]
    %v376 = vld [vmem:[#allocation5 + $0x4d8] sm:$0xff]
    %v377 = vld [vmem:[#allocation5 + $0x4e0] sm:$0xff]
    %v378 = vld [vmem:[#allocation5 + $0x4e8] sm:$0xff]
    %v379 = vld [vmem:[#allocation5 + $0x4f0] sm:$0xff]
    %v380 = vld [vmem:[#allocation5 + $0x4f8] sm:$0xff]
    %v381 = vld [vmem:[#allocation5 + $0x500] sm:$0xff]
    %v382 = vld [vmem:[#allocation5 + $0x508] sm:$0xff]
    %v383 = vld [vmem:[#allocation5 + $0x510] sm:$0xff]
    %v384 = vld [vmem:[#allocation5 + $0x518] sm:$0xff]
    %v385 = vld [vmem:[#allocation5 + $0x520] sm:$0xff]
    %v386 = vld [vmem:[#allocation5 + $0x528] sm:$0xff]
    %v387 = vld [vmem:[#allocation5 + $0x530] sm:$0xff]
    %v388 = vld [vmem:[#allocation5 + $0x538] sm:$0xff]
    %v389 = vld [vmem:[#allocation5 + $0x540] sm:$0xff]
    %v390 = vld [vmem:[#allocation5 + $0x548] sm:$0xff]
    %v391 = vld [vmem:[#allocation5 + $0x550] sm:$0xff]
    %v392 = vld [vmem:[#allocation5 + $0x558] sm:$0xff]
    %v393 = vld [vmem:[#allocation5 + $0x560] sm:$0xff]
    %v394 = vld [vmem:[#allocation5 + $0x568] sm:$0xff]
    %v395 = vld [vmem:[#allocation5 + $0x570] sm:$0xff]
    %v396 = vld [vmem:[#allocation5 + $0x578] sm:$0xff]
    %v397 = vld [vmem:[#allocation5 + $0x580] sm:$0xff]
    %v398 = vld [vmem:[#allocation5 + $0x588] sm:$0xff]
    %v399 = vld [vmem:[#allocation5 + $0x590] sm:$0xff]
    %v400 = vld [vmem:[#allocation5 + $0x598] sm:$0xff]
    %v401 = vld [vmem:[#allocation5 + $0x5a0] sm:$0xff]
    %v402 = vld [vmem:[#allocation5 + $0x5a8] sm:$0xff]
    %v403 = vld [vmem:[#allocation5 + $0x5b0] sm:$0xff]
    %v404 = vld [vmem:[#allocation5 + $0x5b8] sm:$0xff]
    %v405 = vld [vmem:[#allocation5 + $0x5c0] sm:$0xff]
    %v406 = vld [vmem:[#allocation5 + $0x5c8] sm:$0xff]
    %v407 = vld [vmem:[#allocation5 + $0x5d0] sm:$0xff]
    %v408 = vld [vmem:[#allocation5 + $0x5d8] sm:$0xff]
    %v409 = vld [vmem:[#allocation5 + $0x5e0] sm:$0xff]
    %v410 = vld [vmem:[#allocation5 + $0x5e8] sm:$0xff]
    %v411 = vld [vmem:[#allocation5 + $0x5f0] sm:$0xff]
    %v412 = vld [vmem:[#allocation5 + $0x5f8] sm:$0xff]
    %v413 = vld [vmem:[#allocation5 + $0x600] sm:$0xff]
    %v414 = vld [vmem:[#allocation5 + $0x608] sm:$0xff]
    %v415 = vld [vmem:[#allocation5 + $0x610] sm:$0xff]
    %v416 = vld [vmem:[#allocation5 + $0x618] sm:$0xff]
    %v417 = vld [vmem:[#allocation5 + $0x620] sm:$0xff]
    %v418 = vld [vmem:[#allocation5 + $0x628] sm:$0xff]
    %v419 = vld [vmem:[#allocation5 + $0x630] sm:$0xff]
    %v420 = vld [vmem:[#allocation5 + $0x638] sm:$0xff]
    %v421 = vld [vmem:[#allocation5 + $0x640] sm:$0xff]
    %v422 = vld [vmem:[#allocation5 + $0x648] sm:$0xff]
    %v423 = vld [vmem:[#allocation5 + $0x650] sm:$0xff]
    %v424 = vld [vmem:[#allocation5 + $0x658] sm:$0xff]
    %v425 = vld [vmem:[#allocation5 + $0x660] sm:$0xff]
    %v426 = vld [vmem:[#allocation5 + $0x668] sm:$0xff]
    %v427 = vld [vmem:[#allocation5 + $0x670] sm:$0xff]
    %v428 = vld [vmem:[#allocation5 + $0x678] sm:$0xff]
    %v429 = vld [vmem:[#allocation5 + $0x680] sm:$0xff]
    %v430 = vld [vmem:[#allocation5 + $0x688] sm:$0xff]
    %v431 = vld [vmem:[#allocation5 + $0x690] sm:$0xff]
    %v432 = vld [vmem:[#allocation5 + $0x698] sm:$0xff]
    %v433 = vld [vmem:[#allocation5 + $0x6a0] sm:$0xff]
    %v434 = vld [vmem:[#allocation5 + $0x6a8] sm:$0xff]
    %v435 = vld [vmem:[#allocation5 + $0x6b0] sm:$0xff]
    %v436 = vld [vmem:[#allocation5 + $0x6b8] sm:$0xff]
    %v437 = vld [vmem:[#allocation5 + $0x6c0] sm:$0xff]
    %v438 = vld [vmem:[#allocation5 + $0x6c8] sm:$0xff]
    %v439 = vld [vmem:[#allocation5 + $0x6d0] sm:$0xff]
    %v440 = vld [vmem:[#allocation5 + $0x6d8] sm:$0xff]
    %v441 = vld [vmem:[#allocation5 + $0x6e0] sm:$0xff]
    %v442 = vld [vmem:[#allocation5 + $0x6e8] sm:$0xff]
    %v443 = vld [vmem:[#allocation5 + $0x6f0] sm:$0xff]
    %v444 = vld [vmem:[#allocation5 + $0x6f8] sm:$0xff]
    %v445 = vld [vmem:[#allocation5 + $0x700] sm:$0xff]
    %v446 = vld [vmem:[#allocation5 + $0x708] sm:$0xff]
    %v447 = vld [vmem:[#allocation5 + $0x710] sm:$0xff]
    %v448 = vld [vmem:[#allocation5 + $0x718] sm:$0xff]
    %v449 = vld [vmem:[#allocation5 + $0x720] sm:$0xff]
    %v450 = vld [vmem:[#allocation5 + $0x728] sm:$0xff]
    %v451 = vld [vmem:[#allocation5 + $0x730] sm:$0xff]
    %v452 = vld [vmem:[#allocation5 + $0x738] sm:$0xff]
    %v453 = vld [vmem:[#allocation5 + $0x740] sm:$0xff]
    %v454 = vld [vmem:[#allocation5 + $0x748] sm:$0xff]
    %v455 = vld [vmem:[#allocation5 + $0x750] sm:$0xff]
    %v456 = vld [vmem:[#allocation5 + $0x758] sm:$0xff]
    %v457 = vld [vmem:[#allocation5 + $0x760] sm:$0xff]
    %v458 = vld [vmem:[#allocation5 + $0x768] sm:$0xff]
    %v459 = vld [vmem:[#allocation5 + $0x770] sm:$0xff]
    %v460 = vld [vmem:[#allocation5 + $0x778] sm:$0xff]
    %v461 = vld [vmem:[#allocation5 + $0x780] sm:$0xff]
    %v462 = vld [vmem:[#allocation5 + $0x788] sm:$0xff]
    %v463 = vld [vmem:[#allocation5 + $0x790] sm:$0xff]
    %v464 = vld [vmem:[#allocation5 + $0x798] sm:$0xff]
    %v465 = vld [vmem:[#allocation5 + $0x7a0] sm:$0xff]
    %v466 = vld [vmem:[#allocation5 + $0x7a8] sm:$0xff]
    %v467 = vld [vmem:[#allocation5 + $0x7b0] sm:$0xff]
    %v468 = vld [vmem:[#allocation5 + $0x7b8] sm:$0xff]
    %v469 = vld [vmem:[#allocation5 + $0x7c0] sm:$0xff]
    %v470 = vld [vmem:[#allocation5 + $0x7c8] sm:$0xff]
    %v471 = vld [vmem:[#allocation5 + $0x7d0] sm:$0xff]
    %v472 = vld [vmem:[#allocation5 + $0x7d8] sm:$0xff]
    %v473 = vld [vmem:[#allocation5 + $0x7e0] sm:$0xff]
    %v474 = vld [vmem:[#allocation5 + $0x7e8] sm:$0xff]
    %v475 = vld [vmem:[#allocation5 + $0x7f0] sm:$0xff]
    %v476 = vld [vmem:[#allocation5 + $0x7f8] sm:$0xff]
    %v477 = vld [vmem:[#allocation5 + $0x800] sm:$0xff]
    %v478 = vld [vmem:[#allocation5 + $0x808] sm:$0xff]
    %v479 = vld [vmem:[#allocation5 + $0x810] sm:$0xff]
    %v480 = vld [vmem:[#allocation5 + $0x818] sm:$0xff]
    %v481 = vld [vmem:[#allocation5 + $0x820] sm:$0xff]
    %v482 = vld [vmem:[#allocation5 + $0x828] sm:$0xff]
    %v483 = vld [vmem:[#allocation5 + $0x830] sm:$0xff]
    %v484 = vld [vmem:[#allocation5 + $0x838] sm:$0xff]
    %v485 = vld [vmem:[#allocation5 + $0x840] sm:$0xff]
    %v486 = vld [vmem:[#allocation5 + $0x848] sm:$0xff]
    %v487 = vld [vmem:[#allocation5 + $0x850] sm:$0xff]
    %v488 = vld [vmem:[#allocation5 + $0x858] sm:$0xff]
    %v489 = vld [vmem:[#allocation5 + $0x860] sm:$0xff]
    %v490 = vld [vmem:[#allocation5 + $0x868] sm:$0xff]
    %v491 = vld [vmem:[#allocation5 + $0x870] sm:$0xff]
    %v492 = vld [vmem:[#allocation5 + $0x878] sm:$0xff]
    %v493 = vld [vmem:[#allocation5 + $0x880] sm:$0xff]
    %v494 = vld [vmem:[#allocation5 + $0x888] sm:$0xff]
    %v495 = vld [vmem:[#allocation5 + $0x890] sm:$0xff]
    %v496 = vld [vmem:[#allocation5 + $0x898] sm:$0xff]
    %v497 = vld [vmem:[#allocation5 + $0x8a0] sm:$0xff]
    %v498 = vld [vmem:[#allocation5 + $0x8a8] sm:$0xff]
    %v499 = vld [vmem:[#allocation5 + $0x8b0] sm:$0xff]
    %v500 = vld [vmem:[#allocation5 + $0x8b8] sm:$0xff]
    %v501 = vld [vmem:[#allocation5 + $0x8c0] sm:$0xff]
    %v502 = vld [vmem:[#allocation5 + $0x8c8] sm:$0xff]
    %v503 = vld [vmem:[#allocation5 + $0x8d0] sm:$0xff]
    %v504 = vld [vmem:[#allocation5 + $0x8d8] sm:$0xff]
    %v505 = vld [vmem:[#allocation5 + $0x8e0] sm:$0xff]
    %v506 = vld [vmem:[#allocation5 + $0x8e8] sm:$0xff]
    %v507 = vld [vmem:[#allocation5 + $0x8f0] sm:$0xff]
    %v508 = vld [vmem:[#allocation5 + $0x8f8] sm:$0xff]
    %v509 = vld [vmem:[#allocation5 + $0x900] sm:$0xff]
    %v510 = vld [vmem:[#allocation5 + $0x908] sm:$0xff]
    %v511 = vld [vmem:[#allocation5 + $0x910] sm:$0xff]
    %v512 = vld [vmem:[#allocation5 + $0x918] sm:$0xff]
    %v513 = vld [vmem:[#allocation5 + $0x920] sm:$0xff]
    %v514 = vld [vmem:[#allocation5 + $0x928] sm:$0xff]
    %v515 = vld [vmem:[#allocation5 + $0x930] sm:$0xff]
    %v516 = vld [vmem:[#allocation5 + $0x938] sm:$0xff]
    %v517 = vld [vmem:[#allocation5 + $0x940] sm:$0xff]
    %v518 = vld [vmem:[#allocation5 + $0x948] sm:$0xff]
    %v519 = vld [vmem:[#allocation5 + $0x950] sm:$0xff]
    %v520 = vld [vmem:[#allocation5 + $0x958] sm:$0xff]
    %v521 = vld [vmem:[#allocation5 + $0x960] sm:$0xff]
    %v522 = vld [vmem:[#allocation5 + $0x968] sm:$0xff]
    %v523 = vld [vmem:[#allocation5 + $0x970] sm:$0xff]
    %v524 = vld [vmem:[#allocation5 + $0x978] sm:$0xff]
    %v525 = vld [vmem:[#allocation5 + $0x980] sm:$0xff]
    %v526 = vld [vmem:[#allocation5 + $0x988] sm:$0xff]
    %v527 = vld [vmem:[#allocation5 + $0x990] sm:$0xff]
    %v528 = vld [vmem:[#allocation5 + $0x998] sm:$0xff]
    %v529 = vld [vmem:[#allocation5 + $0x9a0] sm:$0xff]
    %v530 = vld [vmem:[#allocation5 + $0x9a8] sm:$0xff]
    %v531 = vld [vmem:[#allocation5 + $0x9b0] sm:$0xff]
    %v532 = vld [vmem:[#allocation5 + $0x9b8] sm:$0xff]
    %v533 = vld [vmem:[#allocation5 + $0x9c0] sm:$0xff]
    %v534 = vld [vmem:[#allocation5 + $0x9c8] sm:$0xff]
    %v535 = vld [vmem:[#allocation5 + $0x9d0] sm:$0xff]
    %v536 = vld [vmem:[#allocation5 + $0x9d8] sm:$0xff]
    %v537 = vld [vmem:[#allocation5 + $0x9e0] sm:$0xff]
    %v538 = vld [vmem:[#allocation5 + $0x9e8] sm:$0xff]
    %v539 = vld [vmem:[#allocation5 + $0x9f0] sm:$0xff]
    %v540 = vld [vmem:[#allocation5 + $0x9f8] sm:$0xff]
    %v541 = vld [vmem:[#allocation5 + $0xa00] sm:$0xff]
    %v542 = vld [vmem:[#allocation5 + $0xa08] sm:$0xff]
    %v543 = vld [vmem:[#allocation5 + $0xa10] sm:$0xff]
    %v544 = vld [vmem:[#allocation5 + $0xa18] sm:$0xff]
    %v545 = vld [vmem:[#allocation5 + $0xa20] sm:$0xff]
    %v546 = vld [vmem:[#allocation5 + $0xa28] sm:$0xff]
    %v547 = vld [vmem:[#allocation5 + $0xa30] sm:$0xff]
    %v548 = vld [vmem:[#allocation5 + $0xa38] sm:$0xff]
    %v549 = vld [vmem:[#allocation5 + $0xa40] sm:$0xff]
    %v550 = vld [vmem:[#allocation5 + $0xa48] sm:$0xff]
    %v551 = vld [vmem:[#allocation5 + $0xa50] sm:$0xff]
    %v552 = vld [vmem:[#allocation5 + $0xa58] sm:$0xff]
    %v553 = vld [vmem:[#allocation5 + $0xa60] sm:$0xff]
    %v554 = vld [vmem:[#allocation5 + $0xa68] sm:$0xff]
    %v555 = vld [vmem:[#allocation5 + $0xa70] sm:$0xff]
    %v556 = vld [vmem:[#allocation5 + $0xa78] sm:$0xff]
    %v557 = vld [vmem:[#allocation5 + $0xa80] sm:$0xff]
    %v558 = vld [vmem:[#allocation5 + $0xa88] sm:$0xff]
    %v559 = vld [vmem:[#allocation5 + $0xa90] sm:$0xff]
    %v560 = vld [vmem:[#allocation5 + $0xa98] sm:$0xff]
    %v561 = vld [vmem:[#allocation5 + $0xaa0] sm:$0xff]
    %v562 = vld [vmem:[#allocation5 + $0xaa8] sm:$0xff]
    %v563 = vld [vmem:[#allocation5 + $0xab0] sm:$0xff]
    %v564 = vld [vmem:[#allocation5 + $0xab8] sm:$0xff]
    %v565 = vld [vmem:[#allocation5 + $0xac0] sm:$0xff]
    %v566 = vld [vmem:[#allocation5 + $0xac8] sm:$0xff]
    %v567 = vld [vmem:[#allocation5 + $0xad0] sm:$0xff]
    %v568 = vld [vmem:[#allocation5 + $0xad8] sm:$0xff]
    %v569 = vld [vmem:[#allocation5 + $0xae0] sm:$0xff]
    %v570 = vld [vmem:[#allocation5 + $0xae8] sm:$0xff]
    %v571 = vld [vmem:[#allocation5 + $0xaf0] sm:$0xff]
    %v572 = vld [vmem:[#allocation5 + $0xaf8] sm:$0xff]
    %v573 = vld [vmem:[#allocation5 + $0xb00] sm:$0xff]
    %v574 = vld [vmem:[#allocation5 + $0xb08] sm:$0xff]
    %v575 = vld [vmem:[#allocation5 + $0xb10] sm:$0xff]
    %v576 = vld [vmem:[#allocation5 + $0xb18] sm:$0xff]
    %v577 = vld [vmem:[#allocation5 + $0xb20] sm:$0xff]
    %v578 = vld [vmem:[#allocation5 + $0xb28] sm:$0xff]
    %v579 = vld [vmem:[#allocation5 + $0xb30] sm:$0xff]
    %v580 = vld [vmem:[#allocation5 + $0xb38] sm:$0xff]
    %v581 = vld [vmem:[#allocation5 + $0xb40] sm:$0xff]
    %v582 = vld [vmem:[#allocation5 + $0xb48] sm:$0xff]
    %v583 = vld [vmem:[#allocation5 + $0xb50] sm:$0xff]
    %v584 = vld [vmem:[#allocation5 + $0xb58] sm:$0xff]
    %v585 = vld [vmem:[#allocation5 + $0xb60] sm:$0xff]
    %v586 = vld [vmem:[#allocation5 + $0xb68] sm:$0xff]
    %v587 = vld [vmem:[#allocation5 + $0xb70] sm:$0xff]
    %v588 = vld [vmem:[#allocation5 + $0xb78] sm:$0xff]
    %v589 = vld [vmem:[#allocation5 + $0xb80] sm:$0xff]
    %v590 = vld [vmem:[#allocation5 + $0xb88] sm:$0xff]
    %v591 = vld [vmem:[#allocation5 + $0xb90] sm:$0xff]
    %v592 = vld [vmem:[#allocation5 + $0xb98] sm:$0xff]
    %v593 = vld [vmem:[#allocation5 + $0xba0] sm:$0xff]
    %v594 = vld [vmem:[#allocation5 + $0xba8] sm:$0xff]
    %v595 = vld [vmem:[#allocation5 + $0xbb0] sm:$0xff]
    %v596 = vld [vmem:[#allocation5 + $0xbb8] sm:$0xff]
    %v597 = vld [vmem:[#allocation5 + $0xbc0] sm:$0xff]
    %v598 = vld [vmem:[#allocation5 + $0xbc8] sm:$0xff]
    %v599 = vld [vmem:[#allocation5 + $0xbd0] sm:$0xff]
    %v600 = vld [vmem:[#allocation5 + $0xbd8] sm:$0xff]
    %v601 = vld [vmem:[#allocation5 + $0xbe0] sm:$0xff]
    %v602 = vld [vmem:[#allocation5 + $0xbe8] sm:$0xff]
    %v603 = vld [vmem:[#allocation5 + $0xbf0] sm:$0xff]
    %v604 = vld [vmem:[#allocation5 + $0xbf8] sm:$0xff]
    %v605 = vld [vmem:[#allocation5 + $0xc00] sm:$0xff]
    %v606 = vld [vmem:[#allocation5 + $0xc08] sm:$0xff]
    %v607 = vld [vmem:[#allocation5 + $0xc10] sm:$0xff]
    %v608 = vld [vmem:[#allocation5 + $0xc18] sm:$0xff]
    %v609 = vld [vmem:[#allocation5 + $0xc20] sm:$0xff]
    %v610 = vld [vmem:[#allocation5 + $0xc28] sm:$0xff]
    %v611 = vld [vmem:[#allocation5 + $0xc30] sm:$0xff]
    %v612 = vld [vmem:[#allocation5 + $0xc38] sm:$0xff]
    %v613 = vld [vmem:[#allocation5 + $0xc40] sm:$0xff]
    %v614 = vld [vmem:[#allocation5 + $0xc48] sm:$0xff]
    %v615 = vld [vmem:[#allocation5 + $0xc50] sm:$0xff]
    %v616 = vld [vmem:[#allocation5 + $0xc58] sm:$0xff]
    %v617 = vld [vmem:[#allocation5 + $0xc60] sm:$0xff]
    %v618 = vld [vmem:[#allocation5 + $0xc68] sm:$0xff]
    %v619 = vld [vmem:[#allocation5 + $0xc70] sm:$0xff]
    %v620 = vld [vmem:[#allocation5 + $0xc78] sm:$0xff]
    %v621 = vld [vmem:[#allocation5 + $0xc80] sm:$0xff]
    %v622 = vld [vmem:[#allocation5 + $0xc88] sm:$0xff]
    %v623 = vld [vmem:[#allocation5 + $0xc90] sm:$0xff]
    %v624 = vld [vmem:[#allocation5 + $0xc98] sm:$0xff]
    %v625 = vld [vmem:[#allocation5 + $0xca0] sm:$0xff]
    %v626 = vld [vmem:[#allocation5 + $0xca8] sm:$0xff]
    %v627 = vld [vmem:[#allocation5 + $0xcb0] sm:$0xff]
    %v628 = vld [vmem:[#allocation5 + $0xcb8] sm:$0xff]
    %v629 = vld [vmem:[#allocation5 + $0xcc0] sm:$0xff]
    %v630 = vld [vmem:[#allocation5 + $0xcc8] sm:$0xff]
    %v631 = vld [vmem:[#allocation5 + $0xcd0] sm:$0xff]
    %v632 = vld [vmem:[#allocation5 + $0xcd8] sm:$0xff]
    %v633 = vld [vmem:[#allocation5 + $0xce0] sm:$0xff]
    %v634 = vld [vmem:[#allocation5 + $0xce8] sm:$0xff]
    %v635 = vld [vmem:[#allocation5 + $0xcf0] sm:$0xff]
    %v636 = vld [vmem:[#allocation5 + $0xcf8] sm:$0xff]
    %v637 = vld [vmem:[#allocation5 + $0xd00] sm:$0xff]
    %v638 = vld [vmem:[#allocation5 + $0xd08] sm:$0xff]
    %v639 = vld [vmem:[#allocation5 + $0xd10] sm:$0xff]
    %v640 = vld [vmem:[#allocation5 + $0xd18] sm:$0xff]
    %v641 = vld [vmem:[#allocation5 + $0xd20] sm:$0xff]
    %v642 = vld [vmem:[#allocation5 + $0xd28] sm:$0xff]
    %v643 = vld [vmem:[#allocation5 + $0xd30] sm:$0xff]
    %v644 = vld [vmem:[#allocation5 + $0xd38] sm:$0xff]
    %v645 = vld [vmem:[#allocation5 + $0xd40] sm:$0xff]
    %v646 = vld [vmem:[#allocation5 + $0xd48] sm:$0xff]
    %v647 = vld [vmem:[#allocation5 + $0xd50] sm:$0xff]
    %v648 = vld [vmem:[#allocation5 + $0xd58] sm:$0xff]
    %v649 = vld [vmem:[#allocation5 + $0xd60] sm:$0xff]
    %v650 = vld [vmem:[#allocation5 + $0xd68] sm:$0xff]
    %v651 = vld [vmem:[#allocation5 + $0xd70] sm:$0xff]
    %v652 = vld [vmem:[#allocation5 + $0xd78] sm:$0xff]
    %v653 = vld [vmem:[#allocation5 + $0xd80] sm:$0xff]
    %v654 = vld [vmem:[#allocation5 + $0xd88] sm:$0xff]
    %v655 = vld [vmem:[#allocation5 + $0xd90] sm:$0xff]
    %v656 = vld [vmem:[#allocation5 + $0xd98] sm:$0xff]
    %v657 = vld [vmem:[#allocation5 + $0xda0] sm:$0xff]
    %v658 = vld [vmem:[#allocation5 + $0xda8] sm:$0xff]
    %v659 = vld [vmem:[#allocation5 + $0xdb0] sm:$0xff]
    %v660 = vld [vmem:[#allocation5 + $0xdb8] sm:$0xff]
    %v661 = vld [vmem:[#allocation5 + $0xdc0] sm:$0xff]
    %v662 = vld [vmem:[#allocation5 + $0xdc8] sm:$0xff]
    %v663 = vld [vmem:[#allocation5 + $0xdd0] sm:$0xff]
    %v664 = vld [vmem:[#allocation5 + $0xdd8] sm:$0xff]
    %v665 = vld [vmem:[#allocation5 + $0xde0] sm:$0xff]
    %v666 = vld [vmem:[#allocation5 + $0xde8] sm:$0xff]
    %v667 = vld [vmem:[#allocation5 + $0xdf0] sm:$0xff]
    %v668 = vld [vmem:[#allocation5 + $0xdf8] sm:$0xff]
    %v669 = vld [vmem:[#allocation5 + $0xe00] sm:$0xff]
    %v670 = vld [vmem:[#allocation5 + $0xe08] sm:$0xff]
    %v671 = vld [vmem:[#allocation5 + $0xe10] sm:$0xff]
    %v672 = vld [vmem:[#allocation5 + $0xe18] sm:$0xff]
    %v673 = vld [vmem:[#allocation5 + $0xe20] sm:$0xff]
    %v674 = vld [vmem:[#allocation5 + $0xe28] sm:$0xff]
    %v675 = vld [vmem:[#allocation5 + $0xe30] sm:$0xff]
    %v676 = vld [vmem:[#allocation5 + $0xe38] sm:$0xff]
    %v677 = vld [vmem:[#allocation5 + $0xe40] sm:$0xff]
    %v678 = vld [vmem:[#allocation5 + $0xe48] sm:$0xff]
    %v679 = vld [vmem:[#allocation5 + $0xe50] sm:$0xff]
    %v680 = vld [vmem:[#allocation5 + $0xe58] sm:$0xff]
    %v681 = vld [vmem:[#allocation5 + $0xe60] sm:$0xff]
    %v682 = vld [vmem:[#allocation5 + $0xe68] sm:$0xff]
    %v683 = vld [vmem:[#allocation5 + $0xe70] sm:$0xff]
    %v684 = vld [vmem:[#allocation5 + $0xe78] sm:$0xff]
    %v685 = vld [vmem:[#allocation5 + $0xe80] sm:$0xff]
    %v686 = vld [vmem:[#allocation5 + $0xe88] sm:$0xff]
    %v687 = vld [vmem:[#allocation5 + $0xe90] sm:$0xff]
    %v688 = vld [vmem:[#allocation5 + $0xe98] sm:$0xff]
    %v689 = vld [vmem:[#allocation5 + $0xea0] sm:$0xff]
    %v690 = vld [vmem:[#allocation5 + $0xea8] sm:$0xff]
    %v691 = vld [vmem:[#allocation5 + $0xeb0] sm:$0xff]
    %v692 = vld [vmem:[#allocation5 + $0xeb8] sm:$0xff]
    %v693 = vld [vmem:[#allocation5 + $0xec0] sm:$0xff]
    %v694 = vld [vmem:[#allocation5 + $0xec8] sm:$0xff]
    %v695 = vld [vmem:[#allocation5 + $0xed0] sm:$0xff]
    %v696 = vld [vmem:[#allocation5 + $0xed8] sm:$0xff]
    %v697 = vld [vmem:[#allocation5 + $0xee0] sm:$0xff]
    %v698 = vld [vmem:[#allocation5 + $0xee8] sm:$0xff]
    %v699 = vld [vmem:[#allocation5 + $0xef0] sm:$0xff]
    %v700 = vld [vmem:[#allocation5 + $0xef8] sm:$0xff]
    %v701 = vld [vmem:[#allocation5 + $0xf00] sm:$0xff]
    %v702 = vld [vmem:[#allocation5 + $0xf08] sm:$0xff]
    %v703 = vld [vmem:[#allocation5 + $0xf10] sm:$0xff]
    %v704 = vld [vmem:[#allocation5 + $0xf18] sm:$0xff]
    %v705 = vld [vmem:[#allocation5 + $0xf20] sm:$0xff]
    %v706 = vld [vmem:[#allocation5 + $0xf28] sm:$0xff]
    %v707 = vld [vmem:[#allocation5 + $0xf30] sm:$0xff]
    %v708 = vld [vmem:[#allocation5 + $0xf38] sm:$0xff]
    %v709 = vld [vmem:[#allocation5 + $0xf40] sm:$0xff]
    %v710 = vld [vmem:[#allocation5 + $0xf48] sm:$0xff]
    %v711 = vld [vmem:[#allocation5 + $0xf50] sm:$0xff]
    %v712 = vld [vmem:[#allocation5 + $0xf58] sm:$0xff]
    %v713 = vld [vmem:[#allocation5 + $0xf60] sm:$0xff]
    %v714 = vld [vmem:[#allocation5 + $0xf68] sm:$0xff]
    %v715 = vld [vmem:[#allocation5 + $0xf70] sm:$0xff]
    %v716 = vld [vmem:[#allocation5 + $0xf78] sm:$0xff]
    %v717 = vld [vmem:[#allocation5 + $0xf80] sm:$0xff]
    %v718 = vld [vmem:[#allocation5 + $0xf88] sm:$0xff]
    %v719 = vld [vmem:[#allocation5 + $0xf90] sm:$0xff]
    %v720 = vld [vmem:[#allocation5 + $0xf98] sm:$0xff]
    %v721 = vld [vmem:[#allocation5 + $0xfa0] sm:$0xff]
    %v722 = vld [vmem:[#allocation5 + $0xfa8] sm:$0xff]
    %v723 = vld [vmem:[#allocation5 + $0xfb0] sm:$0xff]
    %v724 = vld [vmem:[#allocation5 + $0xfb8] sm:$0xff]
    %v725 = vld [vmem:[#allocation5 + $0xfc0] sm:$0xff]
    %v726 = vld [vmem:[#allocation5 + $0xfc8] sm:$0xff]
    %v727 = vld [vmem:[#allocation5 + $0xfd0] sm:$0xff]
    %v728 = vld [vmem:[#allocation5 + $0xfd8] sm:$0xff]
    %v729 = vld [vmem:[#allocation5 + $0xfe0] sm:$0xff]
    %v730 = vld [vmem:[#allocation5 + $0xfe8] sm:$0xff]
    %v731 = vld [vmem:[#allocation5 + $0xff0] sm:$0xff]
    %v732 = vld [vmem:[#allocation5 + $0xff8] sm:$0xff]
    %v733 = vld [vmem:[#allocation5 + $0x1000] sm:$0xff]
    %v734 = vld [vmem:[#allocation5 + $0x1008] sm:$0xff]
    %v735 = vld [vmem:[#allocation5 + $0x1010] sm:$0xff]
    %v736 = vld [vmem:[#allocation5 + $0x1018] sm:$0xff]
    %v737 = vld [vmem:[#allocation5 + $0x1020] sm:$0xff]
    %v738 = vld [vmem:[#allocation5 + $0x1028] sm:$0xff]
    %v739 = vld [vmem:[#allocation5 + $0x1030] sm:$0xff]
    %v740 = vld [vmem:[#allocation5 + $0x1038] sm:$0xff]
    %v741 = vld [vmem:[#allocation5 + $0x1040] sm:$0xff]
    %v742 = vld [vmem:[#allocation5 + $0x1048] sm:$0xff]
    %v743 = vld [vmem:[#allocation5 + $0x1050] sm:$0xff]
    %v744 = vld [vmem:[#allocation5 + $0x1058] sm:$0xff]
    %v745 = vld [vmem:[#allocation5 + $0x1060] sm:$0xff]
    %v746 = vld [vmem:[#allocation5 + $0x1068] sm:$0xff]
    %v747 = vld [vmem:[#allocation5 + $0x1070] sm:$0xff]
    %v748 = vld [vmem:[#allocation5 + $0x1078] sm:$0xff]
    %v749 = vld [vmem:[#allocation5 + $0x1080] sm:$0xff]
    %v750 = vld [vmem:[#allocation5 + $0x1088] sm:$0xff]
    %v751 = vld [vmem:[#allocation5 + $0x1090] sm:$0xff]
    %v752 = vld [vmem:[#allocation5 + $0x1098] sm:$0xff]
    %v753 = vld [vmem:[#allocation5 + $0x10a0] sm:$0xff]
    %v754 = vld [vmem:[#allocation5 + $0x10a8] sm:$0xff]
    %v755 = vld [vmem:[#allocation5 + $0x10b0] sm:$0xff]
    %v756 = vld [vmem:[#allocation5 + $0x10b8] sm:$0xff]
    %v757 = vld [vmem:[#allocation5 + $0x10c0] sm:$0xff]
    %v758 = vld [vmem:[#allocation5 + $0x10c8] sm:$0xff]
    %v759 = vld [vmem:[#allocation5 + $0x10d0] sm:$0xff]
    %v760 = vld [vmem:[#allocation5 + $0x10d8] sm:$0xff]
    %v761 = vld [vmem:[#allocation5 + $0x10e0] sm:$0xff]
    %v762 = vld [vmem:[#allocation5 + $0x10e8] sm:$0xff]
    %v763 = vld [vmem:[#allocation5 + $0x10f0] sm:$0xff]
    %v764 = vld [vmem:[#allocation5 + $0x10f8] sm:$0xff]
    %v765 = vld [vmem:[#allocation5 + $0x1100] sm:$0xff]
    %v766 = vld [vmem:[#allocation5 + $0x1108] sm:$0xff]
    %v767 = vld [vmem:[#allocation5 + $0x1110] sm:$0xff]
    %v768 = vld [vmem:[#allocation5 + $0x1118] sm:$0xff]
    %v769 = vld [vmem:[#allocation5 + $0x1120] sm:$0xff]
    %v770 = vld [vmem:[#allocation5 + $0x1128] sm:$0xff]
    %v771 = vld [vmem:[#allocation5 + $0x1130] sm:$0xff]
    %v772 = vld [vmem:[#allocation5 + $0x1138] sm:$0xff]
    %v773 = vld [vmem:[#allocation5 + $0x1140] sm:$0xff]
    %v774 = vld [vmem:[#allocation5 + $0x1148] sm:$0xff]
    %v775 = vld [vmem:[#allocation5 + $0x1150] sm:$0xff]
    %v776 = vld [vmem:[#allocation5 + $0x1158] sm:$0xff]
    %v777 = vld [vmem:[#allocation5 + $0x1160] sm:$0xff]
    %v778 = vld [vmem:[#allocation5 + $0x1168] sm:$0xff]
    %v779 = vld [vmem:[#allocation5 + $0x1170] sm:$0xff]
    %v780 = vld [vmem:[#allocation5 + $0x1178] sm:$0xff]
    %v781 = vld [vmem:[#allocation5 + $0x1180] sm:$0xff]
    %v782 = vld [vmem:[#allocation5 + $0x1188] sm:$0xff]
    %v783 = vld [vmem:[#allocation5 + $0x1190] sm:$0xff]
    %v784 = vld [vmem:[#allocation5 + $0x1198] sm:$0xff]
    %v785 = vld [vmem:[#allocation5 + $0x11a0] sm:$0xff]
    %v786 = vld [vmem:[#allocation5 + $0x11a8] sm:$0xff]
    %v787 = vld [vmem:[#allocation5 + $0x11b0] sm:$0xff]
    %v788 = vld [vmem:[#allocation5 + $0x11b8] sm:$0xff]
    %v789 = vld [vmem:[#allocation5 + $0x11c0] sm:$0xff]
    %v790 = vld [vmem:[#allocation5 + $0x11c8] sm:$0xff]
    %v791 = vld [vmem:[#allocation5 + $0x11d0] sm:$0xff]
    %v792 = vld [vmem:[#allocation5 + $0x11d8] sm:$0xff]
    %v793 = vld [vmem:[#allocation5 + $0x11e0] sm:$0xff]
    %v794 = vld [vmem:[#allocation5 + $0x11e8] sm:$0xff]
    %v795 = vld [vmem:[#allocation5 + $0x11f0] sm:$0xff]
    %v796 = vld [vmem:[#allocation5 + $0x11f8] sm:$0xff]
    %v797 = vld [vmem:[#allocation5 + $0x1200] sm:$0xff]
    %v798 = vld [vmem:[#allocation5 + $0x1208] sm:$0xff]
    %v799 = vld [vmem:[#allocation5 + $0x1210] sm:$0xff]
    %v800 = vld [vmem:[#allocation5 + $0x1218] sm:$0xff]
    %v801 = vld [vmem:[#allocation5 + $0x1220] sm:$0xff]
    %v802 = vld [vmem:[#allocation5 + $0x1228] sm:$0xff]
    %v803 = vld [vmem:[#allocation5 + $0x1230] sm:$0xff]
    %v804 = vld [vmem:[#allocation5 + $0x1238] sm:$0xff]
    %v805 = vld [vmem:[#allocation5 + $0x1240] sm:$0xff]
    %v806 = vld [vmem:[#allocation5 + $0x1248] sm:$0xff]
    %v807 = vld [vmem:[#allocation5 + $0x1250] sm:$0xff]
    %v808 = vld [vmem:[#allocation5 + $0x1258] sm:$0xff]
    %v809 = vld [vmem:[#allocation5 + $0x1260] sm:$0xff]
    %v810 = vld [vmem:[#allocation5 + $0x1268] sm:$0xff]
    %v811 = vld [vmem:[#allocation5 + $0x1270] sm:$0xff]
    %v812 = vld [vmem:[#allocation5 + $0x1278] sm:$0xff]
    %v813 = vld [vmem:[#allocation5 + $0x1280] sm:$0xff]
    %v814 = vld [vmem:[#allocation5 + $0x1288] sm:$0xff]
    %v815 = vld [vmem:[#allocation5 + $0x1290] sm:$0xff]
    %v816 = vld [vmem:[#allocation5 + $0x1298] sm:$0xff]
    %v817 = vld [vmem:[#allocation5 + $0x12a0] sm:$0xff]
    %v818 = vld [vmem:[#allocation5 + $0x12a8] sm:$0xff]
    %v819 = vld [vmem:[#allocation5 + $0x12b0] sm:$0xff]
    %v820 = vld [vmem:[#allocation5 + $0x12b8] sm:$0xff]
    %v821 = vld [vmem:[#allocation5 + $0x12c0] sm:$0xff]
    %v822 = vld [vmem:[#allocation5 + $0x12c8] sm:$0xff]
    %v823 = vld [vmem:[#allocation5 + $0x12d0] sm:$0xff]
    %v824 = vld [vmem:[#allocation5 + $0x12d8] sm:$0xff]
    %v825 = vld [vmem:[#allocation5 + $0x12e0] sm:$0xff]
    %v826 = vld [vmem:[#allocation5 + $0x12e8] sm:$0xff]
    %v827 = vld [vmem:[#allocation5 + $0x12f0] sm:$0xff]
    %v828 = vld [vmem:[#allocation5 + $0x12f8] sm:$0xff]
    %v829 = vld [vmem:[#allocation5 + $0x1300] sm:$0xff]
    %v830 = vld [vmem:[#allocation5 + $0x1308] sm:$0xff]
    %v831 = vld [vmem:[#allocation5 + $0x1310] sm:$0xff]
    %v832 = vld [vmem:[#allocation5 + $0x1318] sm:$0xff]
    %v833 = vld [vmem:[#allocation5 + $0x1320] sm:$0xff]
    %v834 = vld [vmem:[#allocation5 + $0x1328] sm:$0xff]
    %v835 = vld [vmem:[#allocation5 + $0x1330] sm:$0xff]
    %v836 = vld [vmem:[#allocation5 + $0x1338] sm:$0xff]
    %v837 = vld [vmem:[#allocation5 + $0x1340] sm:$0xff]
    %v838 = vld [vmem:[#allocation5 + $0x1348] sm:$0xff]
    %v839 = vld [vmem:[#allocation5 + $0x1350] sm:$0xff]
    %v840 = vld [vmem:[#allocation5 + $0x1358] sm:$0xff]
    %v841 = vld [vmem:[#allocation5 + $0x1360] sm:$0xff]
    %v842 = vld [vmem:[#allocation5 + $0x1368] sm:$0xff]
    %v843 = vld [vmem:[#allocation5 + $0x1370] sm:$0xff]
    %v844 = vld [vmem:[#allocation5 + $0x1378] sm:$0xff]
    %v845 = vld [vmem:[#allocation5 + $0x1380] sm:$0xff]
    %v846 = vld [vmem:[#allocation5 + $0x1388] sm:$0xff]
    %v847 = vld [vmem:[#allocation5 + $0x1390] sm:$0xff]
    %v848 = vld [vmem:[#allocation5 + $0x1398] sm:$0xff]
    %v849 = vld [vmem:[#allocation5 + $0x13a0] sm:$0xff]
    %v850 = vld [vmem:[#allocation5 + $0x13a8] sm:$0xff]
    %v851 = vld [vmem:[#allocation5 + $0x13b0] sm:$0xff]
    %v852 = vld [vmem:[#allocation5 + $0x13b8] sm:$0xff]
    %v853 = vld [vmem:[#allocation5 + $0x13c0] sm:$0xff]
    %v854 = vld [vmem:[#allocation5 + $0x13c8] sm:$0xff]
    %v855 = vld [vmem:[#allocation5 + $0x13d0] sm:$0xff]
    %v856 = vld [vmem:[#allocation5 + $0x13d8] sm:$0xff]
    %v857 = vld [vmem:[#allocation5 + $0x13e0] sm:$0xff]
    %v858 = vld [vmem:[#allocation5 + $0x13e8] sm:$0xff]
    %v859 = vld [vmem:[#allocation5 + $0x13f0] sm:$0xff]
    %v860 = vld [vmem:[#allocation5 + $0x13f8] sm:$0xff]
    %v861 = vld [vmem:[#allocation5 + $0x1400] sm:$0xff]
    %v862 = vld [vmem:[#allocation5 + $0x1408] sm:$0xff]
    %v863 = vld [vmem:[#allocation5 + $0x1410] sm:$0xff]
    %v864 = vld [vmem:[#allocation5 + $0x1418] sm:$0xff]
    %v865 = vld [vmem:[#allocation5 + $0x1420] sm:$0xff]
    %v866 = vld [vmem:[#allocation5 + $0x1428] sm:$0xff]
    %v867 = vld [vmem:[#allocation5 + $0x1430] sm:$0xff]
    %v868 = vld [vmem:[#allocation5 + $0x1438] sm:$0xff]
    %v869 = vld [vmem:[#allocation5 + $0x1440] sm:$0xff]
    %v870 = vld [vmem:[#allocation5 + $0x1448] sm:$0xff]
    %v871 = vld [vmem:[#allocation5 + $0x1450] sm:$0xff]
    %v872 = vld [vmem:[#allocation5 + $0x1458] sm:$0xff]
    %v873 = vld [vmem:[#allocation5 + $0x1460] sm:$0xff]
    %v874 = vld [vmem:[#allocation5 + $0x1468] sm:$0xff]
    %v875 = vld [vmem:[#allocation5 + $0x1470] sm:$0xff]
    %v876 = vld [vmem:[#allocation5 + $0x1478] sm:$0xff]
    %v877 = vld [vmem:[#allocation5 + $0x1480] sm:$0xff]
    %v878 = vld [vmem:[#allocation5 + $0x1488] sm:$0xff]
    %v879 = vld [vmem:[#allocation5 + $0x1490] sm:$0xff]
    %v880 = vld [vmem:[#allocation5 + $0x1498] sm:$0xff]
    %v881 = vld [vmem:[#allocation5 + $0x14a0] sm:$0xff]
    %v882 = vld [vmem:[#allocation5 + $0x14a8] sm:$0xff]
    %v883 = vld [vmem:[#allocation5 + $0x14b0] sm:$0xff]
    %v884 = vld [vmem:[#allocation5 + $0x14b8] sm:$0xff]
    %v885 = vld [vmem:[#allocation7] sm:$0xff]
    %v887 = vperm.slane %v885, 0
    %v888 = vperm.slane %v885, 1
    %v889 = vperm.slane %v885, 2
    %v890 = vperm.slane %v885, 3
    %v891 = vperm.slane %v885, 4
    %v892 = vperm.slane %v885, 5
    %v893 = vperm.slane %v885, 6
    %v894 = vperm.slane %v885, 7
    %v1567 = vunpack.c.l.b16 %v221
    %v1568 = vunpack.c.h.b16 %v221
    %v1569 = vunpack.c.l.b16 %v222
    %v1570 = vunpack.c.h.b16 %v222
    %v1571 = vunpack.c.l.b16 %v223
    %v1572 = vunpack.c.h.b16 %v223
    %v1573 = vunpack.c.l.b16 %v224
    %v1574 = vunpack.c.h.b16 %v224
    %v1575 = vunpack.c.l.b16 %v225
    %v1576 = vunpack.c.h.b16 %v225
    %v1577 = vunpack.c.l.b16 %v226
    %v1578 = vunpack.c.h.b16 %v226
    %v1579 = vunpack.c.l.b16 %v227
    %v1580 = vunpack.c.h.b16 %v227
    %v1581 = vunpack.c.l.b16 %v228
    %v1582 = vunpack.c.h.b16 %v228
    %v1583 = vunpack.c.l.b16 %v229
    %v1584 = vunpack.c.h.b16 %v229
    %v1585 = vunpack.c.l.b16 %v230
    %v1586 = vunpack.c.h.b16 %v230
    %v1587 = vunpack.c.l.b16 %v231
    %v1588 = vunpack.c.h.b16 %v231
    %v1589 = vunpack.c.l.b16 %v232
    %v1590 = vunpack.c.h.b16 %v232
    %v1591 = vunpack.c.l.b16 %v233
    %v1592 = vunpack.c.h.b16 %v233
    %v1593 = vunpack.c.l.b16 %v234
    %v1594 = vunpack.c.h.b16 %v234
    %v1595 = vunpack.c.l.b16 %v235
    %v1596 = vunpack.c.h.b16 %v235
    %v1597 = vunpack.c.l.b16 %v236
    %v1598 = vunpack.c.h.b16 %v236
    %v1599 = vunpack.c.l.b16 %v237
    %v1600 = vunpack.c.h.b16 %v237
    %v1601 = vunpack.c.l.b16 %v238
    %v1602 = vunpack.c.h.b16 %v238
    %v1603 = vunpack.c.l.b16 %v239
    %v1604 = vunpack.c.h.b16 %v239
    %v1605 = vunpack.c.l.b16 %v240
    %v1606 = vunpack.c.h.b16 %v240
    %v1607 = vunpack.c.l.b16 %v241
    %v1608 = vunpack.c.h.b16 %v241
    %v1609 = vunpack.c.l.b16 %v242
    %v1610 = vunpack.c.h.b16 %v242
    %v1611 = vunpack.c.l.b16 %v243
    %v1612 = vunpack.c.h.b16 %v243
    %v1613 = vunpack.c.l.b16 %v244
    %v1614 = vunpack.c.h.b16 %v244
    %v1615 = vunpack.c.l.b16 %v245
    %v1616 = vunpack.c.h.b16 %v245
    %v1617 = vunpack.c.l.b16 %v246
    %v1618 = vunpack.c.h.b16 %v246
    %v1619 = vunpack.c.l.b16 %v247
    %v1620 = vunpack.c.h.b16 %v247
    %v1621 = vunpack.c.l.b16 %v248
    %v1622 = vunpack.c.h.b16 %v248
    %v1623 = vunpack.c.l.b16 %v249
    %v1624 = vunpack.c.h.b16 %v249
    %v1625 = vunpack.c.l.b16 %v250
    %v1626 = vunpack.c.h.b16 %v250
    %v1627 = vunpack.c.l.b16 %v251
    %v1628 = vunpack.c.h.b16 %v251
    %v1629 = vunpack.c.l.b16 %v252
    %v1630 = vunpack.c.h.b16 %v252
    %v1631 = vunpack.c.l.b16 %v253
    %v1632 = vunpack.c.h.b16 %v253
    %v1633 = vunpack.c.l.b16 %v254
    %v1634 = vunpack.c.h.b16 %v254
    %v1635 = vunpack.c.l.b16 %v255
    %v1636 = vunpack.c.h.b16 %v255
    %v1637 = vunpack.c.l.b16 %v256
    %v1638 = vunpack.c.h.b16 %v256
    %v1639 = vunpack.c.l.b16 %v257
    %v1640 = vunpack.c.h.b16 %v257
    %v1641 = vunpack.c.l.b16 %v258
    %v1642 = vunpack.c.h.b16 %v258
    %v1643 = vunpack.c.l.b16 %v259
    %v1644 = vunpack.c.h.b16 %v259
    %v1645 = vunpack.c.l.b16 %v260
    %v1646 = vunpack.c.h.b16 %v260
    %v1647 = vunpack.c.l.b16 %v261
    %v1648 = vunpack.c.h.b16 %v261
    %v1649 = vunpack.c.l.b16 %v262
    %v1650 = vunpack.c.h.b16 %v262
    %v1651 = vunpack.c.l.b16 %v263
    %v1652 = vunpack.c.h.b16 %v263
    %v1653 = vunpack.c.l.b16 %v264
    %v1654 = vunpack.c.h.b16 %v264
    %v1655 = vunpack.c.l.b16 %v265
    %v1656 = vunpack.c.h.b16 %v265
    %v1657 = vunpack.c.l.b16 %v266
    %v1658 = vunpack.c.h.b16 %v266
    %v1659 = vunpack.c.l.b16 %v267
    %v1660 = vunpack.c.h.b16 %v267
    %v1661 = vunpack.c.l.b16 %v268
    %v1662 = vunpack.c.h.b16 %v268
    %v1663 = vunpack.c.l.b16 %v269
    %v1664 = vunpack.c.h.b16 %v269
    %v1665 = vunpack.c.l.b16 %v270
    %v1666 = vunpack.c.h.b16 %v270
    %v1667 = vunpack.c.l.b16 %v271
    %v1668 = vunpack.c.h.b16 %v271
    %v1669 = vunpack.c.l.b16 %v272
    %v1670 = vunpack.c.h.b16 %v272
    %v1671 = vunpack.c.l.b16 %v273
    %v1672 = vunpack.c.h.b16 %v273
    %v1673 = vunpack.c.l.b16 %v274
    %v1674 = vunpack.c.h.b16 %v274
    %v1675 = vunpack.c.l.b16 %v275
    %v1676 = vunpack.c.h.b16 %v275
    %v1677 = vunpack.c.l.b16 %v276
    %v1678 = vunpack.c.h.b16 %v276
    %v1679 = vunpack.c.l.b16 %v277
    %v1680 = vunpack.c.h.b16 %v277
    %v1681 = vunpack.c.l.b16 %v278
    %v1682 = vunpack.c.h.b16 %v278
    %v1683 = vunpack.c.l.b16 %v279
    %v1684 = vunpack.c.h.b16 %v279
    %v1685 = vunpack.c.l.b16 %v280
    %v1686 = vunpack.c.h.b16 %v280
    %v1687 = vunpack.c.l.b16 %v281
    %v1688 = vunpack.c.h.b16 %v281
    %v1689 = vunpack.c.l.b16 %v282
    %v1690 = vunpack.c.h.b16 %v282
    %v1691 = vunpack.c.l.b16 %v283
    %v1692 = vunpack.c.h.b16 %v283
    %v1693 = vunpack.c.l.b16 %v284
    %v1694 = vunpack.c.h.b16 %v284
    %v1695 = vunpack.c.l.b16 %v285
    %v1696 = vunpack.c.h.b16 %v285
    %v1697 = vunpack.c.l.b16 %v286
    %v1698 = vunpack.c.h.b16 %v286
    %v1699 = vunpack.c.l.b16 %v287
    %v1700 = vunpack.c.h.b16 %v287
    %v1701 = vunpack.c.l.b16 %v288
    %v1702 = vunpack.c.h.b16 %v288
    %v1703 = vunpack.c.l.b16 %v289
    %v1704 = vunpack.c.h.b16 %v289
    %v1705 = vunpack.c.l.b16 %v290
    %v1706 = vunpack.c.h.b16 %v290
    %v1707 = vunpack.c.l.b16 %v291
    %v1708 = vunpack.c.h.b16 %v291
    %v1709 = vunpack.c.l.b16 %v292
    %v1710 = vunpack.c.h.b16 %v292
    %v1711 = vunpack.c.l.b16 %v293
    %v1712 = vunpack.c.h.b16 %v293
    %v1713 = vunpack.c.l.b16 %v294
    %v1714 = vunpack.c.h.b16 %v294
    %v1715 = vunpack.c.l.b16 %v295
    %v1716 = vunpack.c.h.b16 %v295
    %v1717 = vunpack.c.l.b16 %v296
    %v1718 = vunpack.c.h.b16 %v296
    %v1719 = vunpack.c.l.b16 %v297
    %v1720 = vunpack.c.h.b16 %v297
    %v1721 = vunpack.c.l.b16 %v298
    %v1722 = vunpack.c.h.b16 %v298
    %v1723 = vunpack.c.l.b16 %v299
    %v1724 = vunpack.c.h.b16 %v299
    %v1725 = vunpack.c.l.b16 %v300
    %v1726 = vunpack.c.h.b16 %v300
    %v1727 = vunpack.c.l.b16 %v301
    %v1728 = vunpack.c.h.b16 %v301
    %v1729 = vunpack.c.l.b16 %v302
    %v1730 = vunpack.c.h.b16 %v302
    %v1731 = vunpack.c.l.b16 %v303
    %v1732 = vunpack.c.h.b16 %v303
    %v1733 = vunpack.c.l.b16 %v304
    %v1734 = vunpack.c.h.b16 %v304
    %v1735 = vunpack.c.l.b16 %v305
    %v1736 = vunpack.c.h.b16 %v305
    %v1737 = vunpack.c.l.b16 %v306
    %v1738 = vunpack.c.h.b16 %v306
    %v1739 = vunpack.c.l.b16 %v307
    %v1740 = vunpack.c.h.b16 %v307
    %v1741 = vunpack.c.l.b16 %v308
    %v1742 = vunpack.c.h.b16 %v308
    %v1743 = vunpack.c.l.b16 %v309
    %v1744 = vunpack.c.h.b16 %v309
    %v1745 = vunpack.c.l.b16 %v310
    %v1746 = vunpack.c.h.b16 %v310
    %v1747 = vunpack.c.l.b16 %v311
    %v1748 = vunpack.c.h.b16 %v311
    %v1749 = vunpack.c.l.b16 %v312
    %v1750 = vunpack.c.h.b16 %v312
    %v1751 = vunpack.c.l.b16 %v313
    %v1752 = vunpack.c.h.b16 %v313
    %v1753 = vunpack.c.l.b16 %v314
    %v1754 = vunpack.c.h.b16 %v314
    %v1755 = vunpack.c.l.b16 %v315
    %v1756 = vunpack.c.h.b16 %v315
    %v1757 = vunpack.c.l.b16 %v316
    %v1758 = vunpack.c.h.b16 %v316
    %v1759 = vunpack.c.l.b16 %v317
    %v1760 = vunpack.c.h.b16 %v317
    %v1761 = vunpack.c.l.b16 %v318
    %v1762 = vunpack.c.h.b16 %v318
    %v1763 = vunpack.c.l.b16 %v319
    %v1764 = vunpack.c.h.b16 %v319
    %v1765 = vunpack.c.l.b16 %v320
    %v1766 = vunpack.c.h.b16 %v320
    %v1767 = vunpack.c.l.b16 %v321
    %v1768 = vunpack.c.h.b16 %v321
    %v1769 = vunpack.c.l.b16 %v322
    %v1770 = vunpack.c.h.b16 %v322
    %v1771 = vunpack.c.l.b16 %v323
    %v1772 = vunpack.c.h.b16 %v323
    %v1773 = vunpack.c.l.b16 %v324
    %v1774 = vunpack.c.h.b16 %v324
    %v1775 = vunpack.c.l.b16 %v325
    %v1776 = vunpack.c.h.b16 %v325
    %v1777 = vunpack.c.l.b16 %v326
    %v1778 = vunpack.c.h.b16 %v326
    %v1779 = vunpack.c.l.b16 %v327
    %v1780 = vunpack.c.h.b16 %v327
    %v1781 = vunpack.c.l.b16 %v328
    %v1782 = vunpack.c.h.b16 %v328
    %v1783 = vunpack.c.l.b16 %v329
    %v1784 = vunpack.c.h.b16 %v329
    %v1785 = vunpack.c.l.b16 %v330
    %v1786 = vunpack.c.h.b16 %v330
    %v1787 = vunpack.c.l.b16 %v331
    %v1788 = vunpack.c.h.b16 %v331
    %v1789 = vunpack.c.l.b16 %v332
    %v1790 = vunpack.c.h.b16 %v332
    %v1791 = vunpack.c.l.b16 %v333
    %v1792 = vunpack.c.h.b16 %v333
    %v1793 = vunpack.c.l.b16 %v334
    %v1794 = vunpack.c.h.b16 %v334
    %v1795 = vunpack.c.l.b16 %v335
    %v1796 = vunpack.c.h.b16 %v335
    %v1797 = vunpack.c.l.b16 %v336
    %v1798 = vunpack.c.h.b16 %v336
    %v1799 = vunpack.c.l.b16 %v337
    %v1800 = vunpack.c.h.b16 %v337
    %v1801 = vunpack.c.l.b16 %v338
    %v1802 = vunpack.c.h.b16 %v338
    %v1803 = vunpack.c.l.b16 %v339
    %v1804 = vunpack.c.h.b16 %v339
    %v1805 = vunpack.c.l.b16 %v340
    %v1806 = vunpack.c.h.b16 %v340
    %v1807 = vunpack.c.l.b16 %v341
    %v1808 = vunpack.c.h.b16 %v341
    %v1809 = vunpack.c.l.b16 %v342
    %v1810 = vunpack.c.h.b16 %v342
    %v1811 = vunpack.c.l.b16 %v343
    %v1812 = vunpack.c.h.b16 %v343
    %v1813 = vunpack.c.l.b16 %v344
    %v1814 = vunpack.c.h.b16 %v344
    %v1815 = vunpack.c.l.b16 %v345
    %v1816 = vunpack.c.h.b16 %v345
    %v1817 = vunpack.c.l.b16 %v346
    %v1818 = vunpack.c.h.b16 %v346
    %v1819 = vunpack.c.l.b16 %v347
    %v1820 = vunpack.c.h.b16 %v347
    %v1821 = vunpack.c.l.b16 %v348
    %v1822 = vunpack.c.h.b16 %v348
    %v1823 = vunpack.c.l.b16 %v349
    %v1824 = vunpack.c.h.b16 %v349
    %v1825 = vunpack.c.l.b16 %v350
    %v1826 = vunpack.c.h.b16 %v350
    %v1827 = vunpack.c.l.b16 %v351
    %v1828 = vunpack.c.h.b16 %v351
    %v1829 = vunpack.c.l.b16 %v352
    %v1830 = vunpack.c.h.b16 %v352
    %v1831 = vunpack.c.l.b16 %v353
    %v1832 = vunpack.c.h.b16 %v353
    %v1833 = vunpack.c.l.b16 %v354
    %v1834 = vunpack.c.h.b16 %v354
    %v1835 = vunpack.c.l.b16 %v355
    %v1836 = vunpack.c.h.b16 %v355
    %v1837 = vunpack.c.l.b16 %v356
    %v1838 = vunpack.c.h.b16 %v356
    %v1839 = vunpack.c.l.b16 %v357
    %v1840 = vunpack.c.h.b16 %v357
    %v1841 = vunpack.c.l.b16 %v358
    %v1842 = vunpack.c.h.b16 %v358
    %v1843 = vunpack.c.l.b16 %v359
    %v1844 = vunpack.c.h.b16 %v359
    %v1845 = vunpack.c.l.b16 %v360
    %v1846 = vunpack.c.h.b16 %v360
    %v1847 = vunpack.c.l.b16 %v361
    %v1848 = vunpack.c.h.b16 %v361
    %v1849 = vunpack.c.l.b16 %v362
    %v1850 = vunpack.c.h.b16 %v362
    %v1851 = vunpack.c.l.b16 %v363
    %v1852 = vunpack.c.h.b16 %v363
    %v1853 = vunpack.c.l.b16 %v364
    %v1854 = vunpack.c.h.b16 %v364
    %v1855 = vunpack.c.l.b16 %v365
    %v1856 = vunpack.c.h.b16 %v365
    %v1857 = vunpack.c.l.b16 %v366
    %v1858 = vunpack.c.h.b16 %v366
    %v1859 = vunpack.c.l.b16 %v367
    %v1860 = vunpack.c.h.b16 %v367
    %v1861 = vunpack.c.l.b16 %v368
    %v1862 = vunpack.c.h.b16 %v368
    %v1863 = vunpack.c.l.b16 %v369
    %v1864 = vunpack.c.h.b16 %v369
    %v1865 = vunpack.c.l.b16 %v370
    %v1866 = vunpack.c.h.b16 %v370
    %v1867 = vunpack.c.l.b16 %v371
    %v1868 = vunpack.c.h.b16 %v371
    %v1869 = vunpack.c.l.b16 %v372
    %v1870 = vunpack.c.h.b16 %v372
    %v1871 = vunpack.c.l.b16 %v373
    %v1872 = vunpack.c.h.b16 %v373
    %v1873 = vunpack.c.l.b16 %v374
    %v1874 = vunpack.c.h.b16 %v374
    %v1875 = vunpack.c.l.b16 %v375
    %v1876 = vunpack.c.h.b16 %v375
    %v1877 = vunpack.c.l.b16 %v376
    %v1878 = vunpack.c.h.b16 %v376
    %v1879 = vunpack.c.l.b16 %v377
    %v1880 = vunpack.c.h.b16 %v377
    %v1881 = vunpack.c.l.b16 %v378
    %v1882 = vunpack.c.h.b16 %v378
    %v1883 = vunpack.c.l.b16 %v379
    %v1884 = vunpack.c.h.b16 %v379
    %v1885 = vunpack.c.l.b16 %v380
    %v1886 = vunpack.c.h.b16 %v380
    %v1887 = vunpack.c.l.b16 %v381
    %v1888 = vunpack.c.h.b16 %v381
    %v1889 = vunpack.c.l.b16 %v382
    %v1890 = vunpack.c.h.b16 %v382
    %v1891 = vunpack.c.l.b16 %v383
    %v1892 = vunpack.c.h.b16 %v383
    %v1893 = vunpack.c.l.b16 %v384
    %v1894 = vunpack.c.h.b16 %v384
    %v1895 = vunpack.c.l.b16 %v385
    %v1896 = vunpack.c.h.b16 %v385
    %v1897 = vunpack.c.l.b16 %v386
    %v1898 = vunpack.c.h.b16 %v386
    %v1899 = vunpack.c.l.b16 %v387
    %v1900 = vunpack.c.h.b16 %v387
    %v1901 = vunpack.c.l.b16 %v388
    %v1902 = vunpack.c.h.b16 %v388
    %v1903 = vunpack.c.l.b16 %v389
    %v1904 = vunpack.c.h.b16 %v389
    %v1905 = vunpack.c.l.b16 %v390
    %v1906 = vunpack.c.h.b16 %v390
    %v1907 = vunpack.c.l.b16 %v391
    %v1908 = vunpack.c.h.b16 %v391
    %v1909 = vunpack.c.l.b16 %v392
    %v1910 = vunpack.c.h.b16 %v392
    %v1911 = vunpack.c.l.b16 %v393
    %v1912 = vunpack.c.h.b16 %v393
    %v1913 = vunpack.c.l.b16 %v394
    %v1914 = vunpack.c.h.b16 %v394
    %v1915 = vunpack.c.l.b16 %v395
    %v1916 = vunpack.c.h.b16 %v395
    %v1917 = vunpack.c.l.b16 %v396
    %v1918 = vunpack.c.h.b16 %v396
    %v1919 = vunpack.c.l.b16 %v397
    %v1920 = vunpack.c.h.b16 %v397
    %v1921 = vunpack.c.l.b16 %v398
    %v1922 = vunpack.c.h.b16 %v398
    %v1923 = vunpack.c.l.b16 %v399
    %v1924 = vunpack.c.h.b16 %v399
    %v1925 = vunpack.c.l.b16 %v400
    %v1926 = vunpack.c.h.b16 %v400
    %v1927 = vunpack.c.l.b16 %v401
    %v1928 = vunpack.c.h.b16 %v401
    %v1929 = vunpack.c.l.b16 %v402
    %v1930 = vunpack.c.h.b16 %v402
    %v1931 = vunpack.c.l.b16 %v403
    %v1932 = vunpack.c.h.b16 %v403
    %v1933 = vunpack.c.l.b16 %v404
    %v1934 = vunpack.c.h.b16 %v404
    %v1935 = vunpack.c.l.b16 %v405
    %v1936 = vunpack.c.h.b16 %v405
    %v1937 = vunpack.c.l.b16 %v406
    %v1938 = vunpack.c.h.b16 %v406
    %v1939 = vunpack.c.l.b16 %v407
    %v1940 = vunpack.c.h.b16 %v407
    %v1941 = vunpack.c.l.b16 %v408
    %v1942 = vunpack.c.h.b16 %v408
    %v1943 = vunpack.c.l.b16 %v409
    %v1944 = vunpack.c.h.b16 %v409
    %v1945 = vunpack.c.l.b16 %v410
    %v1946 = vunpack.c.h.b16 %v410
    %v1947 = vunpack.c.l.b16 %v411
    %v1948 = vunpack.c.h.b16 %v411
    %v1949 = vunpack.c.l.b16 %v412
    %v1950 = vunpack.c.h.b16 %v412
    %v1951 = vunpack.c.l.b16 %v413
    %v1952 = vunpack.c.h.b16 %v413
    %v1953 = vunpack.c.l.b16 %v414
    %v1954 = vunpack.c.h.b16 %v414
    %v1955 = vunpack.c.l.b16 %v415
    %v1956 = vunpack.c.h.b16 %v415
    %v1957 = vunpack.c.l.b16 %v416
    %v1958 = vunpack.c.h.b16 %v416
    %v1959 = vunpack.c.l.b16 %v417
    %v1960 = vunpack.c.h.b16 %v417
    %v1961 = vunpack.c.l.b16 %v418
    %v1962 = vunpack.c.h.b16 %v418
    %v1963 = vunpack.c.l.b16 %v419
    %v1964 = vunpack.c.h.b16 %v419
    %v1965 = vunpack.c.l.b16 %v420
    %v1966 = vunpack.c.h.b16 %v420
    %v1967 = vunpack.c.l.b16 %v421
    %v1968 = vunpack.c.h.b16 %v421
    %v1969 = vunpack.c.l.b16 %v422
    %v1970 = vunpack.c.h.b16 %v422
    %v1971 = vunpack.c.l.b16 %v423
    %v1972 = vunpack.c.h.b16 %v423
    %v1973 = vunpack.c.l.b16 %v424
    %v1974 = vunpack.c.h.b16 %v424
    %v1975 = vunpack.c.l.b16 %v425
    %v1976 = vunpack.c.h.b16 %v425
    %v1977 = vunpack.c.l.b16 %v426
    %v1978 = vunpack.c.h.b16 %v426
    %v1979 = vunpack.c.l.b16 %v427
    %v1980 = vunpack.c.h.b16 %v427
    %v1981 = vunpack.c.l.b16 %v428
    %v1982 = vunpack.c.h.b16 %v428
    %v1983 = vunpack.c.l.b16 %v429
    %v1984 = vunpack.c.h.b16 %v429
    %v1985 = vunpack.c.l.b16 %v430
    %v1986 = vunpack.c.h.b16 %v430
    %v1987 = vunpack.c.l.b16 %v431
    %v1988 = vunpack.c.h.b16 %v431
    %v1989 = vunpack.c.l.b16 %v432
    %v1990 = vunpack.c.h.b16 %v432
    %v1991 = vunpack.c.l.b16 %v433
    %v1992 = vunpack.c.h.b16 %v433
    %v1993 = vunpack.c.l.b16 %v434
    %v1994 = vunpack.c.h.b16 %v434
    %v1995 = vunpack.c.l.b16 %v435
    %v1996 = vunpack.c.h.b16 %v435
    %v1997 = vunpack.c.l.b16 %v436
    %v1998 = vunpack.c.h.b16 %v436
    %v1999 = vunpack.c.l.b16 %v437
    %v2000 = vunpack.c.h.b16 %v437
    %v2001 = vunpack.c.l.b16 %v438
    %v2002 = vunpack.c.h.b16 %v438
    %v2003 = vunpack.c.l.b16 %v439
    %v2004 = vunpack.c.h.b16 %v439
    %v2005 = vunpack.c.l.b16 %v440
    %v2006 = vunpack.c.h.b16 %v440
    %v2007 = vunpack.c.l.b16 %v441
    %v2008 = vunpack.c.h.b16 %v441
    %v2009 = vunpack.c.l.b16 %v442
    %v2010 = vunpack.c.h.b16 %v442
    %v2011 = vunpack.c.l.b16 %v443
    %v2012 = vunpack.c.h.b16 %v443
    %v2013 = vunpack.c.l.b16 %v444
    %v2014 = vunpack.c.h.b16 %v444
    %v2015 = vunpack.c.l.b16 %v445
    %v2016 = vunpack.c.h.b16 %v445
    %v2017 = vunpack.c.l.b16 %v446
    %v2018 = vunpack.c.h.b16 %v446
    %v2019 = vunpack.c.l.b16 %v447
    %v2020 = vunpack.c.h.b16 %v447
    %v2021 = vunpack.c.l.b16 %v448
    %v2022 = vunpack.c.h.b16 %v448
    %v2023 = vunpack.c.l.b16 %v449
    %v2024 = vunpack.c.h.b16 %v449
    %v2025 = vunpack.c.l.b16 %v450
    %v2026 = vunpack.c.h.b16 %v450
    %v2027 = vunpack.c.l.b16 %v451
    %v2028 = vunpack.c.h.b16 %v451
    %v2029 = vunpack.c.l.b16 %v452
    %v2030 = vunpack.c.h.b16 %v452
    %v2031 = vunpack.c.l.b16 %v453
    %v2032 = vunpack.c.h.b16 %v453
    %v2033 = vunpack.c.l.b16 %v454
    %v2034 = vunpack.c.h.b16 %v454
    %v2035 = vunpack.c.l.b16 %v455
    %v2036 = vunpack.c.h.b16 %v455
    %v2037 = vunpack.c.l.b16 %v456
    %v2038 = vunpack.c.h.b16 %v456
    %v2039 = vunpack.c.l.b16 %v457
    %v2040 = vunpack.c.h.b16 %v457
    %v2041 = vunpack.c.l.b16 %v458
    %v2042 = vunpack.c.h.b16 %v458
    %v2043 = vunpack.c.l.b16 %v459
    %v2044 = vunpack.c.h.b16 %v459
    %v2045 = vunpack.c.l.b16 %v460
    %v2046 = vunpack.c.h.b16 %v460
    %v2047 = vunpack.c.l.b16 %v461
    %v2048 = vunpack.c.h.b16 %v461
    %v2049 = vunpack.c.l.b16 %v462
    %v2050 = vunpack.c.h.b16 %v462
    %v2051 = vunpack.c.l.b16 %v463
    %v2052 = vunpack.c.h.b16 %v463
    %v2053 = vunpack.c.l.b16 %v464
    %v2054 = vunpack.c.h.b16 %v464
    %v2055 = vunpack.c.l.b16 %v465
    %v2056 = vunpack.c.h.b16 %v465
    %v2057 = vunpack.c.l.b16 %v466
    %v2058 = vunpack.c.h.b16 %v466
    %v2059 = vunpack.c.l.b16 %v467
    %v2060 = vunpack.c.h.b16 %v467
    %v2061 = vunpack.c.l.b16 %v468
    %v2062 = vunpack.c.h.b16 %v468
    %v2063 = vunpack.c.l.b16 %v469
    %v2064 = vunpack.c.h.b16 %v469
    %v2065 = vunpack.c.l.b16 %v470
    %v2066 = vunpack.c.h.b16 %v470
    %v2067 = vunpack.c.l.b16 %v471
    %v2068 = vunpack.c.h.b16 %v471
    %v2069 = vunpack.c.l.b16 %v472
    %v2070 = vunpack.c.h.b16 %v472
    %v2071 = vunpack.c.l.b16 %v473
    %v2072 = vunpack.c.h.b16 %v473
    %v2073 = vunpack.c.l.b16 %v474
    %v2074 = vunpack.c.h.b16 %v474
    %v2075 = vunpack.c.l.b16 %v475
    %v2076 = vunpack.c.h.b16 %v475
    %v2077 = vunpack.c.l.b16 %v476
    %v2078 = vunpack.c.h.b16 %v476
    %v2079 = vunpack.c.l.b16 %v477
    %v2080 = vunpack.c.h.b16 %v477
    %v2081 = vunpack.c.l.b16 %v478
    %v2082 = vunpack.c.h.b16 %v478
    %v2083 = vunpack.c.l.b16 %v479
    %v2084 = vunpack.c.h.b16 %v479
    %v2085 = vunpack.c.l.b16 %v480
    %v2086 = vunpack.c.h.b16 %v480
    %v2087 = vunpack.c.l.b16 %v481
    %v2088 = vunpack.c.h.b16 %v481
    %v2089 = vunpack.c.l.b16 %v482
    %v2090 = vunpack.c.h.b16 %v482
    %v2091 = vunpack.c.l.b16 %v483
    %v2092 = vunpack.c.h.b16 %v483
    %v2093 = vunpack.c.l.b16 %v484
    %v2094 = vunpack.c.h.b16 %v484
    %v2095 = vunpack.c.l.b16 %v485
    %v2096 = vunpack.c.h.b16 %v485
    %v2097 = vunpack.c.l.b16 %v486
    %v2098 = vunpack.c.h.b16 %v486
    %v2099 = vunpack.c.l.b16 %v487
    %v2100 = vunpack.c.h.b16 %v487
    %v2101 = vunpack.c.l.b16 %v488
    %v2102 = vunpack.c.h.b16 %v488
    %v2103 = vunpack.c.l.b16 %v489
    %v2104 = vunpack.c.h.b16 %v489
    %v2105 = vunpack.c.l.b16 %v490
    %v2106 = vunpack.c.h.b16 %v490
    %v2107 = vunpack.c.l.b16 %v491
    %v2108 = vunpack.c.h.b16 %v491
    %v2109 = vunpack.c.l.b16 %v492
    %v2110 = vunpack.c.h.b16 %v492
    %v2111 = vunpack.c.l.b16 %v493
    %v2112 = vunpack.c.h.b16 %v493
    %v2113 = vunpack.c.l.b16 %v494
    %v2114 = vunpack.c.h.b16 %v494
    %v2115 = vunpack.c.l.b16 %v495
    %v2116 = vunpack.c.h.b16 %v495
    %v2117 = vunpack.c.l.b16 %v496
    %v2118 = vunpack.c.h.b16 %v496
    %v2119 = vunpack.c.l.b16 %v497
    %v2120 = vunpack.c.h.b16 %v497
    %v2121 = vunpack.c.l.b16 %v498
    %v2122 = vunpack.c.h.b16 %v498
    %v2123 = vunpack.c.l.b16 %v499
    %v2124 = vunpack.c.h.b16 %v499
    %v2125 = vunpack.c.l.b16 %v500
    %v2126 = vunpack.c.h.b16 %v500
    %v2127 = vunpack.c.l.b16 %v501
    %v2128 = vunpack.c.h.b16 %v501
    %v2129 = vunpack.c.l.b16 %v502
    %v2130 = vunpack.c.h.b16 %v502
    %v2131 = vunpack.c.l.b16 %v503
    %v2132 = vunpack.c.h.b16 %v503
    %v2133 = vunpack.c.l.b16 %v504
    %v2134 = vunpack.c.h.b16 %v504
    %v2135 = vunpack.c.l.b16 %v505
    %v2136 = vunpack.c.h.b16 %v505
    %v2137 = vunpack.c.l.b16 %v506
    %v2138 = vunpack.c.h.b16 %v506
    %v2139 = vunpack.c.l.b16 %v507
    %v2140 = vunpack.c.h.b16 %v507
    %v2141 = vunpack.c.l.b16 %v508
    %v2142 = vunpack.c.h.b16 %v508
    %v2143 = vunpack.c.l.b16 %v509
    %v2144 = vunpack.c.h.b16 %v509
    %v2145 = vunpack.c.l.b16 %v510
    %v2146 = vunpack.c.h.b16 %v510
    %v2147 = vunpack.c.l.b16 %v511
    %v2148 = vunpack.c.h.b16 %v511
    %v2149 = vunpack.c.l.b16 %v512
    %v2150 = vunpack.c.h.b16 %v512
    %v2151 = vunpack.c.l.b16 %v513
    %v2152 = vunpack.c.h.b16 %v513
    %v2153 = vunpack.c.l.b16 %v514
    %v2154 = vunpack.c.h.b16 %v514
    %v2155 = vunpack.c.l.b16 %v515
    %v2156 = vunpack.c.h.b16 %v515
    %v2157 = vunpack.c.l.b16 %v516
    %v2158 = vunpack.c.h.b16 %v516
    %v2159 = vunpack.c.l.b16 %v517
    %v2160 = vunpack.c.h.b16 %v517
    %v2161 = vunpack.c.l.b16 %v518
    %v2162 = vunpack.c.h.b16 %v518
    %v2163 = vunpack.c.l.b16 %v519
    %v2164 = vunpack.c.h.b16 %v519
    %v2165 = vunpack.c.l.b16 %v520
    %v2166 = vunpack.c.h.b16 %v520
    %v2167 = vunpack.c.l.b16 %v521
    %v2168 = vunpack.c.h.b16 %v521
    %v2169 = vunpack.c.l.b16 %v522
    %v2170 = vunpack.c.h.b16 %v522
    %v2171 = vunpack.c.l.b16 %v523
    %v2172 = vunpack.c.h.b16 %v523
    %v2173 = vunpack.c.l.b16 %v524
    %v2174 = vunpack.c.h.b16 %v524
    %v2175 = vunpack.c.l.b16 %v525
    %v2176 = vunpack.c.h.b16 %v525
    %v2177 = vunpack.c.l.b16 %v526
    %v2178 = vunpack.c.h.b16 %v526
    %v2179 = vunpack.c.l.b16 %v527
    %v2180 = vunpack.c.h.b16 %v527
    %v2181 = vunpack.c.l.b16 %v528
    %v2182 = vunpack.c.h.b16 %v528
    %v2183 = vunpack.c.l.b16 %v529
    %v2184 = vunpack.c.h.b16 %v529
    %v2185 = vunpack.c.l.b16 %v530
    %v2186 = vunpack.c.h.b16 %v530
    %v2187 = vunpack.c.l.b16 %v531
    %v2188 = vunpack.c.h.b16 %v531
    %v2189 = vunpack.c.l.b16 %v532
    %v2190 = vunpack.c.h.b16 %v532
    %v2191 = vunpack.c.l.b16 %v533
    %v2192 = vunpack.c.h.b16 %v533
    %v2193 = vunpack.c.l.b16 %v534
    %v2194 = vunpack.c.h.b16 %v534
    %v2195 = vunpack.c.l.b16 %v535
    %v2196 = vunpack.c.h.b16 %v535
    %v2197 = vunpack.c.l.b16 %v536
    %v2198 = vunpack.c.h.b16 %v536
    %v2199 = vunpack.c.l.b16 %v537
    %v2200 = vunpack.c.h.b16 %v537
    %v2201 = vunpack.c.l.b16 %v538
    %v2202 = vunpack.c.h.b16 %v538
    %v2203 = vunpack.c.l.b16 %v539
    %v2204 = vunpack.c.h.b16 %v539
    %v2205 = vunpack.c.l.b16 %v540
    %v2206 = vunpack.c.h.b16 %v540
    %v2207 = vunpack.c.l.b16 %v541
    %v2208 = vunpack.c.h.b16 %v541
    %v2209 = vunpack.c.l.b16 %v542
    %v2210 = vunpack.c.h.b16 %v542
    %v2211 = vunpack.c.l.b16 %v543
    %v2212 = vunpack.c.h.b16 %v543
    %v2213 = vunpack.c.l.b16 %v544
    %v2214 = vunpack.c.h.b16 %v544
    %v2215 = vunpack.c.l.b16 %v545
    %v2216 = vunpack.c.h.b16 %v545
    %v2217 = vunpack.c.l.b16 %v546
    %v2218 = vunpack.c.h.b16 %v546
    %v2219 = vunpack.c.l.b16 %v547
    %v2220 = vunpack.c.h.b16 %v547
    %v2221 = vunpack.c.l.b16 %v548
    %v2222 = vunpack.c.h.b16 %v548
    %v2223 = vunpack.c.l.b16 %v549
    %v2224 = vunpack.c.h.b16 %v549
    %v2225 = vunpack.c.l.b16 %v550
    %v2226 = vunpack.c.h.b16 %v550
    %v2227 = vunpack.c.l.b16 %v551
    %v2228 = vunpack.c.h.b16 %v551
    %v2229 = vunpack.c.l.b16 %v552
    %v2230 = vunpack.c.h.b16 %v552
    %v2231 = vunpack.c.l.b16 %v553
    %v2232 = vunpack.c.h.b16 %v553
    %v2233 = vunpack.c.l.b16 %v554
    %v2234 = vunpack.c.h.b16 %v554
    %v2235 = vunpack.c.l.b16 %v555
    %v2236 = vunpack.c.h.b16 %v555
    %v2237 = vunpack.c.l.b16 %v556
    %v2238 = vunpack.c.h.b16 %v556
    %v2239 = vunpack.c.l.b16 %v557
    %v2240 = vunpack.c.h.b16 %v557
    %v2241 = vunpack.c.l.b16 %v558
    %v2242 = vunpack.c.h.b16 %v558
    %v2243 = vunpack.c.l.b16 %v559
    %v2244 = vunpack.c.h.b16 %v559
    %v2245 = vunpack.c.l.b16 %v560
    %v2246 = vunpack.c.h.b16 %v560
    %v2247 = vunpack.c.l.b16 %v561
    %v2248 = vunpack.c.h.b16 %v561
    %v2249 = vunpack.c.l.b16 %v562
    %v2250 = vunpack.c.h.b16 %v562
    %v2251 = vunpack.c.l.b16 %v563
    %v2252 = vunpack.c.h.b16 %v563
    %v2253 = vunpack.c.l.b16 %v564
    %v2254 = vunpack.c.h.b16 %v564
    %v2255 = vunpack.c.l.b16 %v565
    %v2256 = vunpack.c.h.b16 %v565
    %v2257 = vunpack.c.l.b16 %v566
    %v2258 = vunpack.c.h.b16 %v566
    %v2259 = vunpack.c.l.b16 %v567
    %v2260 = vunpack.c.h.b16 %v567
    %v2261 = vunpack.c.l.b16 %v568
    %v2262 = vunpack.c.h.b16 %v568
    %v2263 = vunpack.c.l.b16 %v569
    %v2264 = vunpack.c.h.b16 %v569
    %v2265 = vunpack.c.l.b16 %v570
    %v2266 = vunpack.c.h.b16 %v570
    %v2267 = vunpack.c.l.b16 %v571
    %v2268 = vunpack.c.h.b16 %v571
    %v2269 = vunpack.c.l.b16 %v572
    %v2270 = vunpack.c.h.b16 %v572
    %v2271 = vunpack.c.l.b16 %v573
    %v2272 = vunpack.c.h.b16 %v573
    %v2273 = vunpack.c.l.b16 %v574
    %v2274 = vunpack.c.h.b16 %v574
    %v2275 = vunpack.c.l.b16 %v575
    %v2276 = vunpack.c.h.b16 %v575
    %v2277 = vunpack.c.l.b16 %v576
    %v2278 = vunpack.c.h.b16 %v576
    %v2279 = vunpack.c.l.b16 %v577
    %v2280 = vunpack.c.h.b16 %v577
    %v2281 = vunpack.c.l.b16 %v578
    %v2282 = vunpack.c.h.b16 %v578
    %v2283 = vunpack.c.l.b16 %v579
    %v2284 = vunpack.c.h.b16 %v579
    %v2285 = vunpack.c.l.b16 %v580
    %v2286 = vunpack.c.h.b16 %v580
    %v2287 = vunpack.c.l.b16 %v581
    %v2288 = vunpack.c.h.b16 %v581
    %v2289 = vunpack.c.l.b16 %v582
    %v2290 = vunpack.c.h.b16 %v582
    %v2291 = vunpack.c.l.b16 %v583
    %v2292 = vunpack.c.h.b16 %v583
    %v2293 = vunpack.c.l.b16 %v584
    %v2294 = vunpack.c.h.b16 %v584
    %v2295 = vunpack.c.l.b16 %v585
    %v2296 = vunpack.c.h.b16 %v585
    %v2297 = vunpack.c.l.b16 %v586
    %v2298 = vunpack.c.h.b16 %v586
    %v2299 = vunpack.c.l.b16 %v587
    %v2300 = vunpack.c.h.b16 %v587
    %v2301 = vunpack.c.l.b16 %v588
    %v2302 = vunpack.c.h.b16 %v588
    %v2303 = vunpack.c.l.b16 %v589
    %v2304 = vunpack.c.h.b16 %v589
    %v2305 = vunpack.c.l.b16 %v590
    %v2306 = vunpack.c.h.b16 %v590
    %v2307 = vunpack.c.l.b16 %v591
    %v2308 = vunpack.c.h.b16 %v591
    %v2309 = vunpack.c.l.b16 %v592
    %v2310 = vunpack.c.h.b16 %v592
    %v2311 = vunpack.c.l.b16 %v593
    %v2312 = vunpack.c.h.b16 %v593
    %v2313 = vunpack.c.l.b16 %v594
    %v2314 = vunpack.c.h.b16 %v594
    %v2315 = vunpack.c.l.b16 %v595
    %v2316 = vunpack.c.h.b16 %v595
    %v2317 = vunpack.c.l.b16 %v596
    %v2318 = vunpack.c.h.b16 %v596
    %v2319 = vunpack.c.l.b16 %v597
    %v2320 = vunpack.c.h.b16 %v597
    %v2321 = vunpack.c.l.b16 %v598
    %v2322 = vunpack.c.h.b16 %v598
    %v2323 = vunpack.c.l.b16 %v599
    %v2324 = vunpack.c.h.b16 %v599
    %v2325 = vunpack.c.l.b16 %v600
    %v2326 = vunpack.c.h.b16 %v600
    %v2327 = vunpack.c.l.b16 %v601
    %v2328 = vunpack.c.h.b16 %v601
    %v2329 = vunpack.c.l.b16 %v602
    %v2330 = vunpack.c.h.b16 %v602
    %v2331 = vunpack.c.l.b16 %v603
    %v2332 = vunpack.c.h.b16 %v603
    %v2333 = vunpack.c.l.b16 %v604
    %v2334 = vunpack.c.h.b16 %v604
    %v2335 = vunpack.c.l.b16 %v605
    %v2336 = vunpack.c.h.b16 %v605
    %v2337 = vunpack.c.l.b16 %v606
    %v2338 = vunpack.c.h.b16 %v606
    %v2339 = vunpack.c.l.b16 %v607
    %v2340 = vunpack.c.h.b16 %v607
    %v2341 = vunpack.c.l.b16 %v608
    %v2342 = vunpack.c.h.b16 %v608
    %v2343 = vunpack.c.l.b16 %v609
    %v2344 = vunpack.c.h.b16 %v609
    %v2345 = vunpack.c.l.b16 %v610
    %v2346 = vunpack.c.h.b16 %v610
    %v2347 = vunpack.c.l.b16 %v611
    %v2348 = vunpack.c.h.b16 %v611
    %v2349 = vunpack.c.l.b16 %v612
    %v2350 = vunpack.c.h.b16 %v612
    %v2351 = vunpack.c.l.b16 %v613
    %v2352 = vunpack.c.h.b16 %v613
    %v2353 = vunpack.c.l.b16 %v614
    %v2354 = vunpack.c.h.b16 %v614
    %v2355 = vunpack.c.l.b16 %v615
    %v2356 = vunpack.c.h.b16 %v615
    %v2357 = vunpack.c.l.b16 %v616
    %v2358 = vunpack.c.h.b16 %v616
    %v2359 = vunpack.c.l.b16 %v617
    %v2360 = vunpack.c.h.b16 %v617
    %v2361 = vunpack.c.l.b16 %v618
    %v2362 = vunpack.c.h.b16 %v618
    %v2363 = vunpack.c.l.b16 %v619
    %v2364 = vunpack.c.h.b16 %v619
    %v2365 = vunpack.c.l.b16 %v620
    %v2366 = vunpack.c.h.b16 %v620
    %v2367 = vunpack.c.l.b16 %v621
    %v2368 = vunpack.c.h.b16 %v621
    %v2369 = vunpack.c.l.b16 %v622
    %v2370 = vunpack.c.h.b16 %v622
    %v2371 = vunpack.c.l.b16 %v623
    %v2372 = vunpack.c.h.b16 %v623
    %v2373 = vunpack.c.l.b16 %v624
    %v2374 = vunpack.c.h.b16 %v624
    %v2375 = vunpack.c.l.b16 %v625
    %v2376 = vunpack.c.h.b16 %v625
    %v2377 = vunpack.c.l.b16 %v626
    %v2378 = vunpack.c.h.b16 %v626
    %v2379 = vunpack.c.l.b16 %v627
    %v2380 = vunpack.c.h.b16 %v627
    %v2381 = vunpack.c.l.b16 %v628
    %v2382 = vunpack.c.h.b16 %v628
    %v2383 = vunpack.c.l.b16 %v629
    %v2384 = vunpack.c.h.b16 %v629
    %v2385 = vunpack.c.l.b16 %v630
    %v2386 = vunpack.c.h.b16 %v630
    %v2387 = vunpack.c.l.b16 %v631
    %v2388 = vunpack.c.h.b16 %v631
    %v2389 = vunpack.c.l.b16 %v632
    %v2390 = vunpack.c.h.b16 %v632
    %v2391 = vunpack.c.l.b16 %v633
    %v2392 = vunpack.c.h.b16 %v633
    %v2393 = vunpack.c.l.b16 %v634
    %v2394 = vunpack.c.h.b16 %v634
    %v2395 = vunpack.c.l.b16 %v635
    %v2396 = vunpack.c.h.b16 %v635
    %v2397 = vunpack.c.l.b16 %v636
    %v2398 = vunpack.c.h.b16 %v636
    %v2399 = vunpack.c.l.b16 %v637
    %v2400 = vunpack.c.h.b16 %v637
    %v2401 = vunpack.c.l.b16 %v638
    %v2402 = vunpack.c.h.b16 %v638
    %v2403 = vunpack.c.l.b16 %v639
    %v2404 = vunpack.c.h.b16 %v639
    %v2405 = vunpack.c.l.b16 %v640
    %v2406 = vunpack.c.h.b16 %v640
    %v2407 = vunpack.c.l.b16 %v641
    %v2408 = vunpack.c.h.b16 %v641
    %v2409 = vunpack.c.l.b16 %v642
    %v2410 = vunpack.c.h.b16 %v642
    %v2411 = vunpack.c.l.b16 %v643
    %v2412 = vunpack.c.h.b16 %v643
    %v2413 = vunpack.c.l.b16 %v644
    %v2414 = vunpack.c.h.b16 %v644
    %v2415 = vunpack.c.l.b16 %v645
    %v2416 = vunpack.c.h.b16 %v645
    %v2417 = vunpack.c.l.b16 %v646
    %v2418 = vunpack.c.h.b16 %v646
    %v2419 = vunpack.c.l.b16 %v647
    %v2420 = vunpack.c.h.b16 %v647
    %v2421 = vunpack.c.l.b16 %v648
    %v2422 = vunpack.c.h.b16 %v648
    %v2423 = vunpack.c.l.b16 %v649
    %v2424 = vunpack.c.h.b16 %v649
    %v2425 = vunpack.c.l.b16 %v650
    %v2426 = vunpack.c.h.b16 %v650
    %v2427 = vunpack.c.l.b16 %v651
    %v2428 = vunpack.c.h.b16 %v651
    %v2429 = vunpack.c.l.b16 %v652
    %v2430 = vunpack.c.h.b16 %v652
    %v2431 = vunpack.c.l.b16 %v653
    %v2432 = vunpack.c.h.b16 %v653
    %v2433 = vunpack.c.l.b16 %v654
    %v2434 = vunpack.c.h.b16 %v654
    %v2435 = vunpack.c.l.b16 %v655
    %v2436 = vunpack.c.h.b16 %v655
    %v2437 = vunpack.c.l.b16 %v656
    %v2438 = vunpack.c.h.b16 %v656
    %v2439 = vunpack.c.l.b16 %v657
    %v2440 = vunpack.c.h.b16 %v657
    %v2441 = vunpack.c.l.b16 %v658
    %v2442 = vunpack.c.h.b16 %v658
    %v2443 = vunpack.c.l.b16 %v659
    %v2444 = vunpack.c.h.b16 %v659
    %v2445 = vunpack.c.l.b16 %v660
    %v2446 = vunpack.c.h.b16 %v660
    %v2447 = vunpack.c.l.b16 %v661
    %v2448 = vunpack.c.h.b16 %v661
    %v2449 = vunpack.c.l.b16 %v662
    %v2450 = vunpack.c.h.b16 %v662
    %v2451 = vunpack.c.l.b16 %v663
    %v2452 = vunpack.c.h.b16 %v663
    %v2453 = vunpack.c.l.b16 %v664
    %v2454 = vunpack.c.h.b16 %v664
    %v2455 = vunpack.c.l.b16 %v665
    %v2456 = vunpack.c.h.b16 %v665
    %v2457 = vunpack.c.l.b16 %v666
    %v2458 = vunpack.c.h.b16 %v666
    %v2459 = vunpack.c.l.b16 %v667
    %v2460 = vunpack.c.h.b16 %v667
    %v2461 = vunpack.c.l.b16 %v668
    %v2462 = vunpack.c.h.b16 %v668
    %v2463 = vunpack.c.l.b16 %v669
    %v2464 = vunpack.c.h.b16 %v669
    %v2465 = vunpack.c.l.b16 %v670
    %v2466 = vunpack.c.h.b16 %v670
    %v2467 = vunpack.c.l.b16 %v671
    %v2468 = vunpack.c.h.b16 %v671
    %v2469 = vunpack.c.l.b16 %v672
    %v2470 = vunpack.c.h.b16 %v672
    %v2471 = vunpack.c.l.b16 %v673
    %v2472 = vunpack.c.h.b16 %v673
    %v2473 = vunpack.c.l.b16 %v674
    %v2474 = vunpack.c.h.b16 %v674
    %v2475 = vunpack.c.l.b16 %v675
    %v2476 = vunpack.c.h.b16 %v675
    %v2477 = vunpack.c.l.b16 %v676
    %v2478 = vunpack.c.h.b16 %v676
    %v2479 = vunpack.c.l.b16 %v677
    %v2480 = vunpack.c.h.b16 %v677
    %v2481 = vunpack.c.l.b16 %v678
    %v2482 = vunpack.c.h.b16 %v678
    %v2483 = vunpack.c.l.b16 %v679
    %v2484 = vunpack.c.h.b16 %v679
    %v2485 = vunpack.c.l.b16 %v680
    %v2486 = vunpack.c.h.b16 %v680
    %v2487 = vunpack.c.l.b16 %v681
    %v2488 = vunpack.c.h.b16 %v681
    %v2489 = vunpack.c.l.b16 %v682
    %v2490 = vunpack.c.h.b16 %v682
    %v2491 = vunpack.c.l.b16 %v683
    %v2492 = vunpack.c.h.b16 %v683
    %v2493 = vunpack.c.l.b16 %v684
    %v2494 = vunpack.c.h.b16 %v684
    %v2495 = vunpack.c.l.b16 %v685
    %v2496 = vunpack.c.h.b16 %v685
    %v2497 = vunpack.c.l.b16 %v686
    %v2498 = vunpack.c.h.b16 %v686
    %v2499 = vunpack.c.l.b16 %v687
    %v2500 = vunpack.c.h.b16 %v687
    %v2501 = vunpack.c.l.b16 %v688
    %v2502 = vunpack.c.h.b16 %v688
    %v2503 = vunpack.c.l.b16 %v689
    %v2504 = vunpack.c.h.b16 %v689
    %v2505 = vunpack.c.l.b16 %v690
    %v2506 = vunpack.c.h.b16 %v690
    %v2507 = vunpack.c.l.b16 %v691
    %v2508 = vunpack.c.h.b16 %v691
    %v2509 = vunpack.c.l.b16 %v692
    %v2510 = vunpack.c.h.b16 %v692
    %v2511 = vunpack.c.l.b16 %v693
    %v2512 = vunpack.c.h.b16 %v693
    %v2513 = vunpack.c.l.b16 %v694
    %v2514 = vunpack.c.h.b16 %v694
    %v2515 = vunpack.c.l.b16 %v695
    %v2516 = vunpack.c.h.b16 %v695
    %v2517 = vunpack.c.l.b16 %v696
    %v2518 = vunpack.c.h.b16 %v696
    %v2519 = vunpack.c.l.b16 %v697
    %v2520 = vunpack.c.h.b16 %v697
    %v2521 = vunpack.c.l.b16 %v698
    %v2522 = vunpack.c.h.b16 %v698
    %v2523 = vunpack.c.l.b16 %v699
    %v2524 = vunpack.c.h.b16 %v699
    %v2525 = vunpack.c.l.b16 %v700
    %v2526 = vunpack.c.h.b16 %v700
    %v2527 = vunpack.c.l.b16 %v701
    %v2528 = vunpack.c.h.b16 %v701
    %v2529 = vunpack.c.l.b16 %v702
    %v2530 = vunpack.c.h.b16 %v702
    %v2531 = vunpack.c.l.b16 %v703
    %v2532 = vunpack.c.h.b16 %v703
    %v2533 = vunpack.c.l.b16 %v704
    %v2534 = vunpack.c.h.b16 %v704
    %v2535 = vunpack.c.l.b16 %v705
    %v2536 = vunpack.c.h.b16 %v705
    %v2537 = vunpack.c.l.b16 %v706
    %v2538 = vunpack.c.h.b16 %v706
    %v2539 = vunpack.c.l.b16 %v707
    %v2540 = vunpack.c.h.b16 %v707
    %v2541 = vunpack.c.l.b16 %v708
    %v2542 = vunpack.c.h.b16 %v708
    %v2543 = vunpack.c.l.b16 %v709
    %v2544 = vunpack.c.h.b16 %v709
    %v2545 = vunpack.c.l.b16 %v710
    %v2546 = vunpack.c.h.b16 %v710
    %v2547 = vunpack.c.l.b16 %v711
    %v2548 = vunpack.c.h.b16 %v711
    %v2549 = vunpack.c.l.b16 %v712
    %v2550 = vunpack.c.h.b16 %v712
    %v2551 = vunpack.c.l.b16 %v713
    %v2552 = vunpack.c.h.b16 %v713
    %v2553 = vunpack.c.l.b16 %v714
    %v2554 = vunpack.c.h.b16 %v714
    %v2555 = vunpack.c.l.b16 %v715
    %v2556 = vunpack.c.h.b16 %v715
    %v2557 = vunpack.c.l.b16 %v716
    %v2558 = vunpack.c.h.b16 %v716
    %v2559 = vunpack.c.l.b16 %v717
    %v2560 = vunpack.c.h.b16 %v717
    %v2561 = vunpack.c.l.b16 %v718
    %v2562 = vunpack.c.h.b16 %v718
    %v2563 = vunpack.c.l.b16 %v719
    %v2564 = vunpack.c.h.b16 %v719
    %v2565 = vunpack.c.l.b16 %v720
    %v2566 = vunpack.c.h.b16 %v720
    %v2567 = vunpack.c.l.b16 %v721
    %v2568 = vunpack.c.h.b16 %v721
    %v2569 = vunpack.c.l.b16 %v722
    %v2570 = vunpack.c.h.b16 %v722
    %v2571 = vunpack.c.l.b16 %v723
    %v2572 = vunpack.c.h.b16 %v723
    %v2573 = vunpack.c.l.b16 %v724
    %v2574 = vunpack.c.h.b16 %v724
    %v2575 = vunpack.c.l.b16 %v725
    %v2576 = vunpack.c.h.b16 %v725
    %v2577 = vunpack.c.l.b16 %v726
    %v2578 = vunpack.c.h.b16 %v726
    %v2579 = vunpack.c.l.b16 %v727
    %v2580 = vunpack.c.h.b16 %v727
    %v2581 = vunpack.c.l.b16 %v728
    %v2582 = vunpack.c.h.b16 %v728
    %v2583 = vunpack.c.l.b16 %v729
    %v2584 = vunpack.c.h.b16 %v729
    %v2585 = vunpack.c.l.b16 %v730
    %v2586 = vunpack.c.h.b16 %v730
    %v2587 = vunpack.c.l.b16 %v731
    %v2588 = vunpack.c.h.b16 %v731
    %v2589 = vunpack.c.l.b16 %v732
    %v2590 = vunpack.c.h.b16 %v732
    %v2591 = vunpack.c.l.b16 %v733
    %v2592 = vunpack.c.h.b16 %v733
    %v2593 = vunpack.c.l.b16 %v734
    %v2594 = vunpack.c.h.b16 %v734
    %v2595 = vunpack.c.l.b16 %v735
    %v2596 = vunpack.c.h.b16 %v735
    %v2597 = vunpack.c.l.b16 %v736
    %v2598 = vunpack.c.h.b16 %v736
    %v2599 = vunpack.c.l.b16 %v737
    %v2600 = vunpack.c.h.b16 %v737
    %v2601 = vunpack.c.l.b16 %v738
    %v2602 = vunpack.c.h.b16 %v738
    %v2603 = vunpack.c.l.b16 %v739
    %v2604 = vunpack.c.h.b16 %v739
    %v2605 = vunpack.c.l.b16 %v740
    %v2606 = vunpack.c.h.b16 %v740
    %v2607 = vunpack.c.l.b16 %v741
    %v2608 = vunpack.c.h.b16 %v741
    %v2609 = vunpack.c.l.b16 %v742
    %v2610 = vunpack.c.h.b16 %v742
    %v2611 = vunpack.c.l.b16 %v743
    %v2612 = vunpack.c.h.b16 %v743
    %v2613 = vunpack.c.l.b16 %v744
    %v2614 = vunpack.c.h.b16 %v744
    %v2615 = vunpack.c.l.b16 %v745
    %v2616 = vunpack.c.h.b16 %v745
    %v2617 = vunpack.c.l.b16 %v746
    %v2618 = vunpack.c.h.b16 %v746
    %v2619 = vunpack.c.l.b16 %v747
    %v2620 = vunpack.c.h.b16 %v747
    %v2621 = vunpack.c.l.b16 %v748
    %v2622 = vunpack.c.h.b16 %v748
    %v2623 = vunpack.c.l.b16 %v749
    %v2624 = vunpack.c.h.b16 %v749
    %v2625 = vunpack.c.l.b16 %v750
    %v2626 = vunpack.c.h.b16 %v750
    %v2627 = vunpack.c.l.b16 %v751
    %v2628 = vunpack.c.h.b16 %v751
    %v2629 = vunpack.c.l.b16 %v752
    %v2630 = vunpack.c.h.b16 %v752
    %v2631 = vunpack.c.l.b16 %v753
    %v2632 = vunpack.c.h.b16 %v753
    %v2633 = vunpack.c.l.b16 %v754
    %v2634 = vunpack.c.h.b16 %v754
    %v2635 = vunpack.c.l.b16 %v755
    %v2636 = vunpack.c.h.b16 %v755
    %v2637 = vunpack.c.l.b16 %v756
    %v2638 = vunpack.c.h.b16 %v756
    %v2639 = vunpack.c.l.b16 %v757
    %v2640 = vunpack.c.h.b16 %v757
    %v2641 = vunpack.c.l.b16 %v758
    %v2642 = vunpack.c.h.b16 %v758
    %v2643 = vunpack.c.l.b16 %v759
    %v2644 = vunpack.c.h.b16 %v759
    %v2645 = vunpack.c.l.b16 %v760
    %v2646 = vunpack.c.h.b16 %v760
    %v2647 = vunpack.c.l.b16 %v761
    %v2648 = vunpack.c.h.b16 %v761
    %v2649 = vunpack.c.l.b16 %v762
    %v2650 = vunpack.c.h.b16 %v762
    %v2651 = vunpack.c.l.b16 %v763
    %v2652 = vunpack.c.h.b16 %v763
    %v2653 = vunpack.c.l.b16 %v764
    %v2654 = vunpack.c.h.b16 %v764
    %v2655 = vunpack.c.l.b16 %v765
    %v2656 = vunpack.c.h.b16 %v765
    %v2657 = vunpack.c.l.b16 %v766
    %v2658 = vunpack.c.h.b16 %v766
    %v2659 = vunpack.c.l.b16 %v767
    %v2660 = vunpack.c.h.b16 %v767
    %v2661 = vunpack.c.l.b16 %v768
    %v2662 = vunpack.c.h.b16 %v768
    %v2663 = vunpack.c.l.b16 %v769
    %v2664 = vunpack.c.h.b16 %v769
    %v2665 = vunpack.c.l.b16 %v770
    %v2666 = vunpack.c.h.b16 %v770
    %v2667 = vunpack.c.l.b16 %v771
    %v2668 = vunpack.c.h.b16 %v771
    %v2669 = vunpack.c.l.b16 %v772
    %v2670 = vunpack.c.h.b16 %v772
    %v2671 = vunpack.c.l.b16 %v773
    %v2672 = vunpack.c.h.b16 %v773
    %v2673 = vunpack.c.l.b16 %v774
    %v2674 = vunpack.c.h.b16 %v774
    %v2675 = vunpack.c.l.b16 %v775
    %v2676 = vunpack.c.h.b16 %v775
    %v2677 = vunpack.c.l.b16 %v776
    %v2678 = vunpack.c.h.b16 %v776
    %v2679 = vunpack.c.l.b16 %v777
    %v2680 = vunpack.c.h.b16 %v777
    %v2681 = vunpack.c.l.b16 %v778
    %v2682 = vunpack.c.h.b16 %v778
    %v2683 = vunpack.c.l.b16 %v779
    %v2684 = vunpack.c.h.b16 %v779
    %v2685 = vunpack.c.l.b16 %v780
    %v2686 = vunpack.c.h.b16 %v780
    %v2687 = vunpack.c.l.b16 %v781
    %v2688 = vunpack.c.h.b16 %v781
    %v2689 = vunpack.c.l.b16 %v782
    %v2690 = vunpack.c.h.b16 %v782
    %v2691 = vunpack.c.l.b16 %v783
    %v2692 = vunpack.c.h.b16 %v783
    %v2693 = vunpack.c.l.b16 %v784
    %v2694 = vunpack.c.h.b16 %v784
    %v2695 = vunpack.c.l.b16 %v785
    %v2696 = vunpack.c.h.b16 %v785
    %v2697 = vunpack.c.l.b16 %v786
    %v2698 = vunpack.c.h.b16 %v786
    %v2699 = vunpack.c.l.b16 %v787
    %v2700 = vunpack.c.h.b16 %v787
    %v2701 = vunpack.c.l.b16 %v788
    %v2702 = vunpack.c.h.b16 %v788
    %v2703 = vunpack.c.l.b16 %v789
    %v2704 = vunpack.c.h.b16 %v789
    %v2705 = vunpack.c.l.b16 %v790
    %v2706 = vunpack.c.h.b16 %v790
    %v2707 = vunpack.c.l.b16 %v791
    %v2708 = vunpack.c.h.b16 %v791
    %v2709 = vunpack.c.l.b16 %v792
    %v2710 = vunpack.c.h.b16 %v792
    %v2711 = vunpack.c.l.b16 %v793
    %v2712 = vunpack.c.h.b16 %v793
    %v2713 = vunpack.c.l.b16 %v794
    %v2714 = vunpack.c.h.b16 %v794
    %v2715 = vunpack.c.l.b16 %v795
    %v2716 = vunpack.c.h.b16 %v795
    %v2717 = vunpack.c.l.b16 %v796
    %v2718 = vunpack.c.h.b16 %v796
    %v2719 = vunpack.c.l.b16 %v797
    %v2720 = vunpack.c.h.b16 %v797
    %v2721 = vunpack.c.l.b16 %v798
    %v2722 = vunpack.c.h.b16 %v798
    %v2723 = vunpack.c.l.b16 %v799
    %v2724 = vunpack.c.h.b16 %v799
    %v2725 = vunpack.c.l.b16 %v800
    %v2726 = vunpack.c.h.b16 %v800
    %v2727 = vunpack.c.l.b16 %v801
    %v2728 = vunpack.c.h.b16 %v801
    %v2729 = vunpack.c.l.b16 %v802
    %v2730 = vunpack.c.h.b16 %v802
    %v2731 = vunpack.c.l.b16 %v803
    %v2732 = vunpack.c.h.b16 %v803
    %v2733 = vunpack.c.l.b16 %v804
    %v2734 = vunpack.c.h.b16 %v804
    %v2735 = vunpack.c.l.b16 %v805
    %v2736 = vunpack.c.h.b16 %v805
    %v2737 = vunpack.c.l.b16 %v806
    %v2738 = vunpack.c.h.b16 %v806
    %v2739 = vunpack.c.l.b16 %v807
    %v2740 = vunpack.c.h.b16 %v807
    %v2741 = vunpack.c.l.b16 %v808
    %v2742 = vunpack.c.h.b16 %v808
    %v2743 = vunpack.c.l.b16 %v809
    %v2744 = vunpack.c.h.b16 %v809
    %v2745 = vunpack.c.l.b16 %v810
    %v2746 = vunpack.c.h.b16 %v810
    %v2747 = vunpack.c.l.b16 %v811
    %v2748 = vunpack.c.h.b16 %v811
    %v2749 = vunpack.c.l.b16 %v812
    %v2750 = vunpack.c.h.b16 %v812
    %v2751 = vunpack.c.l.b16 %v813
    %v2752 = vunpack.c.h.b16 %v813
    %v2753 = vunpack.c.l.b16 %v814
    %v2754 = vunpack.c.h.b16 %v814
    %v2755 = vunpack.c.l.b16 %v815
    %v2756 = vunpack.c.h.b16 %v815
    %v2757 = vunpack.c.l.b16 %v816
    %v2758 = vunpack.c.h.b16 %v816
    %v2759 = vunpack.c.l.b16 %v817
    %v2760 = vunpack.c.h.b16 %v817
    %v2761 = vunpack.c.l.b16 %v818
    %v2762 = vunpack.c.h.b16 %v818
    %v2763 = vunpack.c.l.b16 %v819
    %v2764 = vunpack.c.h.b16 %v819
    %v2765 = vunpack.c.l.b16 %v820
    %v2766 = vunpack.c.h.b16 %v820
    %v2767 = vunpack.c.l.b16 %v821
    %v2768 = vunpack.c.h.b16 %v821
    %v2769 = vunpack.c.l.b16 %v822
    %v2770 = vunpack.c.h.b16 %v822
    %v2771 = vunpack.c.l.b16 %v823
    %v2772 = vunpack.c.h.b16 %v823
    %v2773 = vunpack.c.l.b16 %v824
    %v2774 = vunpack.c.h.b16 %v824
    %v2775 = vunpack.c.l.b16 %v825
    %v2776 = vunpack.c.h.b16 %v825
    %v2777 = vunpack.c.l.b16 %v826
    %v2778 = vunpack.c.h.b16 %v826
    %v2779 = vunpack.c.l.b16 %v827
    %v2780 = vunpack.c.h.b16 %v827
    %v2781 = vunpack.c.l.b16 %v828
    %v2782 = vunpack.c.h.b16 %v828
    %v2783 = vunpack.c.l.b16 %v829
    %v2784 = vunpack.c.h.b16 %v829
    %v2785 = vunpack.c.l.b16 %v830
    %v2786 = vunpack.c.h.b16 %v830
    %v2787 = vunpack.c.l.b16 %v831
    %v2788 = vunpack.c.h.b16 %v831
    %v2789 = vunpack.c.l.b16 %v832
    %v2790 = vunpack.c.h.b16 %v832
    %v2791 = vunpack.c.l.b16 %v833
    %v2792 = vunpack.c.h.b16 %v833
    %v2793 = vunpack.c.l.b16 %v834
    %v2794 = vunpack.c.h.b16 %v834
    %v2795 = vunpack.c.l.b16 %v835
    %v2796 = vunpack.c.h.b16 %v835
    %v2797 = vunpack.c.l.b16 %v836
    %v2798 = vunpack.c.h.b16 %v836
    %v2799 = vunpack.c.l.b16 %v837
    %v2800 = vunpack.c.h.b16 %v837
    %v2801 = vunpack.c.l.b16 %v838
    %v2802 = vunpack.c.h.b16 %v838
    %v2803 = vunpack.c.l.b16 %v839
    %v2804 = vunpack.c.h.b16 %v839
    %v2805 = vunpack.c.l.b16 %v840
    %v2806 = vunpack.c.h.b16 %v840
    %v2807 = vunpack.c.l.b16 %v841
    %v2808 = vunpack.c.h.b16 %v841
    %v2809 = vunpack.c.l.b16 %v842
    %v2810 = vunpack.c.h.b16 %v842
    %v2811 = vunpack.c.l.b16 %v843
    %v2812 = vunpack.c.h.b16 %v843
    %v2813 = vunpack.c.l.b16 %v844
    %v2814 = vunpack.c.h.b16 %v844
    %v2815 = vunpack.c.l.b16 %v845
    %v2816 = vunpack.c.h.b16 %v845
    %v2817 = vunpack.c.l.b16 %v846
    %v2818 = vunpack.c.h.b16 %v846
    %v2819 = vunpack.c.l.b16 %v847
    %v2820 = vunpack.c.h.b16 %v847
    %v2821 = vunpack.c.l.b16 %v848
    %v2822 = vunpack.c.h.b16 %v848
    %v2823 = vunpack.c.l.b16 %v849
    %v2824 = vunpack.c.h.b16 %v849
    %v2825 = vunpack.c.l.b16 %v850
    %v2826 = vunpack.c.h.b16 %v850
    %v2827 = vunpack.c.l.b16 %v851
    %v2828 = vunpack.c.h.b16 %v851
    %v2829 = vunpack.c.l.b16 %v852
    %v2830 = vunpack.c.h.b16 %v852
    %v2831 = vunpack.c.l.b16 %v853
    %v2832 = vunpack.c.h.b16 %v853
    %v2833 = vunpack.c.l.b16 %v854
    %v2834 = vunpack.c.h.b16 %v854
    %v2835 = vunpack.c.l.b16 %v855
    %v2836 = vunpack.c.h.b16 %v855
    %v2837 = vunpack.c.l.b16 %v856
    %v2838 = vunpack.c.h.b16 %v856
    %v2839 = vunpack.c.l.b16 %v857
    %v2840 = vunpack.c.h.b16 %v857
    %v2841 = vunpack.c.l.b16 %v858
    %v2842 = vunpack.c.h.b16 %v858
    %v2843 = vunpack.c.l.b16 %v859
    %v2844 = vunpack.c.h.b16 %v859
    %v2845 = vunpack.c.l.b16 %v860
    %v2846 = vunpack.c.h.b16 %v860
    %v2847 = vunpack.c.l.b16 %v861
    %v2848 = vunpack.c.h.b16 %v861
    %v2849 = vunpack.c.l.b16 %v862
    %v2850 = vunpack.c.h.b16 %v862
    %v2851 = vunpack.c.l.b16 %v863
    %v2852 = vunpack.c.h.b16 %v863
    %v2853 = vunpack.c.l.b16 %v864
    %v2854 = vunpack.c.h.b16 %v864
    %v2855 = vunpack.c.l.b16 %v865
    %v2856 = vunpack.c.h.b16 %v865
    %v2857 = vunpack.c.l.b16 %v866
    %v2858 = vunpack.c.h.b16 %v866
    %v2859 = vunpack.c.l.b16 %v867
    %v2860 = vunpack.c.h.b16 %v867
    %v2861 = vunpack.c.l.b16 %v868
    %v2862 = vunpack.c.h.b16 %v868
    %v2863 = vunpack.c.l.b16 %v869
    %v2864 = vunpack.c.h.b16 %v869
    %v2865 = vunpack.c.l.b16 %v870
    %v2866 = vunpack.c.h.b16 %v870
    %v2867 = vunpack.c.l.b16 %v871
    %v2868 = vunpack.c.h.b16 %v871
    %v2869 = vunpack.c.l.b16 %v872
    %v2870 = vunpack.c.h.b16 %v872
    %v2871 = vunpack.c.l.b16 %v873
    %v2872 = vunpack.c.h.b16 %v873
    %v2873 = vunpack.c.l.b16 %v874
    %v2874 = vunpack.c.h.b16 %v874
    %v2875 = vunpack.c.l.b16 %v875
    %v2876 = vunpack.c.h.b16 %v875
    %v2877 = vunpack.c.l.b16 %v876
    %v2878 = vunpack.c.h.b16 %v876
    %v2879 = vunpack.c.l.b16 %v877
    %v2880 = vunpack.c.h.b16 %v877
    %v2881 = vunpack.c.l.b16 %v878
    %v2882 = vunpack.c.h.b16 %v878
    %v2883 = vunpack.c.l.b16 %v879
    %v2884 = vunpack.c.h.b16 %v879
    %v2885 = vunpack.c.l.b16 %v880
    %v2886 = vunpack.c.h.b16 %v880
    %v2887 = vunpack.c.l.b16 %v881
    %v2888 = vunpack.c.h.b16 %v881
    %v2889 = vunpack.c.l.b16 %v882
    %v2890 = vunpack.c.h.b16 %v882
    %v2891 = vunpack.c.l.b16 %v883
    %v2892 = vunpack.c.h.b16 %v883
    %v2893 = vunpack.c.l.b16 %v884
    %v2894 = vunpack.c.h.b16 %v884
    %v2895 = vpack.c.b16 %v1575, %v1567
    %v2896 = vpack.c.b16 %v1576, %v1568
    %v2897 = vpack.c.b16 %v1577, %v1569
    %v2898 = vpack.c.b16 %v1578, %v1570
    %v2899 = vpack.c.b16 %v1579, %v1571
    %v2900 = vpack.c.b16 %v1580, %v1572
    %v2901 = vpack.c.b16 %v1581, %v1573
    %v2902 = vpack.c.b16 %v1582, %v1574
    %v2903 = vpack.c.b16 %v1591, %v1583
    %v2904 = vpack.c.b16 %v1592, %v1584
    %v2905 = vpack.c.b16 %v1593, %v1585
    %v2906 = vpack.c.b16 %v1594, %v1586
    %v2907 = vpack.c.b16 %v1595, %v1587
    %v2908 = vpack.c.b16 %v1596, %v1588
    %v2909 = vpack.c.b16 %v1597, %v1589
    %v2910 = vpack.c.b16 %v1598, %v1590
    %v2911 = vpack.c.b16 %v1607, %v1599
    %v2912 = vpack.c.b16 %v1608, %v1600
    %v2913 = vpack.c.b16 %v1609, %v1601
    %v2914 = vpack.c.b16 %v1610, %v1602
    %v2915 = vpack.c.b16 %v1611, %v1603
    %v2916 = vpack.c.b16 %v1612, %v1604
    %v2917 = vpack.c.b16 %v1613, %v1605
    %v2918 = vpack.c.b16 %v1614, %v1606
    %v2919 = vpack.c.b16 %v1623, %v1615
    %v2920 = vpack.c.b16 %v1624, %v1616
    %v2921 = vpack.c.b16 %v1625, %v1617
    %v2922 = vpack.c.b16 %v1626, %v1618
    %v2923 = vpack.c.b16 %v1627, %v1619
    %v2924 = vpack.c.b16 %v1628, %v1620
    %v2925 = vpack.c.b16 %v1629, %v1621
    %v2926 = vpack.c.b16 %v1630, %v1622
    %v2927 = vpack.c.b16 %v1639, %v1631
    %v2928 = vpack.c.b16 %v1640, %v1632
    %v2929 = vpack.c.b16 %v1641, %v1633
    %v2930 = vpack.c.b16 %v1642, %v1634
    %v2931 = vpack.c.b16 %v1643, %v1635
    %v2932 = vpack.c.b16 %v1644, %v1636
    %v2933 = vpack.c.b16 %v1645, %v1637
    %v2934 = vpack.c.b16 %v1646, %v1638
    %v2935 = vpack.c.b16 %v1655, %v1647
    %v2936 = vpack.c.b16 %v1656, %v1648
    %v2937 = vpack.c.b16 %v1657, %v1649
    %v2938 = vpack.c.b16 %v1658, %v1650
    %v2939 = vpack.c.b16 %v1659, %v1651
    %v2940 = vpack.c.b16 %v1660, %v1652
    %v2941 = vpack.c.b16 %v1661, %v1653
    %v2942 = vpack.c.b16 %v1662, %v1654
    %v2943 = vpack.c.b16 %v1671, %v1663
    %v2944 = vpack.c.b16 %v1672, %v1664
    %v2945 = vpack.c.b16 %v1673, %v1665
    %v2946 = vpack.c.b16 %v1674, %v1666
    %v2947 = vpack.c.b16 %v1675, %v1667
    %v2948 = vpack.c.b16 %v1676, %v1668
    %v2949 = vpack.c.b16 %v1677, %v1669
    %v2950 = vpack.c.b16 %v1678, %v1670
    %v2951 = vpack.c.b16 %v1687, %v1679
    %v2952 = vpack.c.b16 %v1688, %v1680
    %v2953 = vpack.c.b16 %v1689, %v1681
    %v2954 = vpack.c.b16 %v1690, %v1682
    %v2955 = vpack.c.b16 %v1691, %v1683
    %v2956 = vpack.c.b16 %v1692, %v1684
    %v2957 = vpack.c.b16 %v1693, %v1685
    %v2958 = vpack.c.b16 %v1694, %v1686
    %v2959 = vpack.c.b16 %v1703, %v1695
    %v2960 = vpack.c.b16 %v1704, %v1696
    %v2961 = vpack.c.b16 %v1705, %v1697
    %v2962 = vpack.c.b16 %v1706, %v1698
    %v2963 = vpack.c.b16 %v1707, %v1699
    %v2964 = vpack.c.b16 %v1708, %v1700
    %v2965 = vpack.c.b16 %v1709, %v1701
    %v2966 = vpack.c.b16 %v1710, %v1702
    %v2967 = vpack.c.b16 %v1719, %v1711
    %v2968 = vpack.c.b16 %v1720, %v1712
    %v2969 = vpack.c.b16 %v1721, %v1713
    %v2970 = vpack.c.b16 %v1722, %v1714
    %v2971 = vpack.c.b16 %v1723, %v1715
    %v2972 = vpack.c.b16 %v1724, %v1716
    %v2973 = vpack.c.b16 %v1725, %v1717
    %v2974 = vpack.c.b16 %v1726, %v1718
    %v2975 = vpack.c.b16 %v1735, %v1727
    %v2976 = vpack.c.b16 %v1736, %v1728
    %v2977 = vpack.c.b16 %v1737, %v1729
    %v2978 = vpack.c.b16 %v1738, %v1730
    %v2979 = vpack.c.b16 %v1739, %v1731
    %v2980 = vpack.c.b16 %v1740, %v1732
    %v2981 = vpack.c.b16 %v1741, %v1733
    %v2982 = vpack.c.b16 %v1742, %v1734
    %v2983 = vpack.c.b16 %v1751, %v1743
    %v2984 = vpack.c.b16 %v1752, %v1744
    %v2985 = vpack.c.b16 %v1753, %v1745
    %v2986 = vpack.c.b16 %v1754, %v1746
    %v2987 = vpack.c.b16 %v1755, %v1747
    %v2988 = vpack.c.b16 %v1756, %v1748
    %v2989 = vpack.c.b16 %v1757, %v1749
    %v2990 = vpack.c.b16 %v1758, %v1750
    %v2991 = vpack.c.b16 %v1767, %v1759
    %v2992 = vpack.c.b16 %v1768, %v1760
    %v2993 = vpack.c.b16 %v1769, %v1761
    %v2994 = vpack.c.b16 %v1770, %v1762
    %v2995 = vpack.c.b16 %v1771, %v1763
    %v2996 = vpack.c.b16 %v1772, %v1764
    %v2997 = vpack.c.b16 %v1773, %v1765
    %v2998 = vpack.c.b16 %v1774, %v1766
    %v2999 = vpack.c.b16 %v1783, %v1775
    %v3000 = vpack.c.b16 %v1784, %v1776
    %v3001 = vpack.c.b16 %v1785, %v1777
    %v3002 = vpack.c.b16 %v1786, %v1778
    %v3003 = vpack.c.b16 %v1787, %v1779
    %v3004 = vpack.c.b16 %v1788, %v1780
    %v3005 = vpack.c.b16 %v1789, %v1781
    %v3006 = vpack.c.b16 %v1790, %v1782
    %v3007 = vpack.c.b16 %v1799, %v1791
    %v3008 = vpack.c.b16 %v1800, %v1792
    %v3009 = vpack.c.b16 %v1801, %v1793
    %v3010 = vpack.c.b16 %v1802, %v1794
    %v3011 = vpack.c.b16 %v1803, %v1795
    %v3012 = vpack.c.b16 %v1804, %v1796
    %v3013 = vpack.c.b16 %v1805, %v1797
    %v3014 = vpack.c.b16 %v1806, %v1798
    %v3015 = vpack.c.b16 %v1815, %v1807
    %v3016 = vpack.c.b16 %v1816, %v1808
    %v3017 = vpack.c.b16 %v1817, %v1809
    %v3018 = vpack.c.b16 %v1818, %v1810
    %v3019 = vpack.c.b16 %v1819, %v1811
    %v3020 = vpack.c.b16 %v1820, %v1812
    %v3021 = vpack.c.b16 %v1821, %v1813
    %v3022 = vpack.c.b16 %v1822, %v1814
    %v3023 = vpack.c.b16 %v1831, %v1823
    %v3024 = vpack.c.b16 %v1832, %v1824
    %v3025 = vpack.c.b16 %v1833, %v1825
    %v3026 = vpack.c.b16 %v1834, %v1826
    %v3027 = vpack.c.b16 %v1835, %v1827
    %v3028 = vpack.c.b16 %v1836, %v1828
    %v3029 = vpack.c.b16 %v1837, %v1829
    %v3030 = vpack.c.b16 %v1838, %v1830
    %v3031 = vpack.c.b16 %v1847, %v1839
    %v3032 = vpack.c.b16 %v1848, %v1840
    %v3033 = vpack.c.b16 %v1849, %v1841
    %v3034 = vpack.c.b16 %v1850, %v1842
    %v3035 = vpack.c.b16 %v1851, %v1843
    %v3036 = vpack.c.b16 %v1852, %v1844
    %v3037 = vpack.c.b16 %v1853, %v1845
    %v3038 = vpack.c.b16 %v1854, %v1846
    %v3039 = vpack.c.b16 %v1863, %v1855
    %v3040 = vpack.c.b16 %v1864, %v1856
    %v3041 = vpack.c.b16 %v1865, %v1857
    %v3042 = vpack.c.b16 %v1866, %v1858
    %v3043 = vpack.c.b16 %v1867, %v1859
    %v3044 = vpack.c.b16 %v1868, %v1860
    %v3045 = vpack.c.b16 %v1869, %v1861
    %v3046 = vpack.c.b16 %v1870, %v1862
    %v3047 = vpack.c.b16 %v1879, %v1871
    %v3048 = vpack.c.b16 %v1880, %v1872
    %v3049 = vpack.c.b16 %v1881, %v1873
    %v3050 = vpack.c.b16 %v1882, %v1874
    %v3051 = vpack.c.b16 %v1883, %v1875
    %v3052 = vpack.c.b16 %v1884, %v1876
    %v3053 = vpack.c.b16 %v1885, %v1877
    %v3054 = vpack.c.b16 %v1886, %v1878
    %v3055 = vpack.c.b16 %v1895, %v1887
    %v3056 = vpack.c.b16 %v1896, %v1888
    %v3057 = vpack.c.b16 %v1897, %v1889
    %v3058 = vpack.c.b16 %v1898, %v1890
    %v3059 = vpack.c.b16 %v1899, %v1891
    %v3060 = vpack.c.b16 %v1900, %v1892
    %v3061 = vpack.c.b16 %v1901, %v1893
    %v3062 = vpack.c.b16 %v1902, %v1894
    %v3063 = vpack.c.b16 %v1911, %v1903
    %v3064 = vpack.c.b16 %v1912, %v1904
    %v3065 = vpack.c.b16 %v1913, %v1905
    %v3066 = vpack.c.b16 %v1914, %v1906
    %v3067 = vpack.c.b16 %v1915, %v1907
    %v3068 = vpack.c.b16 %v1916, %v1908
    %v3069 = vpack.c.b16 %v1917, %v1909
    %v3070 = vpack.c.b16 %v1918, %v1910
    %v3071 = vpack.c.b16 %v1927, %v1919
    %v3072 = vpack.c.b16 %v1928, %v1920
    %v3073 = vpack.c.b16 %v1929, %v1921
    %v3074 = vpack.c.b16 %v1930, %v1922
    %v3075 = vpack.c.b16 %v1931, %v1923
    %v3076 = vpack.c.b16 %v1932, %v1924
    %v3077 = vpack.c.b16 %v1933, %v1925
    %v3078 = vpack.c.b16 %v1934, %v1926
    %v3079 = vpack.c.b16 %v1943, %v1935
    %v3080 = vpack.c.b16 %v1944, %v1936
    %v3081 = vpack.c.b16 %v1945, %v1937
    %v3082 = vpack.c.b16 %v1946, %v1938
    %v3083 = vpack.c.b16 %v1947, %v1939
    %v3084 = vpack.c.b16 %v1948, %v1940
    %v3085 = vpack.c.b16 %v1949, %v1941
    %v3086 = vpack.c.b16 %v1950, %v1942
    %v3087 = vpack.c.b16 %v1959, %v1951
    %v3088 = vpack.c.b16 %v1960, %v1952
    %v3089 = vpack.c.b16 %v1961, %v1953
    %v3090 = vpack.c.b16 %v1962, %v1954
    %v3091 = vpack.c.b16 %v1963, %v1955
    %v3092 = vpack.c.b16 %v1964, %v1956
    %v3093 = vpack.c.b16 %v1965, %v1957
    %v3094 = vpack.c.b16 %v1966, %v1958
    %v3095 = vpack.c.b16 %v1975, %v1967
    %v3096 = vpack.c.b16 %v1976, %v1968
    %v3097 = vpack.c.b16 %v1977, %v1969
    %v3098 = vpack.c.b16 %v1978, %v1970
    %v3099 = vpack.c.b16 %v1979, %v1971
    %v3100 = vpack.c.b16 %v1980, %v1972
    %v3101 = vpack.c.b16 %v1981, %v1973
    %v3102 = vpack.c.b16 %v1982, %v1974
    %v3103 = vpack.c.b16 %v1991, %v1983
    %v3104 = vpack.c.b16 %v1992, %v1984
    %v3105 = vpack.c.b16 %v1993, %v1985
    %v3106 = vpack.c.b16 %v1994, %v1986
    %v3107 = vpack.c.b16 %v1995, %v1987
    %v3108 = vpack.c.b16 %v1996, %v1988
    %v3109 = vpack.c.b16 %v1997, %v1989
    %v3110 = vpack.c.b16 %v1998, %v1990
    %v3111 = vpack.c.b16 %v2007, %v1999
    %v3112 = vpack.c.b16 %v2008, %v2000
    %v3113 = vpack.c.b16 %v2009, %v2001
    %v3114 = vpack.c.b16 %v2010, %v2002
    %v3115 = vpack.c.b16 %v2011, %v2003
    %v3116 = vpack.c.b16 %v2012, %v2004
    %v3117 = vpack.c.b16 %v2013, %v2005
    %v3118 = vpack.c.b16 %v2014, %v2006
    %v3119 = vpack.c.b16 %v2023, %v2015
    %v3120 = vpack.c.b16 %v2024, %v2016
    %v3121 = vpack.c.b16 %v2025, %v2017
    %v3122 = vpack.c.b16 %v2026, %v2018
    %v3123 = vpack.c.b16 %v2027, %v2019
    %v3124 = vpack.c.b16 %v2028, %v2020
    %v3125 = vpack.c.b16 %v2029, %v2021
    %v3126 = vpack.c.b16 %v2030, %v2022
    %v3127 = vpack.c.b16 %v2039, %v2031
    %v3128 = vpack.c.b16 %v2040, %v2032
    %v3129 = vpack.c.b16 %v2041, %v2033
    %v3130 = vpack.c.b16 %v2042, %v2034
    %v3131 = vpack.c.b16 %v2043, %v2035
    %v3132 = vpack.c.b16 %v2044, %v2036
    %v3133 = vpack.c.b16 %v2045, %v2037
    %v3134 = vpack.c.b16 %v2046, %v2038
    %v3135 = vpack.c.b16 %v2055, %v2047
    %v3136 = vpack.c.b16 %v2056, %v2048
    %v3137 = vpack.c.b16 %v2057, %v2049
    %v3138 = vpack.c.b16 %v2058, %v2050
    %v3139 = vpack.c.b16 %v2059, %v2051
    %v3140 = vpack.c.b16 %v2060, %v2052
    %v3141 = vpack.c.b16 %v2061, %v2053
    %v3142 = vpack.c.b16 %v2062, %v2054
    %v3143 = vpack.c.b16 %v2071, %v2063
    %v3144 = vpack.c.b16 %v2072, %v2064
    %v3145 = vpack.c.b16 %v2073, %v2065
    %v3146 = vpack.c.b16 %v2074, %v2066
    %v3147 = vpack.c.b16 %v2075, %v2067
    %v3148 = vpack.c.b16 %v2076, %v2068
    %v3149 = vpack.c.b16 %v2077, %v2069
    %v3150 = vpack.c.b16 %v2078, %v2070
    %v3151 = vpack.c.b16 %v2087, %v2079
    %v3152 = vpack.c.b16 %v2088, %v2080
    %v3153 = vpack.c.b16 %v2089, %v2081
    %v3154 = vpack.c.b16 %v2090, %v2082
    %v3155 = vpack.c.b16 %v2091, %v2083
    %v3156 = vpack.c.b16 %v2092, %v2084
    %v3157 = vpack.c.b16 %v2093, %v2085
    %v3158 = vpack.c.b16 %v2094, %v2086
    %v3159 = vpack.c.b16 %v2103, %v2095
    %v3160 = vpack.c.b16 %v2104, %v2096
    %v3161 = vpack.c.b16 %v2105, %v2097
    %v3162 = vpack.c.b16 %v2106, %v2098
    %v3163 = vpack.c.b16 %v2107, %v2099
    %v3164 = vpack.c.b16 %v2108, %v2100
    %v3165 = vpack.c.b16 %v2109, %v2101
    %v3166 = vpack.c.b16 %v2110, %v2102
    %v3167 = vpack.c.b16 %v2119, %v2111
    %v3168 = vpack.c.b16 %v2120, %v2112
    %v3169 = vpack.c.b16 %v2121, %v2113
    %v3170 = vpack.c.b16 %v2122, %v2114
    %v3171 = vpack.c.b16 %v2123, %v2115
    %v3172 = vpack.c.b16 %v2124, %v2116
    %v3173 = vpack.c.b16 %v2125, %v2117
    %v3174 = vpack.c.b16 %v2126, %v2118
    %v3175 = vpack.c.b16 %v2135, %v2127
    %v3176 = vpack.c.b16 %v2136, %v2128
    %v3177 = vpack.c.b16 %v2137, %v2129
    %v3178 = vpack.c.b16 %v2138, %v2130
    %v3179 = vpack.c.b16 %v2139, %v2131
    %v3180 = vpack.c.b16 %v2140, %v2132
    %v3181 = vpack.c.b16 %v2141, %v2133
    %v3182 = vpack.c.b16 %v2142, %v2134
    %v3183 = vpack.c.b16 %v2151, %v2143
    %v3184 = vpack.c.b16 %v2152, %v2144
    %v3185 = vpack.c.b16 %v2153, %v2145
    %v3186 = vpack.c.b16 %v2154, %v2146
    %v3187 = vpack.c.b16 %v2155, %v2147
    %v3188 = vpack.c.b16 %v2156, %v2148
    %v3189 = vpack.c.b16 %v2157, %v2149
    %v3190 = vpack.c.b16 %v2158, %v2150
    %v3191 = vpack.c.b16 %v2167, %v2159
    %v3192 = vpack.c.b16 %v2168, %v2160
    %v3193 = vpack.c.b16 %v2169, %v2161
    %v3194 = vpack.c.b16 %v2170, %v2162
    %v3195 = vpack.c.b16 %v2171, %v2163
    %v3196 = vpack.c.b16 %v2172, %v2164
    %v3197 = vpack.c.b16 %v2173, %v2165
    %v3198 = vpack.c.b16 %v2174, %v2166
    %v3199 = vpack.c.b16 %v2183, %v2175
    %v3200 = vpack.c.b16 %v2184, %v2176
    %v3201 = vpack.c.b16 %v2185, %v2177
    %v3202 = vpack.c.b16 %v2186, %v2178
    %v3203 = vpack.c.b16 %v2187, %v2179
    %v3204 = vpack.c.b16 %v2188, %v2180
    %v3205 = vpack.c.b16 %v2189, %v2181
    %v3206 = vpack.c.b16 %v2190, %v2182
    %v3207 = vpack.c.b16 %v2199, %v2191
    %v3208 = vpack.c.b16 %v2200, %v2192
    %v3209 = vpack.c.b16 %v2201, %v2193
    %v3210 = vpack.c.b16 %v2202, %v2194
    %v3211 = vpack.c.b16 %v2203, %v2195
    %v3212 = vpack.c.b16 %v2204, %v2196
    %v3213 = vpack.c.b16 %v2205, %v2197
    %v3214 = vpack.c.b16 %v2206, %v2198
    %v3215 = vpack.c.b16 %v2215, %v2207
    %v3216 = vpack.c.b16 %v2216, %v2208
    %v3217 = vpack.c.b16 %v2217, %v2209
    %v3218 = vpack.c.b16 %v2218, %v2210
    %v3219 = vpack.c.b16 %v2219, %v2211
    %v3220 = vpack.c.b16 %v2220, %v2212
    %v3221 = vpack.c.b16 %v2221, %v2213
    %v3222 = vpack.c.b16 %v2222, %v2214
    %v3223 = vpack.c.b16 %v2231, %v2223
    %v3224 = vpack.c.b16 %v2232, %v2224
    %v3225 = vpack.c.b16 %v2233, %v2225
    %v3226 = vpack.c.b16 %v2234, %v2226
    %v3227 = vpack.c.b16 %v2235, %v2227
    %v3228 = vpack.c.b16 %v2236, %v2228
    %v3229 = vpack.c.b16 %v2237, %v2229
    %v3230 = vpack.c.b16 %v2238, %v2230
    %v3231 = vpack.c.b16 %v2247, %v2239
    %v3232 = vpack.c.b16 %v2248, %v2240
    %v3233 = vpack.c.b16 %v2249, %v2241
    %v3234 = vpack.c.b16 %v2250, %v2242
    %v3235 = vpack.c.b16 %v2251, %v2243
    %v3236 = vpack.c.b16 %v2252, %v2244
    %v3237 = vpack.c.b16 %v2253, %v2245
    %v3238 = vpack.c.b16 %v2254, %v2246
    %v3239 = vpack.c.b16 %v2263, %v2255
    %v3240 = vpack.c.b16 %v2264, %v2256
    %v3241 = vpack.c.b16 %v2265, %v2257
    %v3242 = vpack.c.b16 %v2266, %v2258
    %v3243 = vpack.c.b16 %v2267, %v2259
    %v3244 = vpack.c.b16 %v2268, %v2260
    %v3245 = vpack.c.b16 %v2269, %v2261
    %v3246 = vpack.c.b16 %v2270, %v2262
    %v3247 = vpack.c.b16 %v2279, %v2271
    %v3248 = vpack.c.b16 %v2280, %v2272
    %v3249 = vpack.c.b16 %v2281, %v2273
    %v3250 = vpack.c.b16 %v2282, %v2274
    %v3251 = vpack.c.b16 %v2283, %v2275
    %v3252 = vpack.c.b16 %v2284, %v2276
    %v3253 = vpack.c.b16 %v2285, %v2277
    %v3254 = vpack.c.b16 %v2286, %v2278
    %v3255 = vpack.c.b16 %v2295, %v2287
    %v3256 = vpack.c.b16 %v2296, %v2288
    %v3257 = vpack.c.b16 %v2297, %v2289
    %v3258 = vpack.c.b16 %v2298, %v2290
    %v3259 = vpack.c.b16 %v2299, %v2291
    %v3260 = vpack.c.b16 %v2300, %v2292
    %v3261 = vpack.c.b16 %v2301, %v2293
    %v3262 = vpack.c.b16 %v2302, %v2294
    %v3263 = vpack.c.b16 %v2311, %v2303
    %v3264 = vpack.c.b16 %v2312, %v2304
    %v3265 = vpack.c.b16 %v2313, %v2305
    %v3266 = vpack.c.b16 %v2314, %v2306
    %v3267 = vpack.c.b16 %v2315, %v2307
    %v3268 = vpack.c.b16 %v2316, %v2308
    %v3269 = vpack.c.b16 %v2317, %v2309
    %v3270 = vpack.c.b16 %v2318, %v2310
    %v3271 = vpack.c.b16 %v2327, %v2319
    %v3272 = vpack.c.b16 %v2328, %v2320
    %v3273 = vpack.c.b16 %v2329, %v2321
    %v3274 = vpack.c.b16 %v2330, %v2322
    %v3275 = vpack.c.b16 %v2331, %v2323
    %v3276 = vpack.c.b16 %v2332, %v2324
    %v3277 = vpack.c.b16 %v2333, %v2325
    %v3278 = vpack.c.b16 %v2334, %v2326
    %v3279 = vpack.c.b16 %v2343, %v2335
    %v3280 = vpack.c.b16 %v2344, %v2336
    %v3281 = vpack.c.b16 %v2345, %v2337
    %v3282 = vpack.c.b16 %v2346, %v2338
    %v3283 = vpack.c.b16 %v2347, %v2339
    %v3284 = vpack.c.b16 %v2348, %v2340
    %v3285 = vpack.c.b16 %v2349, %v2341
    %v3286 = vpack.c.b16 %v2350, %v2342
    %v3287 = vpack.c.b16 %v2359, %v2351
    %v3288 = vpack.c.b16 %v2360, %v2352
    %v3289 = vpack.c.b16 %v2361, %v2353
    %v3290 = vpack.c.b16 %v2362, %v2354
    %v3291 = vpack.c.b16 %v2363, %v2355
    %v3292 = vpack.c.b16 %v2364, %v2356
    %v3293 = vpack.c.b16 %v2365, %v2357
    %v3294 = vpack.c.b16 %v2366, %v2358
    %v3295 = vpack.c.b16 %v2375, %v2367
    %v3296 = vpack.c.b16 %v2376, %v2368
    %v3297 = vpack.c.b16 %v2377, %v2369
    %v3298 = vpack.c.b16 %v2378, %v2370
    %v3299 = vpack.c.b16 %v2379, %v2371
    %v3300 = vpack.c.b16 %v2380, %v2372
    %v3301 = vpack.c.b16 %v2381, %v2373
    %v3302 = vpack.c.b16 %v2382, %v2374
    %v3303 = vpack.c.b16 %v2391, %v2383
    %v3304 = vpack.c.b16 %v2392, %v2384
    %v3305 = vpack.c.b16 %v2393, %v2385
    %v3306 = vpack.c.b16 %v2394, %v2386
    %v3307 = vpack.c.b16 %v2395, %v2387
    %v3308 = vpack.c.b16 %v2396, %v2388
    %v3309 = vpack.c.b16 %v2397, %v2389
    %v3310 = vpack.c.b16 %v2398, %v2390
    %v3311 = vpack.c.b16 %v2407, %v2399
    %v3312 = vpack.c.b16 %v2408, %v2400
    %v3313 = vpack.c.b16 %v2409, %v2401
    %v3314 = vpack.c.b16 %v2410, %v2402
    %v3315 = vpack.c.b16 %v2411, %v2403
    %v3316 = vpack.c.b16 %v2412, %v2404
    %v3317 = vpack.c.b16 %v2413, %v2405
    %v3318 = vpack.c.b16 %v2414, %v2406
    %v3319 = vpack.c.b16 %v2423, %v2415
    %v3320 = vpack.c.b16 %v2424, %v2416
    %v3321 = vpack.c.b16 %v2425, %v2417
    %v3322 = vpack.c.b16 %v2426, %v2418
    %v3323 = vpack.c.b16 %v2427, %v2419
    %v3324 = vpack.c.b16 %v2428, %v2420
    %v3325 = vpack.c.b16 %v2429, %v2421
    %v3326 = vpack.c.b16 %v2430, %v2422
    %v3327 = vpack.c.b16 %v2439, %v2431
    %v3328 = vpack.c.b16 %v2440, %v2432
    %v3329 = vpack.c.b16 %v2441, %v2433
    %v3330 = vpack.c.b16 %v2442, %v2434
    %v3331 = vpack.c.b16 %v2443, %v2435
    %v3332 = vpack.c.b16 %v2444, %v2436
    %v3333 = vpack.c.b16 %v2445, %v2437
    %v3334 = vpack.c.b16 %v2446, %v2438
    %v3335 = vpack.c.b16 %v2455, %v2447
    %v3336 = vpack.c.b16 %v2456, %v2448
    %v3337 = vpack.c.b16 %v2457, %v2449
    %v3338 = vpack.c.b16 %v2458, %v2450
    %v3339 = vpack.c.b16 %v2459, %v2451
    %v3340 = vpack.c.b16 %v2460, %v2452
    %v3341 = vpack.c.b16 %v2461, %v2453
    %v3342 = vpack.c.b16 %v2462, %v2454
    %v3343 = vpack.c.b16 %v2471, %v2463
    %v3344 = vpack.c.b16 %v2472, %v2464
    %v3345 = vpack.c.b16 %v2473, %v2465
    %v3346 = vpack.c.b16 %v2474, %v2466
    %v3347 = vpack.c.b16 %v2475, %v2467
    %v3348 = vpack.c.b16 %v2476, %v2468
    %v3349 = vpack.c.b16 %v2477, %v2469
    %v3350 = vpack.c.b16 %v2478, %v2470
    %v3351 = vpack.c.b16 %v2487, %v2479
    %v3352 = vpack.c.b16 %v2488, %v2480
    %v3353 = vpack.c.b16 %v2489, %v2481
    %v3354 = vpack.c.b16 %v2490, %v2482
    %v3355 = vpack.c.b16 %v2491, %v2483
    %v3356 = vpack.c.b16 %v2492, %v2484
    %v3357 = vpack.c.b16 %v2493, %v2485
    %v3358 = vpack.c.b16 %v2494, %v2486
    %v3359 = vpack.c.b16 %v2503, %v2495
    %v3360 = vpack.c.b16 %v2504, %v2496
    %v3361 = vpack.c.b16 %v2505, %v2497
    %v3362 = vpack.c.b16 %v2506, %v2498
    %v3363 = vpack.c.b16 %v2507, %v2499
    %v3364 = vpack.c.b16 %v2508, %v2500
    %v3365 = vpack.c.b16 %v2509, %v2501
    %v3366 = vpack.c.b16 %v2510, %v2502
    %v3367 = vpack.c.b16 %v2519, %v2511
    %v3368 = vpack.c.b16 %v2520, %v2512
    %v3369 = vpack.c.b16 %v2521, %v2513
    %v3370 = vpack.c.b16 %v2522, %v2514
    %v3371 = vpack.c.b16 %v2523, %v2515
    %v3372 = vpack.c.b16 %v2524, %v2516
    %v3373 = vpack.c.b16 %v2525, %v2517
    %v3374 = vpack.c.b16 %v2526, %v2518
    %v3375 = vpack.c.b16 %v2535, %v2527
    %v3376 = vpack.c.b16 %v2536, %v2528
    %v3377 = vpack.c.b16 %v2537, %v2529
    %v3378 = vpack.c.b16 %v2538, %v2530
    %v3379 = vpack.c.b16 %v2539, %v2531
    %v3380 = vpack.c.b16 %v2540, %v2532
    %v3381 = vpack.c.b16 %v2541, %v2533
    %v3382 = vpack.c.b16 %v2542, %v2534
    %v3383 = vpack.c.b16 %v2551, %v2543
    %v3384 = vpack.c.b16 %v2552, %v2544
    %v3385 = vpack.c.b16 %v2553, %v2545
    %v3386 = vpack.c.b16 %v2554, %v2546
    %v3387 = vpack.c.b16 %v2555, %v2547
    %v3388 = vpack.c.b16 %v2556, %v2548
    %v3389 = vpack.c.b16 %v2557, %v2549
    %v3390 = vpack.c.b16 %v2558, %v2550
    %v3391 = vpack.c.b16 %v2567, %v2559
    %v3392 = vpack.c.b16 %v2568, %v2560
    %v3393 = vpack.c.b16 %v2569, %v2561
    %v3394 = vpack.c.b16 %v2570, %v2562
    %v3395 = vpack.c.b16 %v2571, %v2563
    %v3396 = vpack.c.b16 %v2572, %v2564
    %v3397 = vpack.c.b16 %v2573, %v2565
    %v3398 = vpack.c.b16 %v2574, %v2566
    %v3399 = vpack.c.b16 %v2583, %v2575
    %v3400 = vpack.c.b16 %v2584, %v2576
    %v3401 = vpack.c.b16 %v2585, %v2577
    %v3402 = vpack.c.b16 %v2586, %v2578
    %v3403 = vpack.c.b16 %v2587, %v2579
    %v3404 = vpack.c.b16 %v2588, %v2580
    %v3405 = vpack.c.b16 %v2589, %v2581
    %v3406 = vpack.c.b16 %v2590, %v2582
    %v3407 = vpack.c.b16 %v2599, %v2591
    %v3408 = vpack.c.b16 %v2600, %v2592
    %v3409 = vpack.c.b16 %v2601, %v2593
    %v3410 = vpack.c.b16 %v2602, %v2594
    %v3411 = vpack.c.b16 %v2603, %v2595
    %v3412 = vpack.c.b16 %v2604, %v2596
    %v3413 = vpack.c.b16 %v2605, %v2597
    %v3414 = vpack.c.b16 %v2606, %v2598
    %v3415 = vpack.c.b16 %v2615, %v2607
    %v3416 = vpack.c.b16 %v2616, %v2608
    %v3417 = vpack.c.b16 %v2617, %v2609
    %v3418 = vpack.c.b16 %v2618, %v2610
    %v3419 = vpack.c.b16 %v2619, %v2611
    %v3420 = vpack.c.b16 %v2620, %v2612
    %v3421 = vpack.c.b16 %v2621, %v2613
    %v3422 = vpack.c.b16 %v2622, %v2614
    %v3423 = vpack.c.b16 %v2631, %v2623
    %v3424 = vpack.c.b16 %v2632, %v2624
    %v3425 = vpack.c.b16 %v2633, %v2625
    %v3426 = vpack.c.b16 %v2634, %v2626
    %v3427 = vpack.c.b16 %v2635, %v2627
    %v3428 = vpack.c.b16 %v2636, %v2628
    %v3429 = vpack.c.b16 %v2637, %v2629
    %v3430 = vpack.c.b16 %v2638, %v2630
    %v3431 = vpack.c.b16 %v2647, %v2639
    %v3432 = vpack.c.b16 %v2648, %v2640
    %v3433 = vpack.c.b16 %v2649, %v2641
    %v3434 = vpack.c.b16 %v2650, %v2642
    %v3435 = vpack.c.b16 %v2651, %v2643
    %v3436 = vpack.c.b16 %v2652, %v2644
    %v3437 = vpack.c.b16 %v2653, %v2645
    %v3438 = vpack.c.b16 %v2654, %v2646
    %v3439 = vpack.c.b16 %v2663, %v2655
    %v3440 = vpack.c.b16 %v2664, %v2656
    %v3441 = vpack.c.b16 %v2665, %v2657
    %v3442 = vpack.c.b16 %v2666, %v2658
    %v3443 = vpack.c.b16 %v2667, %v2659
    %v3444 = vpack.c.b16 %v2668, %v2660
    %v3445 = vpack.c.b16 %v2669, %v2661
    %v3446 = vpack.c.b16 %v2670, %v2662
    %v3447 = vpack.c.b16 %v2679, %v2671
    %v3448 = vpack.c.b16 %v2680, %v2672
    %v3449 = vpack.c.b16 %v2681, %v2673
    %v3450 = vpack.c.b16 %v2682, %v2674
    %v3451 = vpack.c.b16 %v2683, %v2675
    %v3452 = vpack.c.b16 %v2684, %v2676
    %v3453 = vpack.c.b16 %v2685, %v2677
    %v3454 = vpack.c.b16 %v2686, %v2678
    %v3455 = vpack.c.b16 %v2695, %v2687
    %v3456 = vpack.c.b16 %v2696, %v2688
    %v3457 = vpack.c.b16 %v2697, %v2689
    %v3458 = vpack.c.b16 %v2698, %v2690
    %v3459 = vpack.c.b16 %v2699, %v2691
    %v3460 = vpack.c.b16 %v2700, %v2692
    %v3461 = vpack.c.b16 %v2701, %v2693
    %v3462 = vpack.c.b16 %v2702, %v2694
    %v3463 = vpack.c.b16 %v2711, %v2703
    %v3464 = vpack.c.b16 %v2712, %v2704
    %v3465 = vpack.c.b16 %v2713, %v2705
    %v3466 = vpack.c.b16 %v2714, %v2706
    %v3467 = vpack.c.b16 %v2715, %v2707
    %v3468 = vpack.c.b16 %v2716, %v2708
    %v3469 = vpack.c.b16 %v2717, %v2709
    %v3470 = vpack.c.b16 %v2718, %v2710
    %v3471 = vpack.c.b16 %v2727, %v2719
    %v3472 = vpack.c.b16 %v2728, %v2720
    %v3473 = vpack.c.b16 %v2729, %v2721
    %v3474 = vpack.c.b16 %v2730, %v2722
    %v3475 = vpack.c.b16 %v2731, %v2723
    %v3476 = vpack.c.b16 %v2732, %v2724
    %v3477 = vpack.c.b16 %v2733, %v2725
    %v3478 = vpack.c.b16 %v2734, %v2726
    %v3479 = vpack.c.b16 %v2743, %v2735
    %v3480 = vpack.c.b16 %v2744, %v2736
    %v3481 = vpack.c.b16 %v2745, %v2737
    %v3482 = vpack.c.b16 %v2746, %v2738
    %v3483 = vpack.c.b16 %v2747, %v2739
    %v3484 = vpack.c.b16 %v2748, %v2740
    %v3485 = vpack.c.b16 %v2749, %v2741
    %v3486 = vpack.c.b16 %v2750, %v2742
    %v3487 = vpack.c.b16 %v2759, %v2751
    %v3488 = vpack.c.b16 %v2760, %v2752
    %v3489 = vpack.c.b16 %v2761, %v2753
    %v3490 = vpack.c.b16 %v2762, %v2754
    %v3491 = vpack.c.b16 %v2763, %v2755
    %v3492 = vpack.c.b16 %v2764, %v2756
    %v3493 = vpack.c.b16 %v2765, %v2757
    %v3494 = vpack.c.b16 %v2766, %v2758
    %v3495 = vpack.c.b16 %v2775, %v2767
    %v3496 = vpack.c.b16 %v2776, %v2768
    %v3497 = vpack.c.b16 %v2777, %v2769
    %v3498 = vpack.c.b16 %v2778, %v2770
    %v3499 = vpack.c.b16 %v2779, %v2771
    %v3500 = vpack.c.b16 %v2780, %v2772
    %v3501 = vpack.c.b16 %v2781, %v2773
    %v3502 = vpack.c.b16 %v2782, %v2774
    %v3503 = vpack.c.b16 %v2791, %v2783
    %v3504 = vpack.c.b16 %v2792, %v2784
    %v3505 = vpack.c.b16 %v2793, %v2785
    %v3506 = vpack.c.b16 %v2794, %v2786
    %v3507 = vpack.c.b16 %v2795, %v2787
    %v3508 = vpack.c.b16 %v2796, %v2788
    %v3509 = vpack.c.b16 %v2797, %v2789
    %v3510 = vpack.c.b16 %v2798, %v2790
    %v3511 = vpack.c.b16 %v2807, %v2799
    %v3512 = vpack.c.b16 %v2808, %v2800
    %v3513 = vpack.c.b16 %v2809, %v2801
    %v3514 = vpack.c.b16 %v2810, %v2802
    %v3515 = vpack.c.b16 %v2811, %v2803
    %v3516 = vpack.c.b16 %v2812, %v2804
    %v3517 = vpack.c.b16 %v2813, %v2805
    %v3518 = vpack.c.b16 %v2814, %v2806
    %v3519 = vpack.c.b16 %v2823, %v2815
    %v3520 = vpack.c.b16 %v2824, %v2816
    %v3521 = vpack.c.b16 %v2825, %v2817
    %v3522 = vpack.c.b16 %v2826, %v2818
    %v3523 = vpack.c.b16 %v2827, %v2819
    %v3524 = vpack.c.b16 %v2828, %v2820
    %v3525 = vpack.c.b16 %v2829, %v2821
    %v3526 = vpack.c.b16 %v2830, %v2822
    %v3527 = vpack.c.b16 %v2839, %v2831
    %v3528 = vpack.c.b16 %v2840, %v2832
    %v3529 = vpack.c.b16 %v2841, %v2833
    %v3530 = vpack.c.b16 %v2842, %v2834
    %v3531 = vpack.c.b16 %v2843, %v2835
    %v3532 = vpack.c.b16 %v2844, %v2836
    %v3533 = vpack.c.b16 %v2845, %v2837
    %v3534 = vpack.c.b16 %v2846, %v2838
    %v3535 = vpack.c.b16 %v2855, %v2847
    %v3536 = vpack.c.b16 %v2856, %v2848
    %v3537 = vpack.c.b16 %v2857, %v2849
    %v3538 = vpack.c.b16 %v2858, %v2850
    %v3539 = vpack.c.b16 %v2859, %v2851
    %v3540 = vpack.c.b16 %v2860, %v2852
    %v3541 = vpack.c.b16 %v2861, %v2853
    %v3542 = vpack.c.b16 %v2862, %v2854
    %v3543 = vpack.c.b16 %v2871, %v2863
    %v3544 = vpack.c.b16 %v2872, %v2864
    %v3545 = vpack.c.b16 %v2873, %v2865
    %v3546 = vpack.c.b16 %v2874, %v2866
    %v3547 = vpack.c.b16 %v2875, %v2867
    %v3548 = vpack.c.b16 %v2876, %v2868
    %v3549 = vpack.c.b16 %v2877, %v2869
    %v3550 = vpack.c.b16 %v2878, %v2870
    %v3551 = vpack.c.b16 %v2887, %v2879
    %v3552 = vpack.c.b16 %v2888, %v2880
    %v3553 = vpack.c.b16 %v2889, %v2881
    %v3554 = vpack.c.b16 %v2890, %v2882
    %v3555 = vpack.c.b16 %v2891, %v2883
    %v3556 = vpack.c.b16 %v2892, %v2884
    %v3557 = vpack.c.b16 %v2893, %v2885
    %v3558 = vpack.c.b16 %v2894, %v2886
    %vm4223 = vcmask 392192
    %v4225 = vsel %vm4223, %v209, 0
    %v4228 = vsel %vm4223, %v220, 0
    %4230 = vmatpush.bf16.msra.mxu0 %v2951
    %4231 = vmatpush.bf16.msra.mxu0 %v2943
    %4232 = vmatpush.bf16.msra.mxu0 %v2935
    %4233 = vmatpush.bf16.msra.mxu0 %v2927
    %4234 = vmatpush.bf16.msra.mxu0 %v2919
    %4235 = vmatpush.bf16.msra.mxu0 %v2911
    %4236 = vmatpush.bf16.msra.mxu0 %v2903
    %4237 = vmatpush.bf16.msra.mxu0 %v2895
    %4238 = vmatmul.bf16.gmra.mxu0 %v199
    %v4239 = vpop.f32.mrf.mxu0
    %v4240 = vadd.f32 %v887, %v4239
    %v4241 = vpop.f32.mrf.mxu0
    %v4242 = vadd.f32 %v887, %v4241
    %4243 = vmatmul.bf16.gmra.mxu0 %v210
    %v4244 = vpop.f32.mrf.mxu0
    %v4245 = vadd.f32 %v887, %v4244
    %v4246 = vpop.f32.mrf.mxu0
    %4247 = vdwg.mxu0
    %4248 = vmatpush.bf16.msra.mxu0 %v3015
    %4249 = vmatpush.bf16.msra.mxu0 %v3007
    %4250 = vmatpush.bf16.msra.mxu0 %v2999
    %4251 = vmatpush.bf16.msra.mxu0 %v2991
    %4252 = vmatpush.bf16.msra.mxu0 %v2983
    %4253 = vmatpush.bf16.msra.mxu0 %v2975
    %4254 = vmatpush.bf16.msra.mxu0 %v2967
    %4255 = vmatpush.bf16.msra.mxu0 %v2959
    %4256 = vmatmul.bf16.gmra.mxu0 %v200
    %v4257 = vpop.f32.mrf.mxu0
    %v4258 = vadd.f32 %v4240, %v4257
    %v4259 = vpop.f32.mrf.mxu0
    %v4260 = vadd.f32 %v4242, %v4259
    %4261 = vmatmul.bf16.gmra.mxu0 %v211
    %v4262 = vpop.f32.mrf.mxu0
    %v4263 = vadd.f32 %v4245, %v4262
    %v4264 = vpop.f32.mrf.mxu0
    %4265 = vdwg.mxu0
    %4266 = vmatpush.bf16.msra.mxu0 %v3079
    %4267 = vmatpush.bf16.msra.mxu0 %v3071
    %4268 = vmatpush.bf16.msra.mxu0 %v3063
    %4269 = vmatpush.bf16.msra.mxu0 %v3055
    %4270 = vmatpush.bf16.msra.mxu0 %v3047
    %4271 = vmatpush.bf16.msra.mxu0 %v3039
    %4272 = vmatpush.bf16.msra.mxu0 %v3031
    %4273 = vmatpush.bf16.msra.mxu0 %v3023
    %4274 = vmatmul.bf16.gmra.mxu0 %v201
    %v4275 = vpop.f32.mrf.mxu0
    %v4276 = vadd.f32 %v4258, %v4275
    %v4277 = vpop.f32.mrf.mxu0
    %v4278 = vadd.f32 %v4260, %v4277
    %4279 = vmatmul.bf16.gmra.mxu0 %v212
    %v4280 = vpop.f32.mrf.mxu0
    %v4281 = vadd.f32 %v4263, %v4280
    %v4282 = vpop.f32.mrf.mxu0
    %4283 = vdwg.mxu0
    %4284 = vmatpush.bf16.msra.mxu0 %v3143
    %4285 = vmatpush.bf16.msra.mxu0 %v3135
    %4286 = vmatpush.bf16.msra.mxu0 %v3127
    %4287 = vmatpush.bf16.msra.mxu0 %v3119
    %4288 = vmatpush.bf16.msra.mxu0 %v3111
    %4289 = vmatpush.bf16.msra.mxu0 %v3103
    %4290 = vmatpush.bf16.msra.mxu0 %v3095
    %4291 = vmatpush.bf16.msra.mxu0 %v3087
    %4292 = vmatmul.bf16.gmra.mxu0 %v202
    %v4293 = vpop.f32.mrf.mxu0
    %v4294 = vadd.f32 %v4276, %v4293
    %v4295 = vpop.f32.mrf.mxu0
    %v4296 = vadd.f32 %v4278, %v4295
    %4297 = vmatmul.bf16.gmra.mxu0 %v213
    %v4298 = vpop.f32.mrf.mxu0
    %v4299 = vadd.f32 %v4281, %v4298
    %v4300 = vpop.f32.mrf.mxu0
    %4301 = vdwg.mxu0
    %4302 = vmatpush.bf16.msra.mxu0 %v3207
    %4303 = vmatpush.bf16.msra.mxu0 %v3199
    %4304 = vmatpush.bf16.msra.mxu0 %v3191
    %4305 = vmatpush.bf16.msra.mxu0 %v3183
    %4306 = vmatpush.bf16.msra.mxu0 %v3175
    %4307 = vmatpush.bf16.msra.mxu0 %v3167
    %4308 = vmatpush.bf16.msra.mxu0 %v3159
    %4309 = vmatpush.bf16.msra.mxu0 %v3151
    %4310 = vmatmul.bf16.gmra.mxu0 %v203
    %v4311 = vpop.f32.mrf.mxu0
    %v4312 = vadd.f32 %v4294, %v4311
    %v4313 = vpop.f32.mrf.mxu0
    %v4314 = vadd.f32 %v4296, %v4313
    %4315 = vmatmul.bf16.gmra.mxu0 %v214
    %v4316 = vpop.f32.mrf.mxu0
    %v4317 = vadd.f32 %v4299, %v4316
    %v4318 = vpop.f32.mrf.mxu0
    %4319 = vdwg.mxu0
    %4320 = vmatpush.bf16.msra.mxu0 %v3271
    %4321 = vmatpush.bf16.msra.mxu0 %v3263
    %4322 = vmatpush.bf16.msra.mxu0 %v3255
    %4323 = vmatpush.bf16.msra.mxu0 %v3247
    %4324 = vmatpush.bf16.msra.mxu0 %v3239
    %4325 = vmatpush.bf16.msra.mxu0 %v3231
    %4326 = vmatpush.bf16.msra.mxu0 %v3223
    %4327 = vmatpush.bf16.msra.mxu0 %v3215
    %4328 = vmatmul.bf16.gmra.mxu0 %v204
    %v4329 = vpop.f32.mrf.mxu0
    %v4330 = vadd.f32 %v4312, %v4329
    %v4331 = vpop.f32.mrf.mxu0
    %v4332 = vadd.f32 %v4314, %v4331
    %4333 = vmatmul.bf16.gmra.mxu0 %v215
    %v4334 = vpop.f32.mrf.mxu0
    %v4335 = vadd.f32 %v4317, %v4334
    %v4336 = vpop.f32.mrf.mxu0
    %4337 = vdwg.mxu0
    %4338 = vmatpush.bf16.msra.mxu0 %v3335
    %4339 = vmatpush.bf16.msra.mxu0 %v3327
    %4340 = vmatpush.bf16.msra.mxu0 %v3319
    %4341 = vmatpush.bf16.msra.mxu0 %v3311
    %4342 = vmatpush.bf16.msra.mxu0 %v3303
    %4343 = vmatpush.bf16.msra.mxu0 %v3295
    %4344 = vmatpush.bf16.msra.mxu0 %v3287
    %4345 = vmatpush.bf16.msra.mxu0 %v3279
    %4346 = vmatmul.bf16.gmra.mxu0 %v205
    %v4347 = vpop.f32.mrf.mxu0
    %v4348 = vadd.f32 %v4330, %v4347
    %v4349 = vpop.f32.mrf.mxu0
    %v4350 = vadd.f32 %v4332, %v4349
    %4351 = vmatmul.bf16.gmra.mxu0 %v216
    %v4352 = vpop.f32.mrf.mxu0
    %v4353 = vadd.f32 %v4335, %v4352
    %v4354 = vpop.f32.mrf.mxu0
    %4355 = vdwg.mxu0
    %4356 = vmatpush.bf16.msra.mxu0 %v3399
    %4357 = vmatpush.bf16.msra.mxu0 %v3391
    %4358 = vmatpush.bf16.msra.mxu0 %v3383
    %4359 = vmatpush.bf16.msra.mxu0 %v3375
    %4360 = vmatpush.bf16.msra.mxu0 %v3367
    %4361 = vmatpush.bf16.msra.mxu0 %v3359
    %4362 = vmatpush.bf16.msra.mxu0 %v3351
    %4363 = vmatpush.bf16.msra.mxu0 %v3343
    %4364 = vmatmul.bf16.gmra.mxu0 %v206
    %v4365 = vpop.f32.mrf.mxu0
    %v4366 = vadd.f32 %v4348, %v4365
    %v4367 = vpop.f32.mrf.mxu0
    %v4368 = vadd.f32 %v4350, %v4367
    %4369 = vmatmul.bf16.gmra.mxu0 %v217
    %v4370 = vpop.f32.mrf.mxu0
    %v4371 = vadd.f32 %v4353, %v4370
    %v4372 = vpop.f32.mrf.mxu0
    %4373 = vdwg.mxu0
    %4374 = vmatpush.bf16.msra.mxu0 %v3463
    %4375 = vmatpush.bf16.msra.mxu0 %v3455
    %4376 = vmatpush.bf16.msra.mxu0 %v3447
    %4377 = vmatpush.bf16.msra.mxu0 %v3439
    %4378 = vmatpush.bf16.msra.mxu0 %v3431
    %4379 = vmatpush.bf16.msra.mxu0 %v3423
    %4380 = vmatpush.bf16.msra.mxu0 %v3415
    %4381 = vmatpush.bf16.msra.mxu0 %v3407
    %4382 = vmatmul.bf16.gmra.mxu0 %v207
    %v4383 = vpop.f32.mrf.mxu0
    %v4384 = vadd.f32 %v4366, %v4383
    %v4385 = vpop.f32.mrf.mxu0
    %v4386 = vadd.f32 %v4368, %v4385
    %4387 = vmatmul.bf16.gmra.mxu0 %v218
    %v4388 = vpop.f32.mrf.mxu0
    %v4389 = vadd.f32 %v4371, %v4388
    %v4390 = vpop.f32.mrf.mxu0
    %4391 = vdwg.mxu0
    %4392 = vmatpush.bf16.msra.mxu0 %v3527
    %4393 = vmatpush.bf16.msra.mxu0 %v3519
    %4394 = vmatpush.bf16.msra.mxu0 %v3511
    %4395 = vmatpush.bf16.msra.mxu0 %v3503
    %4396 = vmatpush.bf16.msra.mxu0 %v3495
    %4397 = vmatpush.bf16.msra.mxu0 %v3487
    %4398 = vmatpush.bf16.msra.mxu0 %v3479
    %4399 = vmatpush.bf16.msra.mxu0 %v3471
    %4400 = vmatmul.bf16.gmra.mxu0 %v208
    %v4401 = vpop.f32.mrf.mxu0
    %v4402 = vadd.f32 %v4384, %v4401
    %v4403 = vpop.f32.mrf.mxu0
    %v4404 = vadd.f32 %v4386, %v4403
    %4405 = vmatmul.bf16.gmra.mxu0 %v219
    %v4406 = vpop.f32.mrf.mxu0
    %v4407 = vadd.f32 %v4389, %v4406
    %v4408 = vpop.f32.mrf.mxu0
    %4409 = vdwg.mxu0
    %4410 = vmatpush.bf16.msra.mxu0 0
    %4411 = vmatpush.bf16.msra.mxu0 0
    %4412 = vmatpush.bf16.msra.mxu0 0
    %4413 = vmatpush.bf16.msra.mxu0 0
    %4414 = vmatpush.bf16.msra.mxu0 0
    %4415 = vmatpush.bf16.msra.mxu0 %v3551
    %4416 = vmatpush.bf16.msra.mxu0 %v3543
    %4417 = vmatpush.bf16.msra.mxu0 %v3535
    %4418 = vmatmul.bf16.gmra.mxu0 %v4225
    %v4419 = vpop.f32.mrf.mxu0
    %v4420 = vadd.f32 %v4402, %v4419
    %v4421 = vpop.f32.mrf.mxu0
    %v4422 = vadd.f32 %v4404, %v4421
    %4423 = vmatmul.bf16.gmra.mxu0 %v4228
    %v4424 = vpop.f32.mrf.mxu0
    %v4425 = vadd.f32 %v4407, %v4424
    %v4426 = vpop.f32.mrf.mxu0
    %4427 = vdwg.mxu0
    %4428 = vmatpush.bf16.msra.mxu0 %v2952
    %4429 = vmatpush.bf16.msra.mxu0 %v2944
    %4430 = vmatpush.bf16.msra.mxu0 %v2936
    %4431 = vmatpush.bf16.msra.mxu0 %v2928
    %4432 = vmatpush.bf16.msra.mxu0 %v2920
    %4433 = vmatpush.bf16.msra.mxu0 %v2912
    %4434 = vmatpush.bf16.msra.mxu0 %v2904
    %4435 = vmatpush.bf16.msra.mxu0 %v2896
    %4436 = vmatmul.bf16.gmra.mxu0 %v199
    %v4437 = vpop.f32.mrf.mxu0
    %v4438 = vadd.f32 %v888, %v4437
    %v4439 = vpop.f32.mrf.mxu0
    %v4440 = vadd.f32 %v888, %v4439
    %4441 = vmatmul.bf16.gmra.mxu0 %v210
    %v4442 = vpop.f32.mrf.mxu0
    %v4443 = vadd.f32 %v888, %v4442
    %v4444 = vpop.f32.mrf.mxu0
    %4445 = vdwg.mxu0
    %4446 = vmatpush.bf16.msra.mxu0 %v3016
    %4447 = vmatpush.bf16.msra.mxu0 %v3008
    %4448 = vmatpush.bf16.msra.mxu0 %v3000
    %4449 = vmatpush.bf16.msra.mxu0 %v2992
    %4450 = vmatpush.bf16.msra.mxu0 %v2984
    %4451 = vmatpush.bf16.msra.mxu0 %v2976
    %4452 = vmatpush.bf16.msra.mxu0 %v2968
    %4453 = vmatpush.bf16.msra.mxu0 %v2960
    %4454 = vmatmul.bf16.gmra.mxu0 %v200
    %v4455 = vpop.f32.mrf.mxu0
    %v4456 = vadd.f32 %v4438, %v4455
    %v4457 = vpop.f32.mrf.mxu0
    %v4458 = vadd.f32 %v4440, %v4457
    %4459 = vmatmul.bf16.gmra.mxu0 %v211
    %v4460 = vpop.f32.mrf.mxu0
    %v4461 = vadd.f32 %v4443, %v4460
    %v4462 = vpop.f32.mrf.mxu0
    %4463 = vdwg.mxu0
    %4464 = vmatpush.bf16.msra.mxu0 %v3080
    %4465 = vmatpush.bf16.msra.mxu0 %v3072
    %4466 = vmatpush.bf16.msra.mxu0 %v3064
    %4467 = vmatpush.bf16.msra.mxu0 %v3056
    %4468 = vmatpush.bf16.msra.mxu0 %v3048
    %4469 = vmatpush.bf16.msra.mxu0 %v3040
    %4470 = vmatpush.bf16.msra.mxu0 %v3032
    %4471 = vmatpush.bf16.msra.mxu0 %v3024
    %4472 = vmatmul.bf16.gmra.mxu0 %v201
    %v4473 = vpop.f32.mrf.mxu0
    %v4474 = vadd.f32 %v4456, %v4473
    %v4475 = vpop.f32.mrf.mxu0
    %v4476 = vadd.f32 %v4458, %v4475
    %4477 = vmatmul.bf16.gmra.mxu0 %v212
    %v4478 = vpop.f32.mrf.mxu0
    %v4479 = vadd.f32 %v4461, %v4478
    %v4480 = vpop.f32.mrf.mxu0
    %4481 = vdwg.mxu0
    %4482 = vmatpush.bf16.msra.mxu0 %v3144
    %4483 = vmatpush.bf16.msra.mxu0 %v3136
    %4484 = vmatpush.bf16.msra.mxu0 %v3128
    %4485 = vmatpush.bf16.msra.mxu0 %v3120
    %4486 = vmatpush.bf16.msra.mxu0 %v3112
    %4487 = vmatpush.bf16.msra.mxu0 %v3104
    %4488 = vmatpush.bf16.msra.mxu0 %v3096
    %4489 = vmatpush.bf16.msra.mxu0 %v3088
    %4490 = vmatmul.bf16.gmra.mxu0 %v202
    %v4491 = vpop.f32.mrf.mxu0
    %v4492 = vadd.f32 %v4474, %v4491
    %v4493 = vpop.f32.mrf.mxu0
    %v4494 = vadd.f32 %v4476, %v4493
    %4495 = vmatmul.bf16.gmra.mxu0 %v213
    %v4496 = vpop.f32.mrf.mxu0
    %v4497 = vadd.f32 %v4479, %v4496
    %v4498 = vpop.f32.mrf.mxu0
    %4499 = vdwg.mxu0
    %4500 = vmatpush.bf16.msra.mxu0 %v3208
    %4501 = vmatpush.bf16.msra.mxu0 %v3200
    %4502 = vmatpush.bf16.msra.mxu0 %v3192
    %4503 = vmatpush.bf16.msra.mxu0 %v3184
    %4504 = vmatpush.bf16.msra.mxu0 %v3176
    %4505 = vmatpush.bf16.msra.mxu0 %v3168
    %4506 = vmatpush.bf16.msra.mxu0 %v3160
    %4507 = vmatpush.bf16.msra.mxu0 %v3152
    %4508 = vmatmul.bf16.gmra.mxu0 %v203
    %v4509 = vpop.f32.mrf.mxu0
    %v4510 = vadd.f32 %v4492, %v4509
    %v4511 = vpop.f32.mrf.mxu0
    %v4512 = vadd.f32 %v4494, %v4511
    %4513 = vmatmul.bf16.gmra.mxu0 %v214
    %v4514 = vpop.f32.mrf.mxu0
    %v4515 = vadd.f32 %v4497, %v4514
    %v4516 = vpop.f32.mrf.mxu0
    %4517 = vdwg.mxu0
    %4518 = vmatpush.bf16.msra.mxu0 %v3272
    %4519 = vmatpush.bf16.msra.mxu0 %v3264
    %4520 = vmatpush.bf16.msra.mxu0 %v3256
    %4521 = vmatpush.bf16.msra.mxu0 %v3248
    %4522 = vmatpush.bf16.msra.mxu0 %v3240
    %4523 = vmatpush.bf16.msra.mxu0 %v3232
    %4524 = vmatpush.bf16.msra.mxu0 %v3224
    %4525 = vmatpush.bf16.msra.mxu0 %v3216
    %4526 = vmatmul.bf16.gmra.mxu0 %v204
    %v4527 = vpop.f32.mrf.mxu0
    %v4528 = vadd.f32 %v4510, %v4527
    %v4529 = vpop.f32.mrf.mxu0
    %v4530 = vadd.f32 %v4512, %v4529
    %4531 = vmatmul.bf16.gmra.mxu0 %v215
    %v4532 = vpop.f32.mrf.mxu0
    %v4533 = vadd.f32 %v4515, %v4532
    %v4534 = vpop.f32.mrf.mxu0
    %4535 = vdwg.mxu0
    %4536 = vmatpush.bf16.msra.mxu0 %v3336
    %4537 = vmatpush.bf16.msra.mxu0 %v3328
    %4538 = vmatpush.bf16.msra.mxu0 %v3320
    %4539 = vmatpush.bf16.msra.mxu0 %v3312
    %4540 = vmatpush.bf16.msra.mxu0 %v3304
    %4541 = vmatpush.bf16.msra.mxu0 %v3296
    %4542 = vmatpush.bf16.msra.mxu0 %v3288
    %4543 = vmatpush.bf16.msra.mxu0 %v3280
    %4544 = vmatmul.bf16.gmra.mxu0 %v205
    %v4545 = vpop.f32.mrf.mxu0
    %v4546 = vadd.f32 %v4528, %v4545
    %v4547 = vpop.f32.mrf.mxu0
    %v4548 = vadd.f32 %v4530, %v4547
    %4549 = vmatmul.bf16.gmra.mxu0 %v216
    %v4550 = vpop.f32.mrf.mxu0
    %v4551 = vadd.f32 %v4533, %v4550
    %v4552 = vpop.f32.mrf.mxu0
    %4553 = vdwg.mxu0
    %4554 = vmatpush.bf16.msra.mxu0 %v3400
    %4555 = vmatpush.bf16.msra.mxu0 %v3392
    %4556 = vmatpush.bf16.msra.mxu0 %v3384
    %4557 = vmatpush.bf16.msra.mxu0 %v3376
    %4558 = vmatpush.bf16.msra.mxu0 %v3368
    %4559 = vmatpush.bf16.msra.mxu0 %v3360
    %4560 = vmatpush.bf16.msra.mxu0 %v3352
    %4561 = vmatpush.bf16.msra.mxu0 %v3344
    %4562 = vmatmul.bf16.gmra.mxu0 %v206
    %v4563 = vpop.f32.mrf.mxu0
    %v4564 = vadd.f32 %v4546, %v4563
    %v4565 = vpop.f32.mrf.mxu0
    %v4566 = vadd.f32 %v4548, %v4565
    %4567 = vmatmul.bf16.gmra.mxu0 %v217
    %v4568 = vpop.f32.mrf.mxu0
    %v4569 = vadd.f32 %v4551, %v4568
    %v4570 = vpop.f32.mrf.mxu0
    %4571 = vdwg.mxu0
    %4572 = vmatpush.bf16.msra.mxu0 %v3464
    %4573 = vmatpush.bf16.msra.mxu0 %v3456
    %4574 = vmatpush.bf16.msra.mxu0 %v3448
    %4575 = vmatpush.bf16.msra.mxu0 %v3440
    %4576 = vmatpush.bf16.msra.mxu0 %v3432
    %4577 = vmatpush.bf16.msra.mxu0 %v3424
    %4578 = vmatpush.bf16.msra.mxu0 %v3416
    %4579 = vmatpush.bf16.msra.mxu0 %v3408
    %4580 = vmatmul.bf16.gmra.mxu0 %v207
    %v4581 = vpop.f32.mrf.mxu0
    %v4582 = vadd.f32 %v4564, %v4581
    %v4583 = vpop.f32.mrf.mxu0
    %v4584 = vadd.f32 %v4566, %v4583
    %4585 = vmatmul.bf16.gmra.mxu0 %v218
    %v4586 = vpop.f32.mrf.mxu0
    %v4587 = vadd.f32 %v4569, %v4586
    %v4588 = vpop.f32.mrf.mxu0
    %4589 = vdwg.mxu0
    %4590 = vmatpush.bf16.msra.mxu0 %v3528
    %4591 = vmatpush.bf16.msra.mxu0 %v3520
    %4592 = vmatpush.bf16.msra.mxu0 %v3512
    %4593 = vmatpush.bf16.msra.mxu0 %v3504
    %4594 = vmatpush.bf16.msra.mxu0 %v3496
    %4595 = vmatpush.bf16.msra.mxu0 %v3488
    %4596 = vmatpush.bf16.msra.mxu0 %v3480
    %4597 = vmatpush.bf16.msra.mxu0 %v3472
    %4598 = vmatmul.bf16.gmra.mxu0 %v208
    %v4599 = vpop.f32.mrf.mxu0
    %v4600 = vadd.f32 %v4582, %v4599
    %v4601 = vpop.f32.mrf.mxu0
    %v4602 = vadd.f32 %v4584, %v4601
    %4603 = vmatmul.bf16.gmra.mxu0 %v219
    %v4604 = vpop.f32.mrf.mxu0
    %v4605 = vadd.f32 %v4587, %v4604
    %v4606 = vpop.f32.mrf.mxu0
    %4607 = vdwg.mxu0
    %4608 = vmatpush.bf16.msra.mxu0 0
    %4609 = vmatpush.bf16.msra.mxu0 0
    %4610 = vmatpush.bf16.msra.mxu0 0
    %4611 = vmatpush.bf16.msra.mxu0 0
    %4612 = vmatpush.bf16.msra.mxu0 0
    %4613 = vmatpush.bf16.msra.mxu0 %v3552
    %4614 = vmatpush.bf16.msra.mxu0 %v3544
    %4615 = vmatpush.bf16.msra.mxu0 %v3536
    %4616 = vmatmul.bf16.gmra.mxu0 %v4225
    %v4617 = vpop.f32.mrf.mxu0
    %v4618 = vadd.f32 %v4600, %v4617
    %v4619 = vpop.f32.mrf.mxu0
    %v4620 = vadd.f32 %v4602, %v4619
    %4621 = vmatmul.bf16.gmra.mxu0 %v4228
    %v4622 = vpop.f32.mrf.mxu0
    %v4623 = vadd.f32 %v4605, %v4622
    %v4624 = vpop.f32.mrf.mxu0
    %4625 = vdwg.mxu0
    %4626 = vmatpush.bf16.msra.mxu0 %v2953
    %4627 = vmatpush.bf16.msra.mxu0 %v2945
    %4628 = vmatpush.bf16.msra.mxu0 %v2937
    %4629 = vmatpush.bf16.msra.mxu0 %v2929
    %4630 = vmatpush.bf16.msra.mxu0 %v2921
    %4631 = vmatpush.bf16.msra.mxu0 %v2913
    %4632 = vmatpush.bf16.msra.mxu0 %v2905
    %4633 = vmatpush.bf16.msra.mxu0 %v2897
    %4634 = vmatmul.bf16.gmra.mxu0 %v199
    %v4635 = vpop.f32.mrf.mxu0
    %v4636 = vadd.f32 %v889, %v4635
    %v4637 = vpop.f32.mrf.mxu0
    %v4638 = vadd.f32 %v889, %v4637
    %4639 = vmatmul.bf16.gmra.mxu0 %v210
    %v4640 = vpop.f32.mrf.mxu0
    %v4641 = vadd.f32 %v889, %v4640
    %v4642 = vpop.f32.mrf.mxu0
    %4643 = vdwg.mxu0
    %4644 = vmatpush.bf16.msra.mxu0 %v3017
    %4645 = vmatpush.bf16.msra.mxu0 %v3009
    %4646 = vmatpush.bf16.msra.mxu0 %v3001
    %4647 = vmatpush.bf16.msra.mxu0 %v2993
    %4648 = vmatpush.bf16.msra.mxu0 %v2985
    %4649 = vmatpush.bf16.msra.mxu0 %v2977
    %4650 = vmatpush.bf16.msra.mxu0 %v2969
    %4651 = vmatpush.bf16.msra.mxu0 %v2961
    %4652 = vmatmul.bf16.gmra.mxu0 %v200
    %v4653 = vpop.f32.mrf.mxu0
    %v4654 = vadd.f32 %v4636, %v4653
    %v4655 = vpop.f32.mrf.mxu0
    %v4656 = vadd.f32 %v4638, %v4655
    %4657 = vmatmul.bf16.gmra.mxu0 %v211
    %v4658 = vpop.f32.mrf.mxu0
    %v4659 = vadd.f32 %v4641, %v4658
    %v4660 = vpop.f32.mrf.mxu0
    %4661 = vdwg.mxu0
    %4662 = vmatpush.bf16.msra.mxu0 %v3081
    %4663 = vmatpush.bf16.msra.mxu0 %v3073
    %4664 = vmatpush.bf16.msra.mxu0 %v3065
    %4665 = vmatpush.bf16.msra.mxu0 %v3057
    %4666 = vmatpush.bf16.msra.mxu0 %v3049
    %4667 = vmatpush.bf16.msra.mxu0 %v3041
    %4668 = vmatpush.bf16.msra.mxu0 %v3033
    %4669 = vmatpush.bf16.msra.mxu0 %v3025
    %4670 = vmatmul.bf16.gmra.mxu0 %v201
    %v4671 = vpop.f32.mrf.mxu0
    %v4672 = vadd.f32 %v4654, %v4671
    %v4673 = vpop.f32.mrf.mxu0
    %v4674 = vadd.f32 %v4656, %v4673
    %4675 = vmatmul.bf16.gmra.mxu0 %v212
    %v4676 = vpop.f32.mrf.mxu0
    %v4677 = vadd.f32 %v4659, %v4676
    %v4678 = vpop.f32.mrf.mxu0
    %4679 = vdwg.mxu0
    %4680 = vmatpush.bf16.msra.mxu0 %v3145
    %4681 = vmatpush.bf16.msra.mxu0 %v3137
    %4682 = vmatpush.bf16.msra.mxu0 %v3129
    %4683 = vmatpush.bf16.msra.mxu0 %v3121
    %4684 = vmatpush.bf16.msra.mxu0 %v3113
    %4685 = vmatpush.bf16.msra.mxu0 %v3105
    %4686 = vmatpush.bf16.msra.mxu0 %v3097
    %4687 = vmatpush.bf16.msra.mxu0 %v3089
    %4688 = vmatmul.bf16.gmra.mxu0 %v202
    %v4689 = vpop.f32.mrf.mxu0
    %v4690 = vadd.f32 %v4672, %v4689
    %v4691 = vpop.f32.mrf.mxu0
    %v4692 = vadd.f32 %v4674, %v4691
    %4693 = vmatmul.bf16.gmra.mxu0 %v213
    %v4694 = vpop.f32.mrf.mxu0
    %v4695 = vadd.f32 %v4677, %v4694
    %v4696 = vpop.f32.mrf.mxu0
    %4697 = vdwg.mxu0
    %4698 = vmatpush.bf16.msra.mxu0 %v3209
    %4699 = vmatpush.bf16.msra.mxu0 %v3201
    %4700 = vmatpush.bf16.msra.mxu0 %v3193
    %4701 = vmatpush.bf16.msra.mxu0 %v3185
    %4702 = vmatpush.bf16.msra.mxu0 %v3177
    %4703 = vmatpush.bf16.msra.mxu0 %v3169
    %4704 = vmatpush.bf16.msra.mxu0 %v3161
    %4705 = vmatpush.bf16.msra.mxu0 %v3153
    %4706 = vmatmul.bf16.gmra.mxu0 %v203
    %v4707 = vpop.f32.mrf.mxu0
    %v4708 = vadd.f32 %v4690, %v4707
    %v4709 = vpop.f32.mrf.mxu0
    %v4710 = vadd.f32 %v4692, %v4709
    %4711 = vmatmul.bf16.gmra.mxu0 %v214
    %v4712 = vpop.f32.mrf.mxu0
    %v4713 = vadd.f32 %v4695, %v4712
    %v4714 = vpop.f32.mrf.mxu0
    %4715 = vdwg.mxu0
    %4716 = vmatpush.bf16.msra.mxu0 %v3273
    %4717 = vmatpush.bf16.msra.mxu0 %v3265
    %4718 = vmatpush.bf16.msra.mxu0 %v3257
    %4719 = vmatpush.bf16.msra.mxu0 %v3249
    %4720 = vmatpush.bf16.msra.mxu0 %v3241
    %4721 = vmatpush.bf16.msra.mxu0 %v3233
    %4722 = vmatpush.bf16.msra.mxu0 %v3225
    %4723 = vmatpush.bf16.msra.mxu0 %v3217
    %4724 = vmatmul.bf16.gmra.mxu0 %v204
    %v4725 = vpop.f32.mrf.mxu0
    %v4726 = vadd.f32 %v4708, %v4725
    %v4727 = vpop.f32.mrf.mxu0
    %v4728 = vadd.f32 %v4710, %v4727
    %4729 = vmatmul.bf16.gmra.mxu0 %v215
    %v4730 = vpop.f32.mrf.mxu0
    %v4731 = vadd.f32 %v4713, %v4730
    %v4732 = vpop.f32.mrf.mxu0
    %4733 = vdwg.mxu0
    %4734 = vmatpush.bf16.msra.mxu0 %v3337
    %4735 = vmatpush.bf16.msra.mxu0 %v3329
    %4736 = vmatpush.bf16.msra.mxu0 %v3321
    %4737 = vmatpush.bf16.msra.mxu0 %v3313
    %4738 = vmatpush.bf16.msra.mxu0 %v3305
    %4739 = vmatpush.bf16.msra.mxu0 %v3297
    %4740 = vmatpush.bf16.msra.mxu0 %v3289
    %4741 = vmatpush.bf16.msra.mxu0 %v3281
    %4742 = vmatmul.bf16.gmra.mxu0 %v205
    %v4743 = vpop.f32.mrf.mxu0
    %v4744 = vadd.f32 %v4726, %v4743
    %v4745 = vpop.f32.mrf.mxu0
    %v4746 = vadd.f32 %v4728, %v4745
    %4747 = vmatmul.bf16.gmra.mxu0 %v216
    %v4748 = vpop.f32.mrf.mxu0
    %v4749 = vadd.f32 %v4731, %v4748
    %v4750 = vpop.f32.mrf.mxu0
    %4751 = vdwg.mxu0
    %4752 = vmatpush.bf16.msra.mxu0 %v3401
    %4753 = vmatpush.bf16.msra.mxu0 %v3393
    %4754 = vmatpush.bf16.msra.mxu0 %v3385
    %4755 = vmatpush.bf16.msra.mxu0 %v3377
    %4756 = vmatpush.bf16.msra.mxu0 %v3369
    %4757 = vmatpush.bf16.msra.mxu0 %v3361
    %4758 = vmatpush.bf16.msra.mxu0 %v3353
    %4759 = vmatpush.bf16.msra.mxu0 %v3345
    %4760 = vmatmul.bf16.gmra.mxu0 %v206
    %v4761 = vpop.f32.mrf.mxu0
    %v4762 = vadd.f32 %v4744, %v4761
    %v4763 = vpop.f32.mrf.mxu0
    %v4764 = vadd.f32 %v4746, %v4763
    %4765 = vmatmul.bf16.gmra.mxu0 %v217
    %v4766 = vpop.f32.mrf.mxu0
    %v4767 = vadd.f32 %v4749, %v4766
    %v4768 = vpop.f32.mrf.mxu0
    %4769 = vdwg.mxu0
    %4770 = vmatpush.bf16.msra.mxu0 %v3465
    %4771 = vmatpush.bf16.msra.mxu0 %v3457
    %4772 = vmatpush.bf16.msra.mxu0 %v3449
    %4773 = vmatpush.bf16.msra.mxu0 %v3441
    %4774 = vmatpush.bf16.msra.mxu0 %v3433
    %4775 = vmatpush.bf16.msra.mxu0 %v3425
    %4776 = vmatpush.bf16.msra.mxu0 %v3417
    %4777 = vmatpush.bf16.msra.mxu0 %v3409
    %4778 = vmatmul.bf16.gmra.mxu0 %v207
    %v4779 = vpop.f32.mrf.mxu0
    %v4780 = vadd.f32 %v4762, %v4779
    %v4781 = vpop.f32.mrf.mxu0
    %v4782 = vadd.f32 %v4764, %v4781
    %4783 = vmatmul.bf16.gmra.mxu0 %v218
    %v4784 = vpop.f32.mrf.mxu0
    %v4785 = vadd.f32 %v4767, %v4784
    %v4786 = vpop.f32.mrf.mxu0
    %4787 = vdwg.mxu0
    %4788 = vmatpush.bf16.msra.mxu0 %v3529
    %4789 = vmatpush.bf16.msra.mxu0 %v3521
    %4790 = vmatpush.bf16.msra.mxu0 %v3513
    %4791 = vmatpush.bf16.msra.mxu0 %v3505
    %4792 = vmatpush.bf16.msra.mxu0 %v3497
    %4793 = vmatpush.bf16.msra.mxu0 %v3489
    %4794 = vmatpush.bf16.msra.mxu0 %v3481
    %4795 = vmatpush.bf16.msra.mxu0 %v3473
    %4796 = vmatmul.bf16.gmra.mxu0 %v208
    %v4797 = vpop.f32.mrf.mxu0
    %v4798 = vadd.f32 %v4780, %v4797
    %v4799 = vpop.f32.mrf.mxu0
    %v4800 = vadd.f32 %v4782, %v4799
    %4801 = vmatmul.bf16.gmra.mxu0 %v219
    %v4802 = vpop.f32.mrf.mxu0
    %v4803 = vadd.f32 %v4785, %v4802
    %v4804 = vpop.f32.mrf.mxu0
    %4805 = vdwg.mxu0
    %4806 = vmatpush.bf16.msra.mxu0 0
    %4807 = vmatpush.bf16.msra.mxu0 0
    %4808 = vmatpush.bf16.msra.mxu0 0
    %4809 = vmatpush.bf16.msra.mxu0 0
    %4810 = vmatpush.bf16.msra.mxu0 0
    %4811 = vmatpush.bf16.msra.mxu0 %v3553
    %4812 = vmatpush.bf16.msra.mxu0 %v3545
    %4813 = vmatpush.bf16.msra.mxu0 %v3537
    %4814 = vmatmul.bf16.gmra.mxu0 %v4225
    %v4815 = vpop.f32.mrf.mxu0
    %v4816 = vadd.f32 %v4798, %v4815
    %v4817 = vpop.f32.mrf.mxu0
    %v4818 = vadd.f32 %v4800, %v4817
    %4819 = vmatmul.bf16.gmra.mxu0 %v4228
    %v4820 = vpop.f32.mrf.mxu0
    %v4821 = vadd.f32 %v4803, %v4820
    %v4822 = vpop.f32.mrf.mxu0
    %4823 = vdwg.mxu0
    %4824 = vmatpush.bf16.msra.mxu0 %v2954
    %4825 = vmatpush.bf16.msra.mxu0 %v2946
    %4826 = vmatpush.bf16.msra.mxu0 %v2938
    %4827 = vmatpush.bf16.msra.mxu0 %v2930
    %4828 = vmatpush.bf16.msra.mxu0 %v2922
    %4829 = vmatpush.bf16.msra.mxu0 %v2914
    %4830 = vmatpush.bf16.msra.mxu0 %v2906
    %4831 = vmatpush.bf16.msra.mxu0 %v2898
    %4832 = vmatmul.bf16.gmra.mxu0 %v199
    %v4833 = vpop.f32.mrf.mxu0
    %v4834 = vadd.f32 %v890, %v4833
    %v4835 = vpop.f32.mrf.mxu0
    %v4836 = vadd.f32 %v890, %v4835
    %4837 = vmatmul.bf16.gmra.mxu0 %v210
    %v4838 = vpop.f32.mrf.mxu0
    %v4839 = vadd.f32 %v890, %v4838
    %v4840 = vpop.f32.mrf.mxu0
    %4841 = vdwg.mxu0
    %4842 = vmatpush.bf16.msra.mxu0 %v3018
    %4843 = vmatpush.bf16.msra.mxu0 %v3010
    %4844 = vmatpush.bf16.msra.mxu0 %v3002
    %4845 = vmatpush.bf16.msra.mxu0 %v2994
    %4846 = vmatpush.bf16.msra.mxu0 %v2986
    %4847 = vmatpush.bf16.msra.mxu0 %v2978
    %4848 = vmatpush.bf16.msra.mxu0 %v2970
    %4849 = vmatpush.bf16.msra.mxu0 %v2962
    %4850 = vmatmul.bf16.gmra.mxu0 %v200
    %v4851 = vpop.f32.mrf.mxu0
    %v4852 = vadd.f32 %v4834, %v4851
    %v4853 = vpop.f32.mrf.mxu0
    %v4854 = vadd.f32 %v4836, %v4853
    %4855 = vmatmul.bf16.gmra.mxu0 %v211
    %v4856 = vpop.f32.mrf.mxu0
    %v4857 = vadd.f32 %v4839, %v4856
    %v4858 = vpop.f32.mrf.mxu0
    %4859 = vdwg.mxu0
    %4860 = vmatpush.bf16.msra.mxu0 %v3082
    %4861 = vmatpush.bf16.msra.mxu0 %v3074
    %4862 = vmatpush.bf16.msra.mxu0 %v3066
    %4863 = vmatpush.bf16.msra.mxu0 %v3058
    %4864 = vmatpush.bf16.msra.mxu0 %v3050
    %4865 = vmatpush.bf16.msra.mxu0 %v3042
    %4866 = vmatpush.bf16.msra.mxu0 %v3034
    %4867 = vmatpush.bf16.msra.mxu0 %v3026
    %4868 = vmatmul.bf16.gmra.mxu0 %v201
    %v4869 = vpop.f32.mrf.mxu0
    %v4870 = vadd.f32 %v4852, %v4869
    %v4871 = vpop.f32.mrf.mxu0
    %v4872 = vadd.f32 %v4854, %v4871
    %4873 = vmatmul.bf16.gmra.mxu0 %v212
    %v4874 = vpop.f32.mrf.mxu0
    %v4875 = vadd.f32 %v4857, %v4874
    %v4876 = vpop.f32.mrf.mxu0
    %4877 = vdwg.mxu0
    %4878 = vmatpush.bf16.msra.mxu0 %v3146
    %4879 = vmatpush.bf16.msra.mxu0 %v3138
    %4880 = vmatpush.bf16.msra.mxu0 %v3130
    %4881 = vmatpush.bf16.msra.mxu0 %v3122
    %4882 = vmatpush.bf16.msra.mxu0 %v3114
    %4883 = vmatpush.bf16.msra.mxu0 %v3106
    %4884 = vmatpush.bf16.msra.mxu0 %v3098
    %4885 = vmatpush.bf16.msra.mxu0 %v3090
    %4886 = vmatmul.bf16.gmra.mxu0 %v202
    %v4887 = vpop.f32.mrf.mxu0
    %v4888 = vadd.f32 %v4870, %v4887
    %v4889 = vpop.f32.mrf.mxu0
    %v4890 = vadd.f32 %v4872, %v4889
    %4891 = vmatmul.bf16.gmra.mxu0 %v213
    %v4892 = vpop.f32.mrf.mxu0
    %v4893 = vadd.f32 %v4875, %v4892
    %v4894 = vpop.f32.mrf.mxu0
    %4895 = vdwg.mxu0
    %4896 = vmatpush.bf16.msra.mxu0 %v3210
    %4897 = vmatpush.bf16.msra.mxu0 %v3202
    %4898 = vmatpush.bf16.msra.mxu0 %v3194
    %4899 = vmatpush.bf16.msra.mxu0 %v3186
    %4900 = vmatpush.bf16.msra.mxu0 %v3178
    %4901 = vmatpush.bf16.msra.mxu0 %v3170
    %4902 = vmatpush.bf16.msra.mxu0 %v3162
    %4903 = vmatpush.bf16.msra.mxu0 %v3154
    %4904 = vmatmul.bf16.gmra.mxu0 %v203
    %v4905 = vpop.f32.mrf.mxu0
    %v4906 = vadd.f32 %v4888, %v4905
    %v4907 = vpop.f32.mrf.mxu0
    %v4908 = vadd.f32 %v4890, %v4907
    %4909 = vmatmul.bf16.gmra.mxu0 %v214
    %v4910 = vpop.f32.mrf.mxu0
    %v4911 = vadd.f32 %v4893, %v4910
    %v4912 = vpop.f32.mrf.mxu0
    %4913 = vdwg.mxu0
    %4914 = vmatpush.bf16.msra.mxu0 %v3274
    %4915 = vmatpush.bf16.msra.mxu0 %v3266
    %4916 = vmatpush.bf16.msra.mxu0 %v3258
    %4917 = vmatpush.bf16.msra.mxu0 %v3250
    %4918 = vmatpush.bf16.msra.mxu0 %v3242
    %4919 = vmatpush.bf16.msra.mxu0 %v3234
    %4920 = vmatpush.bf16.msra.mxu0 %v3226
    %4921 = vmatpush.bf16.msra.mxu0 %v3218
    %4922 = vmatmul.bf16.gmra.mxu0 %v204
    %v4923 = vpop.f32.mrf.mxu0
    %v4924 = vadd.f32 %v4906, %v4923
    %v4925 = vpop.f32.mrf.mxu0
    %v4926 = vadd.f32 %v4908, %v4925
    %4927 = vmatmul.bf16.gmra.mxu0 %v215
    %v4928 = vpop.f32.mrf.mxu0
    %v4929 = vadd.f32 %v4911, %v4928
    %v4930 = vpop.f32.mrf.mxu0
    %4931 = vdwg.mxu0
    %4932 = vmatpush.bf16.msra.mxu0 %v3338
    %4933 = vmatpush.bf16.msra.mxu0 %v3330
    %4934 = vmatpush.bf16.msra.mxu0 %v3322
    %4935 = vmatpush.bf16.msra.mxu0 %v3314
    %4936 = vmatpush.bf16.msra.mxu0 %v3306
    %4937 = vmatpush.bf16.msra.mxu0 %v3298
    %4938 = vmatpush.bf16.msra.mxu0 %v3290
    %4939 = vmatpush.bf16.msra.mxu0 %v3282
    %4940 = vmatmul.bf16.gmra.mxu0 %v205
    %v4941 = vpop.f32.mrf.mxu0
    %v4942 = vadd.f32 %v4924, %v4941
    %v4943 = vpop.f32.mrf.mxu0
    %v4944 = vadd.f32 %v4926, %v4943
    %4945 = vmatmul.bf16.gmra.mxu0 %v216
    %v4946 = vpop.f32.mrf.mxu0
    %v4947 = vadd.f32 %v4929, %v4946
    %v4948 = vpop.f32.mrf.mxu0
    %4949 = vdwg.mxu0
    %4950 = vmatpush.bf16.msra.mxu0 %v3402
    %4951 = vmatpush.bf16.msra.mxu0 %v3394
    %4952 = vmatpush.bf16.msra.mxu0 %v3386
    %4953 = vmatpush.bf16.msra.mxu0 %v3378
    %4954 = vmatpush.bf16.msra.mxu0 %v3370
    %4955 = vmatpush.bf16.msra.mxu0 %v3362
    %4956 = vmatpush.bf16.msra.mxu0 %v3354
    %4957 = vmatpush.bf16.msra.mxu0 %v3346
    %4958 = vmatmul.bf16.gmra.mxu0 %v206
    %v4959 = vpop.f32.mrf.mxu0
    %v4960 = vadd.f32 %v4942, %v4959
    %v4961 = vpop.f32.mrf.mxu0
    %v4962 = vadd.f32 %v4944, %v4961
    %4963 = vmatmul.bf16.gmra.mxu0 %v217
    %v4964 = vpop.f32.mrf.mxu0
    %v4965 = vadd.f32 %v4947, %v4964
    %v4966 = vpop.f32.mrf.mxu0
    %4967 = vdwg.mxu0
    %4968 = vmatpush.bf16.msra.mxu0 %v3466
    %4969 = vmatpush.bf16.msra.mxu0 %v3458
    %4970 = vmatpush.bf16.msra.mxu0 %v3450
    %4971 = vmatpush.bf16.msra.mxu0 %v3442
    %4972 = vmatpush.bf16.msra.mxu0 %v3434
    %4973 = vmatpush.bf16.msra.mxu0 %v3426
    %4974 = vmatpush.bf16.msra.mxu0 %v3418
    %4975 = vmatpush.bf16.msra.mxu0 %v3410
    %4976 = vmatmul.bf16.gmra.mxu0 %v207
    %v4977 = vpop.f32.mrf.mxu0
    %v4978 = vadd.f32 %v4960, %v4977
    %v4979 = vpop.f32.mrf.mxu0
    %v4980 = vadd.f32 %v4962, %v4979
    %4981 = vmatmul.bf16.gmra.mxu0 %v218
    %v4982 = vpop.f32.mrf.mxu0
    %v4983 = vadd.f32 %v4965, %v4982
    %v4984 = vpop.f32.mrf.mxu0
    %4985 = vdwg.mxu0
    %4986 = vmatpush.bf16.msra.mxu0 %v3530
    %4987 = vmatpush.bf16.msra.mxu0 %v3522
    %4988 = vmatpush.bf16.msra.mxu0 %v3514
    %4989 = vmatpush.bf16.msra.mxu0 %v3506
    %4990 = vmatpush.bf16.msra.mxu0 %v3498
    %4991 = vmatpush.bf16.msra.mxu0 %v3490
    %4992 = vmatpush.bf16.msra.mxu0 %v3482
    %4993 = vmatpush.bf16.msra.mxu0 %v3474
    %4994 = vmatmul.bf16.gmra.mxu0 %v208
    %v4995 = vpop.f32.mrf.mxu0
    %v4996 = vadd.f32 %v4978, %v4995
    %v4997 = vpop.f32.mrf.mxu0
    %v4998 = vadd.f32 %v4980, %v4997
    %4999 = vmatmul.bf16.gmra.mxu0 %v219
    %v5000 = vpop.f32.mrf.mxu0
    %v5001 = vadd.f32 %v4983, %v5000
    %v5002 = vpop.f32.mrf.mxu0
    %5003 = vdwg.mxu0
    %5004 = vmatpush.bf16.msra.mxu0 0
    %5005 = vmatpush.bf16.msra.mxu0 0
    %5006 = vmatpush.bf16.msra.mxu0 0
    %5007 = vmatpush.bf16.msra.mxu0 0
    %5008 = vmatpush.bf16.msra.mxu0 0
    %5009 = vmatpush.bf16.msra.mxu0 %v3554
    %5010 = vmatpush.bf16.msra.mxu0 %v3546
    %5011 = vmatpush.bf16.msra.mxu0 %v3538
    %5012 = vmatmul.bf16.gmra.mxu0 %v4225
    %v5013 = vpop.f32.mrf.mxu0
    %v5014 = vadd.f32 %v4996, %v5013
    %v5015 = vpop.f32.mrf.mxu0
    %v5016 = vadd.f32 %v4998, %v5015
    %5017 = vmatmul.bf16.gmra.mxu0 %v4228
    %v5018 = vpop.f32.mrf.mxu0
    %v5019 = vadd.f32 %v5001, %v5018
    %v5020 = vpop.f32.mrf.mxu0
    %5021 = vdwg.mxu0
    %5022 = vmatpush.bf16.msra.mxu0 %v2955
    %5023 = vmatpush.bf16.msra.mxu0 %v2947
    %5024 = vmatpush.bf16.msra.mxu0 %v2939
    %5025 = vmatpush.bf16.msra.mxu0 %v2931
    %5026 = vmatpush.bf16.msra.mxu0 %v2923
    %5027 = vmatpush.bf16.msra.mxu0 %v2915
    %5028 = vmatpush.bf16.msra.mxu0 %v2907
    %5029 = vmatpush.bf16.msra.mxu0 %v2899
    %5030 = vmatmul.bf16.gmra.mxu0 %v199
    %v5031 = vpop.f32.mrf.mxu0
    %v5032 = vadd.f32 %v891, %v5031
    %v5033 = vpop.f32.mrf.mxu0
    %v5034 = vadd.f32 %v891, %v5033
    %5035 = vmatmul.bf16.gmra.mxu0 %v210
    %v5036 = vpop.f32.mrf.mxu0
    %v5037 = vadd.f32 %v891, %v5036
    %v5038 = vpop.f32.mrf.mxu0
    %5039 = vdwg.mxu0
    %5040 = vmatpush.bf16.msra.mxu0 %v3019
    %5041 = vmatpush.bf16.msra.mxu0 %v3011
    %5042 = vmatpush.bf16.msra.mxu0 %v3003
    %5043 = vmatpush.bf16.msra.mxu0 %v2995
    %5044 = vmatpush.bf16.msra.mxu0 %v2987
    %5045 = vmatpush.bf16.msra.mxu0 %v2979
    %5046 = vmatpush.bf16.msra.mxu0 %v2971
    %5047 = vmatpush.bf16.msra.mxu0 %v2963
    %5048 = vmatmul.bf16.gmra.mxu0 %v200
    %v5049 = vpop.f32.mrf.mxu0
    %v5050 = vadd.f32 %v5032, %v5049
    %v5051 = vpop.f32.mrf.mxu0
    %v5052 = vadd.f32 %v5034, %v5051
    %5053 = vmatmul.bf16.gmra.mxu0 %v211
    %v5054 = vpop.f32.mrf.mxu0
    %v5055 = vadd.f32 %v5037, %v5054
    %v5056 = vpop.f32.mrf.mxu0
    %5057 = vdwg.mxu0
    %5058 = vmatpush.bf16.msra.mxu0 %v3083
    %5059 = vmatpush.bf16.msra.mxu0 %v3075
    %5060 = vmatpush.bf16.msra.mxu0 %v3067
    %5061 = vmatpush.bf16.msra.mxu0 %v3059
    %5062 = vmatpush.bf16.msra.mxu0 %v3051
    %5063 = vmatpush.bf16.msra.mxu0 %v3043
    %5064 = vmatpush.bf16.msra.mxu0 %v3035
    %5065 = vmatpush.bf16.msra.mxu0 %v3027
    %5066 = vmatmul.bf16.gmra.mxu0 %v201
    %v5067 = vpop.f32.mrf.mxu0
    %v5068 = vadd.f32 %v5050, %v5067
    %v5069 = vpop.f32.mrf.mxu0
    %v5070 = vadd.f32 %v5052, %v5069
    %5071 = vmatmul.bf16.gmra.mxu0 %v212
    %v5072 = vpop.f32.mrf.mxu0
    %v5073 = vadd.f32 %v5055, %v5072
    %v5074 = vpop.f32.mrf.mxu0
    %5075 = vdwg.mxu0
    %5076 = vmatpush.bf16.msra.mxu0 %v3147
    %5077 = vmatpush.bf16.msra.mxu0 %v3139
    %5078 = vmatpush.bf16.msra.mxu0 %v3131
    %5079 = vmatpush.bf16.msra.mxu0 %v3123
    %5080 = vmatpush.bf16.msra.mxu0 %v3115
    %5081 = vmatpush.bf16.msra.mxu0 %v3107
    %5082 = vmatpush.bf16.msra.mxu0 %v3099
    %5083 = vmatpush.bf16.msra.mxu0 %v3091
    %5084 = vmatmul.bf16.gmra.mxu0 %v202
    %v5085 = vpop.f32.mrf.mxu0
    %v5086 = vadd.f32 %v5068, %v5085
    %v5087 = vpop.f32.mrf.mxu0
    %v5088 = vadd.f32 %v5070, %v5087
    %5089 = vmatmul.bf16.gmra.mxu0 %v213
    %v5090 = vpop.f32.mrf.mxu0
    %v5091 = vadd.f32 %v5073, %v5090
    %v5092 = vpop.f32.mrf.mxu0
    %5093 = vdwg.mxu0
    %5094 = vmatpush.bf16.msra.mxu0 %v3211
    %5095 = vmatpush.bf16.msra.mxu0 %v3203
    %5096 = vmatpush.bf16.msra.mxu0 %v3195
    %5097 = vmatpush.bf16.msra.mxu0 %v3187
    %5098 = vmatpush.bf16.msra.mxu0 %v3179
    %5099 = vmatpush.bf16.msra.mxu0 %v3171
    %5100 = vmatpush.bf16.msra.mxu0 %v3163
    %5101 = vmatpush.bf16.msra.mxu0 %v3155
    %5102 = vmatmul.bf16.gmra.mxu0 %v203
    %v5103 = vpop.f32.mrf.mxu0
    %v5104 = vadd.f32 %v5086, %v5103
    %v5105 = vpop.f32.mrf.mxu0
    %v5106 = vadd.f32 %v5088, %v5105
    %5107 = vmatmul.bf16.gmra.mxu0 %v214
    %v5108 = vpop.f32.mrf.mxu0
    %v5109 = vadd.f32 %v5091, %v5108
    %v5110 = vpop.f32.mrf.mxu0
    %5111 = vdwg.mxu0
    %5112 = vmatpush.bf16.msra.mxu0 %v3275
    %5113 = vmatpush.bf16.msra.mxu0 %v3267
    %5114 = vmatpush.bf16.msra.mxu0 %v3259
    %5115 = vmatpush.bf16.msra.mxu0 %v3251
    %5116 = vmatpush.bf16.msra.mxu0 %v3243
    %5117 = vmatpush.bf16.msra.mxu0 %v3235
    %5118 = vmatpush.bf16.msra.mxu0 %v3227
    %5119 = vmatpush.bf16.msra.mxu0 %v3219
    %5120 = vmatmul.bf16.gmra.mxu0 %v204
    %v5121 = vpop.f32.mrf.mxu0
    %v5122 = vadd.f32 %v5104, %v5121
    %v5123 = vpop.f32.mrf.mxu0
    %v5124 = vadd.f32 %v5106, %v5123
    %5125 = vmatmul.bf16.gmra.mxu0 %v215
    %v5126 = vpop.f32.mrf.mxu0
    %v5127 = vadd.f32 %v5109, %v5126
    %v5128 = vpop.f32.mrf.mxu0
    %5129 = vdwg.mxu0
    %5130 = vmatpush.bf16.msra.mxu0 %v3339
    %5131 = vmatpush.bf16.msra.mxu0 %v3331
    %5132 = vmatpush.bf16.msra.mxu0 %v3323
    %5133 = vmatpush.bf16.msra.mxu0 %v3315
    %5134 = vmatpush.bf16.msra.mxu0 %v3307
    %5135 = vmatpush.bf16.msra.mxu0 %v3299
    %5136 = vmatpush.bf16.msra.mxu0 %v3291
    %5137 = vmatpush.bf16.msra.mxu0 %v3283
    %5138 = vmatmul.bf16.gmra.mxu0 %v205
    %v5139 = vpop.f32.mrf.mxu0
    %v5140 = vadd.f32 %v5122, %v5139
    %v5141 = vpop.f32.mrf.mxu0
    %v5142 = vadd.f32 %v5124, %v5141
    %5143 = vmatmul.bf16.gmra.mxu0 %v216
    %v5144 = vpop.f32.mrf.mxu0
    %v5145 = vadd.f32 %v5127, %v5144
    %v5146 = vpop.f32.mrf.mxu0
    %5147 = vdwg.mxu0
    %5148 = vmatpush.bf16.msra.mxu0 %v3403
    %5149 = vmatpush.bf16.msra.mxu0 %v3395
    %5150 = vmatpush.bf16.msra.mxu0 %v3387
    %5151 = vmatpush.bf16.msra.mxu0 %v3379
    %5152 = vmatpush.bf16.msra.mxu0 %v3371
    %5153 = vmatpush.bf16.msra.mxu0 %v3363
    %5154 = vmatpush.bf16.msra.mxu0 %v3355
    %5155 = vmatpush.bf16.msra.mxu0 %v3347
    %5156 = vmatmul.bf16.gmra.mxu0 %v206
    %v5157 = vpop.f32.mrf.mxu0
    %v5158 = vadd.f32 %v5140, %v5157
    %v5159 = vpop.f32.mrf.mxu0
    %v5160 = vadd.f32 %v5142, %v5159
    %5161 = vmatmul.bf16.gmra.mxu0 %v217
    %v5162 = vpop.f32.mrf.mxu0
    %v5163 = vadd.f32 %v5145, %v5162
    %v5164 = vpop.f32.mrf.mxu0
    %5165 = vdwg.mxu0
    %5166 = vmatpush.bf16.msra.mxu0 %v3467
    %5167 = vmatpush.bf16.msra.mxu0 %v3459
    %5168 = vmatpush.bf16.msra.mxu0 %v3451
    %5169 = vmatpush.bf16.msra.mxu0 %v3443
    %5170 = vmatpush.bf16.msra.mxu0 %v3435
    %5171 = vmatpush.bf16.msra.mxu0 %v3427
    %5172 = vmatpush.bf16.msra.mxu0 %v3419
    %5173 = vmatpush.bf16.msra.mxu0 %v3411
    %5174 = vmatmul.bf16.gmra.mxu0 %v207
    %v5175 = vpop.f32.mrf.mxu0
    %v5176 = vadd.f32 %v5158, %v5175
    %v5177 = vpop.f32.mrf.mxu0
    %v5178 = vadd.f32 %v5160, %v5177
    %5179 = vmatmul.bf16.gmra.mxu0 %v218
    %v5180 = vpop.f32.mrf.mxu0
    %v5181 = vadd.f32 %v5163, %v5180
    %v5182 = vpop.f32.mrf.mxu0
    %5183 = vdwg.mxu0
    %5184 = vmatpush.bf16.msra.mxu0 %v3531
    %5185 = vmatpush.bf16.msra.mxu0 %v3523
    %5186 = vmatpush.bf16.msra.mxu0 %v3515
    %5187 = vmatpush.bf16.msra.mxu0 %v3507
    %5188 = vmatpush.bf16.msra.mxu0 %v3499
    %5189 = vmatpush.bf16.msra.mxu0 %v3491
    %5190 = vmatpush.bf16.msra.mxu0 %v3483
    %5191 = vmatpush.bf16.msra.mxu0 %v3475
    %5192 = vmatmul.bf16.gmra.mxu0 %v208
    %v5193 = vpop.f32.mrf.mxu0
    %v5194 = vadd.f32 %v5176, %v5193
    %v5195 = vpop.f32.mrf.mxu0
    %v5196 = vadd.f32 %v5178, %v5195
    %5197 = vmatmul.bf16.gmra.mxu0 %v219
    %v5198 = vpop.f32.mrf.mxu0
    %v5199 = vadd.f32 %v5181, %v5198
    %v5200 = vpop.f32.mrf.mxu0
    %5201 = vdwg.mxu0
    %5202 = vmatpush.bf16.msra.mxu0 0
    %5203 = vmatpush.bf16.msra.mxu0 0
    %5204 = vmatpush.bf16.msra.mxu0 0
    %5205 = vmatpush.bf16.msra.mxu0 0
    %5206 = vmatpush.bf16.msra.mxu0 0
    %5207 = vmatpush.bf16.msra.mxu0 %v3555
    %5208 = vmatpush.bf16.msra.mxu0 %v3547
    %5209 = vmatpush.bf16.msra.mxu0 %v3539
    %5210 = vmatmul.bf16.gmra.mxu0 %v4225
    %v5211 = vpop.f32.mrf.mxu0
    %v5212 = vadd.f32 %v5194, %v5211
    %v5213 = vpop.f32.mrf.mxu0
    %v5214 = vadd.f32 %v5196, %v5213
    %5215 = vmatmul.bf16.gmra.mxu0 %v4228
    %v5216 = vpop.f32.mrf.mxu0
    %v5217 = vadd.f32 %v5199, %v5216
    %v5218 = vpop.f32.mrf.mxu0
    %5219 = vdwg.mxu0
    %5220 = vmatpush.bf16.msra.mxu0 %v2956
    %5221 = vmatpush.bf16.msra.mxu0 %v2948
    %5222 = vmatpush.bf16.msra.mxu0 %v2940
    %5223 = vmatpush.bf16.msra.mxu0 %v2932
    %5224 = vmatpush.bf16.msra.mxu0 %v2924
    %5225 = vmatpush.bf16.msra.mxu0 %v2916
    %5226 = vmatpush.bf16.msra.mxu0 %v2908
    %5227 = vmatpush.bf16.msra.mxu0 %v2900
    %5228 = vmatmul.bf16.gmra.mxu0 %v199
    %v5229 = vpop.f32.mrf.mxu0
    %v5230 = vadd.f32 %v892, %v5229
    %v5231 = vpop.f32.mrf.mxu0
    %v5232 = vadd.f32 %v892, %v5231
    %5233 = vmatmul.bf16.gmra.mxu0 %v210
    %v5234 = vpop.f32.mrf.mxu0
    %v5235 = vadd.f32 %v892, %v5234
    %v5236 = vpop.f32.mrf.mxu0
    %5237 = vdwg.mxu0
    %5238 = vmatpush.bf16.msra.mxu0 %v3020
    %5239 = vmatpush.bf16.msra.mxu0 %v3012
    %5240 = vmatpush.bf16.msra.mxu0 %v3004
    %5241 = vmatpush.bf16.msra.mxu0 %v2996
    %5242 = vmatpush.bf16.msra.mxu0 %v2988
    %5243 = vmatpush.bf16.msra.mxu0 %v2980
    %5244 = vmatpush.bf16.msra.mxu0 %v2972
    %5245 = vmatpush.bf16.msra.mxu0 %v2964
    %5246 = vmatmul.bf16.gmra.mxu0 %v200
    %v5247 = vpop.f32.mrf.mxu0
    %v5248 = vadd.f32 %v5230, %v5247
    %v5249 = vpop.f32.mrf.mxu0
    %v5250 = vadd.f32 %v5232, %v5249
    %5251 = vmatmul.bf16.gmra.mxu0 %v211
    %v5252 = vpop.f32.mrf.mxu0
    %v5253 = vadd.f32 %v5235, %v5252
    %v5254 = vpop.f32.mrf.mxu0
    %5255 = vdwg.mxu0
    %5256 = vmatpush.bf16.msra.mxu0 %v3084
    %5257 = vmatpush.bf16.msra.mxu0 %v3076
    %5258 = vmatpush.bf16.msra.mxu0 %v3068
    %5259 = vmatpush.bf16.msra.mxu0 %v3060
    %5260 = vmatpush.bf16.msra.mxu0 %v3052
    %5261 = vmatpush.bf16.msra.mxu0 %v3044
    %5262 = vmatpush.bf16.msra.mxu0 %v3036
    %5263 = vmatpush.bf16.msra.mxu0 %v3028
    %5264 = vmatmul.bf16.gmra.mxu0 %v201
    %v5265 = vpop.f32.mrf.mxu0
    %v5266 = vadd.f32 %v5248, %v5265
    %v5267 = vpop.f32.mrf.mxu0
    %v5268 = vadd.f32 %v5250, %v5267
    %5269 = vmatmul.bf16.gmra.mxu0 %v212
    %v5270 = vpop.f32.mrf.mxu0
    %v5271 = vadd.f32 %v5253, %v5270
    %v5272 = vpop.f32.mrf.mxu0
    %5273 = vdwg.mxu0
    %5274 = vmatpush.bf16.msra.mxu0 %v3148
    %5275 = vmatpush.bf16.msra.mxu0 %v3140
    %5276 = vmatpush.bf16.msra.mxu0 %v3132
    %5277 = vmatpush.bf16.msra.mxu0 %v3124
    %5278 = vmatpush.bf16.msra.mxu0 %v3116
    %5279 = vmatpush.bf16.msra.mxu0 %v3108
    %5280 = vmatpush.bf16.msra.mxu0 %v3100
    %5281 = vmatpush.bf16.msra.mxu0 %v3092
    %5282 = vmatmul.bf16.gmra.mxu0 %v202
    %v5283 = vpop.f32.mrf.mxu0
    %v5284 = vadd.f32 %v5266, %v5283
    %v5285 = vpop.f32.mrf.mxu0
    %v5286 = vadd.f32 %v5268, %v5285
    %5287 = vmatmul.bf16.gmra.mxu0 %v213
    %v5288 = vpop.f32.mrf.mxu0
    %v5289 = vadd.f32 %v5271, %v5288
    %v5290 = vpop.f32.mrf.mxu0
    %5291 = vdwg.mxu0
    %5292 = vmatpush.bf16.msra.mxu0 %v3212
    %5293 = vmatpush.bf16.msra.mxu0 %v3204
    %5294 = vmatpush.bf16.msra.mxu0 %v3196
    %5295 = vmatpush.bf16.msra.mxu0 %v3188
    %5296 = vmatpush.bf16.msra.mxu0 %v3180
    %5297 = vmatpush.bf16.msra.mxu0 %v3172
    %5298 = vmatpush.bf16.msra.mxu0 %v3164
    %5299 = vmatpush.bf16.msra.mxu0 %v3156
    %5300 = vmatmul.bf16.gmra.mxu0 %v203
    %v5301 = vpop.f32.mrf.mxu0
    %v5302 = vadd.f32 %v5284, %v5301
    %v5303 = vpop.f32.mrf.mxu0
    %v5304 = vadd.f32 %v5286, %v5303
    %5305 = vmatmul.bf16.gmra.mxu0 %v214
    %v5306 = vpop.f32.mrf.mxu0
    %v5307 = vadd.f32 %v5289, %v5306
    %v5308 = vpop.f32.mrf.mxu0
    %5309 = vdwg.mxu0
    %5310 = vmatpush.bf16.msra.mxu0 %v3276
    %5311 = vmatpush.bf16.msra.mxu0 %v3268
    %5312 = vmatpush.bf16.msra.mxu0 %v3260
    %5313 = vmatpush.bf16.msra.mxu0 %v3252
    %5314 = vmatpush.bf16.msra.mxu0 %v3244
    %5315 = vmatpush.bf16.msra.mxu0 %v3236
    %5316 = vmatpush.bf16.msra.mxu0 %v3228
    %5317 = vmatpush.bf16.msra.mxu0 %v3220
    %5318 = vmatmul.bf16.gmra.mxu0 %v204
    %v5319 = vpop.f32.mrf.mxu0
    %v5320 = vadd.f32 %v5302, %v5319
    %v5321 = vpop.f32.mrf.mxu0
    %v5322 = vadd.f32 %v5304, %v5321
    %5323 = vmatmul.bf16.gmra.mxu0 %v215
    %v5324 = vpop.f32.mrf.mxu0
    %v5325 = vadd.f32 %v5307, %v5324
    %v5326 = vpop.f32.mrf.mxu0
    %5327 = vdwg.mxu0
    %5328 = vmatpush.bf16.msra.mxu0 %v3340
    %5329 = vmatpush.bf16.msra.mxu0 %v3332
    %5330 = vmatpush.bf16.msra.mxu0 %v3324
    %5331 = vmatpush.bf16.msra.mxu0 %v3316
    %5332 = vmatpush.bf16.msra.mxu0 %v3308
    %5333 = vmatpush.bf16.msra.mxu0 %v3300
    %5334 = vmatpush.bf16.msra.mxu0 %v3292
    %5335 = vmatpush.bf16.msra.mxu0 %v3284
    %5336 = vmatmul.bf16.gmra.mxu0 %v205
    %v5337 = vpop.f32.mrf.mxu0
    %v5338 = vadd.f32 %v5320, %v5337
    %v5339 = vpop.f32.mrf.mxu0
    %v5340 = vadd.f32 %v5322, %v5339
    %5341 = vmatmul.bf16.gmra.mxu0 %v216
    %v5342 = vpop.f32.mrf.mxu0
    %v5343 = vadd.f32 %v5325, %v5342
    %v5344 = vpop.f32.mrf.mxu0
    %5345 = vdwg.mxu0
    %5346 = vmatpush.bf16.msra.mxu0 %v3404
    %5347 = vmatpush.bf16.msra.mxu0 %v3396
    %5348 = vmatpush.bf16.msra.mxu0 %v3388
    %5349 = vmatpush.bf16.msra.mxu0 %v3380
    %5350 = vmatpush.bf16.msra.mxu0 %v3372
    %5351 = vmatpush.bf16.msra.mxu0 %v3364
    %5352 = vmatpush.bf16.msra.mxu0 %v3356
    %5353 = vmatpush.bf16.msra.mxu0 %v3348
    %5354 = vmatmul.bf16.gmra.mxu0 %v206
    %v5355 = vpop.f32.mrf.mxu0
    %v5356 = vadd.f32 %v5338, %v5355
    %v5357 = vpop.f32.mrf.mxu0
    %v5358 = vadd.f32 %v5340, %v5357
    %5359 = vmatmul.bf16.gmra.mxu0 %v217
    %v5360 = vpop.f32.mrf.mxu0
    %v5361 = vadd.f32 %v5343, %v5360
    %v5362 = vpop.f32.mrf.mxu0
    %5363 = vdwg.mxu0
    %5364 = vmatpush.bf16.msra.mxu0 %v3468
    %5365 = vmatpush.bf16.msra.mxu0 %v3460
    %5366 = vmatpush.bf16.msra.mxu0 %v3452
    %5367 = vmatpush.bf16.msra.mxu0 %v3444
    %5368 = vmatpush.bf16.msra.mxu0 %v3436
    %5369 = vmatpush.bf16.msra.mxu0 %v3428
    %5370 = vmatpush.bf16.msra.mxu0 %v3420
    %5371 = vmatpush.bf16.msra.mxu0 %v3412
    %5372 = vmatmul.bf16.gmra.mxu0 %v207
    %v5373 = vpop.f32.mrf.mxu0
    %v5374 = vadd.f32 %v5356, %v5373
    %v5375 = vpop.f32.mrf.mxu0
    %v5376 = vadd.f32 %v5358, %v5375
    %5377 = vmatmul.bf16.gmra.mxu0 %v218
    %v5378 = vpop.f32.mrf.mxu0
    %v5379 = vadd.f32 %v5361, %v5378
    %v5380 = vpop.f32.mrf.mxu0
    %5381 = vdwg.mxu0
    %5382 = vmatpush.bf16.msra.mxu0 %v3532
    %5383 = vmatpush.bf16.msra.mxu0 %v3524
    %5384 = vmatpush.bf16.msra.mxu0 %v3516
    %5385 = vmatpush.bf16.msra.mxu0 %v3508
    %5386 = vmatpush.bf16.msra.mxu0 %v3500
    %5387 = vmatpush.bf16.msra.mxu0 %v3492
    %5388 = vmatpush.bf16.msra.mxu0 %v3484
    %5389 = vmatpush.bf16.msra.mxu0 %v3476
    %5390 = vmatmul.bf16.gmra.mxu0 %v208
    %v5391 = vpop.f32.mrf.mxu0
    %v5392 = vadd.f32 %v5374, %v5391
    %v5393 = vpop.f32.mrf.mxu0
    %v5394 = vadd.f32 %v5376, %v5393
    %5395 = vmatmul.bf16.gmra.mxu0 %v219
    %v5396 = vpop.f32.mrf.mxu0
    %v5397 = vadd.f32 %v5379, %v5396
    %v5398 = vpop.f32.mrf.mxu0
    %5399 = vdwg.mxu0
    %5400 = vmatpush.bf16.msra.mxu0 0
    %5401 = vmatpush.bf16.msra.mxu0 0
    %5402 = vmatpush.bf16.msra.mxu0 0
    %5403 = vmatpush.bf16.msra.mxu0 0
    %5404 = vmatpush.bf16.msra.mxu0 0
    %5405 = vmatpush.bf16.msra.mxu0 %v3556
    %5406 = vmatpush.bf16.msra.mxu0 %v3548
    %5407 = vmatpush.bf16.msra.mxu0 %v3540
    %5408 = vmatmul.bf16.gmra.mxu0 %v4225
    %v5409 = vpop.f32.mrf.mxu0
    %v5410 = vadd.f32 %v5392, %v5409
    %v5411 = vpop.f32.mrf.mxu0
    %v5412 = vadd.f32 %v5394, %v5411
    %5413 = vmatmul.bf16.gmra.mxu0 %v4228
    %v5414 = vpop.f32.mrf.mxu0
    %v5415 = vadd.f32 %v5397, %v5414
    %v5416 = vpop.f32.mrf.mxu0
    %5417 = vdwg.mxu0
    %5418 = vmatpush.bf16.msra.mxu0 %v2957
    %5419 = vmatpush.bf16.msra.mxu0 %v2949
    %5420 = vmatpush.bf16.msra.mxu0 %v2941
    %5421 = vmatpush.bf16.msra.mxu0 %v2933
    %5422 = vmatpush.bf16.msra.mxu0 %v2925
    %5423 = vmatpush.bf16.msra.mxu0 %v2917
    %5424 = vmatpush.bf16.msra.mxu0 %v2909
    %5425 = vmatpush.bf16.msra.mxu0 %v2901
    %5426 = vmatmul.bf16.gmra.mxu0 %v199
    %v5427 = vpop.f32.mrf.mxu0
    %v5428 = vadd.f32 %v893, %v5427
    %v5429 = vpop.f32.mrf.mxu0
    %v5430 = vadd.f32 %v893, %v5429
    %5431 = vmatmul.bf16.gmra.mxu0 %v210
    %v5432 = vpop.f32.mrf.mxu0
    %v5433 = vadd.f32 %v893, %v5432
    %v5434 = vpop.f32.mrf.mxu0
    %5435 = vdwg.mxu0
    %5436 = vmatpush.bf16.msra.mxu0 %v3021
    %5437 = vmatpush.bf16.msra.mxu0 %v3013
    %5438 = vmatpush.bf16.msra.mxu0 %v3005
    %5439 = vmatpush.bf16.msra.mxu0 %v2997
    %5440 = vmatpush.bf16.msra.mxu0 %v2989
    %5441 = vmatpush.bf16.msra.mxu0 %v2981
    %5442 = vmatpush.bf16.msra.mxu0 %v2973
    %5443 = vmatpush.bf16.msra.mxu0 %v2965
    %5444 = vmatmul.bf16.gmra.mxu0 %v200
    %v5445 = vpop.f32.mrf.mxu0
    %v5446 = vadd.f32 %v5428, %v5445
    %v5447 = vpop.f32.mrf.mxu0
    %v5448 = vadd.f32 %v5430, %v5447
    %5449 = vmatmul.bf16.gmra.mxu0 %v211
    %v5450 = vpop.f32.mrf.mxu0
    %v5451 = vadd.f32 %v5433, %v5450
    %v5452 = vpop.f32.mrf.mxu0
    %5453 = vdwg.mxu0
    %5454 = vmatpush.bf16.msra.mxu0 %v3085
    %5455 = vmatpush.bf16.msra.mxu0 %v3077
    %5456 = vmatpush.bf16.msra.mxu0 %v3069
    %5457 = vmatpush.bf16.msra.mxu0 %v3061
    %5458 = vmatpush.bf16.msra.mxu0 %v3053
    %5459 = vmatpush.bf16.msra.mxu0 %v3045
    %5460 = vmatpush.bf16.msra.mxu0 %v3037
    %5461 = vmatpush.bf16.msra.mxu0 %v3029
    %5462 = vmatmul.bf16.gmra.mxu0 %v201
    %v5463 = vpop.f32.mrf.mxu0
    %v5464 = vadd.f32 %v5446, %v5463
    %v5465 = vpop.f32.mrf.mxu0
    %v5466 = vadd.f32 %v5448, %v5465
    %5467 = vmatmul.bf16.gmra.mxu0 %v212
    %v5468 = vpop.f32.mrf.mxu0
    %v5469 = vadd.f32 %v5451, %v5468
    %v5470 = vpop.f32.mrf.mxu0
    %5471 = vdwg.mxu0
    %5472 = vmatpush.bf16.msra.mxu0 %v3149
    %5473 = vmatpush.bf16.msra.mxu0 %v3141
    %5474 = vmatpush.bf16.msra.mxu0 %v3133
    %5475 = vmatpush.bf16.msra.mxu0 %v3125
    %5476 = vmatpush.bf16.msra.mxu0 %v3117
    %5477 = vmatpush.bf16.msra.mxu0 %v3109
    %5478 = vmatpush.bf16.msra.mxu0 %v3101
    %5479 = vmatpush.bf16.msra.mxu0 %v3093
    %5480 = vmatmul.bf16.gmra.mxu0 %v202
    %v5481 = vpop.f32.mrf.mxu0
    %v5482 = vadd.f32 %v5464, %v5481
    %v5483 = vpop.f32.mrf.mxu0
    %v5484 = vadd.f32 %v5466, %v5483
    %5485 = vmatmul.bf16.gmra.mxu0 %v213
    %v5486 = vpop.f32.mrf.mxu0
    %v5487 = vadd.f32 %v5469, %v5486
    %v5488 = vpop.f32.mrf.mxu0
    %5489 = vdwg.mxu0
    %5490 = vmatpush.bf16.msra.mxu0 %v3213
    %5491 = vmatpush.bf16.msra.mxu0 %v3205
    %5492 = vmatpush.bf16.msra.mxu0 %v3197
    %5493 = vmatpush.bf16.msra.mxu0 %v3189
    %5494 = vmatpush.bf16.msra.mxu0 %v3181
    %5495 = vmatpush.bf16.msra.mxu0 %v3173
    %5496 = vmatpush.bf16.msra.mxu0 %v3165
    %5497 = vmatpush.bf16.msra.mxu0 %v3157
    %5498 = vmatmul.bf16.gmra.mxu0 %v203
    %v5499 = vpop.f32.mrf.mxu0
    %v5500 = vadd.f32 %v5482, %v5499
    %v5501 = vpop.f32.mrf.mxu0
    %v5502 = vadd.f32 %v5484, %v5501
    %5503 = vmatmul.bf16.gmra.mxu0 %v214
    %v5504 = vpop.f32.mrf.mxu0
    %v5505 = vadd.f32 %v5487, %v5504
    %v5506 = vpop.f32.mrf.mxu0
    %5507 = vdwg.mxu0
    %5508 = vmatpush.bf16.msra.mxu0 %v3277
    %5509 = vmatpush.bf16.msra.mxu0 %v3269
    %5510 = vmatpush.bf16.msra.mxu0 %v3261
    %5511 = vmatpush.bf16.msra.mxu0 %v3253
    %5512 = vmatpush.bf16.msra.mxu0 %v3245
    %5513 = vmatpush.bf16.msra.mxu0 %v3237
    %5514 = vmatpush.bf16.msra.mxu0 %v3229
    %5515 = vmatpush.bf16.msra.mxu0 %v3221
    %5516 = vmatmul.bf16.gmra.mxu0 %v204
    %v5517 = vpop.f32.mrf.mxu0
    %v5518 = vadd.f32 %v5500, %v5517
    %v5519 = vpop.f32.mrf.mxu0
    %v5520 = vadd.f32 %v5502, %v5519
    %5521 = vmatmul.bf16.gmra.mxu0 %v215
    %v5522 = vpop.f32.mrf.mxu0
    %v5523 = vadd.f32 %v5505, %v5522
    %v5524 = vpop.f32.mrf.mxu0
    %5525 = vdwg.mxu0
    %5526 = vmatpush.bf16.msra.mxu0 %v3341
    %5527 = vmatpush.bf16.msra.mxu0 %v3333
    %5528 = vmatpush.bf16.msra.mxu0 %v3325
    %5529 = vmatpush.bf16.msra.mxu0 %v3317
    %5530 = vmatpush.bf16.msra.mxu0 %v3309
    %5531 = vmatpush.bf16.msra.mxu0 %v3301
    %5532 = vmatpush.bf16.msra.mxu0 %v3293
    %5533 = vmatpush.bf16.msra.mxu0 %v3285
    %5534 = vmatmul.bf16.gmra.mxu0 %v205
    %v5535 = vpop.f32.mrf.mxu0
    %v5536 = vadd.f32 %v5518, %v5535
    %v5537 = vpop.f32.mrf.mxu0
    %v5538 = vadd.f32 %v5520, %v5537
    %5539 = vmatmul.bf16.gmra.mxu0 %v216
    %v5540 = vpop.f32.mrf.mxu0
    %v5541 = vadd.f32 %v5523, %v5540
    %v5542 = vpop.f32.mrf.mxu0
    %5543 = vdwg.mxu0
    %5544 = vmatpush.bf16.msra.mxu0 %v3405
    %5545 = vmatpush.bf16.msra.mxu0 %v3397
    %5546 = vmatpush.bf16.msra.mxu0 %v3389
    %5547 = vmatpush.bf16.msra.mxu0 %v3381
    %5548 = vmatpush.bf16.msra.mxu0 %v3373
    %5549 = vmatpush.bf16.msra.mxu0 %v3365
    %5550 = vmatpush.bf16.msra.mxu0 %v3357
    %5551 = vmatpush.bf16.msra.mxu0 %v3349
    %5552 = vmatmul.bf16.gmra.mxu0 %v206
    %v5553 = vpop.f32.mrf.mxu0
    %v5554 = vadd.f32 %v5536, %v5553
    %v5555 = vpop.f32.mrf.mxu0
    %v5556 = vadd.f32 %v5538, %v5555
    %5557 = vmatmul.bf16.gmra.mxu0 %v217
    %v5558 = vpop.f32.mrf.mxu0
    %v5559 = vadd.f32 %v5541, %v5558
    %v5560 = vpop.f32.mrf.mxu0
    %5561 = vdwg.mxu0
    %5562 = vmatpush.bf16.msra.mxu0 %v3469
    %5563 = vmatpush.bf16.msra.mxu0 %v3461
    %5564 = vmatpush.bf16.msra.mxu0 %v3453
    %5565 = vmatpush.bf16.msra.mxu0 %v3445
    %5566 = vmatpush.bf16.msra.mxu0 %v3437
    %5567 = vmatpush.bf16.msra.mxu0 %v3429
    %5568 = vmatpush.bf16.msra.mxu0 %v3421
    %5569 = vmatpush.bf16.msra.mxu0 %v3413
    %5570 = vmatmul.bf16.gmra.mxu0 %v207
    %v5571 = vpop.f32.mrf.mxu0
    %v5572 = vadd.f32 %v5554, %v5571
    %v5573 = vpop.f32.mrf.mxu0
    %v5574 = vadd.f32 %v5556, %v5573
    %5575 = vmatmul.bf16.gmra.mxu0 %v218
    %v5576 = vpop.f32.mrf.mxu0
    %v5577 = vadd.f32 %v5559, %v5576
    %v5578 = vpop.f32.mrf.mxu0
    %5579 = vdwg.mxu0
    %5580 = vmatpush.bf16.msra.mxu0 %v3533
    %5581 = vmatpush.bf16.msra.mxu0 %v3525
    %5582 = vmatpush.bf16.msra.mxu0 %v3517
    %5583 = vmatpush.bf16.msra.mxu0 %v3509
    %5584 = vmatpush.bf16.msra.mxu0 %v3501
    %5585 = vmatpush.bf16.msra.mxu0 %v3493
    %5586 = vmatpush.bf16.msra.mxu0 %v3485
    %5587 = vmatpush.bf16.msra.mxu0 %v3477
    %5588 = vmatmul.bf16.gmra.mxu0 %v208
    %v5589 = vpop.f32.mrf.mxu0
    %v5590 = vadd.f32 %v5572, %v5589
    %v5591 = vpop.f32.mrf.mxu0
    %v5592 = vadd.f32 %v5574, %v5591
    %5593 = vmatmul.bf16.gmra.mxu0 %v219
    %v5594 = vpop.f32.mrf.mxu0
    %v5595 = vadd.f32 %v5577, %v5594
    %v5596 = vpop.f32.mrf.mxu0
    %5597 = vdwg.mxu0
    %5598 = vmatpush.bf16.msra.mxu0 0
    %5599 = vmatpush.bf16.msra.mxu0 0
    %5600 = vmatpush.bf16.msra.mxu0 0
    %5601 = vmatpush.bf16.msra.mxu0 0
    %5602 = vmatpush.bf16.msra.mxu0 0
    %5603 = vmatpush.bf16.msra.mxu0 %v3557
    %5604 = vmatpush.bf16.msra.mxu0 %v3549
    %5605 = vmatpush.bf16.msra.mxu0 %v3541
    %5606 = vmatmul.bf16.gmra.mxu0 %v4225
    %v5607 = vpop.f32.mrf.mxu0
    %v5608 = vadd.f32 %v5590, %v5607
    %v5609 = vpop.f32.mrf.mxu0
    %v5610 = vadd.f32 %v5592, %v5609
    %5611 = vmatmul.bf16.gmra.mxu0 %v4228
    %v5612 = vpop.f32.mrf.mxu0
    %v5613 = vadd.f32 %v5595, %v5612
    %v5614 = vpop.f32.mrf.mxu0
    %5615 = vdwg.mxu0
    %5616 = vmatpush.bf16.msra.mxu0 %v2958
    %5617 = vmatpush.bf16.msra.mxu0 %v2950
    %5618 = vmatpush.bf16.msra.mxu0 %v2942
    %5619 = vmatpush.bf16.msra.mxu0 %v2934
    %5620 = vmatpush.bf16.msra.mxu0 %v2926
    %5621 = vmatpush.bf16.msra.mxu0 %v2918
    %5622 = vmatpush.bf16.msra.mxu0 %v2910
    %5623 = vmatpush.bf16.msra.mxu0 %v2902
    %5624 = vmatmul.bf16.gmra.mxu0 %v199
    %v5625 = vpop.f32.mrf.mxu0
    %v5626 = vadd.f32 %v894, %v5625
    %v5627 = vpop.f32.mrf.mxu0
    %v5628 = vadd.f32 %v894, %v5627
    %5629 = vmatmul.bf16.gmra.mxu0 %v210
    %v5630 = vpop.f32.mrf.mxu0
    %v5631 = vadd.f32 %v894, %v5630
    %v5632 = vpop.f32.mrf.mxu0
    %5633 = vdwg.mxu0
    %5634 = vmatpush.bf16.msra.mxu0 %v3022
    %5635 = vmatpush.bf16.msra.mxu0 %v3014
    %5636 = vmatpush.bf16.msra.mxu0 %v3006
    %5637 = vmatpush.bf16.msra.mxu0 %v2998
    %5638 = vmatpush.bf16.msra.mxu0 %v2990
    %5639 = vmatpush.bf16.msra.mxu0 %v2982
    %5640 = vmatpush.bf16.msra.mxu0 %v2974
    %5641 = vmatpush.bf16.msra.mxu0 %v2966
    %5642 = vmatmul.bf16.gmra.mxu0 %v200
    %v5643 = vpop.f32.mrf.mxu0
    %v5644 = vadd.f32 %v5626, %v5643
    %v5645 = vpop.f32.mrf.mxu0
    %v5646 = vadd.f32 %v5628, %v5645
    %5647 = vmatmul.bf16.gmra.mxu0 %v211
    %v5648 = vpop.f32.mrf.mxu0
    %v5649 = vadd.f32 %v5631, %v5648
    %v5650 = vpop.f32.mrf.mxu0
    %5651 = vdwg.mxu0
    %5652 = vmatpush.bf16.msra.mxu0 %v3086
    %5653 = vmatpush.bf16.msra.mxu0 %v3078
    %5654 = vmatpush.bf16.msra.mxu0 %v3070
    %5655 = vmatpush.bf16.msra.mxu0 %v3062
    %5656 = vmatpush.bf16.msra.mxu0 %v3054
    %5657 = vmatpush.bf16.msra.mxu0 %v3046
    %5658 = vmatpush.bf16.msra.mxu0 %v3038
    %5659 = vmatpush.bf16.msra.mxu0 %v3030
    %5660 = vmatmul.bf16.gmra.mxu0 %v201
    %v5661 = vpop.f32.mrf.mxu0
    %v5662 = vadd.f32 %v5644, %v5661
    %v5663 = vpop.f32.mrf.mxu0
    %v5664 = vadd.f32 %v5646, %v5663
    %5665 = vmatmul.bf16.gmra.mxu0 %v212
    %v5666 = vpop.f32.mrf.mxu0
    %v5667 = vadd.f32 %v5649, %v5666
    %v5668 = vpop.f32.mrf.mxu0
    %5669 = vdwg.mxu0
    %5670 = vmatpush.bf16.msra.mxu0 %v3150
    %5671 = vmatpush.bf16.msra.mxu0 %v3142
    %5672 = vmatpush.bf16.msra.mxu0 %v3134
    %5673 = vmatpush.bf16.msra.mxu0 %v3126
    %5674 = vmatpush.bf16.msra.mxu0 %v3118
    %5675 = vmatpush.bf16.msra.mxu0 %v3110
    %5676 = vmatpush.bf16.msra.mxu0 %v3102
    %5677 = vmatpush.bf16.msra.mxu0 %v3094
    %5678 = vmatmul.bf16.gmra.mxu0 %v202
    %v5679 = vpop.f32.mrf.mxu0
    %v5680 = vadd.f32 %v5662, %v5679
    %v5681 = vpop.f32.mrf.mxu0
    %v5682 = vadd.f32 %v5664, %v5681
    %5683 = vmatmul.bf16.gmra.mxu0 %v213
    %v5684 = vpop.f32.mrf.mxu0
    %v5685 = vadd.f32 %v5667, %v5684
    %v5686 = vpop.f32.mrf.mxu0
    %5687 = vdwg.mxu0
    %5688 = vmatpush.bf16.msra.mxu0 %v3214
    %5689 = vmatpush.bf16.msra.mxu0 %v3206
    %5690 = vmatpush.bf16.msra.mxu0 %v3198
    %5691 = vmatpush.bf16.msra.mxu0 %v3190
    %5692 = vmatpush.bf16.msra.mxu0 %v3182
    %5693 = vmatpush.bf16.msra.mxu0 %v3174
    %5694 = vmatpush.bf16.msra.mxu0 %v3166
    %5695 = vmatpush.bf16.msra.mxu0 %v3158
    %5696 = vmatmul.bf16.gmra.mxu0 %v203
    %v5697 = vpop.f32.mrf.mxu0
    %v5698 = vadd.f32 %v5680, %v5697
    %v5699 = vpop.f32.mrf.mxu0
    %v5700 = vadd.f32 %v5682, %v5699
    %5701 = vmatmul.bf16.gmra.mxu0 %v214
    %v5702 = vpop.f32.mrf.mxu0
    %v5703 = vadd.f32 %v5685, %v5702
    %v5704 = vpop.f32.mrf.mxu0
    %5705 = vdwg.mxu0
    %5706 = vmatpush.bf16.msra.mxu0 %v3278
    %5707 = vmatpush.bf16.msra.mxu0 %v3270
    %5708 = vmatpush.bf16.msra.mxu0 %v3262
    %5709 = vmatpush.bf16.msra.mxu0 %v3254
    %5710 = vmatpush.bf16.msra.mxu0 %v3246
    %5711 = vmatpush.bf16.msra.mxu0 %v3238
    %5712 = vmatpush.bf16.msra.mxu0 %v3230
    %5713 = vmatpush.bf16.msra.mxu0 %v3222
    %5714 = vmatmul.bf16.gmra.mxu0 %v204
    %v5715 = vpop.f32.mrf.mxu0
    %v5716 = vadd.f32 %v5698, %v5715
    %v5717 = vpop.f32.mrf.mxu0
    %v5718 = vadd.f32 %v5700, %v5717
    %5719 = vmatmul.bf16.gmra.mxu0 %v215
    %v5720 = vpop.f32.mrf.mxu0
    %v5721 = vadd.f32 %v5703, %v5720
    %v5722 = vpop.f32.mrf.mxu0
    %5723 = vdwg.mxu0
    %5724 = vmatpush.bf16.msra.mxu0 %v3342
    %5725 = vmatpush.bf16.msra.mxu0 %v3334
    %5726 = vmatpush.bf16.msra.mxu0 %v3326
    %5727 = vmatpush.bf16.msra.mxu0 %v3318
    %5728 = vmatpush.bf16.msra.mxu0 %v3310
    %5729 = vmatpush.bf16.msra.mxu0 %v3302
    %5730 = vmatpush.bf16.msra.mxu0 %v3294
    %5731 = vmatpush.bf16.msra.mxu0 %v3286
    %5732 = vmatmul.bf16.gmra.mxu0 %v205
    %v5733 = vpop.f32.mrf.mxu0
    %v5734 = vadd.f32 %v5716, %v5733
    %v5735 = vpop.f32.mrf.mxu0
    %v5736 = vadd.f32 %v5718, %v5735
    %5737 = vmatmul.bf16.gmra.mxu0 %v216
    %v5738 = vpop.f32.mrf.mxu0
    %v5739 = vadd.f32 %v5721, %v5738
    %v5740 = vpop.f32.mrf.mxu0
    %5741 = vdwg.mxu0
    %5742 = vmatpush.bf16.msra.mxu0 %v3406
    %5743 = vmatpush.bf16.msra.mxu0 %v3398
    %5744 = vmatpush.bf16.msra.mxu0 %v3390
    %5745 = vmatpush.bf16.msra.mxu0 %v3382
    %5746 = vmatpush.bf16.msra.mxu0 %v3374
    %5747 = vmatpush.bf16.msra.mxu0 %v3366
    %5748 = vmatpush.bf16.msra.mxu0 %v3358
    %5749 = vmatpush.bf16.msra.mxu0 %v3350
    %5750 = vmatmul.bf16.gmra.mxu0 %v206
    %v5751 = vpop.f32.mrf.mxu0
    %v5752 = vadd.f32 %v5734, %v5751
    %v5753 = vpop.f32.mrf.mxu0
    %v5754 = vadd.f32 %v5736, %v5753
    %5755 = vmatmul.bf16.gmra.mxu0 %v217
    %v5756 = vpop.f32.mrf.mxu0
    %v5757 = vadd.f32 %v5739, %v5756
    %v5758 = vpop.f32.mrf.mxu0
    %5759 = vdwg.mxu0
    %5760 = vmatpush.bf16.msra.mxu0 %v3470
    %5761 = vmatpush.bf16.msra.mxu0 %v3462
    %5762 = vmatpush.bf16.msra.mxu0 %v3454
    %5763 = vmatpush.bf16.msra.mxu0 %v3446
    %5764 = vmatpush.bf16.msra.mxu0 %v3438
    %5765 = vmatpush.bf16.msra.mxu0 %v3430
    %5766 = vmatpush.bf16.msra.mxu0 %v3422
    %5767 = vmatpush.bf16.msra.mxu0 %v3414
    %5768 = vmatmul.bf16.gmra.mxu0 %v207
    %v5769 = vpop.f32.mrf.mxu0
    %v5770 = vadd.f32 %v5752, %v5769
    %v5771 = vpop.f32.mrf.mxu0
    %v5772 = vadd.f32 %v5754, %v5771
    %5773 = vmatmul.bf16.gmra.mxu0 %v218
    %v5774 = vpop.f32.mrf.mxu0
    %v5775 = vadd.f32 %v5757, %v5774
    %v5776 = vpop.f32.mrf.mxu0
    %5777 = vdwg.mxu0
    %5778 = vmatpush.bf16.msra.mxu0 %v3534
    %5779 = vmatpush.bf16.msra.mxu0 %v3526
    %5780 = vmatpush.bf16.msra.mxu0 %v3518
    %5781 = vmatpush.bf16.msra.mxu0 %v3510
    %5782 = vmatpush.bf16.msra.mxu0 %v3502
    %5783 = vmatpush.bf16.msra.mxu0 %v3494
    %5784 = vmatpush.bf16.msra.mxu0 %v3486
    %5785 = vmatpush.bf16.msra.mxu0 %v3478
    %5786 = vmatmul.bf16.gmra.mxu0 %v208
    %v5787 = vpop.f32.mrf.mxu0
    %v5788 = vadd.f32 %v5770, %v5787
    %v5789 = vpop.f32.mrf.mxu0
    %v5790 = vadd.f32 %v5772, %v5789
    %5791 = vmatmul.bf16.gmra.mxu0 %v219
    %v5792 = vpop.f32.mrf.mxu0
    %v5793 = vadd.f32 %v5775, %v5792
    %v5794 = vpop.f32.mrf.mxu0
    %5795 = vdwg.mxu0
    %5796 = vmatpush.bf16.msra.mxu0 0
    %5797 = vmatpush.bf16.msra.mxu0 0
    %5798 = vmatpush.bf16.msra.mxu0 0
    %5799 = vmatpush.bf16.msra.mxu0 0
    %5800 = vmatpush.bf16.msra.mxu0 0
    %5801 = vmatpush.bf16.msra.mxu0 %v3558
    %5802 = vmatpush.bf16.msra.mxu0 %v3550
    %5803 = vmatpush.bf16.msra.mxu0 %v3542
    %5804 = vmatmul.bf16.gmra.mxu0 %v4225
    %v5805 = vpop.f32.mrf.mxu0
    %v5806 = vadd.f32 %v5788, %v5805
    %v5807 = vpop.f32.mrf.mxu0
    %v5808 = vadd.f32 %v5790, %v5807
    %5809 = vmatmul.bf16.gmra.mxu0 %v4228
    %v5810 = vpop.f32.mrf.mxu0
    %v5811 = vadd.f32 %v5793, %v5810
    %v5812 = vpop.f32.mrf.mxu0
    %5813 = vdwg.mxu0
    %v5814 = vmax.f32 %v4420, 0.0
    %v5815 = vmax.f32 %v4618, 0.0
    %v5816 = vmax.f32 %v4816, 0.0
    %v5817 = vmax.f32 %v5014, 0.0
    %v5818 = vmax.f32 %v5212, 0.0
    %v5819 = vmax.f32 %v5410, 0.0
    %v5820 = vmax.f32 %v5608, 0.0
    %v5821 = vmax.f32 %v5806, 0.0
    %v5822 = vmax.f32 %v4422, 0.0
    %v5823 = vmax.f32 %v4620, 0.0
    %v5824 = vmax.f32 %v4818, 0.0
    %v5825 = vmax.f32 %v5016, 0.0
    %v5826 = vmax.f32 %v5214, 0.0
    %v5827 = vmax.f32 %v5412, 0.0
    %v5828 = vmax.f32 %v5610, 0.0
    %v5829 = vmax.f32 %v5808, 0.0
    %v5830 = vmax.f32 %v4425, 0.0
    %v5831 = vmax.f32 %v4623, 0.0
    %v5832 = vmax.f32 %v4821, 0.0
    %v5833 = vmax.f32 %v5019, 0.0
    %v5834 = vmax.f32 %v5217, 0.0
    %v5835 = vmax.f32 %v5415, 0.0
    %v5836 = vmax.f32 %v5613, 0.0
    %v5837 = vmax.f32 %v5811, 0.0
    %v5838 = vpack.c.bf16 %v5822, %v5814
    %v5839 = vpack.c.bf16 %v5823, %v5815
    %v5840 = vpack.c.bf16 %v5824, %v5816
    %v5841 = vpack.c.bf16 %v5825, %v5817
    %v5842 = vpack.c.bf16 %v5826, %v5818
    %v5843 = vpack.c.bf16 %v5827, %v5819
    %v5844 = vpack.c.bf16 %v5828, %v5820
    %v5845 = vpack.c.bf16 %v5829, %v5821
    %v5846 = vpack.c.bf16 %v5830, %v5830
    %v5847 = vpack.c.bf16 %v5831, %v5831
    %v5848 = vpack.c.bf16 %v5832, %v5832
    %v5849 = vpack.c.bf16 %v5833, %v5833
    %v5850 = vpack.c.bf16 %v5834, %v5834
    %v5851 = vpack.c.bf16 %v5835, %v5835
    %v5852 = vpack.c.bf16 %v5836, %v5836
    %v5853 = vpack.c.bf16 %v5837, %v5837
    %v5854 = vld [vmem:[#allocation8] sm:$0xff]
    %v5855 = vld [vmem:[#allocation8 + $0x8] sm:$0xff]
    %v5856 = vld [vmem:[#allocation8 + $0x10] sm:$0xff]
    %v5857 = vld [vmem:[#allocation8 + $0x18] sm:$0xff]
    %v5858 = vld [vmem:[#allocation8 + $0x20] sm:$0xff]
    %v5859 = vld [vmem:[#allocation8 + $0x28] sm:$0xff]
    %v5860 = vld [vmem:[#allocation8 + $0x30] sm:$0xff]
    %v5861 = vld [vmem:[#allocation8 + $0x38] sm:$0xff]
    %v5862 = vld [vmem:[#allocation8 + $0x40] sm:$0xff]
    %v5863 = vld [vmem:[#allocation8 + $0x48] sm:$0xff]
    %v5864 = vld [vmem:[#allocation8 + $0x50] sm:$0xff]
    %v5865 = vld [vmem:[#allocation8 + $0x58] sm:$0xff]
    %v5866 = vld [vmem:[#allocation8 + $0x60] sm:$0xff]
    %v5867 = vld [vmem:[#allocation8 + $0x68] sm:$0xff]
    %v5868 = vld [vmem:[#allocation8 + $0x70] sm:$0xff]
    %v5869 = vld [vmem:[#allocation8 + $0x78] sm:$0xff]
    %v5870 = vld [vmem:[#allocation8 + $0x80] sm:$0xff]
    %v5871 = vld [vmem:[#allocation8 + $0x88] sm:$0xff]
    %v5872 = vld [vmem:[#allocation8 + $0x90] sm:$0xff]
    %v5873 = vld [vmem:[#allocation8 + $0x98] sm:$0xff]
    %v5874 = vld [vmem:[#allocation8 + $0xa0] sm:$0xff]
    %v5875 = vld [vmem:[#allocation8 + $0xa8] sm:$0xff]
    %v5876 = vld [vmem:[#allocation8 + $0xb0] sm:$0xff]
    %v5877 = vld [vmem:[#allocation8 + $0xb8] sm:$0xff]
    %v5878 = vld [vmem:[#allocation8 + $0xc0] sm:$0xff]
    %v5879 = vld [vmem:[#allocation8 + $0xc8] sm:$0xff]
    %v5880 = vld [vmem:[#allocation8 + $0xd0] sm:$0xff]
    %v5881 = vld [vmem:[#allocation8 + $0xd8] sm:$0xff]
    %v5882 = vld [vmem:[#allocation8 + $0xe0] sm:$0xff]
    %v5883 = vld [vmem:[#allocation8 + $0xe8] sm:$0xff]
    %v5884 = vld [vmem:[#allocation8 + $0xf0] sm:$0xff]
    %v5885 = vld [vmem:[#allocation8 + $0xf8] sm:$0xff]
    %v5886 = vld [vmem:[#allocation8 + $0x100] sm:$0xff]
    %v5887 = vld [vmem:[#allocation8 + $0x108] sm:$0xff]
    %v5888 = vld [vmem:[#allocation8 + $0x110] sm:$0xff]
    %v5889 = vld [vmem:[#allocation8 + $0x118] sm:$0xff]
    %v5890 = vld [vmem:[#allocation8 + $0x120] sm:$0xff]
    %v5891 = vld [vmem:[#allocation8 + $0x128] sm:$0xff]
    %v5892 = vld [vmem:[#allocation8 + $0x130] sm:$0xff]
    %v5893 = vld [vmem:[#allocation8 + $0x138] sm:$0xff]
    %v5894 = vld [vmem:[#allocation8 + $0x140] sm:$0xff]
    %v5895 = vld [vmem:[#allocation8 + $0x148] sm:$0xff]
    %v5896 = vld [vmem:[#allocation8 + $0x150] sm:$0xff]
    %v5897 = vld [vmem:[#allocation8 + $0x158] sm:$0xff]
    %v5898 = vld [vmem:[#allocation8 + $0x160] sm:$0xff]
    %v5899 = vld [vmem:[#allocation8 + $0x168] sm:$0xff]
    %v5900 = vld [vmem:[#allocation8 + $0x170] sm:$0xff]
    %v5901 = vld [vmem:[#allocation8 + $0x178] sm:$0xff]
    %v5902 = vld [vmem:[#allocation8 + $0x180] sm:$0xff]
    %v5903 = vld [vmem:[#allocation8 + $0x188] sm:$0xff]
    %v5904 = vld [vmem:[#allocation8 + $0x190] sm:$0xff]
    %v5905 = vld [vmem:[#allocation8 + $0x198] sm:$0xff]
    %v5906 = vld [vmem:[#allocation8 + $0x1a0] sm:$0xff]
    %v5907 = vld [vmem:[#allocation8 + $0x1a8] sm:$0xff]
    %v5908 = vld [vmem:[#allocation8 + $0x1b0] sm:$0xff]
    %v5909 = vld [vmem:[#allocation8 + $0x1b8] sm:$0xff]
    %v5910 = vld [vmem:[#allocation8 + $0x1c0] sm:$0xff]
    %v5911 = vld [vmem:[#allocation8 + $0x1c8] sm:$0xff]
    %v5912 = vld [vmem:[#allocation8 + $0x1d0] sm:$0xff]
    %v5913 = vld [vmem:[#allocation8 + $0x1d8] sm:$0xff]
    %v5914 = vld [vmem:[#allocation8 + $0x1e0] sm:$0xff]
    %v5915 = vld [vmem:[#allocation8 + $0x1e8] sm:$0xff]
    %v5916 = vld [vmem:[#allocation8 + $0x1f0] sm:$0xff]
    %v5917 = vld [vmem:[#allocation8 + $0x1f8] sm:$0xff]
    %v5918 = vld [vmem:[#allocation8 + $0x200] sm:$0xff]
    %v5919 = vld [vmem:[#allocation8 + $0x208] sm:$0xff]
    %v5920 = vld [vmem:[#allocation8 + $0x210] sm:$0xff]
    %v5921 = vld [vmem:[#allocation8 + $0x218] sm:$0xff]
    %v5922 = vld [vmem:[#allocation8 + $0x220] sm:$0xff]
    %v5923 = vld [vmem:[#allocation8 + $0x228] sm:$0xff]
    %v5924 = vld [vmem:[#allocation8 + $0x230] sm:$0xff]
    %v5925 = vld [vmem:[#allocation8 + $0x238] sm:$0xff]
    %v5926 = vld [vmem:[#allocation8 + $0x240] sm:$0xff]
    %v5927 = vld [vmem:[#allocation8 + $0x248] sm:$0xff]
    %v5928 = vld [vmem:[#allocation8 + $0x250] sm:$0xff]
    %v5929 = vld [vmem:[#allocation8 + $0x258] sm:$0xff]
    %v5930 = vld [vmem:[#allocation8 + $0x260] sm:$0xff]
    %v5931 = vld [vmem:[#allocation8 + $0x268] sm:$0xff]
    %v5932 = vld [vmem:[#allocation8 + $0x270] sm:$0xff]
    %v5933 = vld [vmem:[#allocation8 + $0x278] sm:$0xff]
    %v5934 = vld [vmem:[#allocation8 + $0x280] sm:$0xff]
    %v5935 = vld [vmem:[#allocation8 + $0x288] sm:$0xff]
    %v5936 = vld [vmem:[#allocation8 + $0x290] sm:$0xff]
    %v5937 = vld [vmem:[#allocation8 + $0x298] sm:$0xff]
    %v5938 = vld [vmem:[#allocation8 + $0x2a0] sm:$0xff]
    %v5939 = vld [vmem:[#allocation8 + $0x2a8] sm:$0xff]
    %v5940 = vld [vmem:[#allocation8 + $0x2b0] sm:$0xff]
    %v5941 = vld [vmem:[#allocation8 + $0x2b8] sm:$0xff]
    %v5942 = vld [vmem:[#allocation8 + $0x2c0] sm:$0xff]
    %v5943 = vld [vmem:[#allocation8 + $0x2c8] sm:$0xff]
    %v5944 = vld [vmem:[#allocation8 + $0x2d0] sm:$0xff]
    %v5945 = vld [vmem:[#allocation8 + $0x2d8] sm:$0xff]
    %v5946 = vld [vmem:[#allocation8 + $0x2e0] sm:$0xff]
    %v5947 = vld [vmem:[#allocation8 + $0x2e8] sm:$0xff]
    %v5948 = vld [vmem:[#allocation8 + $0x2f0] sm:$0xff]
    %v5949 = vld [vmem:[#allocation8 + $0x2f8] sm:$0xff]
    %v5950 = vld [vmem:[#allocation8 + $0x300] sm:$0xff]
    %v5951 = vld [vmem:[#allocation8 + $0x308] sm:$0xff]
    %v5952 = vld [vmem:[#allocation8 + $0x310] sm:$0xff]
    %v5953 = vld [vmem:[#allocation8 + $0x318] sm:$0xff]
    %v5954 = vld [vmem:[#allocation8 + $0x320] sm:$0xff]
    %v5955 = vld [vmem:[#allocation8 + $0x328] sm:$0xff]
    %v5956 = vld [vmem:[#allocation8 + $0x330] sm:$0xff]
    %v5957 = vld [vmem:[#allocation8 + $0x338] sm:$0xff]
    %v5958 = vld [vmem:[#allocation8 + $0x340] sm:$0xff]
    %v5959 = vld [vmem:[#allocation8 + $0x348] sm:$0xff]
    %v5960 = vld [vmem:[#allocation8 + $0x350] sm:$0xff]
    %v5961 = vld [vmem:[#allocation8 + $0x358] sm:$0xff]
    %v5962 = vld [vmem:[#allocation8 + $0x360] sm:$0xff]
    %v5963 = vld [vmem:[#allocation8 + $0x368] sm:$0xff]
    %v5964 = vld [vmem:[#allocation8 + $0x370] sm:$0xff]
    %v5965 = vld [vmem:[#allocation8 + $0x378] sm:$0xff]
    %v5966 = vld [vmem:[#allocation8 + $0x380] sm:$0xff]
    %v5967 = vld [vmem:[#allocation8 + $0x388] sm:$0xff]
    %v5968 = vld [vmem:[#allocation8 + $0x390] sm:$0xff]
    %v5969 = vld [vmem:[#allocation8 + $0x398] sm:$0xff]
    %v5970 = vld [vmem:[#allocation8 + $0x3a0] sm:$0xff]
    %v5971 = vld [vmem:[#allocation8 + $0x3a8] sm:$0xff]
    %v5972 = vld [vmem:[#allocation8 + $0x3b0] sm:$0xff]
    %v5973 = vld [vmem:[#allocation8 + $0x3b8] sm:$0xff]
    %v5974 = vld [vmem:[#allocation8 + $0x3c0] sm:$0xff]
    %v5975 = vld [vmem:[#allocation8 + $0x3c8] sm:$0xff]
    %v5976 = vld [vmem:[#allocation8 + $0x3d0] sm:$0xff]
    %v5977 = vld [vmem:[#allocation8 + $0x3d8] sm:$0xff]
    %v5978 = vld [vmem:[#allocation8 + $0x3e0] sm:$0xff]
    %v5979 = vld [vmem:[#allocation8 + $0x3e8] sm:$0xff]
    %v5980 = vld [vmem:[#allocation8 + $0x3f0] sm:$0xff]
    %v5981 = vld [vmem:[#allocation8 + $0x3f8] sm:$0xff]
    %v5982 = vld [vmem:[#allocation8 + $0x400] sm:$0xff]
    %v5983 = vld [vmem:[#allocation8 + $0x408] sm:$0xff]
    %v5984 = vld [vmem:[#allocation8 + $0x410] sm:$0xff]
    %v5985 = vld [vmem:[#allocation8 + $0x418] sm:$0xff]
    %v5986 = vld [vmem:[#allocation8 + $0x420] sm:$0xff]
    %v5987 = vld [vmem:[#allocation8 + $0x428] sm:$0xff]
    %v5988 = vld [vmem:[#allocation8 + $0x430] sm:$0xff]
    %v5989 = vld [vmem:[#allocation8 + $0x438] sm:$0xff]
    %v5990 = vld [vmem:[#allocation8 + $0x440] sm:$0xff]
    %v5991 = vld [vmem:[#allocation8 + $0x448] sm:$0xff]
    %v5992 = vld [vmem:[#allocation8 + $0x450] sm:$0xff]
    %v5993 = vld [vmem:[#allocation8 + $0x458] sm:$0xff]
    %v5994 = vld [vmem:[#allocation8 + $0x460] sm:$0xff]
    %v5995 = vld [vmem:[#allocation8 + $0x468] sm:$0xff]
    %v5996 = vld [vmem:[#allocation8 + $0x470] sm:$0xff]
    %v5997 = vld [vmem:[#allocation8 + $0x478] sm:$0xff]
    %v5998 = vld [vmem:[#allocation8 + $0x480] sm:$0xff]
    %v5999 = vld [vmem:[#allocation8 + $0x488] sm:$0xff]
    %v6000 = vld [vmem:[#allocation8 + $0x490] sm:$0xff]
    %v6001 = vld [vmem:[#allocation8 + $0x498] sm:$0xff]
    %v6002 = vld [vmem:[#allocation8 + $0x4a0] sm:$0xff]
    %v6003 = vld [vmem:[#allocation8 + $0x4a8] sm:$0xff]
    %v6004 = vld [vmem:[#allocation8 + $0x4b0] sm:$0xff]
    %v6005 = vld [vmem:[#allocation8 + $0x4b8] sm:$0xff]
    %v6006 = vld [vmem:[#allocation8 + $0x4c0] sm:$0xff]
    %v6007 = vld [vmem:[#allocation8 + $0x4c8] sm:$0xff]
    %v6008 = vld [vmem:[#allocation8 + $0x4d0] sm:$0xff]
    %v6009 = vld [vmem:[#allocation8 + $0x4d8] sm:$0xff]
    %v6010 = vld [vmem:[#allocation8 + $0x4e0] sm:$0xff]
    %v6011 = vld [vmem:[#allocation8 + $0x4e8] sm:$0xff]
    %v6012 = vld [vmem:[#allocation8 + $0x4f0] sm:$0xff]
    %v6013 = vld [vmem:[#allocation8 + $0x4f8] sm:$0xff]
    %v6014 = vld [vmem:[#allocation8 + $0x500] sm:$0xff]
    %v6015 = vld [vmem:[#allocation8 + $0x508] sm:$0xff]
    %v6016 = vld [vmem:[#allocation8 + $0x510] sm:$0xff]
    %v6017 = vld [vmem:[#allocation8 + $0x518] sm:$0xff]
    %v6018 = vld [vmem:[#allocation8 + $0x520] sm:$0xff]
    %v6019 = vld [vmem:[#allocation8 + $0x528] sm:$0xff]
    %v6020 = vld [vmem:[#allocation8 + $0x530] sm:$0xff]
    %v6021 = vld [vmem:[#allocation8 + $0x538] sm:$0xff]
    %v6022 = vld [vmem:[#allocation8 + $0x540] sm:$0xff]
    %v6023 = vld [vmem:[#allocation8 + $0x548] sm:$0xff]
    %v6024 = vld [vmem:[#allocation8 + $0x550] sm:$0xff]
    %v6025 = vld [vmem:[#allocation8 + $0x558] sm:$0xff]
    %v6026 = vld [vmem:[#allocation8 + $0x560] sm:$0xff]
    %v6027 = vld [vmem:[#allocation8 + $0x568] sm:$0xff]
    %v6028 = vld [vmem:[#allocation8 + $0x570] sm:$0xff]
    %v6029 = vld [vmem:[#allocation8 + $0x578] sm:$0xff]
    %v6030 = vld [vmem:[#allocation8 + $0x580] sm:$0xff]
    %v6031 = vld [vmem:[#allocation8 + $0x588] sm:$0xff]
    %v6032 = vld [vmem:[#allocation8 + $0x590] sm:$0xff]
    %v6033 = vld [vmem:[#allocation8 + $0x598] sm:$0xff]
    %v6034 = vld [vmem:[#allocation8 + $0x5a0] sm:$0xff]
    %v6035 = vld [vmem:[#allocation8 + $0x5a8] sm:$0xff]
    %v6036 = vld [vmem:[#allocation8 + $0x5b0] sm:$0xff]
    %v6037 = vld [vmem:[#allocation8 + $0x5b8] sm:$0xff]
    %v6038 = vld [vmem:[#allocation8 + $0x5c0] sm:$0xff]
    %v6039 = vld [vmem:[#allocation8 + $0x5c8] sm:$0xff]
    %v6040 = vld [vmem:[#allocation8 + $0x5d0] sm:$0xff]
    %v6041 = vld [vmem:[#allocation8 + $0x5d8] sm:$0xff]
    %v6042 = vld [vmem:[#allocation8 + $0x5e0] sm:$0xff]
    %v6043 = vld [vmem:[#allocation8 + $0x5e8] sm:$0xff]
    %v6044 = vld [vmem:[#allocation8 + $0x5f0] sm:$0xff]
    %v6045 = vld [vmem:[#allocation8 + $0x5f8] sm:$0xff]
    %v6046 = vld [vmem:[#allocation8 + $0x600] sm:$0xff]
    %v6047 = vld [vmem:[#allocation8 + $0x608] sm:$0xff]
    %v6048 = vld [vmem:[#allocation8 + $0x610] sm:$0xff]
    %v6049 = vld [vmem:[#allocation8 + $0x618] sm:$0xff]
    %v6050 = vld [vmem:[#allocation8 + $0x620] sm:$0xff]
    %v6051 = vld [vmem:[#allocation8 + $0x628] sm:$0xff]
    %v6052 = vld [vmem:[#allocation8 + $0x630] sm:$0xff]
    %v6053 = vld [vmem:[#allocation8 + $0x638] sm:$0xff]
    %v6054 = vld [vmem:[#allocation8 + $0x640] sm:$0xff]
    %v6055 = vld [vmem:[#allocation8 + $0x648] sm:$0xff]
    %v6056 = vld [vmem:[#allocation8 + $0x650] sm:$0xff]
    %v6057 = vld [vmem:[#allocation8 + $0x658] sm:$0xff]
    %v6058 = vld [vmem:[#allocation8 + $0x660] sm:$0xff]
    %v6059 = vld [vmem:[#allocation8 + $0x668] sm:$0xff]
    %v6060 = vld [vmem:[#allocation8 + $0x670] sm:$0xff]
    %v6061 = vld [vmem:[#allocation8 + $0x678] sm:$0xff]
    %v6062 = vld [vmem:[#allocation8 + $0x680] sm:$0xff]
    %v6063 = vld [vmem:[#allocation8 + $0x688] sm:$0xff]
    %v6064 = vld [vmem:[#allocation8 + $0x690] sm:$0xff]
    %v6065 = vld [vmem:[#allocation8 + $0x698] sm:$0xff]
    %v6066 = vld [vmem:[#allocation8 + $0x6a0] sm:$0xff]
    %v6067 = vld [vmem:[#allocation8 + $0x6a8] sm:$0xff]
    %v6068 = vld [vmem:[#allocation8 + $0x6b0] sm:$0xff]
    %v6069 = vld [vmem:[#allocation8 + $0x6b8] sm:$0xff]
    %v6070 = vld [vmem:[#allocation8 + $0x6c0] sm:$0xff]
    %v6071 = vld [vmem:[#allocation8 + $0x6c8] sm:$0xff]
    %v6072 = vld [vmem:[#allocation8 + $0x6d0] sm:$0xff]
    %v6073 = vld [vmem:[#allocation8 + $0x6d8] sm:$0xff]
    %v6074 = vld [vmem:[#allocation8 + $0x6e0] sm:$0xff]
    %v6075 = vld [vmem:[#allocation8 + $0x6e8] sm:$0xff]
    %v6076 = vld [vmem:[#allocation8 + $0x6f0] sm:$0xff]
    %v6077 = vld [vmem:[#allocation8 + $0x6f8] sm:$0xff]
    %v6078 = vld [vmem:[#allocation8 + $0x700] sm:$0xff]
    %v6079 = vld [vmem:[#allocation8 + $0x708] sm:$0xff]
    %v6080 = vld [vmem:[#allocation8 + $0x710] sm:$0xff]
    %v6081 = vld [vmem:[#allocation8 + $0x718] sm:$0xff]
    %v6082 = vld [vmem:[#allocation8 + $0x720] sm:$0xff]
    %v6083 = vld [vmem:[#allocation8 + $0x728] sm:$0xff]
    %v6084 = vld [vmem:[#allocation8 + $0x730] sm:$0xff]
    %v6085 = vld [vmem:[#allocation8 + $0x738] sm:$0xff]
    %v6086 = vld [vmem:[#allocation8 + $0x740] sm:$0xff]
    %v6087 = vld [vmem:[#allocation8 + $0x748] sm:$0xff]
    %v6088 = vld [vmem:[#allocation8 + $0x750] sm:$0xff]
    %v6089 = vld [vmem:[#allocation8 + $0x758] sm:$0xff]
    %v6090 = vld [vmem:[#allocation8 + $0x760] sm:$0xff]
    %v6091 = vld [vmem:[#allocation8 + $0x768] sm:$0xff]
    %v6092 = vld [vmem:[#allocation8 + $0x770] sm:$0xff]
    %v6093 = vld [vmem:[#allocation8 + $0x778] sm:$0xff]
    %v6094 = vld [vmem:[#allocation8 + $0x780] sm:$0xff]
    %v6095 = vld [vmem:[#allocation8 + $0x788] sm:$0xff]
    %v6096 = vld [vmem:[#allocation8 + $0x790] sm:$0xff]
    %v6097 = vld [vmem:[#allocation8 + $0x798] sm:$0xff]
    %v6098 = vld [vmem:[#allocation8 + $0x7a0] sm:$0xff]
    %v6099 = vld [vmem:[#allocation8 + $0x7a8] sm:$0xff]
    %v6100 = vld [vmem:[#allocation8 + $0x7b0] sm:$0xff]
    %v6101 = vld [vmem:[#allocation8 + $0x7b8] sm:$0xff]
    %v6102 = vld [vmem:[#allocation8 + $0x7c0] sm:$0xff]
    %v6103 = vld [vmem:[#allocation8 + $0x7c8] sm:$0xff]
    %v6104 = vld [vmem:[#allocation8 + $0x7d0] sm:$0xff]
    %v6105 = vld [vmem:[#allocation8 + $0x7d8] sm:$0xff]
    %v6106 = vld [vmem:[#allocation8 + $0x7e0] sm:$0xff]
    %v6107 = vld [vmem:[#allocation8 + $0x7e8] sm:$0xff]
    %v6108 = vld [vmem:[#allocation8 + $0x7f0] sm:$0xff]
    %v6109 = vld [vmem:[#allocation8 + $0x7f8] sm:$0xff]
    %v6110 = vld [vmem:[#allocation10] sm:$0xf]
    %v6112 = vperm.slane %v6110, 0
    %v6113 = vperm.slane %v6110, 1
    %v6114 = vperm.slane %v6110, 2
    %v6115 = vperm.slane %v6110, 3
    %v6376 = vunpack.c.l.b16 %v5854
    %v6377 = vunpack.c.h.b16 %v5854
    %v6378 = vunpack.c.l.b16 %v5855
    %v6379 = vunpack.c.h.b16 %v5855
    %v6380 = vunpack.c.l.b16 %v5856
    %v6381 = vunpack.c.h.b16 %v5856
    %v6382 = vunpack.c.l.b16 %v5857
    %v6383 = vunpack.c.h.b16 %v5857
    %v6384 = vunpack.c.l.b16 %v5858
    %v6385 = vunpack.c.h.b16 %v5858
    %v6386 = vunpack.c.l.b16 %v5859
    %v6387 = vunpack.c.h.b16 %v5859
    %v6388 = vunpack.c.l.b16 %v5860
    %v6389 = vunpack.c.h.b16 %v5860
    %v6390 = vunpack.c.l.b16 %v5861
    %v6391 = vunpack.c.h.b16 %v5861
    %v6392 = vunpack.c.l.b16 %v5862
    %v6393 = vunpack.c.h.b16 %v5862
    %v6394 = vunpack.c.l.b16 %v5863
    %v6395 = vunpack.c.h.b16 %v5863
    %v6396 = vunpack.c.l.b16 %v5864
    %v6397 = vunpack.c.h.b16 %v5864
    %v6398 = vunpack.c.l.b16 %v5865
    %v6399 = vunpack.c.h.b16 %v5865
    %v6400 = vunpack.c.l.b16 %v5866
    %v6401 = vunpack.c.h.b16 %v5866
    %v6402 = vunpack.c.l.b16 %v5867
    %v6403 = vunpack.c.h.b16 %v5867
    %v6404 = vunpack.c.l.b16 %v5868
    %v6405 = vunpack.c.h.b16 %v5868
    %v6406 = vunpack.c.l.b16 %v5869
    %v6407 = vunpack.c.h.b16 %v5869
    %v6408 = vunpack.c.l.b16 %v5870
    %v6409 = vunpack.c.h.b16 %v5870
    %v6410 = vunpack.c.l.b16 %v5871
    %v6411 = vunpack.c.h.b16 %v5871
    %v6412 = vunpack.c.l.b16 %v5872
    %v6413 = vunpack.c.h.b16 %v5872
    %v6414 = vunpack.c.l.b16 %v5873
    %v6415 = vunpack.c.h.b16 %v5873
    %v6416 = vunpack.c.l.b16 %v5874
    %v6417 = vunpack.c.h.b16 %v5874
    %v6418 = vunpack.c.l.b16 %v5875
    %v6419 = vunpack.c.h.b16 %v5875
    %v6420 = vunpack.c.l.b16 %v5876
    %v6421 = vunpack.c.h.b16 %v5876
    %v6422 = vunpack.c.l.b16 %v5877
    %v6423 = vunpack.c.h.b16 %v5877
    %v6424 = vunpack.c.l.b16 %v5878
    %v6425 = vunpack.c.h.b16 %v5878
    %v6426 = vunpack.c.l.b16 %v5879
    %v6427 = vunpack.c.h.b16 %v5879
    %v6428 = vunpack.c.l.b16 %v5880
    %v6429 = vunpack.c.h.b16 %v5880
    %v6430 = vunpack.c.l.b16 %v5881
    %v6431 = vunpack.c.h.b16 %v5881
    %v6432 = vunpack.c.l.b16 %v5882
    %v6433 = vunpack.c.h.b16 %v5882
    %v6434 = vunpack.c.l.b16 %v5883
    %v6435 = vunpack.c.h.b16 %v5883
    %v6436 = vunpack.c.l.b16 %v5884
    %v6437 = vunpack.c.h.b16 %v5884
    %v6438 = vunpack.c.l.b16 %v5885
    %v6439 = vunpack.c.h.b16 %v5885
    %v6440 = vunpack.c.l.b16 %v5886
    %v6441 = vunpack.c.h.b16 %v5886
    %v6442 = vunpack.c.l.b16 %v5887
    %v6443 = vunpack.c.h.b16 %v5887
    %v6444 = vunpack.c.l.b16 %v5888
    %v6445 = vunpack.c.h.b16 %v5888
    %v6446 = vunpack.c.l.b16 %v5889
    %v6447 = vunpack.c.h.b16 %v5889
    %v6448 = vunpack.c.l.b16 %v5890
    %v6449 = vunpack.c.h.b16 %v5890
    %v6450 = vunpack.c.l.b16 %v5891
    %v6451 = vunpack.c.h.b16 %v5891
    %v6452 = vunpack.c.l.b16 %v5892
    %v6453 = vunpack.c.h.b16 %v5892
    %v6454 = vunpack.c.l.b16 %v5893
    %v6455 = vunpack.c.h.b16 %v5893
    %v6456 = vunpack.c.l.b16 %v5894
    %v6457 = vunpack.c.h.b16 %v5894
    %v6458 = vunpack.c.l.b16 %v5895
    %v6459 = vunpack.c.h.b16 %v5895
    %v6460 = vunpack.c.l.b16 %v5896
    %v6461 = vunpack.c.h.b16 %v5896
    %v6462 = vunpack.c.l.b16 %v5897
    %v6463 = vunpack.c.h.b16 %v5897
    %v6464 = vunpack.c.l.b16 %v5898
    %v6465 = vunpack.c.h.b16 %v5898
    %v6466 = vunpack.c.l.b16 %v5899
    %v6467 = vunpack.c.h.b16 %v5899
    %v6468 = vunpack.c.l.b16 %v5900
    %v6469 = vunpack.c.h.b16 %v5900
    %v6470 = vunpack.c.l.b16 %v5901
    %v6471 = vunpack.c.h.b16 %v5901
    %v6472 = vunpack.c.l.b16 %v5902
    %v6473 = vunpack.c.h.b16 %v5902
    %v6474 = vunpack.c.l.b16 %v5903
    %v6475 = vunpack.c.h.b16 %v5903
    %v6476 = vunpack.c.l.b16 %v5904
    %v6477 = vunpack.c.h.b16 %v5904
    %v6478 = vunpack.c.l.b16 %v5905
    %v6479 = vunpack.c.h.b16 %v5905
    %v6480 = vunpack.c.l.b16 %v5906
    %v6481 = vunpack.c.h.b16 %v5906
    %v6482 = vunpack.c.l.b16 %v5907
    %v6483 = vunpack.c.h.b16 %v5907
    %v6484 = vunpack.c.l.b16 %v5908
    %v6485 = vunpack.c.h.b16 %v5908
    %v6486 = vunpack.c.l.b16 %v5909
    %v6487 = vunpack.c.h.b16 %v5909
    %v6488 = vunpack.c.l.b16 %v5910
    %v6489 = vunpack.c.h.b16 %v5910
    %v6490 = vunpack.c.l.b16 %v5911
    %v6491 = vunpack.c.h.b16 %v5911
    %v6492 = vunpack.c.l.b16 %v5912
    %v6493 = vunpack.c.h.b16 %v5912
    %v6494 = vunpack.c.l.b16 %v5913
    %v6495 = vunpack.c.h.b16 %v5913
    %v6496 = vunpack.c.l.b16 %v5914
    %v6497 = vunpack.c.h.b16 %v5914
    %v6498 = vunpack.c.l.b16 %v5915
    %v6499 = vunpack.c.h.b16 %v5915
    %v6500 = vunpack.c.l.b16 %v5916
    %v6501 = vunpack.c.h.b16 %v5916
    %v6502 = vunpack.c.l.b16 %v5917
    %v6503 = vunpack.c.h.b16 %v5917
    %v6504 = vunpack.c.l.b16 %v5918
    %v6505 = vunpack.c.h.b16 %v5918
    %v6506 = vunpack.c.l.b16 %v5919
    %v6507 = vunpack.c.h.b16 %v5919
    %v6508 = vunpack.c.l.b16 %v5920
    %v6509 = vunpack.c.h.b16 %v5920
    %v6510 = vunpack.c.l.b16 %v5921
    %v6511 = vunpack.c.h.b16 %v5921
    %v6512 = vunpack.c.l.b16 %v5922
    %v6513 = vunpack.c.h.b16 %v5922
    %v6514 = vunpack.c.l.b16 %v5923
    %v6515 = vunpack.c.h.b16 %v5923
    %v6516 = vunpack.c.l.b16 %v5924
    %v6517 = vunpack.c.h.b16 %v5924
    %v6518 = vunpack.c.l.b16 %v5925
    %v6519 = vunpack.c.h.b16 %v5925
    %v6520 = vunpack.c.l.b16 %v5926
    %v6521 = vunpack.c.h.b16 %v5926
    %v6522 = vunpack.c.l.b16 %v5927
    %v6523 = vunpack.c.h.b16 %v5927
    %v6524 = vunpack.c.l.b16 %v5928
    %v6525 = vunpack.c.h.b16 %v5928
    %v6526 = vunpack.c.l.b16 %v5929
    %v6527 = vunpack.c.h.b16 %v5929
    %v6528 = vunpack.c.l.b16 %v5930
    %v6529 = vunpack.c.h.b16 %v5930
    %v6530 = vunpack.c.l.b16 %v5931
    %v6531 = vunpack.c.h.b16 %v5931
    %v6532 = vunpack.c.l.b16 %v5932
    %v6533 = vunpack.c.h.b16 %v5932
    %v6534 = vunpack.c.l.b16 %v5933
    %v6535 = vunpack.c.h.b16 %v5933
    %v6536 = vunpack.c.l.b16 %v5934
    %v6537 = vunpack.c.h.b16 %v5934
    %v6538 = vunpack.c.l.b16 %v5935
    %v6539 = vunpack.c.h.b16 %v5935
    %v6540 = vunpack.c.l.b16 %v5936
    %v6541 = vunpack.c.h.b16 %v5936
    %v6542 = vunpack.c.l.b16 %v5937
    %v6543 = vunpack.c.h.b16 %v5937
    %v6544 = vunpack.c.l.b16 %v5938
    %v6545 = vunpack.c.h.b16 %v5938
    %v6546 = vunpack.c.l.b16 %v5939
    %v6547 = vunpack.c.h.b16 %v5939
    %v6548 = vunpack.c.l.b16 %v5940
    %v6549 = vunpack.c.h.b16 %v5940
    %v6550 = vunpack.c.l.b16 %v5941
    %v6551 = vunpack.c.h.b16 %v5941
    %v6552 = vunpack.c.l.b16 %v5942
    %v6553 = vunpack.c.h.b16 %v5942
    %v6554 = vunpack.c.l.b16 %v5943
    %v6555 = vunpack.c.h.b16 %v5943
    %v6556 = vunpack.c.l.b16 %v5944
    %v6557 = vunpack.c.h.b16 %v5944
    %v6558 = vunpack.c.l.b16 %v5945
    %v6559 = vunpack.c.h.b16 %v5945
    %v6560 = vunpack.c.l.b16 %v5946
    %v6561 = vunpack.c.h.b16 %v5946
    %v6562 = vunpack.c.l.b16 %v5947
    %v6563 = vunpack.c.h.b16 %v5947
    %v6564 = vunpack.c.l.b16 %v5948
    %v6565 = vunpack.c.h.b16 %v5948
    %v6566 = vunpack.c.l.b16 %v5949
    %v6567 = vunpack.c.h.b16 %v5949
    %v6568 = vunpack.c.l.b16 %v5950
    %v6569 = vunpack.c.h.b16 %v5950
    %v6570 = vunpack.c.l.b16 %v5951
    %v6571 = vunpack.c.h.b16 %v5951
    %v6572 = vunpack.c.l.b16 %v5952
    %v6573 = vunpack.c.h.b16 %v5952
    %v6574 = vunpack.c.l.b16 %v5953
    %v6575 = vunpack.c.h.b16 %v5953
    %v6576 = vunpack.c.l.b16 %v5954
    %v6577 = vunpack.c.h.b16 %v5954
    %v6578 = vunpack.c.l.b16 %v5955
    %v6579 = vunpack.c.h.b16 %v5955
    %v6580 = vunpack.c.l.b16 %v5956
    %v6581 = vunpack.c.h.b16 %v5956
    %v6582 = vunpack.c.l.b16 %v5957
    %v6583 = vunpack.c.h.b16 %v5957
    %v6584 = vunpack.c.l.b16 %v5958
    %v6585 = vunpack.c.h.b16 %v5958
    %v6586 = vunpack.c.l.b16 %v5959
    %v6587 = vunpack.c.h.b16 %v5959
    %v6588 = vunpack.c.l.b16 %v5960
    %v6589 = vunpack.c.h.b16 %v5960
    %v6590 = vunpack.c.l.b16 %v5961
    %v6591 = vunpack.c.h.b16 %v5961
    %v6592 = vunpack.c.l.b16 %v5962
    %v6593 = vunpack.c.h.b16 %v5962
    %v6594 = vunpack.c.l.b16 %v5963
    %v6595 = vunpack.c.h.b16 %v5963
    %v6596 = vunpack.c.l.b16 %v5964
    %v6597 = vunpack.c.h.b16 %v5964
    %v6598 = vunpack.c.l.b16 %v5965
    %v6599 = vunpack.c.h.b16 %v5965
    %v6600 = vunpack.c.l.b16 %v5966
    %v6601 = vunpack.c.h.b16 %v5966
    %v6602 = vunpack.c.l.b16 %v5967
    %v6603 = vunpack.c.h.b16 %v5967
    %v6604 = vunpack.c.l.b16 %v5968
    %v6605 = vunpack.c.h.b16 %v5968
    %v6606 = vunpack.c.l.b16 %v5969
    %v6607 = vunpack.c.h.b16 %v5969
    %v6608 = vunpack.c.l.b16 %v5970
    %v6609 = vunpack.c.h.b16 %v5970
    %v6610 = vunpack.c.l.b16 %v5971
    %v6611 = vunpack.c.h.b16 %v5971
    %v6612 = vunpack.c.l.b16 %v5972
    %v6613 = vunpack.c.h.b16 %v5972
    %v6614 = vunpack.c.l.b16 %v5973
    %v6615 = vunpack.c.h.b16 %v5973
    %v6616 = vunpack.c.l.b16 %v5974
    %v6617 = vunpack.c.h.b16 %v5974
    %v6618 = vunpack.c.l.b16 %v5975
    %v6619 = vunpack.c.h.b16 %v5975
    %v6620 = vunpack.c.l.b16 %v5976
    %v6621 = vunpack.c.h.b16 %v5976
    %v6622 = vunpack.c.l.b16 %v5977
    %v6623 = vunpack.c.h.b16 %v5977
    %v6624 = vunpack.c.l.b16 %v5978
    %v6625 = vunpack.c.h.b16 %v5978
    %v6626 = vunpack.c.l.b16 %v5979
    %v6627 = vunpack.c.h.b16 %v5979
    %v6628 = vunpack.c.l.b16 %v5980
    %v6629 = vunpack.c.h.b16 %v5980
    %v6630 = vunpack.c.l.b16 %v5981
    %v6631 = vunpack.c.h.b16 %v5981
    %v6632 = vunpack.c.l.b16 %v5982
    %v6633 = vunpack.c.h.b16 %v5982
    %v6634 = vunpack.c.l.b16 %v5983
    %v6635 = vunpack.c.h.b16 %v5983
    %v6636 = vunpack.c.l.b16 %v5984
    %v6637 = vunpack.c.h.b16 %v5984
    %v6638 = vunpack.c.l.b16 %v5985
    %v6639 = vunpack.c.h.b16 %v5985
    %v6640 = vunpack.c.l.b16 %v5986
    %v6641 = vunpack.c.h.b16 %v5986
    %v6642 = vunpack.c.l.b16 %v5987
    %v6643 = vunpack.c.h.b16 %v5987
    %v6644 = vunpack.c.l.b16 %v5988
    %v6645 = vunpack.c.h.b16 %v5988
    %v6646 = vunpack.c.l.b16 %v5989
    %v6647 = vunpack.c.h.b16 %v5989
    %v6648 = vunpack.c.l.b16 %v5990
    %v6649 = vunpack.c.h.b16 %v5990
    %v6650 = vunpack.c.l.b16 %v5991
    %v6651 = vunpack.c.h.b16 %v5991
    %v6652 = vunpack.c.l.b16 %v5992
    %v6653 = vunpack.c.h.b16 %v5992
    %v6654 = vunpack.c.l.b16 %v5993
    %v6655 = vunpack.c.h.b16 %v5993
    %v6656 = vunpack.c.l.b16 %v5994
    %v6657 = vunpack.c.h.b16 %v5994
    %v6658 = vunpack.c.l.b16 %v5995
    %v6659 = vunpack.c.h.b16 %v5995
    %v6660 = vunpack.c.l.b16 %v5996
    %v6661 = vunpack.c.h.b16 %v5996
    %v6662 = vunpack.c.l.b16 %v5997
    %v6663 = vunpack.c.h.b16 %v5997
    %v6664 = vunpack.c.l.b16 %v5998
    %v6665 = vunpack.c.h.b16 %v5998
    %v6666 = vunpack.c.l.b16 %v5999
    %v6667 = vunpack.c.h.b16 %v5999
    %v6668 = vunpack.c.l.b16 %v6000
    %v6669 = vunpack.c.h.b16 %v6000
    %v6670 = vunpack.c.l.b16 %v6001
    %v6671 = vunpack.c.h.b16 %v6001
    %v6672 = vunpack.c.l.b16 %v6002
    %v6673 = vunpack.c.h.b16 %v6002
    %v6674 = vunpack.c.l.b16 %v6003
    %v6675 = vunpack.c.h.b16 %v6003
    %v6676 = vunpack.c.l.b16 %v6004
    %v6677 = vunpack.c.h.b16 %v6004
    %v6678 = vunpack.c.l.b16 %v6005
    %v6679 = vunpack.c.h.b16 %v6005
    %v6680 = vunpack.c.l.b16 %v6006
    %v6681 = vunpack.c.h.b16 %v6006
    %v6682 = vunpack.c.l.b16 %v6007
    %v6683 = vunpack.c.h.b16 %v6007
    %v6684 = vunpack.c.l.b16 %v6008
    %v6685 = vunpack.c.h.b16 %v6008
    %v6686 = vunpack.c.l.b16 %v6009
    %v6687 = vunpack.c.h.b16 %v6009
    %v6688 = vunpack.c.l.b16 %v6010
    %v6689 = vunpack.c.h.b16 %v6010
    %v6690 = vunpack.c.l.b16 %v6011
    %v6691 = vunpack.c.h.b16 %v6011
    %v6692 = vunpack.c.l.b16 %v6012
    %v6693 = vunpack.c.h.b16 %v6012
    %v6694 = vunpack.c.l.b16 %v6013
    %v6695 = vunpack.c.h.b16 %v6013
    %v6696 = vunpack.c.l.b16 %v6014
    %v6697 = vunpack.c.h.b16 %v6014
    %v6698 = vunpack.c.l.b16 %v6015
    %v6699 = vunpack.c.h.b16 %v6015
    %v6700 = vunpack.c.l.b16 %v6016
    %v6701 = vunpack.c.h.b16 %v6016
    %v6702 = vunpack.c.l.b16 %v6017
    %v6703 = vunpack.c.h.b16 %v6017
    %v6704 = vunpack.c.l.b16 %v6018
    %v6705 = vunpack.c.h.b16 %v6018
    %v6706 = vunpack.c.l.b16 %v6019
    %v6707 = vunpack.c.h.b16 %v6019
    %v6708 = vunpack.c.l.b16 %v6020
    %v6709 = vunpack.c.h.b16 %v6020
    %v6710 = vunpack.c.l.b16 %v6021
    %v6711 = vunpack.c.h.b16 %v6021
    %v6712 = vunpack.c.l.b16 %v6022
    %v6713 = vunpack.c.h.b16 %v6022
    %v6714 = vunpack.c.l.b16 %v6023
    %v6715 = vunpack.c.h.b16 %v6023
    %v6716 = vunpack.c.l.b16 %v6024
    %v6717 = vunpack.c.h.b16 %v6024
    %v6718 = vunpack.c.l.b16 %v6025
    %v6719 = vunpack.c.h.b16 %v6025
    %v6720 = vunpack.c.l.b16 %v6026
    %v6721 = vunpack.c.h.b16 %v6026
    %v6722 = vunpack.c.l.b16 %v6027
    %v6723 = vunpack.c.h.b16 %v6027
    %v6724 = vunpack.c.l.b16 %v6028
    %v6725 = vunpack.c.h.b16 %v6028
    %v6726 = vunpack.c.l.b16 %v6029
    %v6727 = vunpack.c.h.b16 %v6029
    %v6728 = vunpack.c.l.b16 %v6030
    %v6729 = vunpack.c.h.b16 %v6030
    %v6730 = vunpack.c.l.b16 %v6031
    %v6731 = vunpack.c.h.b16 %v6031
    %v6732 = vunpack.c.l.b16 %v6032
    %v6733 = vunpack.c.h.b16 %v6032
    %v6734 = vunpack.c.l.b16 %v6033
    %v6735 = vunpack.c.h.b16 %v6033
    %v6736 = vunpack.c.l.b16 %v6034
    %v6737 = vunpack.c.h.b16 %v6034
    %v6738 = vunpack.c.l.b16 %v6035
    %v6739 = vunpack.c.h.b16 %v6035
    %v6740 = vunpack.c.l.b16 %v6036
    %v6741 = vunpack.c.h.b16 %v6036
    %v6742 = vunpack.c.l.b16 %v6037
    %v6743 = vunpack.c.h.b16 %v6037
    %v6744 = vunpack.c.l.b16 %v6038
    %v6745 = vunpack.c.h.b16 %v6038
    %v6746 = vunpack.c.l.b16 %v6039
    %v6747 = vunpack.c.h.b16 %v6039
    %v6748 = vunpack.c.l.b16 %v6040
    %v6749 = vunpack.c.h.b16 %v6040
    %v6750 = vunpack.c.l.b16 %v6041
    %v6751 = vunpack.c.h.b16 %v6041
    %v6752 = vunpack.c.l.b16 %v6042
    %v6753 = vunpack.c.h.b16 %v6042
    %v6754 = vunpack.c.l.b16 %v6043
    %v6755 = vunpack.c.h.b16 %v6043
    %v6756 = vunpack.c.l.b16 %v6044
    %v6757 = vunpack.c.h.b16 %v6044
    %v6758 = vunpack.c.l.b16 %v6045
    %v6759 = vunpack.c.h.b16 %v6045
    %v6760 = vunpack.c.l.b16 %v6046
    %v6761 = vunpack.c.h.b16 %v6046
    %v6762 = vunpack.c.l.b16 %v6047
    %v6763 = vunpack.c.h.b16 %v6047
    %v6764 = vunpack.c.l.b16 %v6048
    %v6765 = vunpack.c.h.b16 %v6048
    %v6766 = vunpack.c.l.b16 %v6049
    %v6767 = vunpack.c.h.b16 %v6049
    %v6768 = vunpack.c.l.b16 %v6050
    %v6769 = vunpack.c.h.b16 %v6050
    %v6770 = vunpack.c.l.b16 %v6051
    %v6771 = vunpack.c.h.b16 %v6051
    %v6772 = vunpack.c.l.b16 %v6052
    %v6773 = vunpack.c.h.b16 %v6052
    %v6774 = vunpack.c.l.b16 %v6053
    %v6775 = vunpack.c.h.b16 %v6053
    %v6776 = vunpack.c.l.b16 %v6054
    %v6777 = vunpack.c.h.b16 %v6054
    %v6778 = vunpack.c.l.b16 %v6055
    %v6779 = vunpack.c.h.b16 %v6055
    %v6780 = vunpack.c.l.b16 %v6056
    %v6781 = vunpack.c.h.b16 %v6056
    %v6782 = vunpack.c.l.b16 %v6057
    %v6783 = vunpack.c.h.b16 %v6057
    %v6784 = vunpack.c.l.b16 %v6058
    %v6785 = vunpack.c.h.b16 %v6058
    %v6786 = vunpack.c.l.b16 %v6059
    %v6787 = vunpack.c.h.b16 %v6059
    %v6788 = vunpack.c.l.b16 %v6060
    %v6789 = vunpack.c.h.b16 %v6060
    %v6790 = vunpack.c.l.b16 %v6061
    %v6791 = vunpack.c.h.b16 %v6061
    %v6792 = vunpack.c.l.b16 %v6062
    %v6793 = vunpack.c.h.b16 %v6062
    %v6794 = vunpack.c.l.b16 %v6063
    %v6795 = vunpack.c.h.b16 %v6063
    %v6796 = vunpack.c.l.b16 %v6064
    %v6797 = vunpack.c.h.b16 %v6064
    %v6798 = vunpack.c.l.b16 %v6065
    %v6799 = vunpack.c.h.b16 %v6065
    %v6800 = vunpack.c.l.b16 %v6066
    %v6801 = vunpack.c.h.b16 %v6066
    %v6802 = vunpack.c.l.b16 %v6067
    %v6803 = vunpack.c.h.b16 %v6067
    %v6804 = vunpack.c.l.b16 %v6068
    %v6805 = vunpack.c.h.b16 %v6068
    %v6806 = vunpack.c.l.b16 %v6069
    %v6807 = vunpack.c.h.b16 %v6069
    %v6808 = vunpack.c.l.b16 %v6070
    %v6809 = vunpack.c.h.b16 %v6070
    %v6810 = vunpack.c.l.b16 %v6071
    %v6811 = vunpack.c.h.b16 %v6071
    %v6812 = vunpack.c.l.b16 %v6072
    %v6813 = vunpack.c.h.b16 %v6072
    %v6814 = vunpack.c.l.b16 %v6073
    %v6815 = vunpack.c.h.b16 %v6073
    %v6816 = vunpack.c.l.b16 %v6074
    %v6817 = vunpack.c.h.b16 %v6074
    %v6818 = vunpack.c.l.b16 %v6075
    %v6819 = vunpack.c.h.b16 %v6075
    %v6820 = vunpack.c.l.b16 %v6076
    %v6821 = vunpack.c.h.b16 %v6076
    %v6822 = vunpack.c.l.b16 %v6077
    %v6823 = vunpack.c.h.b16 %v6077
    %v6824 = vunpack.c.l.b16 %v6078
    %v6825 = vunpack.c.h.b16 %v6078
    %v6826 = vunpack.c.l.b16 %v6079
    %v6827 = vunpack.c.h.b16 %v6079
    %v6828 = vunpack.c.l.b16 %v6080
    %v6829 = vunpack.c.h.b16 %v6080
    %v6830 = vunpack.c.l.b16 %v6081
    %v6831 = vunpack.c.h.b16 %v6081
    %v6832 = vunpack.c.l.b16 %v6082
    %v6833 = vunpack.c.h.b16 %v6082
    %v6834 = vunpack.c.l.b16 %v6083
    %v6835 = vunpack.c.h.b16 %v6083
    %v6836 = vunpack.c.l.b16 %v6084
    %v6837 = vunpack.c.h.b16 %v6084
    %v6838 = vunpack.c.l.b16 %v6085
    %v6839 = vunpack.c.h.b16 %v6085
    %v6840 = vunpack.c.l.b16 %v6086
    %v6841 = vunpack.c.h.b16 %v6086
    %v6842 = vunpack.c.l.b16 %v6087
    %v6843 = vunpack.c.h.b16 %v6087
    %v6844 = vunpack.c.l.b16 %v6088
    %v6845 = vunpack.c.h.b16 %v6088
    %v6846 = vunpack.c.l.b16 %v6089
    %v6847 = vunpack.c.h.b16 %v6089
    %v6848 = vunpack.c.l.b16 %v6090
    %v6849 = vunpack.c.h.b16 %v6090
    %v6850 = vunpack.c.l.b16 %v6091
    %v6851 = vunpack.c.h.b16 %v6091
    %v6852 = vunpack.c.l.b16 %v6092
    %v6853 = vunpack.c.h.b16 %v6092
    %v6854 = vunpack.c.l.b16 %v6093
    %v6855 = vunpack.c.h.b16 %v6093
    %v6856 = vunpack.c.l.b16 %v6094
    %v6857 = vunpack.c.h.b16 %v6094
    %v6858 = vunpack.c.l.b16 %v6095
    %v6859 = vunpack.c.h.b16 %v6095
    %v6860 = vunpack.c.l.b16 %v6096
    %v6861 = vunpack.c.h.b16 %v6096
    %v6862 = vunpack.c.l.b16 %v6097
    %v6863 = vunpack.c.h.b16 %v6097
    %v6864 = vunpack.c.l.b16 %v6098
    %v6865 = vunpack.c.h.b16 %v6098
    %v6866 = vunpack.c.l.b16 %v6099
    %v6867 = vunpack.c.h.b16 %v6099
    %v6868 = vunpack.c.l.b16 %v6100
    %v6869 = vunpack.c.h.b16 %v6100
    %v6870 = vunpack.c.l.b16 %v6101
    %v6871 = vunpack.c.h.b16 %v6101
    %v6872 = vunpack.c.l.b16 %v6102
    %v6873 = vunpack.c.h.b16 %v6102
    %v6874 = vunpack.c.l.b16 %v6103
    %v6875 = vunpack.c.h.b16 %v6103
    %v6876 = vunpack.c.l.b16 %v6104
    %v6877 = vunpack.c.h.b16 %v6104
    %v6878 = vunpack.c.l.b16 %v6105
    %v6879 = vunpack.c.h.b16 %v6105
    %v6880 = vunpack.c.l.b16 %v6106
    %v6881 = vunpack.c.h.b16 %v6106
    %v6882 = vunpack.c.l.b16 %v6107
    %v6883 = vunpack.c.h.b16 %v6107
    %v6884 = vunpack.c.l.b16 %v6108
    %v6885 = vunpack.c.h.b16 %v6108
    %v6886 = vunpack.c.l.b16 %v6109
    %v6887 = vunpack.c.h.b16 %v6109
    %v6888 = vpack.c.b16 %v6380, %v6376
    %v6889 = vpack.c.b16 %v6381, %v6377
    %v6890 = vpack.c.b16 %v6382, %v6378
    %v6891 = vpack.c.b16 %v6383, %v6379
    %v6892 = vpack.c.b16 %v6388, %v6384
    %v6893 = vpack.c.b16 %v6389, %v6385
    %v6894 = vpack.c.b16 %v6390, %v6386
    %v6895 = vpack.c.b16 %v6391, %v6387
    %v6896 = vpack.c.b16 %v6396, %v6392
    %v6897 = vpack.c.b16 %v6397, %v6393
    %v6898 = vpack.c.b16 %v6398, %v6394
    %v6899 = vpack.c.b16 %v6399, %v6395
    %v6900 = vpack.c.b16 %v6404, %v6400
    %v6901 = vpack.c.b16 %v6405, %v6401
    %v6902 = vpack.c.b16 %v6406, %v6402
    %v6903 = vpack.c.b16 %v6407, %v6403
    %v6904 = vpack.c.b16 %v6412, %v6408
    %v6905 = vpack.c.b16 %v6413, %v6409
    %v6906 = vpack.c.b16 %v6414, %v6410
    %v6907 = vpack.c.b16 %v6415, %v6411
    %v6908 = vpack.c.b16 %v6420, %v6416
    %v6909 = vpack.c.b16 %v6421, %v6417
    %v6910 = vpack.c.b16 %v6422, %v6418
    %v6911 = vpack.c.b16 %v6423, %v6419
    %v6912 = vpack.c.b16 %v6428, %v6424
    %v6913 = vpack.c.b16 %v6429, %v6425
    %v6914 = vpack.c.b16 %v6430, %v6426
    %v6915 = vpack.c.b16 %v6431, %v6427
    %v6916 = vpack.c.b16 %v6436, %v6432
    %v6917 = vpack.c.b16 %v6437, %v6433
    %v6918 = vpack.c.b16 %v6438, %v6434
    %v6919 = vpack.c.b16 %v6439, %v6435
    %v6920 = vpack.c.b16 %v6444, %v6440
    %v6921 = vpack.c.b16 %v6445, %v6441
    %v6922 = vpack.c.b16 %v6446, %v6442
    %v6923 = vpack.c.b16 %v6447, %v6443
    %v6924 = vpack.c.b16 %v6452, %v6448
    %v6925 = vpack.c.b16 %v6453, %v6449
    %v6926 = vpack.c.b16 %v6454, %v6450
    %v6927 = vpack.c.b16 %v6455, %v6451
    %v6928 = vpack.c.b16 %v6460, %v6456
    %v6929 = vpack.c.b16 %v6461, %v6457
    %v6930 = vpack.c.b16 %v6462, %v6458
    %v6931 = vpack.c.b16 %v6463, %v6459
    %v6932 = vpack.c.b16 %v6468, %v6464
    %v6933 = vpack.c.b16 %v6469, %v6465
    %v6934 = vpack.c.b16 %v6470, %v6466
    %v6935 = vpack.c.b16 %v6471, %v6467
    %v6936 = vpack.c.b16 %v6476, %v6472
    %v6937 = vpack.c.b16 %v6477, %v6473
    %v6938 = vpack.c.b16 %v6478, %v6474
    %v6939 = vpack.c.b16 %v6479, %v6475
    %v6940 = vpack.c.b16 %v6484, %v6480
    %v6941 = vpack.c.b16 %v6485, %v6481
    %v6942 = vpack.c.b16 %v6486, %v6482
    %v6943 = vpack.c.b16 %v6487, %v6483
    %v6944 = vpack.c.b16 %v6492, %v6488
    %v6945 = vpack.c.b16 %v6493, %v6489
    %v6946 = vpack.c.b16 %v6494, %v6490
    %v6947 = vpack.c.b16 %v6495, %v6491
    %v6948 = vpack.c.b16 %v6500, %v6496
    %v6949 = vpack.c.b16 %v6501, %v6497
    %v6950 = vpack.c.b16 %v6502, %v6498
    %v6951 = vpack.c.b16 %v6503, %v6499
    %v6952 = vpack.c.b16 %v6508, %v6504
    %v6953 = vpack.c.b16 %v6509, %v6505
    %v6954 = vpack.c.b16 %v6510, %v6506
    %v6955 = vpack.c.b16 %v6511, %v6507
    %v6956 = vpack.c.b16 %v6516, %v6512
    %v6957 = vpack.c.b16 %v6517, %v6513
    %v6958 = vpack.c.b16 %v6518, %v6514
    %v6959 = vpack.c.b16 %v6519, %v6515
    %v6960 = vpack.c.b16 %v6524, %v6520
    %v6961 = vpack.c.b16 %v6525, %v6521
    %v6962 = vpack.c.b16 %v6526, %v6522
    %v6963 = vpack.c.b16 %v6527, %v6523
    %v6964 = vpack.c.b16 %v6532, %v6528
    %v6965 = vpack.c.b16 %v6533, %v6529
    %v6966 = vpack.c.b16 %v6534, %v6530
    %v6967 = vpack.c.b16 %v6535, %v6531
    %v6968 = vpack.c.b16 %v6540, %v6536
    %v6969 = vpack.c.b16 %v6541, %v6537
    %v6970 = vpack.c.b16 %v6542, %v6538
    %v6971 = vpack.c.b16 %v6543, %v6539
    %v6972 = vpack.c.b16 %v6548, %v6544
    %v6973 = vpack.c.b16 %v6549, %v6545
    %v6974 = vpack.c.b16 %v6550, %v6546
    %v6975 = vpack.c.b16 %v6551, %v6547
    %v6976 = vpack.c.b16 %v6556, %v6552
    %v6977 = vpack.c.b16 %v6557, %v6553
    %v6978 = vpack.c.b16 %v6558, %v6554
    %v6979 = vpack.c.b16 %v6559, %v6555
    %v6980 = vpack.c.b16 %v6564, %v6560
    %v6981 = vpack.c.b16 %v6565, %v6561
    %v6982 = vpack.c.b16 %v6566, %v6562
    %v6983 = vpack.c.b16 %v6567, %v6563
    %v6984 = vpack.c.b16 %v6572, %v6568
    %v6985 = vpack.c.b16 %v6573, %v6569
    %v6986 = vpack.c.b16 %v6574, %v6570
    %v6987 = vpack.c.b16 %v6575, %v6571
    %v6988 = vpack.c.b16 %v6580, %v6576
    %v6989 = vpack.c.b16 %v6581, %v6577
    %v6990 = vpack.c.b16 %v6582, %v6578
    %v6991 = vpack.c.b16 %v6583, %v6579
    %v6992 = vpack.c.b16 %v6588, %v6584
    %v6993 = vpack.c.b16 %v6589, %v6585
    %v6994 = vpack.c.b16 %v6590, %v6586
    %v6995 = vpack.c.b16 %v6591, %v6587
    %v6996 = vpack.c.b16 %v6596, %v6592
    %v6997 = vpack.c.b16 %v6597, %v6593
    %v6998 = vpack.c.b16 %v6598, %v6594
    %v6999 = vpack.c.b16 %v6599, %v6595
    %v7000 = vpack.c.b16 %v6604, %v6600
    %v7001 = vpack.c.b16 %v6605, %v6601
    %v7002 = vpack.c.b16 %v6606, %v6602
    %v7003 = vpack.c.b16 %v6607, %v6603
    %v7004 = vpack.c.b16 %v6612, %v6608
    %v7005 = vpack.c.b16 %v6613, %v6609
    %v7006 = vpack.c.b16 %v6614, %v6610
    %v7007 = vpack.c.b16 %v6615, %v6611
    %v7008 = vpack.c.b16 %v6620, %v6616
    %v7009 = vpack.c.b16 %v6621, %v6617
    %v7010 = vpack.c.b16 %v6622, %v6618
    %v7011 = vpack.c.b16 %v6623, %v6619
    %v7012 = vpack.c.b16 %v6628, %v6624
    %v7013 = vpack.c.b16 %v6629, %v6625
    %v7014 = vpack.c.b16 %v6630, %v6626
    %v7015 = vpack.c.b16 %v6631, %v6627
    %v7016 = vpack.c.b16 %v6636, %v6632
    %v7017 = vpack.c.b16 %v6637, %v6633
    %v7018 = vpack.c.b16 %v6638, %v6634
    %v7019 = vpack.c.b16 %v6639, %v6635
    %v7020 = vpack.c.b16 %v6644, %v6640
    %v7021 = vpack.c.b16 %v6645, %v6641
    %v7022 = vpack.c.b16 %v6646, %v6642
    %v7023 = vpack.c.b16 %v6647, %v6643
    %v7024 = vpack.c.b16 %v6652, %v6648
    %v7025 = vpack.c.b16 %v6653, %v6649
    %v7026 = vpack.c.b16 %v6654, %v6650
    %v7027 = vpack.c.b16 %v6655, %v6651
    %v7028 = vpack.c.b16 %v6660, %v6656
    %v7029 = vpack.c.b16 %v6661, %v6657
    %v7030 = vpack.c.b16 %v6662, %v6658
    %v7031 = vpack.c.b16 %v6663, %v6659
    %v7032 = vpack.c.b16 %v6668, %v6664
    %v7033 = vpack.c.b16 %v6669, %v6665
    %v7034 = vpack.c.b16 %v6670, %v6666
    %v7035 = vpack.c.b16 %v6671, %v6667
    %v7036 = vpack.c.b16 %v6676, %v6672
    %v7037 = vpack.c.b16 %v6677, %v6673
    %v7038 = vpack.c.b16 %v6678, %v6674
    %v7039 = vpack.c.b16 %v6679, %v6675
    %v7040 = vpack.c.b16 %v6684, %v6680
    %v7041 = vpack.c.b16 %v6685, %v6681
    %v7042 = vpack.c.b16 %v6686, %v6682
    %v7043 = vpack.c.b16 %v6687, %v6683
    %v7044 = vpack.c.b16 %v6692, %v6688
    %v7045 = vpack.c.b16 %v6693, %v6689
    %v7046 = vpack.c.b16 %v6694, %v6690
    %v7047 = vpack.c.b16 %v6695, %v6691
    %v7048 = vpack.c.b16 %v6700, %v6696
    %v7049 = vpack.c.b16 %v6701, %v6697
    %v7050 = vpack.c.b16 %v6702, %v6698
    %v7051 = vpack.c.b16 %v6703, %v6699
    %v7052 = vpack.c.b16 %v6708, %v6704
    %v7053 = vpack.c.b16 %v6709, %v6705
    %v7054 = vpack.c.b16 %v6710, %v6706
    %v7055 = vpack.c.b16 %v6711, %v6707
    %v7056 = vpack.c.b16 %v6716, %v6712
    %v7057 = vpack.c.b16 %v6717, %v6713
    %v7058 = vpack.c.b16 %v6718, %v6714
    %v7059 = vpack.c.b16 %v6719, %v6715
    %v7060 = vpack.c.b16 %v6724, %v6720
    %v7061 = vpack.c.b16 %v6725, %v6721
    %v7062 = vpack.c.b16 %v6726, %v6722
    %v7063 = vpack.c.b16 %v6727, %v6723
    %v7064 = vpack.c.b16 %v6732, %v6728
    %v7065 = vpack.c.b16 %v6733, %v6729
    %v7066 = vpack.c.b16 %v6734, %v6730
    %v7067 = vpack.c.b16 %v6735, %v6731
    %v7068 = vpack.c.b16 %v6740, %v6736
    %v7069 = vpack.c.b16 %v6741, %v6737
    %v7070 = vpack.c.b16 %v6742, %v6738
    %v7071 = vpack.c.b16 %v6743, %v6739
    %v7072 = vpack.c.b16 %v6748, %v6744
    %v7073 = vpack.c.b16 %v6749, %v6745
    %v7074 = vpack.c.b16 %v6750, %v6746
    %v7075 = vpack.c.b16 %v6751, %v6747
    %v7076 = vpack.c.b16 %v6756, %v6752
    %v7077 = vpack.c.b16 %v6757, %v6753
    %v7078 = vpack.c.b16 %v6758, %v6754
    %v7079 = vpack.c.b16 %v6759, %v6755
    %v7080 = vpack.c.b16 %v6764, %v6760
    %v7081 = vpack.c.b16 %v6765, %v6761
    %v7082 = vpack.c.b16 %v6766, %v6762
    %v7083 = vpack.c.b16 %v6767, %v6763
    %v7084 = vpack.c.b16 %v6772, %v6768
    %v7085 = vpack.c.b16 %v6773, %v6769
    %v7086 = vpack.c.b16 %v6774, %v6770
    %v7087 = vpack.c.b16 %v6775, %v6771
    %v7088 = vpack.c.b16 %v6780, %v6776
    %v7089 = vpack.c.b16 %v6781, %v6777
    %v7090 = vpack.c.b16 %v6782, %v6778
    %v7091 = vpack.c.b16 %v6783, %v6779
    %v7092 = vpack.c.b16 %v6788, %v6784
    %v7093 = vpack.c.b16 %v6789, %v6785
    %v7094 = vpack.c.b16 %v6790, %v6786
    %v7095 = vpack.c.b16 %v6791, %v6787
    %v7096 = vpack.c.b16 %v6796, %v6792
    %v7097 = vpack.c.b16 %v6797, %v6793
    %v7098 = vpack.c.b16 %v6798, %v6794
    %v7099 = vpack.c.b16 %v6799, %v6795
    %v7100 = vpack.c.b16 %v6804, %v6800
    %v7101 = vpack.c.b16 %v6805, %v6801
    %v7102 = vpack.c.b16 %v6806, %v6802
    %v7103 = vpack.c.b16 %v6807, %v6803
    %v7104 = vpack.c.b16 %v6812, %v6808
    %v7105 = vpack.c.b16 %v6813, %v6809
    %v7106 = vpack.c.b16 %v6814, %v6810
    %v7107 = vpack.c.b16 %v6815, %v6811
    %v7108 = vpack.c.b16 %v6820, %v6816
    %v7109 = vpack.c.b16 %v6821, %v6817
    %v7110 = vpack.c.b16 %v6822, %v6818
    %v7111 = vpack.c.b16 %v6823, %v6819
    %v7112 = vpack.c.b16 %v6828, %v6824
    %v7113 = vpack.c.b16 %v6829, %v6825
    %v7114 = vpack.c.b16 %v6830, %v6826
    %v7115 = vpack.c.b16 %v6831, %v6827
    %v7116 = vpack.c.b16 %v6836, %v6832
    %v7117 = vpack.c.b16 %v6837, %v6833
    %v7118 = vpack.c.b16 %v6838, %v6834
    %v7119 = vpack.c.b16 %v6839, %v6835
    %v7120 = vpack.c.b16 %v6844, %v6840
    %v7121 = vpack.c.b16 %v6845, %v6841
    %v7122 = vpack.c.b16 %v6846, %v6842
    %v7123 = vpack.c.b16 %v6847, %v6843
    %v7124 = vpack.c.b16 %v6852, %v6848
    %v7125 = vpack.c.b16 %v6853, %v6849
    %v7126 = vpack.c.b16 %v6854, %v6850
    %v7127 = vpack.c.b16 %v6855, %v6851
    %v7128 = vpack.c.b16 %v6860, %v6856
    %v7129 = vpack.c.b16 %v6861, %v6857
    %v7130 = vpack.c.b16 %v6862, %v6858
    %v7131 = vpack.c.b16 %v6863, %v6859
    %v7132 = vpack.c.b16 %v6868, %v6864
    %v7133 = vpack.c.b16 %v6869, %v6865
    %v7134 = vpack.c.b16 %v6870, %v6866
    %v7135 = vpack.c.b16 %v6871, %v6867
    %v7136 = vpack.c.b16 %v6876, %v6872
    %v7137 = vpack.c.b16 %v6877, %v6873
    %v7138 = vpack.c.b16 %v6878, %v6874
    %v7139 = vpack.c.b16 %v6879, %v6875
    %v7140 = vpack.c.b16 %v6884, %v6880
    %v7141 = vpack.c.b16 %v6885, %v6881
    %v7142 = vpack.c.b16 %v6886, %v6882
    %v7143 = vpack.c.b16 %v6887, %v6883
    %7400 = vmatpush.bf16.msra.mxu0 %v6916
    %7401 = vmatpush.bf16.msra.mxu0 %v6912
    %7402 = vmatpush.bf16.msra.mxu0 %v6908
    %7403 = vmatpush.bf16.msra.mxu0 %v6904
    %7404 = vmatpush.bf16.msra.mxu0 %v6900
    %7405 = vmatpush.bf16.msra.mxu0 %v6896
    %7406 = vmatpush.bf16.msra.mxu0 %v6892
    %7407 = vmatpush.bf16.msra.mxu0 %v6888
    %7408 = vmatmul.bf16.gmra.mxu0 %v5838
    %v7409 = vpop.f32.mrf.mxu0
    %v7410 = vadd.f32 %v6112, %v7409
    %v7411 = vpop.f32.mrf.mxu0
    %v7412 = vadd.f32 %v6112, %v7411
    %7413 = vmatmul.bf16.gmra.mxu0 %v5846
    %v7414 = vpop.f32.mrf.mxu0
    %v7415 = vadd.f32 %v6112, %v7414
    %v7416 = vpop.f32.mrf.mxu0
    %7417 = vdwg.mxu0
    %7418 = vmatpush.bf16.msra.mxu0 %v6948
    %7419 = vmatpush.bf16.msra.mxu0 %v6944
    %7420 = vmatpush.bf16.msra.mxu0 %v6940
    %7421 = vmatpush.bf16.msra.mxu0 %v6936
    %7422 = vmatpush.bf16.msra.mxu0 %v6932
    %7423 = vmatpush.bf16.msra.mxu0 %v6928
    %7424 = vmatpush.bf16.msra.mxu0 %v6924
    %7425 = vmatpush.bf16.msra.mxu0 %v6920
    %7426 = vmatmul.bf16.gmra.mxu0 %v5839
    %v7427 = vpop.f32.mrf.mxu0
    %v7428 = vadd.f32 %v7410, %v7427
    %v7429 = vpop.f32.mrf.mxu0
    %v7430 = vadd.f32 %v7412, %v7429
    %7431 = vmatmul.bf16.gmra.mxu0 %v5847
    %v7432 = vpop.f32.mrf.mxu0
    %v7433 = vadd.f32 %v7415, %v7432
    %v7434 = vpop.f32.mrf.mxu0
    %7435 = vdwg.mxu0
    %7436 = vmatpush.bf16.msra.mxu0 %v6980
    %7437 = vmatpush.bf16.msra.mxu0 %v6976
    %7438 = vmatpush.bf16.msra.mxu0 %v6972
    %7439 = vmatpush.bf16.msra.mxu0 %v6968
    %7440 = vmatpush.bf16.msra.mxu0 %v6964
    %7441 = vmatpush.bf16.msra.mxu0 %v6960
    %7442 = vmatpush.bf16.msra.mxu0 %v6956
    %7443 = vmatpush.bf16.msra.mxu0 %v6952
    %7444 = vmatmul.bf16.gmra.mxu0 %v5840
    %v7445 = vpop.f32.mrf.mxu0
    %v7446 = vadd.f32 %v7428, %v7445
    %v7447 = vpop.f32.mrf.mxu0
    %v7448 = vadd.f32 %v7430, %v7447
    %7449 = vmatmul.bf16.gmra.mxu0 %v5848
    %v7450 = vpop.f32.mrf.mxu0
    %v7451 = vadd.f32 %v7433, %v7450
    %v7452 = vpop.f32.mrf.mxu0
    %7453 = vdwg.mxu0
    %7454 = vmatpush.bf16.msra.mxu0 %v7012
    %7455 = vmatpush.bf16.msra.mxu0 %v7008
    %7456 = vmatpush.bf16.msra.mxu0 %v7004
    %7457 = vmatpush.bf16.msra.mxu0 %v7000
    %7458 = vmatpush.bf16.msra.mxu0 %v6996
    %7459 = vmatpush.bf16.msra.mxu0 %v6992
    %7460 = vmatpush.bf16.msra.mxu0 %v6988
    %7461 = vmatpush.bf16.msra.mxu0 %v6984
    %7462 = vmatmul.bf16.gmra.mxu0 %v5841
    %v7463 = vpop.f32.mrf.mxu0
    %v7464 = vadd.f32 %v7446, %v7463
    %v7465 = vpop.f32.mrf.mxu0
    %v7466 = vadd.f32 %v7448, %v7465
    %7467 = vmatmul.bf16.gmra.mxu0 %v5849
    %v7468 = vpop.f32.mrf.mxu0
    %v7469 = vadd.f32 %v7451, %v7468
    %v7470 = vpop.f32.mrf.mxu0
    %7471 = vdwg.mxu0
    %7472 = vmatpush.bf16.msra.mxu0 %v7044
    %7473 = vmatpush.bf16.msra.mxu0 %v7040
    %7474 = vmatpush.bf16.msra.mxu0 %v7036
    %7475 = vmatpush.bf16.msra.mxu0 %v7032
    %7476 = vmatpush.bf16.msra.mxu0 %v7028
    %7477 = vmatpush.bf16.msra.mxu0 %v7024
    %7478 = vmatpush.bf16.msra.mxu0 %v7020
    %7479 = vmatpush.bf16.msra.mxu0 %v7016
    %7480 = vmatmul.bf16.gmra.mxu0 %v5842
    %v7481 = vpop.f32.mrf.mxu0
    %v7482 = vadd.f32 %v7464, %v7481
    %v7483 = vpop.f32.mrf.mxu0
    %v7484 = vadd.f32 %v7466, %v7483
    %7485 = vmatmul.bf16.gmra.mxu0 %v5850
    %v7486 = vpop.f32.mrf.mxu0
    %v7487 = vadd.f32 %v7469, %v7486
    %v7488 = vpop.f32.mrf.mxu0
    %7489 = vdwg.mxu0
    %7490 = vmatpush.bf16.msra.mxu0 %v7076
    %7491 = vmatpush.bf16.msra.mxu0 %v7072
    %7492 = vmatpush.bf16.msra.mxu0 %v7068
    %7493 = vmatpush.bf16.msra.mxu0 %v7064
    %7494 = vmatpush.bf16.msra.mxu0 %v7060
    %7495 = vmatpush.bf16.msra.mxu0 %v7056
    %7496 = vmatpush.bf16.msra.mxu0 %v7052
    %7497 = vmatpush.bf16.msra.mxu0 %v7048
    %7498 = vmatmul.bf16.gmra.mxu0 %v5843
    %v7499 = vpop.f32.mrf.mxu0
    %v7500 = vadd.f32 %v7482, %v7499
    %v7501 = vpop.f32.mrf.mxu0
    %v7502 = vadd.f32 %v7484, %v7501
    %7503 = vmatmul.bf16.gmra.mxu0 %v5851
    %v7504 = vpop.f32.mrf.mxu0
    %v7505 = vadd.f32 %v7487, %v7504
    %v7506 = vpop.f32.mrf.mxu0
    %7507 = vdwg.mxu0
    %7508 = vmatpush.bf16.msra.mxu0 %v7108
    %7509 = vmatpush.bf16.msra.mxu0 %v7104
    %7510 = vmatpush.bf16.msra.mxu0 %v7100
    %7511 = vmatpush.bf16.msra.mxu0 %v7096
    %7512 = vmatpush.bf16.msra.mxu0 %v7092
    %7513 = vmatpush.bf16.msra.mxu0 %v7088
    %7514 = vmatpush.bf16.msra.mxu0 %v7084
    %7515 = vmatpush.bf16.msra.mxu0 %v7080
    %7516 = vmatmul.bf16.gmra.mxu0 %v5844
    %v7517 = vpop.f32.mrf.mxu0
    %v7518 = vadd.f32 %v7500, %v7517
    %v7519 = vpop.f32.mrf.mxu0
    %v7520 = vadd.f32 %v7502, %v7519
    %7521 = vmatmul.bf16.gmra.mxu0 %v5852
    %v7522 = vpop.f32.mrf.mxu0
    %v7523 = vadd.f32 %v7505, %v7522
    %v7524 = vpop.f32.mrf.mxu0
    %7525 = vdwg.mxu0
    %7526 = vmatpush.bf16.msra.mxu0 %v7140
    %7527 = vmatpush.bf16.msra.mxu0 %v7136
    %7528 = vmatpush.bf16.msra.mxu0 %v7132
    %7529 = vmatpush.bf16.msra.mxu0 %v7128
    %7530 = vmatpush.bf16.msra.mxu0 %v7124
    %7531 = vmatpush.bf16.msra.mxu0 %v7120
    %7532 = vmatpush.bf16.msra.mxu0 %v7116
    %7533 = vmatpush.bf16.msra.mxu0 %v7112
    %7534 = vmatmul.bf16.gmra.mxu0 %v5845
    %v7535 = vpop.f32.mrf.mxu0
    %v7536 = vadd.f32 %v7518, %v7535
    %v7537 = vpop.f32.mrf.mxu0
    %v7538 = vadd.f32 %v7520, %v7537
    %7539 = vmatmul.bf16.gmra.mxu0 %v5853
    %v7540 = vpop.f32.mrf.mxu0
    %v7541 = vadd.f32 %v7523, %v7540
    %v7542 = vpop.f32.mrf.mxu0
    %7543 = vdwg.mxu0
    %7544 = vmatpush.bf16.msra.mxu0 %v6917
    %7545 = vmatpush.bf16.msra.mxu0 %v6913
    %7546 = vmatpush.bf16.msra.mxu0 %v6909
    %7547 = vmatpush.bf16.msra.mxu0 %v6905
    %7548 = vmatpush.bf16.msra.mxu0 %v6901
    %7549 = vmatpush.bf16.msra.mxu0 %v6897
    %7550 = vmatpush.bf16.msra.mxu0 %v6893
    %7551 = vmatpush.bf16.msra.mxu0 %v6889
    %7552 = vmatmul.bf16.gmra.mxu0 %v5838
    %v7553 = vpop.f32.mrf.mxu0
    %v7554 = vadd.f32 %v6113, %v7553
    %v7555 = vpop.f32.mrf.mxu0
    %v7556 = vadd.f32 %v6113, %v7555
    %7557 = vmatmul.bf16.gmra.mxu0 %v5846
    %v7558 = vpop.f32.mrf.mxu0
    %v7559 = vadd.f32 %v6113, %v7558
    %v7560 = vpop.f32.mrf.mxu0
    %7561 = vdwg.mxu0
    %7562 = vmatpush.bf16.msra.mxu0 %v6949
    %7563 = vmatpush.bf16.msra.mxu0 %v6945
    %7564 = vmatpush.bf16.msra.mxu0 %v6941
    %7565 = vmatpush.bf16.msra.mxu0 %v6937
    %7566 = vmatpush.bf16.msra.mxu0 %v6933
    %7567 = vmatpush.bf16.msra.mxu0 %v6929
    %7568 = vmatpush.bf16.msra.mxu0 %v6925
    %7569 = vmatpush.bf16.msra.mxu0 %v6921
    %7570 = vmatmul.bf16.gmra.mxu0 %v5839
    %v7571 = vpop.f32.mrf.mxu0
    %v7572 = vadd.f32 %v7554, %v7571
    %v7573 = vpop.f32.mrf.mxu0
    %v7574 = vadd.f32 %v7556, %v7573
    %7575 = vmatmul.bf16.gmra.mxu0 %v5847
    %v7576 = vpop.f32.mrf.mxu0
    %v7577 = vadd.f32 %v7559, %v7576
    %v7578 = vpop.f32.mrf.mxu0
    %7579 = vdwg.mxu0
    %7580 = vmatpush.bf16.msra.mxu0 %v6981
    %7581 = vmatpush.bf16.msra.mxu0 %v6977
    %7582 = vmatpush.bf16.msra.mxu0 %v6973
    %7583 = vmatpush.bf16.msra.mxu0 %v6969
    %7584 = vmatpush.bf16.msra.mxu0 %v6965
    %7585 = vmatpush.bf16.msra.mxu0 %v6961
    %7586 = vmatpush.bf16.msra.mxu0 %v6957
    %7587 = vmatpush.bf16.msra.mxu0 %v6953
    %7588 = vmatmul.bf16.gmra.mxu0 %v5840
    %v7589 = vpop.f32.mrf.mxu0
    %v7590 = vadd.f32 %v7572, %v7589
    %v7591 = vpop.f32.mrf.mxu0
    %v7592 = vadd.f32 %v7574, %v7591
    %7593 = vmatmul.bf16.gmra.mxu0 %v5848
    %v7594 = vpop.f32.mrf.mxu0
    %v7595 = vadd.f32 %v7577, %v7594
    %v7596 = vpop.f32.mrf.mxu0
    %7597 = vdwg.mxu0
    %7598 = vmatpush.bf16.msra.mxu0 %v7013
    %7599 = vmatpush.bf16.msra.mxu0 %v7009
    %7600 = vmatpush.bf16.msra.mxu0 %v7005
    %7601 = vmatpush.bf16.msra.mxu0 %v7001
    %7602 = vmatpush.bf16.msra.mxu0 %v6997
    %7603 = vmatpush.bf16.msra.mxu0 %v6993
    %7604 = vmatpush.bf16.msra.mxu0 %v6989
    %7605 = vmatpush.bf16.msra.mxu0 %v6985
    %7606 = vmatmul.bf16.gmra.mxu0 %v5841
    %v7607 = vpop.f32.mrf.mxu0
    %v7608 = vadd.f32 %v7590, %v7607
    %v7609 = vpop.f32.mrf.mxu0
    %v7610 = vadd.f32 %v7592, %v7609
    %7611 = vmatmul.bf16.gmra.mxu0 %v5849
    %v7612 = vpop.f32.mrf.mxu0
    %v7613 = vadd.f32 %v7595, %v7612
    %v7614 = vpop.f32.mrf.mxu0
    %7615 = vdwg.mxu0
    %7616 = vmatpush.bf16.msra.mxu0 %v7045
    %7617 = vmatpush.bf16.msra.mxu0 %v7041
    %7618 = vmatpush.bf16.msra.mxu0 %v7037
    %7619 = vmatpush.bf16.msra.mxu0 %v7033
    %7620 = vmatpush.bf16.msra.mxu0 %v7029
    %7621 = vmatpush.bf16.msra.mxu0 %v7025
    %7622 = vmatpush.bf16.msra.mxu0 %v7021
    %7623 = vmatpush.bf16.msra.mxu0 %v7017
    %7624 = vmatmul.bf16.gmra.mxu0 %v5842
    %v7625 = vpop.f32.mrf.mxu0
    %v7626 = vadd.f32 %v7608, %v7625
    %v7627 = vpop.f32.mrf.mxu0
    %v7628 = vadd.f32 %v7610, %v7627
    %7629 = vmatmul.bf16.gmra.mxu0 %v5850
    %v7630 = vpop.f32.mrf.mxu0
    %v7631 = vadd.f32 %v7613, %v7630
    %v7632 = vpop.f32.mrf.mxu0
    %7633 = vdwg.mxu0
    %7634 = vmatpush.bf16.msra.mxu0 %v7077
    %7635 = vmatpush.bf16.msra.mxu0 %v7073
    %7636 = vmatpush.bf16.msra.mxu0 %v7069
    %7637 = vmatpush.bf16.msra.mxu0 %v7065
    %7638 = vmatpush.bf16.msra.mxu0 %v7061
    %7639 = vmatpush.bf16.msra.mxu0 %v7057
    %7640 = vmatpush.bf16.msra.mxu0 %v7053
    %7641 = vmatpush.bf16.msra.mxu0 %v7049
    %7642 = vmatmul.bf16.gmra.mxu0 %v5843
    %v7643 = vpop.f32.mrf.mxu0
    %v7644 = vadd.f32 %v7626, %v7643
    %v7645 = vpop.f32.mrf.mxu0
    %v7646 = vadd.f32 %v7628, %v7645
    %7647 = vmatmul.bf16.gmra.mxu0 %v5851
    %v7648 = vpop.f32.mrf.mxu0
    %v7649 = vadd.f32 %v7631, %v7648
    %v7650 = vpop.f32.mrf.mxu0
    %7651 = vdwg.mxu0
    %7652 = vmatpush.bf16.msra.mxu0 %v7109
    %7653 = vmatpush.bf16.msra.mxu0 %v7105
    %7654 = vmatpush.bf16.msra.mxu0 %v7101
    %7655 = vmatpush.bf16.msra.mxu0 %v7097
    %7656 = vmatpush.bf16.msra.mxu0 %v7093
    %7657 = vmatpush.bf16.msra.mxu0 %v7089
    %7658 = vmatpush.bf16.msra.mxu0 %v7085
    %7659 = vmatpush.bf16.msra.mxu0 %v7081
    %7660 = vmatmul.bf16.gmra.mxu0 %v5844
    %v7661 = vpop.f32.mrf.mxu0
    %v7662 = vadd.f32 %v7644, %v7661
    %v7663 = vpop.f32.mrf.mxu0
    %v7664 = vadd.f32 %v7646, %v7663
    %7665 = vmatmul.bf16.gmra.mxu0 %v5852
    %v7666 = vpop.f32.mrf.mxu0
    %v7667 = vadd.f32 %v7649, %v7666
    %v7668 = vpop.f32.mrf.mxu0
    %7669 = vdwg.mxu0
    %7670 = vmatpush.bf16.msra.mxu0 %v7141
    %7671 = vmatpush.bf16.msra.mxu0 %v7137
    %7672 = vmatpush.bf16.msra.mxu0 %v7133
    %7673 = vmatpush.bf16.msra.mxu0 %v7129
    %7674 = vmatpush.bf16.msra.mxu0 %v7125
    %7675 = vmatpush.bf16.msra.mxu0 %v7121
    %7676 = vmatpush.bf16.msra.mxu0 %v7117
    %7677 = vmatpush.bf16.msra.mxu0 %v7113
    %7678 = vmatmul.bf16.gmra.mxu0 %v5845
    %v7679 = vpop.f32.mrf.mxu0
    %v7680 = vadd.f32 %v7662, %v7679
    %v7681 = vpop.f32.mrf.mxu0
    %v7682 = vadd.f32 %v7664, %v7681
    %7683 = vmatmul.bf16.gmra.mxu0 %v5853
    %v7684 = vpop.f32.mrf.mxu0
    %v7685 = vadd.f32 %v7667, %v7684
    %v7686 = vpop.f32.mrf.mxu0
    %7687 = vdwg.mxu0
    %7688 = vmatpush.bf16.msra.mxu0 %v6918
    %7689 = vmatpush.bf16.msra.mxu0 %v6914
    %7690 = vmatpush.bf16.msra.mxu0 %v6910
    %7691 = vmatpush.bf16.msra.mxu0 %v6906
    %7692 = vmatpush.bf16.msra.mxu0 %v6902
    %7693 = vmatpush.bf16.msra.mxu0 %v6898
    %7694 = vmatpush.bf16.msra.mxu0 %v6894
    %7695 = vmatpush.bf16.msra.mxu0 %v6890
    %7696 = vmatmul.bf16.gmra.mxu0 %v5838
    %v7697 = vpop.f32.mrf.mxu0
    %v7698 = vadd.f32 %v6114, %v7697
    %v7699 = vpop.f32.mrf.mxu0
    %v7700 = vadd.f32 %v6114, %v7699
    %7701 = vmatmul.bf16.gmra.mxu0 %v5846
    %v7702 = vpop.f32.mrf.mxu0
    %v7703 = vadd.f32 %v6114, %v7702
    %v7704 = vpop.f32.mrf.mxu0
    %7705 = vdwg.mxu0
    %7706 = vmatpush.bf16.msra.mxu0 %v6950
    %7707 = vmatpush.bf16.msra.mxu0 %v6946
    %7708 = vmatpush.bf16.msra.mxu0 %v6942
    %7709 = vmatpush.bf16.msra.mxu0 %v6938
    %7710 = vmatpush.bf16.msra.mxu0 %v6934
    %7711 = vmatpush.bf16.msra.mxu0 %v6930
    %7712 = vmatpush.bf16.msra.mxu0 %v6926
    %7713 = vmatpush.bf16.msra.mxu0 %v6922
    %7714 = vmatmul.bf16.gmra.mxu0 %v5839
    %v7715 = vpop.f32.mrf.mxu0
    %v7716 = vadd.f32 %v7698, %v7715
    %v7717 = vpop.f32.mrf.mxu0
    %v7718 = vadd.f32 %v7700, %v7717
    %7719 = vmatmul.bf16.gmra.mxu0 %v5847
    %v7720 = vpop.f32.mrf.mxu0
    %v7721 = vadd.f32 %v7703, %v7720
    %v7722 = vpop.f32.mrf.mxu0
    %7723 = vdwg.mxu0
    %7724 = vmatpush.bf16.msra.mxu0 %v6982
    %7725 = vmatpush.bf16.msra.mxu0 %v6978
    %7726 = vmatpush.bf16.msra.mxu0 %v6974
    %7727 = vmatpush.bf16.msra.mxu0 %v6970
    %7728 = vmatpush.bf16.msra.mxu0 %v6966
    %7729 = vmatpush.bf16.msra.mxu0 %v6962
    %7730 = vmatpush.bf16.msra.mxu0 %v6958
    %7731 = vmatpush.bf16.msra.mxu0 %v6954
    %7732 = vmatmul.bf16.gmra.mxu0 %v5840
    %v7733 = vpop.f32.mrf.mxu0
    %v7734 = vadd.f32 %v7716, %v7733
    %v7735 = vpop.f32.mrf.mxu0
    %v7736 = vadd.f32 %v7718, %v7735
    %7737 = vmatmul.bf16.gmra.mxu0 %v5848
    %v7738 = vpop.f32.mrf.mxu0
    %v7739 = vadd.f32 %v7721, %v7738
    %v7740 = vpop.f32.mrf.mxu0
    %7741 = vdwg.mxu0
    %7742 = vmatpush.bf16.msra.mxu0 %v7014
    %7743 = vmatpush.bf16.msra.mxu0 %v7010
    %7744 = vmatpush.bf16.msra.mxu0 %v7006
    %7745 = vmatpush.bf16.msra.mxu0 %v7002
    %7746 = vmatpush.bf16.msra.mxu0 %v6998
    %7747 = vmatpush.bf16.msra.mxu0 %v6994
    %7748 = vmatpush.bf16.msra.mxu0 %v6990
    %7749 = vmatpush.bf16.msra.mxu0 %v6986
    %7750 = vmatmul.bf16.gmra.mxu0 %v5841
    %v7751 = vpop.f32.mrf.mxu0
    %v7752 = vadd.f32 %v7734, %v7751
    %v7753 = vpop.f32.mrf.mxu0
    %v7754 = vadd.f32 %v7736, %v7753
    %7755 = vmatmul.bf16.gmra.mxu0 %v5849
    %v7756 = vpop.f32.mrf.mxu0
    %v7757 = vadd.f32 %v7739, %v7756
    %v7758 = vpop.f32.mrf.mxu0
    %7759 = vdwg.mxu0
    %7760 = vmatpush.bf16.msra.mxu0 %v7046
    %7761 = vmatpush.bf16.msra.mxu0 %v7042
    %7762 = vmatpush.bf16.msra.mxu0 %v7038
    %7763 = vmatpush.bf16.msra.mxu0 %v7034
    %7764 = vmatpush.bf16.msra.mxu0 %v7030
    %7765 = vmatpush.bf16.msra.mxu0 %v7026
    %7766 = vmatpush.bf16.msra.mxu0 %v7022
    %7767 = vmatpush.bf16.msra.mxu0 %v7018
    %7768 = vmatmul.bf16.gmra.mxu0 %v5842
    %v7769 = vpop.f32.mrf.mxu0
    %v7770 = vadd.f32 %v7752, %v7769
    %v7771 = vpop.f32.mrf.mxu0
    %v7772 = vadd.f32 %v7754, %v7771
    %7773 = vmatmul.bf16.gmra.mxu0 %v5850
    %v7774 = vpop.f32.mrf.mxu0
    %v7775 = vadd.f32 %v7757, %v7774
    %v7776 = vpop.f32.mrf.mxu0
    %7777 = vdwg.mxu0
    %7778 = vmatpush.bf16.msra.mxu0 %v7078
    %7779 = vmatpush.bf16.msra.mxu0 %v7074
    %7780 = vmatpush.bf16.msra.mxu0 %v7070
    %7781 = vmatpush.bf16.msra.mxu0 %v7066
    %7782 = vmatpush.bf16.msra.mxu0 %v7062
    %7783 = vmatpush.bf16.msra.mxu0 %v7058
    %7784 = vmatpush.bf16.msra.mxu0 %v7054
    %7785 = vmatpush.bf16.msra.mxu0 %v7050
    %7786 = vmatmul.bf16.gmra.mxu0 %v5843
    %v7787 = vpop.f32.mrf.mxu0
    %v7788 = vadd.f32 %v7770, %v7787
    %v7789 = vpop.f32.mrf.mxu0
    %v7790 = vadd.f32 %v7772, %v7789
    %7791 = vmatmul.bf16.gmra.mxu0 %v5851
    %v7792 = vpop.f32.mrf.mxu0
    %v7793 = vadd.f32 %v7775, %v7792
    %v7794 = vpop.f32.mrf.mxu0
    %7795 = vdwg.mxu0
    %7796 = vmatpush.bf16.msra.mxu0 %v7110
    %7797 = vmatpush.bf16.msra.mxu0 %v7106
    %7798 = vmatpush.bf16.msra.mxu0 %v7102
    %7799 = vmatpush.bf16.msra.mxu0 %v7098
    %7800 = vmatpush.bf16.msra.mxu0 %v7094
    %7801 = vmatpush.bf16.msra.mxu0 %v7090
    %7802 = vmatpush.bf16.msra.mxu0 %v7086
    %7803 = vmatpush.bf16.msra.mxu0 %v7082
    %7804 = vmatmul.bf16.gmra.mxu0 %v5844
    %v7805 = vpop.f32.mrf.mxu0
    %v7806 = vadd.f32 %v7788, %v7805
    %v7807 = vpop.f32.mrf.mxu0
    %v7808 = vadd.f32 %v7790, %v7807
    %7809 = vmatmul.bf16.gmra.mxu0 %v5852
    %v7810 = vpop.f32.mrf.mxu0
    %v7811 = vadd.f32 %v7793, %v7810
    %v7812 = vpop.f32.mrf.mxu0
    %7813 = vdwg.mxu0
    %7814 = vmatpush.bf16.msra.mxu0 %v7142
    %7815 = vmatpush.bf16.msra.mxu0 %v7138
    %7816 = vmatpush.bf16.msra.mxu0 %v7134
    %7817 = vmatpush.bf16.msra.mxu0 %v7130
    %7818 = vmatpush.bf16.msra.mxu0 %v7126
    %7819 = vmatpush.bf16.msra.mxu0 %v7122
    %7820 = vmatpush.bf16.msra.mxu0 %v7118
    %7821 = vmatpush.bf16.msra.mxu0 %v7114
    %7822 = vmatmul.bf16.gmra.mxu0 %v5845
    %v7823 = vpop.f32.mrf.mxu0
    %v7824 = vadd.f32 %v7806, %v7823
    %v7825 = vpop.f32.mrf.mxu0
    %v7826 = vadd.f32 %v7808, %v7825
    %7827 = vmatmul.bf16.gmra.mxu0 %v5853
    %v7828 = vpop.f32.mrf.mxu0
    %v7829 = vadd.f32 %v7811, %v7828
    %v7830 = vpop.f32.mrf.mxu0
    %7831 = vdwg.mxu0
    %7832 = vmatpush.bf16.msra.mxu0 %v6919
    %7833 = vmatpush.bf16.msra.mxu0 %v6915
    %7834 = vmatpush.bf16.msra.mxu0 %v6911
    %7835 = vmatpush.bf16.msra.mxu0 %v6907
    %7836 = vmatpush.bf16.msra.mxu0 %v6903
    %7837 = vmatpush.bf16.msra.mxu0 %v6899
    %7838 = vmatpush.bf16.msra.mxu0 %v6895
    %7839 = vmatpush.bf16.msra.mxu0 %v6891
    %7840 = vmatmul.bf16.gmra.mxu0 %v5838
    %v7841 = vpop.f32.mrf.mxu0
    %v7842 = vadd.f32 %v6115, %v7841
    %v7843 = vpop.f32.mrf.mxu0
    %v7844 = vadd.f32 %v6115, %v7843
    %7845 = vmatmul.bf16.gmra.mxu0 %v5846
    %v7846 = vpop.f32.mrf.mxu0
    %v7847 = vadd.f32 %v6115, %v7846
    %v7848 = vpop.f32.mrf.mxu0
    %7849 = vdwg.mxu0
    %7850 = vmatpush.bf16.msra.mxu0 %v6951
    %7851 = vmatpush.bf16.msra.mxu0 %v6947
    %7852 = vmatpush.bf16.msra.mxu0 %v6943
    %7853 = vmatpush.bf16.msra.mxu0 %v6939
    %7854 = vmatpush.bf16.msra.mxu0 %v6935
    %7855 = vmatpush.bf16.msra.mxu0 %v6931
    %7856 = vmatpush.bf16.msra.mxu0 %v6927
    %7857 = vmatpush.bf16.msra.mxu0 %v6923
    %7858 = vmatmul.bf16.gmra.mxu0 %v5839
    %v7859 = vpop.f32.mrf.mxu0
    %v7860 = vadd.f32 %v7842, %v7859
    %v7861 = vpop.f32.mrf.mxu0
    %v7862 = vadd.f32 %v7844, %v7861
    %7863 = vmatmul.bf16.gmra.mxu0 %v5847
    %v7864 = vpop.f32.mrf.mxu0
    %v7865 = vadd.f32 %v7847, %v7864
    %v7866 = vpop.f32.mrf.mxu0
    %7867 = vdwg.mxu0
    %7868 = vmatpush.bf16.msra.mxu0 %v6983
    %7869 = vmatpush.bf16.msra.mxu0 %v6979
    %7870 = vmatpush.bf16.msra.mxu0 %v6975
    %7871 = vmatpush.bf16.msra.mxu0 %v6971
    %7872 = vmatpush.bf16.msra.mxu0 %v6967
    %7873 = vmatpush.bf16.msra.mxu0 %v6963
    %7874 = vmatpush.bf16.msra.mxu0 %v6959
    %7875 = vmatpush.bf16.msra.mxu0 %v6955
    %7876 = vmatmul.bf16.gmra.mxu0 %v5840
    %v7877 = vpop.f32.mrf.mxu0
    %v7878 = vadd.f32 %v7860, %v7877
    %v7879 = vpop.f32.mrf.mxu0
    %v7880 = vadd.f32 %v7862, %v7879
    %7881 = vmatmul.bf16.gmra.mxu0 %v5848
    %v7882 = vpop.f32.mrf.mxu0
    %v7883 = vadd.f32 %v7865, %v7882
    %v7884 = vpop.f32.mrf.mxu0
    %7885 = vdwg.mxu0
    %7886 = vmatpush.bf16.msra.mxu0 %v7015
    %7887 = vmatpush.bf16.msra.mxu0 %v7011
    %7888 = vmatpush.bf16.msra.mxu0 %v7007
    %7889 = vmatpush.bf16.msra.mxu0 %v7003
    %7890 = vmatpush.bf16.msra.mxu0 %v6999
    %7891 = vmatpush.bf16.msra.mxu0 %v6995
    %7892 = vmatpush.bf16.msra.mxu0 %v6991
    %7893 = vmatpush.bf16.msra.mxu0 %v6987
    %7894 = vmatmul.bf16.gmra.mxu0 %v5841
    %v7895 = vpop.f32.mrf.mxu0
    %v7896 = vadd.f32 %v7878, %v7895
    %v7897 = vpop.f32.mrf.mxu0
    %v7898 = vadd.f32 %v7880, %v7897
    %7899 = vmatmul.bf16.gmra.mxu0 %v5849
    %v7900 = vpop.f32.mrf.mxu0
    %v7901 = vadd.f32 %v7883, %v7900
    %v7902 = vpop.f32.mrf.mxu0
    %7903 = vdwg.mxu0
    %7904 = vmatpush.bf16.msra.mxu0 %v7047
    %7905 = vmatpush.bf16.msra.mxu0 %v7043
    %7906 = vmatpush.bf16.msra.mxu0 %v7039
    %7907 = vmatpush.bf16.msra.mxu0 %v7035
    %7908 = vmatpush.bf16.msra.mxu0 %v7031
    %7909 = vmatpush.bf16.msra.mxu0 %v7027
    %7910 = vmatpush.bf16.msra.mxu0 %v7023
    %7911 = vmatpush.bf16.msra.mxu0 %v7019
    %7912 = vmatmul.bf16.gmra.mxu0 %v5842
    %v7913 = vpop.f32.mrf.mxu0
    %v7914 = vadd.f32 %v7896, %v7913
    %v7915 = vpop.f32.mrf.mxu0
    %v7916 = vadd.f32 %v7898, %v7915
    %7917 = vmatmul.bf16.gmra.mxu0 %v5850
    %v7918 = vpop.f32.mrf.mxu0
    %v7919 = vadd.f32 %v7901, %v7918
    %v7920 = vpop.f32.mrf.mxu0
    %7921 = vdwg.mxu0
    %7922 = vmatpush.bf16.msra.mxu0 %v7079
    %7923 = vmatpush.bf16.msra.mxu0 %v7075
    %7924 = vmatpush.bf16.msra.mxu0 %v7071
    %7925 = vmatpush.bf16.msra.mxu0 %v7067
    %7926 = vmatpush.bf16.msra.mxu0 %v7063
    %7927 = vmatpush.bf16.msra.mxu0 %v7059
    %7928 = vmatpush.bf16.msra.mxu0 %v7055
    %7929 = vmatpush.bf16.msra.mxu0 %v7051
    %7930 = vmatmul.bf16.gmra.mxu0 %v5843
    %v7931 = vpop.f32.mrf.mxu0
    %v7932 = vadd.f32 %v7914, %v7931
    %v7933 = vpop.f32.mrf.mxu0
    %v7934 = vadd.f32 %v7916, %v7933
    %7935 = vmatmul.bf16.gmra.mxu0 %v5851
    %v7936 = vpop.f32.mrf.mxu0
    %v7937 = vadd.f32 %v7919, %v7936
    %v7938 = vpop.f32.mrf.mxu0
    %7939 = vdwg.mxu0
    %7940 = vmatpush.bf16.msra.mxu0 %v7111
    %7941 = vmatpush.bf16.msra.mxu0 %v7107
    %7942 = vmatpush.bf16.msra.mxu0 %v7103
    %7943 = vmatpush.bf16.msra.mxu0 %v7099
    %7944 = vmatpush.bf16.msra.mxu0 %v7095
    %7945 = vmatpush.bf16.msra.mxu0 %v7091
    %7946 = vmatpush.bf16.msra.mxu0 %v7087
    %7947 = vmatpush.bf16.msra.mxu0 %v7083
    %7948 = vmatmul.bf16.gmra.mxu0 %v5844
    %v7949 = vpop.f32.mrf.mxu0
    %v7950 = vadd.f32 %v7932, %v7949
    %v7951 = vpop.f32.mrf.mxu0
    %v7952 = vadd.f32 %v7934, %v7951
    %7953 = vmatmul.bf16.gmra.mxu0 %v5852
    %v7954 = vpop.f32.mrf.mxu0
    %v7955 = vadd.f32 %v7937, %v7954
    %v7956 = vpop.f32.mrf.mxu0
    %7957 = vdwg.mxu0
    %7958 = vmatpush.bf16.msra.mxu0 %v7143
    %7959 = vmatpush.bf16.msra.mxu0 %v7139
    %7960 = vmatpush.bf16.msra.mxu0 %v7135
    %7961 = vmatpush.bf16.msra.mxu0 %v7131
    %7962 = vmatpush.bf16.msra.mxu0 %v7127
    %7963 = vmatpush.bf16.msra.mxu0 %v7123
    %7964 = vmatpush.bf16.msra.mxu0 %v7119
    %7965 = vmatpush.bf16.msra.mxu0 %v7115
    %7966 = vmatmul.bf16.gmra.mxu0 %v5845
    %v7967 = vpop.f32.mrf.mxu0
    %v7968 = vadd.f32 %v7950, %v7967
    %v7969 = vpop.f32.mrf.mxu0
    %v7970 = vadd.f32 %v7952, %v7969
    %7971 = vmatmul.bf16.gmra.mxu0 %v5853
    %v7972 = vpop.f32.mrf.mxu0
    %v7973 = vadd.f32 %v7955, %v7972
    %v7974 = vpop.f32.mrf.mxu0
    %7975 = vdwg.mxu0
    %v7976 = vmax.f32 %v7536, 0.0
    %v7977 = vmax.f32 %v7680, 0.0
    %v7978 = vmax.f32 %v7824, 0.0
    %v7979 = vmax.f32 %v7968, 0.0
    %v7980 = vmax.f32 %v7538, 0.0
    %v7981 = vmax.f32 %v7682, 0.0
    %v7982 = vmax.f32 %v7826, 0.0
    %v7983 = vmax.f32 %v7970, 0.0
    %v7984 = vmax.f32 %v7541, 0.0
    %v7985 = vmax.f32 %v7685, 0.0
    %v7986 = vmax.f32 %v7829, 0.0
    %v7987 = vmax.f32 %v7973, 0.0
    %v7988 = vpack.c.bf16 %v7980, %v7976
    %v7989 = vpack.c.bf16 %v7981, %v7977
    %v7990 = vpack.c.bf16 %v7982, %v7978
    %v7991 = vpack.c.bf16 %v7983, %v7979
    %v7992 = vpack.c.bf16 %v7984, %v7984
    %v7993 = vpack.c.bf16 %v7985, %v7985
    %v7994 = vpack.c.bf16 %v7986, %v7986
    %v7995 = vpack.c.bf16 %v7987, %v7987
    %v7996 = vld [vmem:[#allocation11] sm:$0xff]
    %v7997 = vld [vmem:[#allocation11 + $0x8] sm:$0xff]
    %v7998 = vld [vmem:[#allocation11 + $0x10] sm:$0xff]
    %v7999 = vld [vmem:[#allocation11 + $0x18] sm:$0xff]
    %v8000 = vld [vmem:[#allocation11 + $0x20] sm:$0xff]
    %v8001 = vld [vmem:[#allocation11 + $0x28] sm:$0xff]
    %v8002 = vld [vmem:[#allocation11 + $0x30] sm:$0xff]
    %v8003 = vld [vmem:[#allocation11 + $0x38] sm:$0xff]
    %v8004 = vld [vmem:[#allocation11 + $0x40] sm:$0xff]
    %v8005 = vld [vmem:[#allocation11 + $0x48] sm:$0xff]
    %v8006 = vld [vmem:[#allocation11 + $0x50] sm:$0xff]
    %v8007 = vld [vmem:[#allocation11 + $0x58] sm:$0xff]
    %v8008 = vld [vmem:[#allocation11 + $0x60] sm:$0xff]
    %v8009 = vld [vmem:[#allocation11 + $0x68] sm:$0xff]
    %v8010 = vld [vmem:[#allocation11 + $0x70] sm:$0xff]
    %v8011 = vld [vmem:[#allocation11 + $0x78] sm:$0xff]
    %v8012 = vld [vmem:[#allocation11 + $0x80] sm:$0xff]
    %v8013 = vld [vmem:[#allocation11 + $0x88] sm:$0xff]
    %v8014 = vld [vmem:[#allocation11 + $0x90] sm:$0xff]
    %v8015 = vld [vmem:[#allocation11 + $0x98] sm:$0xff]
    %v8016 = vld [vmem:[#allocation11 + $0xa0] sm:$0xff]
    %v8017 = vld [vmem:[#allocation11 + $0xa8] sm:$0xff]
    %v8018 = vld [vmem:[#allocation11 + $0xb0] sm:$0xff]
    %v8019 = vld [vmem:[#allocation11 + $0xb8] sm:$0xff]
    %v8020 = vld [vmem:[#allocation11 + $0xc0] sm:$0xff]
    %v8021 = vld [vmem:[#allocation11 + $0xc8] sm:$0xff]
    %v8022 = vld [vmem:[#allocation11 + $0xd0] sm:$0xff]
    %v8023 = vld [vmem:[#allocation11 + $0xd8] sm:$0xff]
    %v8024 = vld [vmem:[#allocation11 + $0xe0] sm:$0xff]
    %v8025 = vld [vmem:[#allocation11 + $0xe8] sm:$0xff]
    %v8026 = vld [vmem:[#allocation11 + $0xf0] sm:$0xff]
    %v8027 = vld [vmem:[#allocation11 + $0xf8] sm:$0xff]
    %v8028 = vld [vmem:[#allocation11 + $0x100] sm:$0xff]
    %v8029 = vld [vmem:[#allocation11 + $0x108] sm:$0xff]
    %v8030 = vld [vmem:[#allocation11 + $0x110] sm:$0xff]
    %v8031 = vld [vmem:[#allocation11 + $0x118] sm:$0xff]
    %v8032 = vld [vmem:[#allocation11 + $0x120] sm:$0xff]
    %v8033 = vld [vmem:[#allocation11 + $0x128] sm:$0xff]
    %v8034 = vld [vmem:[#allocation11 + $0x130] sm:$0xff]
    %v8035 = vld [vmem:[#allocation11 + $0x138] sm:$0xff]
    %v8036 = vld [vmem:[#allocation11 + $0x140] sm:$0xff]
    %v8037 = vld [vmem:[#allocation11 + $0x148] sm:$0xff]
    %v8038 = vld [vmem:[#allocation11 + $0x150] sm:$0xff]
    %v8039 = vld [vmem:[#allocation11 + $0x158] sm:$0xff]
    %v8040 = vld [vmem:[#allocation11 + $0x160] sm:$0xff]
    %v8041 = vld [vmem:[#allocation11 + $0x168] sm:$0xff]
    %v8042 = vld [vmem:[#allocation11 + $0x170] sm:$0xff]
    %v8043 = vld [vmem:[#allocation11 + $0x178] sm:$0xff]
    %v8044 = vld [vmem:[#allocation11 + $0x180] sm:$0xff]
    %v8045 = vld [vmem:[#allocation11 + $0x188] sm:$0xff]
    %v8046 = vld [vmem:[#allocation11 + $0x190] sm:$0xff]
    %v8047 = vld [vmem:[#allocation11 + $0x198] sm:$0xff]
    %v8048 = vld [vmem:[#allocation11 + $0x1a0] sm:$0xff]
    %v8049 = vld [vmem:[#allocation11 + $0x1a8] sm:$0xff]
    %v8050 = vld [vmem:[#allocation11 + $0x1b0] sm:$0xff]
    %v8051 = vld [vmem:[#allocation11 + $0x1b8] sm:$0xff]
    %v8052 = vld [vmem:[#allocation11 + $0x1c0] sm:$0xff]
    %v8053 = vld [vmem:[#allocation11 + $0x1c8] sm:$0xff]
    %v8054 = vld [vmem:[#allocation11 + $0x1d0] sm:$0xff]
    %v8055 = vld [vmem:[#allocation11 + $0x1d8] sm:$0xff]
    %v8056 = vld [vmem:[#allocation11 + $0x1e0] sm:$0xff]
    %v8057 = vld [vmem:[#allocation11 + $0x1e8] sm:$0xff]
    %v8058 = vld [vmem:[#allocation11 + $0x1f0] sm:$0xff]
    %v8059 = vld [vmem:[#allocation11 + $0x1f8] sm:$0xff]
    %v8060 = vld [vmem:[#allocation13] sm:$0x3]
    %v8062 = vperm.slane %v8060, 0
    %v8063 = vperm.slane %v8060, 1
    %v8130 = vunpack.c.l.b16 %v7996
    %v8131 = vunpack.c.h.b16 %v7996
    %v8132 = vunpack.c.l.b16 %v7997
    %v8133 = vunpack.c.h.b16 %v7997
    %v8134 = vunpack.c.l.b16 %v7998
    %v8135 = vunpack.c.h.b16 %v7998
    %v8136 = vunpack.c.l.b16 %v7999
    %v8137 = vunpack.c.h.b16 %v7999
    %v8138 = vunpack.c.l.b16 %v8000
    %v8139 = vunpack.c.h.b16 %v8000
    %v8140 = vunpack.c.l.b16 %v8001
    %v8141 = vunpack.c.h.b16 %v8001
    %v8142 = vunpack.c.l.b16 %v8002
    %v8143 = vunpack.c.h.b16 %v8002
    %v8144 = vunpack.c.l.b16 %v8003
    %v8145 = vunpack.c.h.b16 %v8003
    %v8146 = vunpack.c.l.b16 %v8004
    %v8147 = vunpack.c.h.b16 %v8004
    %v8148 = vunpack.c.l.b16 %v8005
    %v8149 = vunpack.c.h.b16 %v8005
    %v8150 = vunpack.c.l.b16 %v8006
    %v8151 = vunpack.c.h.b16 %v8006
    %v8152 = vunpack.c.l.b16 %v8007
    %v8153 = vunpack.c.h.b16 %v8007
    %v8154 = vunpack.c.l.b16 %v8008
    %v8155 = vunpack.c.h.b16 %v8008
    %v8156 = vunpack.c.l.b16 %v8009
    %v8157 = vunpack.c.h.b16 %v8009
    %v8158 = vunpack.c.l.b16 %v8010
    %v8159 = vunpack.c.h.b16 %v8010
    %v8160 = vunpack.c.l.b16 %v8011
    %v8161 = vunpack.c.h.b16 %v8011
    %v8162 = vunpack.c.l.b16 %v8012
    %v8163 = vunpack.c.h.b16 %v8012
    %v8164 = vunpack.c.l.b16 %v8013
    %v8165 = vunpack.c.h.b16 %v8013
    %v8166 = vunpack.c.l.b16 %v8014
    %v8167 = vunpack.c.h.b16 %v8014
    %v8168 = vunpack.c.l.b16 %v8015
    %v8169 = vunpack.c.h.b16 %v8015
    %v8170 = vunpack.c.l.b16 %v8016
    %v8171 = vunpack.c.h.b16 %v8016
    %v8172 = vunpack.c.l.b16 %v8017
    %v8173 = vunpack.c.h.b16 %v8017
    %v8174 = vunpack.c.l.b16 %v8018
    %v8175 = vunpack.c.h.b16 %v8018
    %v8176 = vunpack.c.l.b16 %v8019
    %v8177 = vunpack.c.h.b16 %v8019
    %v8178 = vunpack.c.l.b16 %v8020
    %v8179 = vunpack.c.h.b16 %v8020
    %v8180 = vunpack.c.l.b16 %v8021
    %v8181 = vunpack.c.h.b16 %v8021
    %v8182 = vunpack.c.l.b16 %v8022
    %v8183 = vunpack.c.h.b16 %v8022
    %v8184 = vunpack.c.l.b16 %v8023
    %v8185 = vunpack.c.h.b16 %v8023
    %v8186 = vunpack.c.l.b16 %v8024
    %v8187 = vunpack.c.h.b16 %v8024
    %v8188 = vunpack.c.l.b16 %v8025
    %v8189 = vunpack.c.h.b16 %v8025
    %v8190 = vunpack.c.l.b16 %v8026
    %v8191 = vunpack.c.h.b16 %v8026
    %v8192 = vunpack.c.l.b16 %v8027
    %v8193 = vunpack.c.h.b16 %v8027
    %v8194 = vunpack.c.l.b16 %v8028
    %v8195 = vunpack.c.h.b16 %v8028
    %v8196 = vunpack.c.l.b16 %v8029
    %v8197 = vunpack.c.h.b16 %v8029
    %v8198 = vunpack.c.l.b16 %v8030
    %v8199 = vunpack.c.h.b16 %v8030
    %v8200 = vunpack.c.l.b16 %v8031
    %v8201 = vunpack.c.h.b16 %v8031
    %v8202 = vunpack.c.l.b16 %v8032
    %v8203 = vunpack.c.h.b16 %v8032
    %v8204 = vunpack.c.l.b16 %v8033
    %v8205 = vunpack.c.h.b16 %v8033
    %v8206 = vunpack.c.l.b16 %v8034
    %v8207 = vunpack.c.h.b16 %v8034
    %v8208 = vunpack.c.l.b16 %v8035
    %v8209 = vunpack.c.h.b16 %v8035
    %v8210 = vunpack.c.l.b16 %v8036
    %v8211 = vunpack.c.h.b16 %v8036
    %v8212 = vunpack.c.l.b16 %v8037
    %v8213 = vunpack.c.h.b16 %v8037
    %v8214 = vunpack.c.l.b16 %v8038
    %v8215 = vunpack.c.h.b16 %v8038
    %v8216 = vunpack.c.l.b16 %v8039
    %v8217 = vunpack.c.h.b16 %v8039
    %v8218 = vunpack.c.l.b16 %v8040
    %v8219 = vunpack.c.h.b16 %v8040
    %v8220 = vunpack.c.l.b16 %v8041
    %v8221 = vunpack.c.h.b16 %v8041
    %v8222 = vunpack.c.l.b16 %v8042
    %v8223 = vunpack.c.h.b16 %v8042
    %v8224 = vunpack.c.l.b16 %v8043
    %v8225 = vunpack.c.h.b16 %v8043
    %v8226 = vunpack.c.l.b16 %v8044
    %v8227 = vunpack.c.h.b16 %v8044
    %v8228 = vunpack.c.l.b16 %v8045
    %v8229 = vunpack.c.h.b16 %v8045
    %v8230 = vunpack.c.l.b16 %v8046
    %v8231 = vunpack.c.h.b16 %v8046
    %v8232 = vunpack.c.l.b16 %v8047
    %v8233 = vunpack.c.h.b16 %v8047
    %v8234 = vunpack.c.l.b16 %v8048
    %v8235 = vunpack.c.h.b16 %v8048
    %v8236 = vunpack.c.l.b16 %v8049
    %v8237 = vunpack.c.h.b16 %v8049
    %v8238 = vunpack.c.l.b16 %v8050
    %v8239 = vunpack.c.h.b16 %v8050
    %v8240 = vunpack.c.l.b16 %v8051
    %v8241 = vunpack.c.h.b16 %v8051
    %v8242 = vunpack.c.l.b16 %v8052
    %v8243 = vunpack.c.h.b16 %v8052
    %v8244 = vunpack.c.l.b16 %v8053
    %v8245 = vunpack.c.h.b16 %v8053
    %v8246 = vunpack.c.l.b16 %v8054
    %v8247 = vunpack.c.h.b16 %v8054
    %v8248 = vunpack.c.l.b16 %v8055
    %v8249 = vunpack.c.h.b16 %v8055
    %v8250 = vunpack.c.l.b16 %v8056
    %v8251 = vunpack.c.h.b16 %v8056
    %v8252 = vunpack.c.l.b16 %v8057
    %v8253 = vunpack.c.h.b16 %v8057
    %v8254 = vunpack.c.l.b16 %v8058
    %v8255 = vunpack.c.h.b16 %v8058
    %v8256 = vunpack.c.l.b16 %v8059
    %v8257 = vunpack.c.h.b16 %v8059
    %v8258 = vpack.c.b16 %v8132, %v8130
    %v8259 = vpack.c.b16 %v8133, %v8131
    %v8260 = vpack.c.b16 %v8136, %v8134
    %v8261 = vpack.c.b16 %v8137, %v8135
    %v8262 = vpack.c.b16 %v8140, %v8138
    %v8263 = vpack.c.b16 %v8141, %v8139
    %v8264 = vpack.c.b16 %v8144, %v8142
    %v8265 = vpack.c.b16 %v8145, %v8143
    %v8266 = vpack.c.b16 %v8148, %v8146
    %v8267 = vpack.c.b16 %v8149, %v8147
    %v8268 = vpack.c.b16 %v8152, %v8150
    %v8269 = vpack.c.b16 %v8153, %v8151
    %v8270 = vpack.c.b16 %v8156, %v8154
    %v8271 = vpack.c.b16 %v8157, %v8155
    %v8272 = vpack.c.b16 %v8160, %v8158
    %v8273 = vpack.c.b16 %v8161, %v8159
    %v8274 = vpack.c.b16 %v8164, %v8162
    %v8275 = vpack.c.b16 %v8165, %v8163
    %v8276 = vpack.c.b16 %v8168, %v8166
    %v8277 = vpack.c.b16 %v8169, %v8167
    %v8278 = vpack.c.b16 %v8172, %v8170
    %v8279 = vpack.c.b16 %v8173, %v8171
    %v8280 = vpack.c.b16 %v8176, %v8174
    %v8281 = vpack.c.b16 %v8177, %v8175
    %v8282 = vpack.c.b16 %v8180, %v8178
    %v8283 = vpack.c.b16 %v8181, %v8179
    %v8284 = vpack.c.b16 %v8184, %v8182
    %v8285 = vpack.c.b16 %v8185, %v8183
    %v8286 = vpack.c.b16 %v8188, %v8186
    %v8287 = vpack.c.b16 %v8189, %v8187
    %v8288 = vpack.c.b16 %v8192, %v8190
    %v8289 = vpack.c.b16 %v8193, %v8191
    %v8290 = vpack.c.b16 %v8196, %v8194
    %v8291 = vpack.c.b16 %v8197, %v8195
    %v8292 = vpack.c.b16 %v8200, %v8198
    %v8293 = vpack.c.b16 %v8201, %v8199
    %v8294 = vpack.c.b16 %v8204, %v8202
    %v8295 = vpack.c.b16 %v8205, %v8203
    %v8296 = vpack.c.b16 %v8208, %v8206
    %v8297 = vpack.c.b16 %v8209, %v8207
    %v8298 = vpack.c.b16 %v8212, %v8210
    %v8299 = vpack.c.b16 %v8213, %v8211
    %v8300 = vpack.c.b16 %v8216, %v8214
    %v8301 = vpack.c.b16 %v8217, %v8215
    %v8302 = vpack.c.b16 %v8220, %v8218
    %v8303 = vpack.c.b16 %v8221, %v8219
    %v8304 = vpack.c.b16 %v8224, %v8222
    %v8305 = vpack.c.b16 %v8225, %v8223
    %v8306 = vpack.c.b16 %v8228, %v8226
    %v8307 = vpack.c.b16 %v8229, %v8227
    %v8308 = vpack.c.b16 %v8232, %v8230
    %v8309 = vpack.c.b16 %v8233, %v8231
    %v8310 = vpack.c.b16 %v8236, %v8234
    %v8311 = vpack.c.b16 %v8237, %v8235
    %v8312 = vpack.c.b16 %v8240, %v8238
    %v8313 = vpack.c.b16 %v8241, %v8239
    %v8314 = vpack.c.b16 %v8244, %v8242
    %v8315 = vpack.c.b16 %v8245, %v8243
    %v8316 = vpack.c.b16 %v8248, %v8246
    %v8317 = vpack.c.b16 %v8249, %v8247
    %v8318 = vpack.c.b16 %v8252, %v8250
    %v8319 = vpack.c.b16 %v8253, %v8251
    %v8320 = vpack.c.b16 %v8256, %v8254
    %v8321 = vpack.c.b16 %v8257, %v8255
    %8386 = vmatpush.bf16.msra.mxu0 %v8272
    %8387 = vmatpush.bf16.msra.mxu0 %v8270
    %8388 = vmatpush.bf16.msra.mxu0 %v8268
    %8389 = vmatpush.bf16.msra.mxu0 %v8266
    %8390 = vmatpush.bf16.msra.mxu0 %v8264
    %8391 = vmatpush.bf16.msra.mxu0 %v8262
    %8392 = vmatpush.bf16.msra.mxu0 %v8260
    %8393 = vmatpush.bf16.msra.mxu0 %v8258
    %8394 = vmatmul.bf16.gmra.mxu0 %v7988
    %v8395 = vpop.f32.mrf.mxu0
    %v8396 = vadd.f32 %v8062, %v8395
    %v8397 = vpop.f32.mrf.mxu0
    %v8398 = vadd.f32 %v8062, %v8397
    %8399 = vmatmul.bf16.gmra.mxu0 %v7992
    %v8400 = vpop.f32.mrf.mxu0
    %v8401 = vadd.f32 %v8062, %v8400
    %v8402 = vpop.f32.mrf.mxu0
    %8403 = vdwg.mxu0
    %8404 = vmatpush.bf16.msra.mxu0 %v8288
    %8405 = vmatpush.bf16.msra.mxu0 %v8286
    %8406 = vmatpush.bf16.msra.mxu0 %v8284
    %8407 = vmatpush.bf16.msra.mxu0 %v8282
    %8408 = vmatpush.bf16.msra.mxu0 %v8280
    %8409 = vmatpush.bf16.msra.mxu0 %v8278
    %8410 = vmatpush.bf16.msra.mxu0 %v8276
    %8411 = vmatpush.bf16.msra.mxu0 %v8274
    %8412 = vmatmul.bf16.gmra.mxu0 %v7989
    %v8413 = vpop.f32.mrf.mxu0
    %v8414 = vadd.f32 %v8396, %v8413
    %v8415 = vpop.f32.mrf.mxu0
    %v8416 = vadd.f32 %v8398, %v8415
    %8417 = vmatmul.bf16.gmra.mxu0 %v7993
    %v8418 = vpop.f32.mrf.mxu0
    %v8419 = vadd.f32 %v8401, %v8418
    %v8420 = vpop.f32.mrf.mxu0
    %8421 = vdwg.mxu0
    %8422 = vmatpush.bf16.msra.mxu0 %v8304
    %8423 = vmatpush.bf16.msra.mxu0 %v8302
    %8424 = vmatpush.bf16.msra.mxu0 %v8300
    %8425 = vmatpush.bf16.msra.mxu0 %v8298
    %8426 = vmatpush.bf16.msra.mxu0 %v8296
    %8427 = vmatpush.bf16.msra.mxu0 %v8294
    %8428 = vmatpush.bf16.msra.mxu0 %v8292
    %8429 = vmatpush.bf16.msra.mxu0 %v8290
    %8430 = vmatmul.bf16.gmra.mxu0 %v7990
    %v8431 = vpop.f32.mrf.mxu0
    %v8432 = vadd.f32 %v8414, %v8431
    %v8433 = vpop.f32.mrf.mxu0
    %v8434 = vadd.f32 %v8416, %v8433
    %8435 = vmatmul.bf16.gmra.mxu0 %v7994
    %v8436 = vpop.f32.mrf.mxu0
    %v8437 = vadd.f32 %v8419, %v8436
    %v8438 = vpop.f32.mrf.mxu0
    %8439 = vdwg.mxu0
    %8440 = vmatpush.bf16.msra.mxu0 %v8320
    %8441 = vmatpush.bf16.msra.mxu0 %v8318
    %8442 = vmatpush.bf16.msra.mxu0 %v8316
    %8443 = vmatpush.bf16.msra.mxu0 %v8314
    %8444 = vmatpush.bf16.msra.mxu0 %v8312
    %8445 = vmatpush.bf16.msra.mxu0 %v8310
    %8446 = vmatpush.bf16.msra.mxu0 %v8308
    %8447 = vmatpush.bf16.msra.mxu0 %v8306
    %8448 = vmatmul.bf16.gmra.mxu0 %v7991
    %v8449 = vpop.f32.mrf.mxu0
    %v8450 = vadd.f32 %v8432, %v8449
    %v8451 = vpop.f32.mrf.mxu0
    %v8452 = vadd.f32 %v8434, %v8451
    %8453 = vmatmul.bf16.gmra.mxu0 %v7995
    %v8454 = vpop.f32.mrf.mxu0
    %v8455 = vadd.f32 %v8437, %v8454
    %v8456 = vpop.f32.mrf.mxu0
    %8457 = vdwg.mxu0
    %8458 = vmatpush.bf16.msra.mxu0 %v8273
    %8459 = vmatpush.bf16.msra.mxu0 %v8271
    %8460 = vmatpush.bf16.msra.mxu0 %v8269
    %8461 = vmatpush.bf16.msra.mxu0 %v8267
    %8462 = vmatpush.bf16.msra.mxu0 %v8265
    %8463 = vmatpush.bf16.msra.mxu0 %v8263
    %8464 = vmatpush.bf16.msra.mxu0 %v8261
    %8465 = vmatpush.bf16.msra.mxu0 %v8259
    %8466 = vmatmul.bf16.gmra.mxu0 %v7988
    %v8467 = vpop.f32.mrf.mxu0
    %v8468 = vadd.f32 %v8063, %v8467
    %v8469 = vpop.f32.mrf.mxu0
    %v8470 = vadd.f32 %v8063, %v8469
    %8471 = vmatmul.bf16.gmra.mxu0 %v7992
    %v8472 = vpop.f32.mrf.mxu0
    %v8473 = vadd.f32 %v8063, %v8472
    %v8474 = vpop.f32.mrf.mxu0
    %8475 = vdwg.mxu0
    %8476 = vmatpush.bf16.msra.mxu0 %v8289
    %8477 = vmatpush.bf16.msra.mxu0 %v8287
    %8478 = vmatpush.bf16.msra.mxu0 %v8285
    %8479 = vmatpush.bf16.msra.mxu0 %v8283
    %8480 = vmatpush.bf16.msra.mxu0 %v8281
    %8481 = vmatpush.bf16.msra.mxu0 %v8279
    %8482 = vmatpush.bf16.msra.mxu0 %v8277
    %8483 = vmatpush.bf16.msra.mxu0 %v8275
    %8484 = vmatmul.bf16.gmra.mxu0 %v7989
    %v8485 = vpop.f32.mrf.mxu0
    %v8486 = vadd.f32 %v8468, %v8485
    %v8487 = vpop.f32.mrf.mxu0
    %v8488 = vadd.f32 %v8470, %v8487
    %8489 = vmatmul.bf16.gmra.mxu0 %v7993
    %v8490 = vpop.f32.mrf.mxu0
    %v8491 = vadd.f32 %v8473, %v8490
    %v8492 = vpop.f32.mrf.mxu0
    %8493 = vdwg.mxu0
    %8494 = vmatpush.bf16.msra.mxu0 %v8305
    %8495 = vmatpush.bf16.msra.mxu0 %v8303
    %8496 = vmatpush.bf16.msra.mxu0 %v8301
    %8497 = vmatpush.bf16.msra.mxu0 %v8299
    %8498 = vmatpush.bf16.msra.mxu0 %v8297
    %8499 = vmatpush.bf16.msra.mxu0 %v8295
    %8500 = vmatpush.bf16.msra.mxu0 %v8293
    %8501 = vmatpush.bf16.msra.mxu0 %v8291
    %8502 = vmatmul.bf16.gmra.mxu0 %v7990
    %v8503 = vpop.f32.mrf.mxu0
    %v8504 = vadd.f32 %v8486, %v8503
    %v8505 = vpop.f32.mrf.mxu0
    %v8506 = vadd.f32 %v8488, %v8505
    %8507 = vmatmul.bf16.gmra.mxu0 %v7994
    %v8508 = vpop.f32.mrf.mxu0
    %v8509 = vadd.f32 %v8491, %v8508
    %v8510 = vpop.f32.mrf.mxu0
    %8511 = vdwg.mxu0
    %8512 = vmatpush.bf16.msra.mxu0 %v8321
    %8513 = vmatpush.bf16.msra.mxu0 %v8319
    %8514 = vmatpush.bf16.msra.mxu0 %v8317
    %8515 = vmatpush.bf16.msra.mxu0 %v8315
    %8516 = vmatpush.bf16.msra.mxu0 %v8313
    %8517 = vmatpush.bf16.msra.mxu0 %v8311
    %8518 = vmatpush.bf16.msra.mxu0 %v8309
    %8519 = vmatpush.bf16.msra.mxu0 %v8307
    %8520 = vmatmul.bf16.gmra.mxu0 %v7991
    %v8521 = vpop.f32.mrf.mxu0
    %v8522 = vadd.f32 %v8504, %v8521
    %v8523 = vpop.f32.mrf.mxu0
    %v8524 = vadd.f32 %v8506, %v8523
    %8525 = vmatmul.bf16.gmra.mxu0 %v7995
    %v8526 = vpop.f32.mrf.mxu0
    %v8527 = vadd.f32 %v8509, %v8526
    %v8528 = vpop.f32.mrf.mxu0
    %8529 = vdwg.mxu0
    %v8530 = vpack.c.bf16 %v8452, %v8450
    %v8531 = vpack.c.bf16 %v8524, %v8522
    %v8532 = vpack.c.bf16 %v8455, %v8455
    %v8533 = vpack.c.bf16 %v8527, %v8527
    %v8534 = vld [vmem:[#allocation14] sm:$0xf]
    %v8535 = vld [vmem:[#allocation14 + $0x4] sm:$0xf]
    %v8536 = vld [vmem:[#allocation14 + $0x8] sm:$0xf]
    %v8537 = vld [vmem:[#allocation14 + $0xc] sm:$0xf]
    %v8538 = vld [vmem:[#allocation14 + $0x10] sm:$0xf]
    %v8539 = vld [vmem:[#allocation14 + $0x14] sm:$0xf]
    %v8540 = vld [vmem:[#allocation14 + $0x18] sm:$0xf]
    %v8541 = vld [vmem:[#allocation14 + $0x1c] sm:$0xf]
    %v8542 = vld [vmem:[#allocation14 + $0x20] sm:$0xf]
    %v8543 = vld [vmem:[#allocation14 + $0x24] sm:$0xf]
    %v8544 = vld [vmem:[#allocation14 + $0x28] sm:$0xf]
    %v8545 = vld [vmem:[#allocation14 + $0x2c] sm:$0xf]
    %v8546 = vld [vmem:[#allocation14 + $0x30] sm:$0xf]
    %v8547 = vld [vmem:[#allocation14 + $0x34] sm:$0xf]
    %v8548 = vld [vmem:[#allocation14 + $0x38] sm:$0xf]
    %v8549 = vld [vmem:[#allocation14 + $0x3c] sm:$0xf]
    %v8550 = vld [vmem:[#allocation14 + $0x40] sm:$0xf]
    %v8551 = vld [vmem:[#allocation14 + $0x44] sm:$0xf]
    %v8552 = vld [vmem:[#allocation14 + $0x48] sm:$0xf]
    %v8553 = vld [vmem:[#allocation14 + $0x4c] sm:$0xf]
    %v8554 = vld [vmem:[#allocation14 + $0x50] sm:$0xf]
    %v8555 = vld [vmem:[#allocation14 + $0x54] sm:$0xf]
    %v8556 = vld [vmem:[#allocation14 + $0x58] sm:$0xf]
    %v8557 = vld [vmem:[#allocation14 + $0x5c] sm:$0xf]
    %v8558 = vld [vmem:[#allocation14 + $0x60] sm:$0xf]
    %v8559 = vld [vmem:[#allocation14 + $0x64] sm:$0xf]
    %v8560 = vld [vmem:[#allocation14 + $0x68] sm:$0xf]
    %v8561 = vld [vmem:[#allocation14 + $0x6c] sm:$0xf]
    %v8562 = vld [vmem:[#allocation14 + $0x70] sm:$0xf]
    %v8563 = vld [vmem:[#allocation14 + $0x74] sm:$0xf]
    %v8564 = vld [vmem:[#allocation14 + $0x78] sm:$0xf]
    %v8565 = vld [vmem:[#allocation14 + $0x7c] sm:$0xf]
    %v8566 = vld [vmem:[#allocation16] sm:$0x1]
    %v8568 = vperm.slane %v8566, 0
    %v8602 = vunpack.c.l.b16 %v8534
    %v8603 = vunpack.c.l.b16 %v8535
    %v8604 = vunpack.c.l.b16 %v8536
    %v8605 = vunpack.c.l.b16 %v8537
    %v8606 = vunpack.c.l.b16 %v8538
    %v8607 = vunpack.c.l.b16 %v8539
    %v8608 = vunpack.c.l.b16 %v8540
    %v8609 = vunpack.c.l.b16 %v8541
    %v8610 = vunpack.c.l.b16 %v8542
    %v8611 = vunpack.c.l.b16 %v8543
    %v8612 = vunpack.c.l.b16 %v8544
    %v8613 = vunpack.c.l.b16 %v8545
    %v8614 = vunpack.c.l.b16 %v8546
    %v8615 = vunpack.c.l.b16 %v8547
    %v8616 = vunpack.c.l.b16 %v8548
    %v8617 = vunpack.c.l.b16 %v8549
    %v8618 = vunpack.c.l.b16 %v8550
    %v8619 = vunpack.c.l.b16 %v8551
    %v8620 = vunpack.c.l.b16 %v8552
    %v8621 = vunpack.c.l.b16 %v8553
    %v8622 = vunpack.c.l.b16 %v8554
    %v8623 = vunpack.c.l.b16 %v8555
    %v8624 = vunpack.c.l.b16 %v8556
    %v8625 = vunpack.c.l.b16 %v8557
    %v8626 = vunpack.c.l.b16 %v8558
    %v8627 = vunpack.c.l.b16 %v8559
    %v8628 = vunpack.c.l.b16 %v8560
    %v8629 = vunpack.c.l.b16 %v8561
    %v8630 = vunpack.c.l.b16 %v8562
    %v8631 = vunpack.c.l.b16 %v8563
    %v8632 = vunpack.c.l.b16 %v8564
    %v8633 = vunpack.c.l.b16 %v8565
    %v8634 = vpack.c.b16 %v8603, %v8602
    %v8635 = vpack.c.b16 %v8605, %v8604
    %v8636 = vpack.c.b16 %v8607, %v8606
    %v8637 = vpack.c.b16 %v8609, %v8608
    %v8638 = vpack.c.b16 %v8611, %v8610
    %v8639 = vpack.c.b16 %v8613, %v8612
    %v8640 = vpack.c.b16 %v8615, %v8614
    %v8641 = vpack.c.b16 %v8617, %v8616
    %v8642 = vpack.c.b16 %v8619, %v8618
    %v8643 = vpack.c.b16 %v8621, %v8620
    %v8644 = vpack.c.b16 %v8623, %v8622
    %v8645 = vpack.c.b16 %v8625, %v8624
    %v8646 = vpack.c.b16 %v8627, %v8626
    %v8647 = vpack.c.b16 %v8629, %v8628
    %v8648 = vpack.c.b16 %v8631, %v8630
    %v8649 = vpack.c.b16 %v8633, %v8632
    %8666 = vmatpush.bf16.msra.mxu0 %v8641
    %8667 = vmatpush.bf16.msra.mxu0 %v8640
    %8668 = vmatpush.bf16.msra.mxu0 %v8639
    %8669 = vmatpush.bf16.msra.mxu0 %v8638
    %8670 = vmatpush.bf16.msra.mxu0 %v8637
    %8671 = vmatpush.bf16.msra.mxu0 %v8636
    %8672 = vmatpush.bf16.msra.mxu0 %v8635
    %8673 = vmatpush.bf16.msra.mxu0 %v8634
    %8674 = vmatmul.bf16.gmra.mxu0 %v8530
    %v8675 = vpop.f32.mrf.mxu0
    %v8676 = vadd.f32 %v8568, %v8675
    %v8677 = vpop.f32.mrf.mxu0
    %v8678 = vadd.f32 %v8568, %v8677
    %8679 = vmatmul.bf16.gmra.mxu0 %v8532
    %v8680 = vpop.f32.mrf.mxu0
    %v8681 = vadd.f32 %v8568, %v8680
    %v8682 = vpop.f32.mrf.mxu0
    %8683 = vdwg.mxu0
    %8684 = vmatpush.bf16.msra.mxu0 %v8649
    %8685 = vmatpush.bf16.msra.mxu0 %v8648
    %8686 = vmatpush.bf16.msra.mxu0 %v8647
    %8687 = vmatpush.bf16.msra.mxu0 %v8646
    %8688 = vmatpush.bf16.msra.mxu0 %v8645
    %8689 = vmatpush.bf16.msra.mxu0 %v8644
    %8690 = vmatpush.bf16.msra.mxu0 %v8643
    %8691 = vmatpush.bf16.msra.mxu0 %v8642
    %8692 = vmatmul.bf16.gmra.mxu0 %v8531
    %v8693 = vpop.f32.mrf.mxu0
    %v8694 = vadd.f32 %v8676, %v8693
    %v8695 = vpop.f32.mrf.mxu0
    %v8696 = vadd.f32 %v8678, %v8695
    %8697 = vmatmul.bf16.gmra.mxu0 %v8533
    %v8698 = vpop.f32.mrf.mxu0
    %v8699 = vadd.f32 %v8681, %v8698
    %v8700 = vpop.f32.mrf.mxu0
    %8701 = vdwg.mxu0
    %8702 = vst [vmem:[#allocation17] sm:$0xff] %v8694
    %8703 = vst [vmem:[#allocation17 + $0x8] sm:$0xff] %v8696
    %8704 = vst [vmem:[#allocation17 + $0x10] sm:$0xff] %v8699
    // Predicated region
    $region74: #{tpu_custom_call.1} parent=1 // pred_check
      _
    $region75: #{tpu_custom_call.1} parent=1 // pred_check_branch
      %8706 = sbr.rel (0) target = $region77
    $region76: #{tpu_custom_call.1} parent=1 // pred_region
      %8708 = vsyncadd [#allocation4], 0
      %s8709 = sshll.u32 [#allocation17], 4
      %s8710 = int_to_ptr.vmem [resolvable:$true] %s8709
      %s8711 = sshll.u32 %s9, 4
      %s8712 = int_to_ptr.hbm [resolvable:$true] %s8711
      %8717 = dma.vmem_to_hbm [thread:$0]  %s8710, 384, %s8712, [#allocation4], 128, 128, 8
    $region77: #{tpu_custom_call.1} parent=1 // pred_fallthru
      _
    // Predicated region
    $region78: #{tpu_custom_call.1} parent=1 // pred_check
      _
    $region79: #{tpu_custom_call.1} parent=1 // pred_check_branch
      %8719 = sbr.rel (0) target = $region81
    $region80: #{tpu_custom_call.1} parent=1 // pred_region
      %8721 = dma.done [#allocation4], 384
    $region81: #{tpu_custom_call.1} parent=1 // pred_fallthru
      _
    %8722 = vsyncpa [#allocation3], 1
    %8723 = vsyncpa [#allocation6], 1
    %8724 = vsyncpa [#allocation9], 1
    %8725 = vsyncpa [#allocation12], 1
    %8726 = vsyncpa [#allocation15], 1
    %8727 = vsyncpa [#allocation4], 1

</llo_original>
